<compile_context>
chip_gen: v6e
topology: v6e:2x2x1
jax: 0.10.0
libtpu: 0.0.40
codegen_flags: <defaults>
</compile_context>

<pallas_src>
import jax
import jax.numpy as jnp
from jax import lax
from jax.experimental import pallas as pl
from jax.experimental.pallas import tpu as pltpu

HIDDEN = 100      # logical hidden size (matches the PyTorch module)
H_PAD = 128       # lane-padded hidden size used inside the kernel
N_STEPS = 8       # fixed dopri5 steps over [0, 1]
_DT = 1.0 / N_STEPS

# Dormand-Prince coefficients with dt folded in at Python level
# (autonomous ODE -> the c's are unused; b2 == b7 == 0).
DA21 = _DT * (1.0 / 5.0)
DA31, DA32 = _DT * (3.0 / 40.0), _DT * (9.0 / 40.0)
DA41, DA42, DA43 = _DT * (44.0 / 45.0), _DT * (-56.0 / 15.0), _DT * (32.0 / 9.0)
DA51, DA52, DA53, DA54 = (_DT * (19372.0 / 6561.0), _DT * (-25360.0 / 2187.0),
                          _DT * (64448.0 / 6561.0), _DT * (-212.0 / 729.0))
DA61, DA62, DA63, DA64, DA65 = (_DT * (9017.0 / 3168.0), _DT * (-355.0 / 33.0),
                                _DT * (46732.0 / 5247.0), _DT * (49.0 / 176.0),
                                _DT * (-5103.0 / 18656.0))
DB1, DB3, DB4, DB5, DB6 = (_DT * (35.0 / 384.0), _DT * (500.0 / 1113.0),
                           _DT * (125.0 / 192.0), _DT * (-2187.0 / 6784.0),
                           _DT * (11.0 / 84.0))
# y_N = y_0 + h2_tot @ w3 + _B3_SCALE * b3   (sum of the b_i is exactly 1).
_B3_SCALE = N_STEPS * (DB1 + DB3 + DB4 + DB5 + DB6)


def _ode_kernel(state_ref, action_ref, w1s_ref, w1a_ref, b1_ref,
                w2_ref, b2_ref, w31_ref, c31_ref, w3_ref, b3_ref, out_ref):
    state0 = state_ref[...].astype(jnp.float32)             # (TB, S)
    action = action_ref[...].astype(jnp.float32)            # (TB, A)

    tb, s_dim = state0.shape
    h_dim = w2_ref.shape[0]

    # Trajectory constants: d(action)/dt == 0, so its layer-1 contribution is
    # fixed.  Hoist the (TB, H) broadcasts once per tile (no CSE in JAX).
    act_contrib = (jnp.dot(action, w1a_ref[...],
                           preferred_element_type=jnp.float32) + b1_ref[...])
    b2_full = jnp.broadcast_to(b2_ref[...], (tb, h_dim))
    c31_full = jnp.broadcast_to(c31_ref[...], (tb, h_dim))

    def h2_of(pre1_state):
        # pre1_state = (stage input) @ w1s, built on the VPU from p and the q's.
        h1 = jnp.maximum(pre1_state + act_contrib, 0.0)
        z2 = jnp.dot(h1, w2_ref[...], preferred_element_type=jnp.float32) + b2_full
        return jnp.maximum(z2, 0.0)

    def q_of(h2):
        # q = k @ w1s where k = h2 @ w3 + b3  ->  q = h2 @ W31 + c31.
        return jnp.dot(h2, w31_ref[...],
                       preferred_element_type=jnp.float32) + c31_full

    # Carried quantities: p = y @ w1s and the running db-weighted h2 sum.
    p0 = jnp.dot(state0, w1s_ref[...], preferred_element_type=jnp.float32)

    def step(_, carry):
        p, h2_tot = carry

        h2_1 = h2_of(p)
        q1 = q_of(h2_1)
        h2_tot = h2_tot + DB1 * h2_1

        h2_2 = h2_of(p + DA21 * q1)
        q2 = q_of(h2_2)                    # DB2 == 0: not accumulated

        h2_3 = h2_of(p + DA31 * q1 + DA32 * q2)
        q3 = q_of(h2_3)
        h2_tot = h2_tot + DB3 * h2_3

        h2_4 = h2_of(p + DA41 * q1 + DA42 * q2 + DA43 * q3)
        q4 = q_of(h2_4)
        h2_tot = h2_tot + DB4 * h2_4

        h2_5 = h2_of(p + DA51 * q1 + DA52 * q2 + DA53 * q3 + DA54 * q4)
        q5 = q_of(h2_5)
        h2_tot = h2_tot + DB5 * h2_5

        h2_6 = h2_of(p + DA61 * q1 + DA62 * q2 + DA63 * q3 + DA64 * q4
                     + DA65 * q5)
        q6 = q_of(h2_6)
        h2_tot = h2_tot + DB6 * h2_6

        p = p + DB1 * q1 + DB3 * q3 + DB4 * q4 + DB5 * q5 + DB6 * q6
        return p, h2_tot

    # Unrolled: give the scheduler visibility across the 8 dependent RK steps.
    _, h2_tot = lax.fori_loop(
        0, N_STEPS, step, (p0, jnp.zeros((tb, h_dim), jnp.float32)),
        unroll=True)

    # Single w3 projection per tile (linear in h2), plus the folded b3 terms.
    y_out = (state0
             + jnp.dot(h2_tot, w3_ref[...], preferred_element_type=jnp.float32)
             + _B3_SCALE * b3_ref[...])
    out_ref[...] = y_out.astype(out_ref.dtype)


def _device_num_cores():
    """Best-effort TensorCore count of device 0 (v7x/megacore -> 2, else 1)."""
    try:
        d = jax.devices()[0]
        for attr in ("num_cores", "core_count"):
            v = getattr(d, attr, None)
            if isinstance(v, int) and v > 0:
                return v
    except Exception:
        pass
    return 1


def neural_ode_dynamics_forward(state, action, params, *, block_batch=32,
                                min_tiles=None):
    """Equivalent of NeuralODEDynamicsModel.forward: returns traj[1][:, :state_dim].

    `params` are the lane-padded (H_PAD) weights from init_params()[0].
    block_batch: batch-tile upper bound; 32 keeps the unrolled RK live set in
    the 64-vreg file (sweep 32-64 on v6e/v7x).
    """
    w1s, w1a, b1, w2, b2, w3, b3 = params
    B, S = state.shape
    A = action.shape[1]

    # Precompute W31 = w3 @ w1s and c31 = b3 @ w1s (zero padding is preserved:
    # padded rows of w3 / padded cols of w1s are zero).  HIGHEST precision so
    # the precompute itself adds no bf16 truncation.
    w31 = jnp.dot(w3, w1s, precision=lax.Precision.HIGHEST)   # (H_PAD, H_PAD)
    c31 = jnp.dot(b3, w1s, precision=lax.Precision.HIGHEST)   # (1, H_PAD)

    # --- balanced batch tiling (multiple of 8 sublanes) ---------------------
    if min_tiles is None:
        min_tiles = _device_num_cores()      # v7x: 2 TCs -> want >=2 tiles
    num_tiles = pl.cdiv(B, block_batch)
    if B >= 8 * min_tiles:                   # only split if each tile gets work
        num_tiles = max(num_tiles, min_tiles)
    tb = ((pl.cdiv(B, num_tiles) + 7) // 8) * 8
    num_tiles = pl.cdiv(B, tb)
    b_pad = num_tiles * tb

    if b_pad != B:
        pad = b_pad - B
        state_p = jnp.pad(state, ((0, pad), (0, 0)))
        action_p = jnp.pad(action, ((0, pad), (0, 0)))
    else:
        state_p, action_p = state, action

    batch_tile = lambda d: pl.BlockSpec((tb, d), lambda i: (i, 0))
    resident = lambda a: pl.BlockSpec(a.shape, lambda i: (0, 0))  # VMEM-resident

    # Note: per the perf review, no vmem_limit_bytes / Buffered() tuning --
    # total VMEM use is ~130 KB of weights + a few KB per double-buffered tile.
    out = pl.pallas_call(
        _ode_kernel,
        out_shape=jax.ShapeDtypeStruct((b_pad, S), state.dtype),
        grid=(num_tiles,),
        in_specs=[batch_tile(S), batch_tile(A),
                  resident(w1s), resident(w1a), resident(b1),
                  resident(w2), resident(b2),
                  resident(w31), resident(c31),
                  resident(w3), resident(b3)],
        out_specs=pl.BlockSpec((tb, S), lambda i: (i, 0)),
        compiler_params=pltpu.CompilerParams(
            dimension_semantics=("parallel",)),
    )(state_p, action_p, w1s, w1a, b1, w2, b2, w31, c31, w3, b3)
    return out[:B]


def init_params(key, state_dim, action_dim):
    """Deterministic init mimicking torch.nn.Linear (uniform +/- 1/sqrt(fan_in)).

    Returns (padded_params, raw_params):
      padded_params: kernel weights, hidden dim zero-padded to H_PAD=128,
                     stored as (in_features, out_features).
      raw_params:    unpadded (HIDDEN=100) weights for the pure-JAX reference.
    """
    d_in = state_dim + action_dim
    ks = jax.random.split(key, 6)

    def lin(kw, kb, fan_in, fan_out):
        bound = 1.0 / jnp.sqrt(jnp.float32(fan_in))
        w = jax.random.uniform(kw, (fan_in, fan_out), jnp.float32, -bound, bound)
        b = jax.random.uniform(kb, (1, fan_out), jnp.float32, -bound, bound)
        return w, b

    w1, b1 = lin(ks[0], ks[1], d_in, HIDDEN)
    w2, b2 = lin(ks[2], ks[3], HIDDEN, HIDDEN)
    w3, b3 = lin(ks[4], ks[5], HIDDEN, state_dim)

    # Split first-layer weight into state / action parts (cat([state, action]) @ W1).
    w1s, w1a = w1[:state_dim], w1[state_dim:]
    raw = (w1s, w1a, b1, w2, b2, w3, b3)

    # Zero-pad hidden dim 100 -> 128.  Zeros keep results identical:
    #   relu(0 + 0) == 0 in padded lanes, and padded w2/w3 rows are zero.
    ph = H_PAD - HIDDEN
    padded = (
        jnp.pad(w1s, ((0, 0), (0, ph))),          # (S, H_PAD)
        jnp.pad(w1a, ((0, 0), (0, ph))),          # (A, H_PAD)
        jnp.pad(b1, ((0, 0), (0, ph))),           # (1, H_PAD)
        jnp.pad(w2, ((0, ph), (0, ph))),          # (H_PAD, H_PAD)
        jnp.pad(b2, ((0, 0), (0, ph))),           # (1, H_PAD)
        jnp.pad(w3, ((0, ph), (0, 0))),           # (H_PAD, S)
        b3,                                       # (1, S)
    )
    return padded, raw


def _reference(state, action, raw_params):
    """Pure-JAX fixed-step dopri5 reference (unpadded HIDDEN=100 weights,
    standard un-restructured formulation)."""
    w1s, w1a, b1, w2, b2, w3, b3 = raw_params
    S = state.shape[1]

    def f(x_aug):
        s, a = x_aug[:, :S], x_aug[:, S:]
        h1 = jnp.maximum(s @ w1s + a @ w1a + b1, 0.0)
        h2 = jnp.maximum(h1 @ w2 + b2, 0.0)
        dxdt = h2 @ w3 + b3
        return jnp.concatenate([dxdt, jnp.zeros_like(a)], axis=-1)

    y = jnp.concatenate([state, action], axis=-1)
    for _ in range(N_STEPS):
        k1 = f(y)
        k2 = f(y + DA21 * k1)
        k3 = f(y + DA31 * k1 + DA32 * k2)
        k4 = f(y + DA41 * k1 + DA42 * k2 + DA43 * k3)
        k5 = f(y + DA51 * k1 + DA52 * k2 + DA53 * k3 + DA54 * k4)
        k6 = f(y + DA61 * k1 + DA62 * k2 + DA63 * k3 + DA64 * k4 + DA65 * k5)
        y = y + (DB1 * k1 + DB3 * k3 + DB4 * k4 + DB5 * k5 + DB6 * k6)
    return y[:, :S]


if __name__ == "__main__":
    batch, state_dim, action_dim = 2, 4, 2

    key = jax.random.PRNGKey(0)
    k_state, k_action, k_params = jax.random.split(key, 3)
    state = jax.random.normal(k_state, (batch, state_dim), jnp.float32)
    action = jax.random.normal(k_action, (batch, action_dim), jnp.float32)
    padded_params, raw_params = init_params(k_params, state_dim, action_dim)

    out = neural_ode_dynamics_forward(state, action, padded_params)
    out = jax.block_until_ready(out)

    ref = _reference(state, action, raw_params)
    assert out.shape == (batch, state_dim)
    assert jnp.allclose(out, ref, atol=1e-4, rtol=1e-4), (out, ref)
    print("KERNEL_OK")
</pallas_src>

<mosaic_0001>
module attributes {stable_mosaic.version = 11 : i64} {
  func.func @_ode_kernel(%arg0: i32, %arg1: memref<8x4xf32, #tpu.memory_space<vmem>>, %arg2: memref<8x2xf32, #tpu.memory_space<vmem>>, %arg3: memref<4x128xf32, #tpu.memory_space<vmem>>, %arg4: memref<2x128xf32, #tpu.memory_space<vmem>>, %arg5: memref<1x128xf32, #tpu.memory_space<vmem>>, %arg6: memref<128x128xf32, #tpu.memory_space<vmem>>, %arg7: memref<1x128xf32, #tpu.memory_space<vmem>>, %arg8: memref<128x128xf32, #tpu.memory_space<vmem>>, %arg9: memref<1x128xf32, #tpu.memory_space<vmem>>, %arg10: memref<128x4xf32, #tpu.memory_space<vmem>>, %arg11: memref<1x4xf32, #tpu.memory_space<vmem>>, %arg12: memref<8x4xf32, #tpu.memory_space<vmem>>) attributes {dimension_semantics = [#tpu.dimension_semantics<parallel>], iteration_bounds = array<i64: 1>, scalar_prefetch = 0 : i64, scratch_operands = 0 : i64, tpu.core_type = #tpu.core_type<tc>, window_params = [{transform_indices = @transform_0, window_bounds = array<i64: 8, 4>}, {transform_indices = @transform_1, window_bounds = array<i64: 8, 2>}, {pipeline_mode = #tpu.pipeline_mode<synchronous>, transform_indices = @transform_2, window_bounds = array<i64: 4, 128>}, {pipeline_mode = #tpu.pipeline_mode<synchronous>, transform_indices = @transform_3, window_bounds = array<i64: 2, 128>}, {pipeline_mode = #tpu.pipeline_mode<synchronous>, transform_indices = @transform_4, window_bounds = array<i64: 1, 128>}, {pipeline_mode = #tpu.pipeline_mode<synchronous>, transform_indices = @transform_5, window_bounds = array<i64: 128, 128>}, {pipeline_mode = #tpu.pipeline_mode<synchronous>, transform_indices = @transform_6, window_bounds = array<i64: 1, 128>}, {pipeline_mode = #tpu.pipeline_mode<synchronous>, transform_indices = @transform_7, window_bounds = array<i64: 128, 128>}, {pipeline_mode = #tpu.pipeline_mode<synchronous>, transform_indices = @transform_8, window_bounds = array<i64: 1, 128>}, {pipeline_mode = #tpu.pipeline_mode<synchronous>, transform_indices = @transform_9, window_bounds = array<i64: 128, 4>}, {pipeline_mode = #tpu.pipeline_mode<synchronous>, transform_indices = @transform_10, window_bounds = array<i64: 1, 4>}, {transform_indices = @transform_11, window_bounds = array<i64: 8, 4>}]} {
    %c0 = arith.constant 0 : index
    %c0_0 = arith.constant 0 : index
    %0 = vector.load %arg1[%c0, %c0_0] : memref<8x4xf32, #tpu.memory_space<vmem>>, vector<8x4xf32>
    %c0_1 = arith.constant 0 : index
    %c0_2 = arith.constant 0 : index
    %1 = vector.load %arg2[%c0_1, %c0_2] : memref<8x2xf32, #tpu.memory_space<vmem>>, vector<8x2xf32>
    %c0_3 = arith.constant 0 : index
    %c0_4 = arith.constant 0 : index
    %2 = vector.load %arg4[%c0_3, %c0_4] : memref<2x128xf32, #tpu.memory_space<vmem>>, vector<2x128xf32>
    %cst = arith.constant dense<0.000000e+00> : vector<8x128xf32>
    %3 = tpu.matmul %1, %2, %cst {dimension_numbers = #tpu.dot_dimension_numbers<[1], [0], [0], [1], [0, 0, 1, 1], [], []>} : vector<8x2xf32>, vector<2x128xf32>, vector<8x128xf32> -> vector<8x128xf32>
    %c0_5 = arith.constant 0 : index
    %c0_6 = arith.constant 0 : index
    %4 = vector.load %arg5[%c0_5, %c0_6] : memref<1x128xf32, #tpu.memory_space<vmem>>, vector<1x128xf32>
    %5 = vector.broadcast %4 : vector<1x128xf32> to vector<8x128xf32>
    %6 = arith.addf %3, %5 : vector<8x128xf32>
    %c0_7 = arith.constant 0 : index
    %c0_8 = arith.constant 0 : index
    %7 = vector.load %arg7[%c0_7, %c0_8] : memref<1x128xf32, #tpu.memory_space<vmem>>, vector<1x128xf32>
    %8 = vector.shape_cast %7 : vector<1x128xf32> to vector<1x128xf32>
    %9 = vector.broadcast %8 : vector<1x128xf32> to vector<8x128xf32>
    %c0_9 = arith.constant 0 : index
    %c0_10 = arith.constant 0 : index
    %10 = vector.load %arg9[%c0_9, %c0_10] : memref<1x128xf32, #tpu.memory_space<vmem>>, vector<1x128xf32>
    %11 = vector.shape_cast %10 : vector<1x128xf32> to vector<1x128xf32>
    %12 = vector.broadcast %11 : vector<1x128xf32> to vector<8x128xf32>
    %c0_11 = arith.constant 0 : index
    %c0_12 = arith.constant 0 : index
    %13 = vector.load %arg3[%c0_11, %c0_12] : memref<4x128xf32, #tpu.memory_space<vmem>>, vector<4x128xf32>
    %cst_13 = arith.constant dense<0.000000e+00> : vector<8x128xf32>
    %14 = tpu.matmul %0, %13, %cst_13 {dimension_numbers = #tpu.dot_dimension_numbers<[1], [0], [0], [1], [0, 0, 1, 1], [], []>} : vector<8x4xf32>, vector<4x128xf32>, vector<8x128xf32> -> vector<8x128xf32>
    %cst_14 = arith.constant 0.000000e+00 : f32
    %15 = vector.broadcast %cst_14 : f32 to vector<8x128xf32>
    %c0_i32 = arith.constant 0 : i32
    %16 = arith.addf %14, %6 : vector<8x128xf32>
    %cst_15 = arith.constant 0.000000e+00 : f32
    %17 = vector.broadcast %cst_15 : f32 to vector<8x128xf32>
    %18 = arith.maximumf %16, %17 : vector<8x128xf32>
    %c0_16 = arith.constant 0 : index
    %c0_17 = arith.constant 0 : index
    %19 = vector.load %arg6[%c0_16, %c0_17] : memref<128x128xf32, #tpu.memory_space<vmem>>, vector<128x128xf32>
    %cst_18 = arith.constant dense<0.000000e+00> : vector<8x128xf32>
    %20 = tpu.matmul %18, %19, %cst_18 {dimension_numbers = #tpu.dot_dimension_numbers<[1], [0], [0], [1], [0, 0, 1, 1], [], []>} : vector<8x128xf32>, vector<128x128xf32>, vector<8x128xf32> -> vector<8x128xf32>
    %21 = arith.addf %20, %9 : vector<8x128xf32>
    %cst_19 = arith.constant 0.000000e+00 : f32
    %22 = vector.broadcast %cst_19 : f32 to vector<8x128xf32>
    %23 = arith.maximumf %21, %22 : vector<8x128xf32>
    %c0_20 = arith.constant 0 : index
    %c0_21 = arith.constant 0 : index
    %24 = vector.load %arg8[%c0_20, %c0_21] : memref<128x128xf32, #tpu.memory_space<vmem>>, vector<128x128xf32>
    %cst_22 = arith.constant dense<0.000000e+00> : vector<8x128xf32>
    %25 = tpu.matmul %23, %24, %cst_22 {dimension_numbers = #tpu.dot_dimension_numbers<[1], [0], [0], [1], [0, 0, 1, 1], [], []>} : vector<8x128xf32>, vector<128x128xf32>, vector<8x128xf32> -> vector<8x128xf32>
    %26 = arith.addf %25, %12 : vector<8x128xf32>
    %cst_23 = arith.constant 0.0113932295 : f32
    %27 = vector.broadcast %cst_23 : f32 to vector<8x128xf32>
    %28 = arith.mulf %27, %23 : vector<8x128xf32>
    %29 = arith.addf %15, %28 : vector<8x128xf32>
    %cst_24 = arith.constant 2.500000e-02 : f32
    %30 = vector.broadcast %cst_24 : f32 to vector<8x128xf32>
    %31 = arith.mulf %30, %26 : vector<8x128xf32>
    %32 = arith.addf %14, %31 : vector<8x128xf32>
    %33 = arith.addf %32, %6 : vector<8x128xf32>
    %cst_25 = arith.constant 0.000000e+00 : f32
    %34 = vector.broadcast %cst_25 : f32 to vector<8x128xf32>
    %35 = arith.maximumf %33, %34 : vector<8x128xf32>
    %c0_26 = arith.constant 0 : index
    %c0_27 = arith.constant 0 : index
    %36 = vector.load %arg6[%c0_26, %c0_27] : memref<128x128xf32, #tpu.memory_space<vmem>>, vector<128x128xf32>
    %cst_28 = arith.constant dense<0.000000e+00> : vector<8x128xf32>
    %37 = tpu.matmul %35, %36, %cst_28 {dimension_numbers = #tpu.dot_dimension_numbers<[1], [0], [0], [1], [0, 0, 1, 1], [], []>} : vector<8x128xf32>, vector<128x128xf32>, vector<8x128xf32> -> vector<8x128xf32>
    %38 = arith.addf %37, %9 : vector<8x128xf32>
    %cst_29 = arith.constant 0.000000e+00 : f32
    %39 = vector.broadcast %cst_29 : f32 to vector<8x128xf32>
    %40 = arith.maximumf %38, %39 : vector<8x128xf32>
    %c0_30 = arith.constant 0 : index
    %c0_31 = arith.constant 0 : index
    %41 = vector.load %arg8[%c0_30, %c0_31] : memref<128x128xf32, #tpu.memory_space<vmem>>, vector<128x128xf32>
    %cst_32 = arith.constant dense<0.000000e+00> : vector<8x128xf32>
    %42 = tpu.matmul %40, %41, %cst_32 {dimension_numbers = #tpu.dot_dimension_numbers<[1], [0], [0], [1], [0, 0, 1, 1], [], []>} : vector<8x128xf32>, vector<128x128xf32>, vector<8x128xf32> -> vector<8x128xf32>
    %43 = arith.addf %42, %12 : vector<8x128xf32>
    %cst_33 = arith.constant 9.375000e-03 : f32
    %44 = vector.broadcast %cst_33 : f32 to vector<8x128xf32>
    %45 = arith.mulf %44, %26 : vector<8x128xf32>
    %46 = arith.addf %14, %45 : vector<8x128xf32>
    %cst_34 = arith.constant 2.812500e-02 : f32
    %47 = vector.broadcast %cst_34 : f32 to vector<8x128xf32>
    %48 = arith.mulf %47, %43 : vector<8x128xf32>
    %49 = arith.addf %46, %48 : vector<8x128xf32>
    %50 = arith.addf %49, %6 : vector<8x128xf32>
    %cst_35 = arith.constant 0.000000e+00 : f32
    %51 = vector.broadcast %cst_35 : f32 to vector<8x128xf32>
    %52 = arith.maximumf %50, %51 : vector<8x128xf32>
    %c0_36 = arith.constant 0 : index
    %c0_37 = arith.constant 0 : index
    %53 = vector.load %arg6[%c0_36, %c0_37] : memref<128x128xf32, #tpu.memory_space<vmem>>, vector<128x128xf32>
    %cst_38 = arith.constant dense<0.000000e+00> : vector<8x128xf32>
    %54 = tpu.matmul %52, %53, %cst_38 {dimension_numbers = #tpu.dot_dimension_numbers<[1], [0], [0], [1], [0, 0, 1, 1], [], []>} : vector<8x128xf32>, vector<128x128xf32>, vector<8x128xf32> -> vector<8x128xf32>
    %55 = arith.addf %54, %9 : vector<8x128xf32>
    %cst_39 = arith.constant 0.000000e+00 : f32
    %56 = vector.broadcast %cst_39 : f32 to vector<8x128xf32>
    %57 = arith.maximumf %55, %56 : vector<8x128xf32>
    %c0_40 = arith.constant 0 : index
    %c0_41 = arith.constant 0 : index
    %58 = vector.load %arg8[%c0_40, %c0_41] : memref<128x128xf32, #tpu.memory_space<vmem>>, vector<128x128xf32>
    %cst_42 = arith.constant dense<0.000000e+00> : vector<8x128xf32>
    %59 = tpu.matmul %57, %58, %cst_42 {dimension_numbers = #tpu.dot_dimension_numbers<[1], [0], [0], [1], [0, 0, 1, 1], [], []>} : vector<8x128xf32>, vector<128x128xf32>, vector<8x128xf32> -> vector<8x128xf32>
    %60 = arith.addf %59, %12 : vector<8x128xf32>
    %cst_43 = arith.constant 0.0561545379 : f32
    %61 = vector.broadcast %cst_43 : f32 to vector<8x128xf32>
    %62 = arith.mulf %61, %57 : vector<8x128xf32>
    %63 = arith.addf %29, %62 : vector<8x128xf32>
    %cst_44 = arith.constant 0.122222222 : f32
    %64 = vector.broadcast %cst_44 : f32 to vector<8x128xf32>
    %65 = arith.mulf %64, %26 : vector<8x128xf32>
    %66 = arith.addf %14, %65 : vector<8x128xf32>
    %cst_45 = arith.constant -0.466666669 : f32
    %67 = vector.broadcast %cst_45 : f32 to vector<8x128xf32>
    %68 = arith.mulf %67, %43 : vector<8x128xf32>
    %69 = arith.addf %66, %68 : vector<8x128xf32>
    %cst_46 = arith.constant 0.444444448 : f32
    %70 = vector.broadcast %cst_46 : f32 to vector<8x128xf32>
    %71 = arith.mulf %70, %60 : vector<8x128xf32>
    %72 = arith.addf %69, %71 : vector<8x128xf32>
    %73 = arith.addf %72, %6 : vector<8x128xf32>
    %cst_47 = arith.constant 0.000000e+00 : f32
    %74 = vector.broadcast %cst_47 : f32 to vector<8x128xf32>
    %75 = arith.maximumf %73, %74 : vector<8x128xf32>
    %c0_48 = arith.constant 0 : index
    %c0_49 = arith.constant 0 : index
    %76 = vector.load %arg6[%c0_48, %c0_49] : memref<128x128xf32, #tpu.memory_space<vmem>>, vector<128x128xf32>
    %cst_50 = arith.constant dense<0.000000e+00> : vector<8x128xf32>
    %77 = tpu.matmul %75, %76, %cst_50 {dimension_numbers = #tpu.dot_dimension_numbers<[1], [0], [0], [1], [0, 0, 1, 1], [], []>} : vector<8x128xf32>, vector<128x128xf32>, vector<8x128xf32> -> vector<8x128xf32>
    %78 = arith.addf %77, %9 : vector<8x128xf32>
    %cst_51 = arith.constant 0.000000e+00 : f32
    %79 = vector.broadcast %cst_51 : f32 to vector<8x128xf32>
    %80 = arith.maximumf %78, %79 : vector<8x128xf32>
    %c0_52 = arith.constant 0 : index
    %c0_53 = arith.constant 0 : index
    %81 = vector.load %arg8[%c0_52, %c0_53] : memref<128x128xf32, #tpu.memory_space<vmem>>, vector<128x128xf32>
    %cst_54 = arith.constant dense<0.000000e+00> : vector<8x128xf32>
    %82 = tpu.matmul %80, %81, %cst_54 {dimension_numbers = #tpu.dot_dimension_numbers<[1], [0], [0], [1], [0, 0, 1, 1], [], []>} : vector<8x128xf32>, vector<128x128xf32>, vector<8x128xf32> -> vector<8x128xf32>
    %83 = arith.addf %82, %12 : vector<8x128xf32>
    %cst_55 = arith.constant 0.0813802108 : f32
    %84 = vector.broadcast %cst_55 : f32 to vector<8x128xf32>
    %85 = arith.mulf %84, %80 : vector<8x128xf32>
    %86 = arith.addf %63, %85 : vector<8x128xf32>
    %cst_56 = arith.constant 0.369074821 : f32
    %87 = vector.broadcast %cst_56 : f32 to vector<8x128xf32>
    %88 = arith.mulf %87, %26 : vector<8x128xf32>
    %89 = arith.addf %14, %88 : vector<8x128xf32>
    %cst_57 = arith.constant -1.44947422 : f32
    %90 = vector.broadcast %cst_57 : f32 to vector<8x128xf32>
    %91 = arith.mulf %90, %43 : vector<8x128xf32>
    %92 = arith.addf %89, %91 : vector<8x128xf32>
    %cst_58 = arith.constant 1.22786164 : f32
    %93 = vector.broadcast %cst_58 : f32 to vector<8x128xf32>
    %94 = arith.mulf %93, %60 : vector<8x128xf32>
    %95 = arith.addf %92, %94 : vector<8x128xf32>
    %cst_59 = arith.constant -0.0363511667 : f32
    %96 = vector.broadcast %cst_59 : f32 to vector<8x128xf32>
    %97 = arith.mulf %96, %83 : vector<8x128xf32>
    %98 = arith.addf %95, %97 : vector<8x128xf32>
    %99 = arith.addf %98, %6 : vector<8x128xf32>
    %cst_60 = arith.constant 0.000000e+00 : f32
    %100 = vector.broadcast %cst_60 : f32 to vector<8x128xf32>
    %101 = arith.maximumf %99, %100 : vector<8x128xf32>
    %c0_61 = arith.constant 0 : index
    %c0_62 = arith.constant 0 : index
    %102 = vector.load %arg6[%c0_61, %c0_62] : memref<128x128xf32, #tpu.memory_space<vmem>>, vector<128x128xf32>
    %cst_63 = arith.constant dense<0.000000e+00> : vector<8x128xf32>
    %103 = tpu.matmul %101, %102, %cst_63 {dimension_numbers = #tpu.dot_dimension_numbers<[1], [0], [0], [1], [0, 0, 1, 1], [], []>} : vector<8x128xf32>, vector<128x128xf32>, vector<8x128xf32> -> vector<8x128xf32>
    %104 = arith.addf %103, %9 : vector<8x128xf32>
    %cst_64 = arith.constant 0.000000e+00 : f32
    %105 = vector.broadcast %cst_64 : f32 to vector<8x128xf32>
    %106 = arith.maximumf %104, %105 : vector<8x128xf32>
    %c0_65 = arith.constant 0 : index
    %c0_66 = arith.constant 0 : index
    %107 = vector.load %arg8[%c0_65, %c0_66] : memref<128x128xf32, #tpu.memory_space<vmem>>, vector<128x128xf32>
    %cst_67 = arith.constant dense<0.000000e+00> : vector<8x128xf32>
    %108 = tpu.matmul %106, %107, %cst_67 {dimension_numbers = #tpu.dot_dimension_numbers<[1], [0], [0], [1], [0, 0, 1, 1], [], []>} : vector<8x128xf32>, vector<128x128xf32>, vector<8x128xf32> -> vector<8x128xf32>
    %109 = arith.addf %108, %12 : vector<8x128xf32>
    %cst_68 = arith.constant -0.040297024 : f32
    %110 = vector.broadcast %cst_68 : f32 to vector<8x128xf32>
    %111 = arith.mulf %110, %106 : vector<8x128xf32>
    %112 = arith.addf %86, %111 : vector<8x128xf32>
    %cst_69 = arith.constant 0.355784416 : f32
    %113 = vector.broadcast %cst_69 : f32 to vector<8x128xf32>
    %114 = arith.mulf %113, %26 : vector<8x128xf32>
    %115 = arith.addf %14, %114 : vector<8x128xf32>
    %cst_70 = arith.constant -1.344697 : f32
    %116 = vector.broadcast %cst_70 : f32 to vector<8x128xf32>
    %117 = arith.mulf %116, %43 : vector<8x128xf32>
    %118 = arith.addf %115, %117 : vector<8x128xf32>
    %cst_71 = arith.constant 1.11330283 : f32
    %119 = vector.broadcast %cst_71 : f32 to vector<8x128xf32>
    %120 = arith.mulf %119, %60 : vector<8x128xf32>
    %121 = arith.addf %118, %120 : vector<8x128xf32>
    %cst_72 = arith.constant 0.0348011367 : f32
    %122 = vector.broadcast %cst_72 : f32 to vector<8x128xf32>
    %123 = arith.mulf %122, %83 : vector<8x128xf32>
    %124 = arith.addf %121, %123 : vector<8x128xf32>
    %cst_73 = arith.constant -0.0341914147 : f32
    %125 = vector.broadcast %cst_73 : f32 to vector<8x128xf32>
    %126 = arith.mulf %125, %109 : vector<8x128xf32>
    %127 = arith.addf %124, %126 : vector<8x128xf32>
    %128 = arith.addf %127, %6 : vector<8x128xf32>
    %cst_74 = arith.constant 0.000000e+00 : f32
    %129 = vector.broadcast %cst_74 : f32 to vector<8x128xf32>
    %130 = arith.maximumf %128, %129 : vector<8x128xf32>
    %c0_75 = arith.constant 0 : index
    %c0_76 = arith.constant 0 : index
    %131 = vector.load %arg6[%c0_75, %c0_76] : memref<128x128xf32, #tpu.memory_space<vmem>>, vector<128x128xf32>
    %cst_77 = arith.constant dense<0.000000e+00> : vector<8x128xf32>
    %132 = tpu.matmul %130, %131, %cst_77 {dimension_numbers = #tpu.dot_dimension_numbers<[1], [0], [0], [1], [0, 0, 1, 1], [], []>} : vector<8x128xf32>, vector<128x128xf32>, vector<8x128xf32> -> vector<8x128xf32>
    %133 = arith.addf %132, %9 : vector<8x128xf32>
    %cst_78 = arith.constant 0.000000e+00 : f32
    %134 = vector.broadcast %cst_78 : f32 to vector<8x128xf32>
    %135 = arith.maximumf %133, %134 : vector<8x128xf32>
    %c0_79 = arith.constant 0 : index
    %c0_80 = arith.constant 0 : index
    %136 = vector.load %arg8[%c0_79, %c0_80] : memref<128x128xf32, #tpu.memory_space<vmem>>, vector<128x128xf32>
    %cst_81 = arith.constant dense<0.000000e+00> : vector<8x128xf32>
    %137 = tpu.matmul %135, %136, %cst_81 {dimension_numbers = #tpu.dot_dimension_numbers<[1], [0], [0], [1], [0, 0, 1, 1], [], []>} : vector<8x128xf32>, vector<128x128xf32>, vector<8x128xf32> -> vector<8x128xf32>
    %138 = arith.addf %137, %12 : vector<8x128xf32>
    %cst_82 = arith.constant 0.0163690485 : f32
    %139 = vector.broadcast %cst_82 : f32 to vector<8x128xf32>
    %140 = arith.mulf %139, %135 : vector<8x128xf32>
    %141 = arith.addf %112, %140 : vector<8x128xf32>
    %cst_83 = arith.constant 0.0113932295 : f32
    %142 = vector.broadcast %cst_83 : f32 to vector<8x128xf32>
    %143 = arith.mulf %142, %26 : vector<8x128xf32>
    %144 = arith.addf %14, %143 : vector<8x128xf32>
    %cst_84 = arith.constant 0.0561545379 : f32
    %145 = vector.broadcast %cst_84 : f32 to vector<8x128xf32>
    %146 = arith.mulf %145, %60 : vector<8x128xf32>
    %147 = arith.addf %144, %146 : vector<8x128xf32>
    %cst_85 = arith.constant 0.0813802108 : f32
    %148 = vector.broadcast %cst_85 : f32 to vector<8x128xf32>
    %149 = arith.mulf %148, %83 : vector<8x128xf32>
    %150 = arith.addf %147, %149 : vector<8x128xf32>
    %cst_86 = arith.constant -0.040297024 : f32
    %151 = vector.broadcast %cst_86 : f32 to vector<8x128xf32>
    %152 = arith.mulf %151, %109 : vector<8x128xf32>
    %153 = arith.addf %150, %152 : vector<8x128xf32>
    %cst_87 = arith.constant 0.0163690485 : f32
    %154 = vector.broadcast %cst_87 : f32 to vector<8x128xf32>
    %155 = arith.mulf %154, %138 : vector<8x128xf32>
    %156 = arith.addf %153, %155 : vector<8x128xf32>
    %c1_i32 = arith.constant 1 : i32
    %157 = arith.addf %156, %6 : vector<8x128xf32>
    %cst_88 = arith.constant 0.000000e+00 : f32
    %158 = vector.broadcast %cst_88 : f32 to vector<8x128xf32>
    %159 = arith.maximumf %157, %158 : vector<8x128xf32>
    %c0_89 = arith.constant 0 : index
    %c0_90 = arith.constant 0 : index
    %160 = vector.load %arg6[%c0_89, %c0_90] : memref<128x128xf32, #tpu.memory_space<vmem>>, vector<128x128xf32>
    %cst_91 = arith.constant dense<0.000000e+00> : vector<8x128xf32>
    %161 = tpu.matmul %159, %160, %cst_91 {dimension_numbers = #tpu.dot_dimension_numbers<[1], [0], [0], [1], [0, 0, 1, 1], [], []>} : vector<8x128xf32>, vector<128x128xf32>, vector<8x128xf32> -> vector<8x128xf32>
    %162 = arith.addf %161, %9 : vector<8x128xf32>
    %cst_92 = arith.constant 0.000000e+00 : f32
    %163 = vector.broadcast %cst_92 : f32 to vector<8x128xf32>
    %164 = arith.maximumf %162, %163 : vector<8x128xf32>
    %c0_93 = arith.constant 0 : index
    %c0_94 = arith.constant 0 : index
    %165 = vector.load %arg8[%c0_93, %c0_94] : memref<128x128xf32, #tpu.memory_space<vmem>>, vector<128x128xf32>
    %cst_95 = arith.constant dense<0.000000e+00> : vector<8x128xf32>
    %166 = tpu.matmul %164, %165, %cst_95 {dimension_numbers = #tpu.dot_dimension_numbers<[1], [0], [0], [1], [0, 0, 1, 1], [], []>} : vector<8x128xf32>, vector<128x128xf32>, vector<8x128xf32> -> vector<8x128xf32>
    %167 = arith.addf %166, %12 : vector<8x128xf32>
    %cst_96 = arith.constant 0.0113932295 : f32
    %168 = vector.broadcast %cst_96 : f32 to vector<8x128xf32>
    %169 = arith.mulf %168, %164 : vector<8x128xf32>
    %170 = arith.addf %141, %169 : vector<8x128xf32>
    %cst_97 = arith.constant 2.500000e-02 : f32
    %171 = vector.broadcast %cst_97 : f32 to vector<8x128xf32>
    %172 = arith.mulf %171, %167 : vector<8x128xf32>
    %173 = arith.addf %156, %172 : vector<8x128xf32>
    %174 = arith.addf %173, %6 : vector<8x128xf32>
    %cst_98 = arith.constant 0.000000e+00 : f32
    %175 = vector.broadcast %cst_98 : f32 to vector<8x128xf32>
    %176 = arith.maximumf %174, %175 : vector<8x128xf32>
    %c0_99 = arith.constant 0 : index
    %c0_100 = arith.constant 0 : index
    %177 = vector.load %arg6[%c0_99, %c0_100] : memref<128x128xf32, #tpu.memory_space<vmem>>, vector<128x128xf32>
    %cst_101 = arith.constant dense<0.000000e+00> : vector<8x128xf32>
    %178 = tpu.matmul %176, %177, %cst_101 {dimension_numbers = #tpu.dot_dimension_numbers<[1], [0], [0], [1], [0, 0, 1, 1], [], []>} : vector<8x128xf32>, vector<128x128xf32>, vector<8x128xf32> -> vector<8x128xf32>
    %179 = arith.addf %178, %9 : vector<8x128xf32>
    %cst_102 = arith.constant 0.000000e+00 : f32
    %180 = vector.broadcast %cst_102 : f32 to vector<8x128xf32>
    %181 = arith.maximumf %179, %180 : vector<8x128xf32>
    %c0_103 = arith.constant 0 : index
    %c0_104 = arith.constant 0 : index
    %182 = vector.load %arg8[%c0_103, %c0_104] : memref<128x128xf32, #tpu.memory_space<vmem>>, vector<128x128xf32>
    %cst_105 = arith.constant dense<0.000000e+00> : vector<8x128xf32>
    %183 = tpu.matmul %181, %182, %cst_105 {dimension_numbers = #tpu.dot_dimension_numbers<[1], [0], [0], [1], [0, 0, 1, 1], [], []>} : vector<8x128xf32>, vector<128x128xf32>, vector<8x128xf32> -> vector<8x128xf32>
    %184 = arith.addf %183, %12 : vector<8x128xf32>
    %cst_106 = arith.constant 9.375000e-03 : f32
    %185 = vector.broadcast %cst_106 : f32 to vector<8x128xf32>
    %186 = arith.mulf %185, %167 : vector<8x128xf32>
    %187 = arith.addf %156, %186 : vector<8x128xf32>
    %cst_107 = arith.constant 2.812500e-02 : f32
    %188 = vector.broadcast %cst_107 : f32 to vector<8x128xf32>
    %189 = arith.mulf %188, %184 : vector<8x128xf32>
    %190 = arith.addf %187, %189 : vector<8x128xf32>
    %191 = arith.addf %190, %6 : vector<8x128xf32>
    %cst_108 = arith.constant 0.000000e+00 : f32
    %192 = vector.broadcast %cst_108 : f32 to vector<8x128xf32>
    %193 = arith.maximumf %191, %192 : vector<8x128xf32>
    %c0_109 = arith.constant 0 : index
    %c0_110 = arith.constant 0 : index
    %194 = vector.load %arg6[%c0_109, %c0_110] : memref<128x128xf32, #tpu.memory_space<vmem>>, vector<128x128xf32>
    %cst_111 = arith.constant dense<0.000000e+00> : vector<8x128xf32>
    %195 = tpu.matmul %193, %194, %cst_111 {dimension_numbers = #tpu.dot_dimension_numbers<[1], [0], [0], [1], [0, 0, 1, 1], [], []>} : vector<8x128xf32>, vector<128x128xf32>, vector<8x128xf32> -> vector<8x128xf32>
    %196 = arith.addf %195, %9 : vector<8x128xf32>
    %cst_112 = arith.constant 0.000000e+00 : f32
    %197 = vector.broadcast %cst_112 : f32 to vector<8x128xf32>
    %198 = arith.maximumf %196, %197 : vector<8x128xf32>
    %c0_113 = arith.constant 0 : index
    %c0_114 = arith.constant 0 : index
    %199 = vector.load %arg8[%c0_113, %c0_114] : memref<128x128xf32, #tpu.memory_space<vmem>>, vector<128x128xf32>
    %cst_115 = arith.constant dense<0.000000e+00> : vector<8x128xf32>
    %200 = tpu.matmul %198, %199, %cst_115 {dimension_numbers = #tpu.dot_dimension_numbers<[1], [0], [0], [1], [0, 0, 1, 1], [], []>} : vector<8x128xf32>, vector<128x128xf32>, vector<8x128xf32> -> vector<8x128xf32>
    %201 = arith.addf %200, %12 : vector<8x128xf32>
    %cst_116 = arith.constant 0.0561545379 : f32
    %202 = vector.broadcast %cst_116 : f32 to vector<8x128xf32>
    %203 = arith.mulf %202, %198 : vector<8x128xf32>
    %204 = arith.addf %170, %203 : vector<8x128xf32>
    %cst_117 = arith.constant 0.122222222 : f32
    %205 = vector.broadcast %cst_117 : f32 to vector<8x128xf32>
    %206 = arith.mulf %205, %167 : vector<8x128xf32>
    %207 = arith.addf %156, %206 : vector<8x128xf32>
    %cst_118 = arith.constant -0.466666669 : f32
    %208 = vector.broadcast %cst_118 : f32 to vector<8x128xf32>
    %209 = arith.mulf %208, %184 : vector<8x128xf32>
    %210 = arith.addf %207, %209 : vector<8x128xf32>
    %cst_119 = arith.constant 0.444444448 : f32
    %211 = vector.broadcast %cst_119 : f32 to vector<8x128xf32>
    %212 = arith.mulf %211, %201 : vector<8x128xf32>
    %213 = arith.addf %210, %212 : vector<8x128xf32>
    %214 = arith.addf %213, %6 : vector<8x128xf32>
    %cst_120 = arith.constant 0.000000e+00 : f32
    %215 = vector.broadcast %cst_120 : f32 to vector<8x128xf32>
    %216 = arith.maximumf %214, %215 : vector<8x128xf32>
    %c0_121 = arith.constant 0 : index
    %c0_122 = arith.constant 0 : index
    %217 = vector.load %arg6[%c0_121, %c0_122] : memref<128x128xf32, #tpu.memory_space<vmem>>, vector<128x128xf32>
    %cst_123 = arith.constant dense<0.000000e+00> : vector<8x128xf32>
    %218 = tpu.matmul %216, %217, %cst_123 {dimension_numbers = #tpu.dot_dimension_numbers<[1], [0], [0], [1], [0, 0, 1, 1], [], []>} : vector<8x128xf32>, vector<128x128xf32>, vector<8x128xf32> -> vector<8x128xf32>
    %219 = arith.addf %218, %9 : vector<8x128xf32>
    %cst_124 = arith.constant 0.000000e+00 : f32
    %220 = vector.broadcast %cst_124 : f32 to vector<8x128xf32>
    %221 = arith.maximumf %219, %220 : vector<8x128xf32>
    %c0_125 = arith.constant 0 : index
    %c0_126 = arith.constant 0 : index
    %222 = vector.load %arg8[%c0_125, %c0_126] : memref<128x128xf32, #tpu.memory_space<vmem>>, vector<128x128xf32>
    %cst_127 = arith.constant dense<0.000000e+00> : vector<8x128xf32>
    %223 = tpu.matmul %221, %222, %cst_127 {dimension_numbers = #tpu.dot_dimension_numbers<[1], [0], [0], [1], [0, 0, 1, 1], [], []>} : vector<8x128xf32>, vector<128x128xf32>, vector<8x128xf32> -> vector<8x128xf32>
    %224 = arith.addf %223, %12 : vector<8x128xf32>
    %cst_128 = arith.constant 0.0813802108 : f32
    %225 = vector.broadcast %cst_128 : f32 to vector<8x128xf32>
    %226 = arith.mulf %225, %221 : vector<8x128xf32>
    %227 = arith.addf %204, %226 : vector<8x128xf32>
    %cst_129 = arith.constant 0.369074821 : f32
    %228 = vector.broadcast %cst_129 : f32 to vector<8x128xf32>
    %229 = arith.mulf %228, %167 : vector<8x128xf32>
    %230 = arith.addf %156, %229 : vector<8x128xf32>
    %cst_130 = arith.constant -1.44947422 : f32
    %231 = vector.broadcast %cst_130 : f32 to vector<8x128xf32>
    %232 = arith.mulf %231, %184 : vector<8x128xf32>
    %233 = arith.addf %230, %232 : vector<8x128xf32>
    %cst_131 = arith.constant 1.22786164 : f32
    %234 = vector.broadcast %cst_131 : f32 to vector<8x128xf32>
    %235 = arith.mulf %234, %201 : vector<8x128xf32>
    %236 = arith.addf %233, %235 : vector<8x128xf32>
    %cst_132 = arith.constant -0.0363511667 : f32
    %237 = vector.broadcast %cst_132 : f32 to vector<8x128xf32>
    %238 = arith.mulf %237, %224 : vector<8x128xf32>
    %239 = arith.addf %236, %238 : vector<8x128xf32>
    %240 = arith.addf %239, %6 : vector<8x128xf32>
    %cst_133 = arith.constant 0.000000e+00 : f32
    %241 = vector.broadcast %cst_133 : f32 to vector<8x128xf32>
    %242 = arith.maximumf %240, %241 : vector<8x128xf32>
    %c0_134 = arith.constant 0 : index
    %c0_135 = arith.constant 0 : index
    %243 = vector.load %arg6[%c0_134, %c0_135] : memref<128x128xf32, #tpu.memory_space<vmem>>, vector<128x128xf32>
    %cst_136 = arith.constant dense<0.000000e+00> : vector<8x128xf32>
    %244 = tpu.matmul %242, %243, %cst_136 {dimension_numbers = #tpu.dot_dimension_numbers<[1], [0], [0], [1], [0, 0, 1, 1], [], []>} : vector<8x128xf32>, vector<128x128xf32>, vector<8x128xf32> -> vector<8x128xf32>
    %245 = arith.addf %244, %9 : vector<8x128xf32>
    %cst_137 = arith.constant 0.000000e+00 : f32
    %246 = vector.broadcast %cst_137 : f32 to vector<8x128xf32>
    %247 = arith.maximumf %245, %246 : vector<8x128xf32>
    %c0_138 = arith.constant 0 : index
    %c0_139 = arith.constant 0 : index
    %248 = vector.load %arg8[%c0_138, %c0_139] : memref<128x128xf32, #tpu.memory_space<vmem>>, vector<128x128xf32>
    %cst_140 = arith.constant dense<0.000000e+00> : vector<8x128xf32>
    %249 = tpu.matmul %247, %248, %cst_140 {dimension_numbers = #tpu.dot_dimension_numbers<[1], [0], [0], [1], [0, 0, 1, 1], [], []>} : vector<8x128xf32>, vector<128x128xf32>, vector<8x128xf32> -> vector<8x128xf32>
    %250 = arith.addf %249, %12 : vector<8x128xf32>
    %cst_141 = arith.constant -0.040297024 : f32
    %251 = vector.broadcast %cst_141 : f32 to vector<8x128xf32>
    %252 = arith.mulf %251, %247 : vector<8x128xf32>
    %253 = arith.addf %227, %252 : vector<8x128xf32>
    %cst_142 = arith.constant 0.355784416 : f32
    %254 = vector.broadcast %cst_142 : f32 to vector<8x128xf32>
    %255 = arith.mulf %254, %167 : vector<8x128xf32>
    %256 = arith.addf %156, %255 : vector<8x128xf32>
    %cst_143 = arith.constant -1.344697 : f32
    %257 = vector.broadcast %cst_143 : f32 to vector<8x128xf32>
    %258 = arith.mulf %257, %184 : vector<8x128xf32>
    %259 = arith.addf %256, %258 : vector<8x128xf32>
    %cst_144 = arith.constant 1.11330283 : f32
    %260 = vector.broadcast %cst_144 : f32 to vector<8x128xf32>
    %261 = arith.mulf %260, %201 : vector<8x128xf32>
    %262 = arith.addf %259, %261 : vector<8x128xf32>
    %cst_145 = arith.constant 0.0348011367 : f32
    %263 = vector.broadcast %cst_145 : f32 to vector<8x128xf32>
    %264 = arith.mulf %263, %224 : vector<8x128xf32>
    %265 = arith.addf %262, %264 : vector<8x128xf32>
    %cst_146 = arith.constant -0.0341914147 : f32
    %266 = vector.broadcast %cst_146 : f32 to vector<8x128xf32>
    %267 = arith.mulf %266, %250 : vector<8x128xf32>
    %268 = arith.addf %265, %267 : vector<8x128xf32>
    %269 = arith.addf %268, %6 : vector<8x128xf32>
    %cst_147 = arith.constant 0.000000e+00 : f32
    %270 = vector.broadcast %cst_147 : f32 to vector<8x128xf32>
    %271 = arith.maximumf %269, %270 : vector<8x128xf32>
    %c0_148 = arith.constant 0 : index
    %c0_149 = arith.constant 0 : index
    %272 = vector.load %arg6[%c0_148, %c0_149] : memref<128x128xf32, #tpu.memory_space<vmem>>, vector<128x128xf32>
    %cst_150 = arith.constant dense<0.000000e+00> : vector<8x128xf32>
    %273 = tpu.matmul %271, %272, %cst_150 {dimension_numbers = #tpu.dot_dimension_numbers<[1], [0], [0], [1], [0, 0, 1, 1], [], []>} : vector<8x128xf32>, vector<128x128xf32>, vector<8x128xf32> -> vector<8x128xf32>
    %274 = arith.addf %273, %9 : vector<8x128xf32>
    %cst_151 = arith.constant 0.000000e+00 : f32
    %275 = vector.broadcast %cst_151 : f32 to vector<8x128xf32>
    %276 = arith.maximumf %274, %275 : vector<8x128xf32>
    %c0_152 = arith.constant 0 : index
    %c0_153 = arith.constant 0 : index
    %277 = vector.load %arg8[%c0_152, %c0_153] : memref<128x128xf32, #tpu.memory_space<vmem>>, vector<128x128xf32>
    %cst_154 = arith.constant dense<0.000000e+00> : vector<8x128xf32>
    %278 = tpu.matmul %276, %277, %cst_154 {dimension_numbers = #tpu.dot_dimension_numbers<[1], [0], [0], [1], [0, 0, 1, 1], [], []>} : vector<8x128xf32>, vector<128x128xf32>, vector<8x128xf32> -> vector<8x128xf32>
    %279 = arith.addf %278, %12 : vector<8x128xf32>
    %cst_155 = arith.constant 0.0163690485 : f32
    %280 = vector.broadcast %cst_155 : f32 to vector<8x128xf32>
    %281 = arith.mulf %280, %276 : vector<8x128xf32>
    %282 = arith.addf %253, %281 : vector<8x128xf32>
    %cst_156 = arith.constant 0.0113932295 : f32
    %283 = vector.broadcast %cst_156 : f32 to vector<8x128xf32>
    %284 = arith.mulf %283, %167 : vector<8x128xf32>
    %285 = arith.addf %156, %284 : vector<8x128xf32>
    %cst_157 = arith.constant 0.0561545379 : f32
    %286 = vector.broadcast %cst_157 : f32 to vector<8x128xf32>
    %287 = arith.mulf %286, %201 : vector<8x128xf32>
    %288 = arith.addf %285, %287 : vector<8x128xf32>
    %cst_158 = arith.constant 0.0813802108 : f32
    %289 = vector.broadcast %cst_158 : f32 to vector<8x128xf32>
    %290 = arith.mulf %289, %224 : vector<8x128xf32>
    %291 = arith.addf %288, %290 : vector<8x128xf32>
    %cst_159 = arith.constant -0.040297024 : f32
    %292 = vector.broadcast %cst_159 : f32 to vector<8x128xf32>
    %293 = arith.mulf %292, %250 : vector<8x128xf32>
    %294 = arith.addf %291, %293 : vector<8x128xf32>
    %cst_160 = arith.constant 0.0163690485 : f32
    %295 = vector.broadcast %cst_160 : f32 to vector<8x128xf32>
    %296 = arith.mulf %295, %279 : vector<8x128xf32>
    %297 = arith.addf %294, %296 : vector<8x128xf32>
    %c2_i32 = arith.constant 2 : i32
    %298 = arith.addf %297, %6 : vector<8x128xf32>
    %cst_161 = arith.constant 0.000000e+00 : f32
    %299 = vector.broadcast %cst_161 : f32 to vector<8x128xf32>
    %300 = arith.maximumf %298, %299 : vector<8x128xf32>
    %c0_162 = arith.constant 0 : index
    %c0_163 = arith.constant 0 : index
    %301 = vector.load %arg6[%c0_162, %c0_163] : memref<128x128xf32, #tpu.memory_space<vmem>>, vector<128x128xf32>
    %cst_164 = arith.constant dense<0.000000e+00> : vector<8x128xf32>
    %302 = tpu.matmul %300, %301, %cst_164 {dimension_numbers = #tpu.dot_dimension_numbers<[1], [0], [0], [1], [0, 0, 1, 1], [], []>} : vector<8x128xf32>, vector<128x128xf32>, vector<8x128xf32> -> vector<8x128xf32>
    %303 = arith.addf %302, %9 : vector<8x128xf32>
    %cst_165 = arith.constant 0.000000e+00 : f32
    %304 = vector.broadcast %cst_165 : f32 to vector<8x128xf32>
    %305 = arith.maximumf %303, %304 : vector<8x128xf32>
    %c0_166 = arith.constant 0 : index
    %c0_167 = arith.constant 0 : index
    %306 = vector.load %arg8[%c0_166, %c0_167] : memref<128x128xf32, #tpu.memory_space<vmem>>, vector<128x128xf32>
    %cst_168 = arith.constant dense<0.000000e+00> : vector<8x128xf32>
    %307 = tpu.matmul %305, %306, %cst_168 {dimension_numbers = #tpu.dot_dimension_numbers<[1], [0], [0], [1], [0, 0, 1, 1], [], []>} : vector<8x128xf32>, vector<128x128xf32>, vector<8x128xf32> -> vector<8x128xf32>
    %308 = arith.addf %307, %12 : vector<8x128xf32>
    %cst_169 = arith.constant 0.0113932295 : f32
    %309 = vector.broadcast %cst_169 : f32 to vector<8x128xf32>
    %310 = arith.mulf %309, %305 : vector<8x128xf32>
    %311 = arith.addf %282, %310 : vector<8x128xf32>
    %cst_170 = arith.constant 2.500000e-02 : f32
    %312 = vector.broadcast %cst_170 : f32 to vector<8x128xf32>
    %313 = arith.mulf %312, %308 : vector<8x128xf32>
    %314 = arith.addf %297, %313 : vector<8x128xf32>
    %315 = arith.addf %314, %6 : vector<8x128xf32>
    %cst_171 = arith.constant 0.000000e+00 : f32
    %316 = vector.broadcast %cst_171 : f32 to vector<8x128xf32>
    %317 = arith.maximumf %315, %316 : vector<8x128xf32>
    %c0_172 = arith.constant 0 : index
    %c0_173 = arith.constant 0 : index
    %318 = vector.load %arg6[%c0_172, %c0_173] : memref<128x128xf32, #tpu.memory_space<vmem>>, vector<128x128xf32>
    %cst_174 = arith.constant dense<0.000000e+00> : vector<8x128xf32>
    %319 = tpu.matmul %317, %318, %cst_174 {dimension_numbers = #tpu.dot_dimension_numbers<[1], [0], [0], [1], [0, 0, 1, 1], [], []>} : vector<8x128xf32>, vector<128x128xf32>, vector<8x128xf32> -> vector<8x128xf32>
    %320 = arith.addf %319, %9 : vector<8x128xf32>
    %cst_175 = arith.constant 0.000000e+00 : f32
    %321 = vector.broadcast %cst_175 : f32 to vector<8x128xf32>
    %322 = arith.maximumf %320, %321 : vector<8x128xf32>
    %c0_176 = arith.constant 0 : index
    %c0_177 = arith.constant 0 : index
    %323 = vector.load %arg8[%c0_176, %c0_177] : memref<128x128xf32, #tpu.memory_space<vmem>>, vector<128x128xf32>
    %cst_178 = arith.constant dense<0.000000e+00> : vector<8x128xf32>
    %324 = tpu.matmul %322, %323, %cst_178 {dimension_numbers = #tpu.dot_dimension_numbers<[1], [0], [0], [1], [0, 0, 1, 1], [], []>} : vector<8x128xf32>, vector<128x128xf32>, vector<8x128xf32> -> vector<8x128xf32>
    %325 = arith.addf %324, %12 : vector<8x128xf32>
    %cst_179 = arith.constant 9.375000e-03 : f32
    %326 = vector.broadcast %cst_179 : f32 to vector<8x128xf32>
    %327 = arith.mulf %326, %308 : vector<8x128xf32>
    %328 = arith.addf %297, %327 : vector<8x128xf32>
    %cst_180 = arith.constant 2.812500e-02 : f32
    %329 = vector.broadcast %cst_180 : f32 to vector<8x128xf32>
    %330 = arith.mulf %329, %325 : vector<8x128xf32>
    %331 = arith.addf %328, %330 : vector<8x128xf32>
    %332 = arith.addf %331, %6 : vector<8x128xf32>
    %cst_181 = arith.constant 0.000000e+00 : f32
    %333 = vector.broadcast %cst_181 : f32 to vector<8x128xf32>
    %334 = arith.maximumf %332, %333 : vector<8x128xf32>
    %c0_182 = arith.constant 0 : index
    %c0_183 = arith.constant 0 : index
    %335 = vector.load %arg6[%c0_182, %c0_183] : memref<128x128xf32, #tpu.memory_space<vmem>>, vector<128x128xf32>
    %cst_184 = arith.constant dense<0.000000e+00> : vector<8x128xf32>
    %336 = tpu.matmul %334, %335, %cst_184 {dimension_numbers = #tpu.dot_dimension_numbers<[1], [0], [0], [1], [0, 0, 1, 1], [], []>} : vector<8x128xf32>, vector<128x128xf32>, vector<8x128xf32> -> vector<8x128xf32>
    %337 = arith.addf %336, %9 : vector<8x128xf32>
    %cst_185 = arith.constant 0.000000e+00 : f32
    %338 = vector.broadcast %cst_185 : f32 to vector<8x128xf32>
    %339 = arith.maximumf %337, %338 : vector<8x128xf32>
    %c0_186 = arith.constant 0 : index
    %c0_187 = arith.constant 0 : index
    %340 = vector.load %arg8[%c0_186, %c0_187] : memref<128x128xf32, #tpu.memory_space<vmem>>, vector<128x128xf32>
    %cst_188 = arith.constant dense<0.000000e+00> : vector<8x128xf32>
    %341 = tpu.matmul %339, %340, %cst_188 {dimension_numbers = #tpu.dot_dimension_numbers<[1], [0], [0], [1], [0, 0, 1, 1], [], []>} : vector<8x128xf32>, vector<128x128xf32>, vector<8x128xf32> -> vector<8x128xf32>
    %342 = arith.addf %341, %12 : vector<8x128xf32>
    %cst_189 = arith.constant 0.0561545379 : f32
    %343 = vector.broadcast %cst_189 : f32 to vector<8x128xf32>
    %344 = arith.mulf %343, %339 : vector<8x128xf32>
    %345 = arith.addf %311, %344 : vector<8x128xf32>
    %cst_190 = arith.constant 0.122222222 : f32
    %346 = vector.broadcast %cst_190 : f32 to vector<8x128xf32>
    %347 = arith.mulf %346, %308 : vector<8x128xf32>
    %348 = arith.addf %297, %347 : vector<8x128xf32>
    %cst_191 = arith.constant -0.466666669 : f32
    %349 = vector.broadcast %cst_191 : f32 to vector<8x128xf32>
    %350 = arith.mulf %349, %325 : vector<8x128xf32>
    %351 = arith.addf %348, %350 : vector<8x128xf32>
    %cst_192 = arith.constant 0.444444448 : f32
    %352 = vector.broadcast %cst_192 : f32 to vector<8x128xf32>
    %353 = arith.mulf %352, %342 : vector<8x128xf32>
    %354 = arith.addf %351, %353 : vector<8x128xf32>
    %355 = arith.addf %354, %6 : vector<8x128xf32>
    %cst_193 = arith.constant 0.000000e+00 : f32
    %356 = vector.broadcast %cst_193 : f32 to vector<8x128xf32>
    %357 = arith.maximumf %355, %356 : vector<8x128xf32>
    %c0_194 = arith.constant 0 : index
    %c0_195 = arith.constant 0 : index
    %358 = vector.load %arg6[%c0_194, %c0_195] : memref<128x128xf32, #tpu.memory_space<vmem>>, vector<128x128xf32>
    %cst_196 = arith.constant dense<0.000000e+00> : vector<8x128xf32>
    %359 = tpu.matmul %357, %358, %cst_196 {dimension_numbers = #tpu.dot_dimension_numbers<[1], [0], [0], [1], [0, 0, 1, 1], [], []>} : vector<8x128xf32>, vector<128x128xf32>, vector<8x128xf32> -> vector<8x128xf32>
    %360 = arith.addf %359, %9 : vector<8x128xf32>
    %cst_197 = arith.constant 0.000000e+00 : f32
    %361 = vector.broadcast %cst_197 : f32 to vector<8x128xf32>
    %362 = arith.maximumf %360, %361 : vector<8x128xf32>
    %c0_198 = arith.constant 0 : index
    %c0_199 = arith.constant 0 : index
    %363 = vector.load %arg8[%c0_198, %c0_199] : memref<128x128xf32, #tpu.memory_space<vmem>>, vector<128x128xf32>
    %cst_200 = arith.constant dense<0.000000e+00> : vector<8x128xf32>
    %364 = tpu.matmul %362, %363, %cst_200 {dimension_numbers = #tpu.dot_dimension_numbers<[1], [0], [0], [1], [0, 0, 1, 1], [], []>} : vector<8x128xf32>, vector<128x128xf32>, vector<8x128xf32> -> vector<8x128xf32>
    %365 = arith.addf %364, %12 : vector<8x128xf32>
    %cst_201 = arith.constant 0.0813802108 : f32
    %366 = vector.broadcast %cst_201 : f32 to vector<8x128xf32>
    %367 = arith.mulf %366, %362 : vector<8x128xf32>
    %368 = arith.addf %345, %367 : vector<8x128xf32>
    %cst_202 = arith.constant 0.369074821 : f32
    %369 = vector.broadcast %cst_202 : f32 to vector<8x128xf32>
    %370 = arith.mulf %369, %308 : vector<8x128xf32>
    %371 = arith.addf %297, %370 : vector<8x128xf32>
    %cst_203 = arith.constant -1.44947422 : f32
    %372 = vector.broadcast %cst_203 : f32 to vector<8x128xf32>
    %373 = arith.mulf %372, %325 : vector<8x128xf32>
    %374 = arith.addf %371, %373 : vector<8x128xf32>
    %cst_204 = arith.constant 1.22786164 : f32
    %375 = vector.broadcast %cst_204 : f32 to vector<8x128xf32>
    %376 = arith.mulf %375, %342 : vector<8x128xf32>
    %377 = arith.addf %374, %376 : vector<8x128xf32>
    %cst_205 = arith.constant -0.0363511667 : f32
    %378 = vector.broadcast %cst_205 : f32 to vector<8x128xf32>
    %379 = arith.mulf %378, %365 : vector<8x128xf32>
    %380 = arith.addf %377, %379 : vector<8x128xf32>
    %381 = arith.addf %380, %6 : vector<8x128xf32>
    %cst_206 = arith.constant 0.000000e+00 : f32
    %382 = vector.broadcast %cst_206 : f32 to vector<8x128xf32>
    %383 = arith.maximumf %381, %382 : vector<8x128xf32>
    %c0_207 = arith.constant 0 : index
    %c0_208 = arith.constant 0 : index
    %384 = vector.load %arg6[%c0_207, %c0_208] : memref<128x128xf32, #tpu.memory_space<vmem>>, vector<128x128xf32>
    %cst_209 = arith.constant dense<0.000000e+00> : vector<8x128xf32>
    %385 = tpu.matmul %383, %384, %cst_209 {dimension_numbers = #tpu.dot_dimension_numbers<[1], [0], [0], [1], [0, 0, 1, 1], [], []>} : vector<8x128xf32>, vector<128x128xf32>, vector<8x128xf32> -> vector<8x128xf32>
    %386 = arith.addf %385, %9 : vector<8x128xf32>
    %cst_210 = arith.constant 0.000000e+00 : f32
    %387 = vector.broadcast %cst_210 : f32 to vector<8x128xf32>
    %388 = arith.maximumf %386, %387 : vector<8x128xf32>
    %c0_211 = arith.constant 0 : index
    %c0_212 = arith.constant 0 : index
    %389 = vector.load %arg8[%c0_211, %c0_212] : memref<128x128xf32, #tpu.memory_space<vmem>>, vector<128x128xf32>
    %cst_213 = arith.constant dense<0.000000e+00> : vector<8x128xf32>
    %390 = tpu.matmul %388, %389, %cst_213 {dimension_numbers = #tpu.dot_dimension_numbers<[1], [0], [0], [1], [0, 0, 1, 1], [], []>} : vector<8x128xf32>, vector<128x128xf32>, vector<8x128xf32> -> vector<8x128xf32>
    %391 = arith.addf %390, %12 : vector<8x128xf32>
    %cst_214 = arith.constant -0.040297024 : f32
    %392 = vector.broadcast %cst_214 : f32 to vector<8x128xf32>
    %393 = arith.mulf %392, %388 : vector<8x128xf32>
    %394 = arith.addf %368, %393 : vector<8x128xf32>
    %cst_215 = arith.constant 0.355784416 : f32
    %395 = vector.broadcast %cst_215 : f32 to vector<8x128xf32>
    %396 = arith.mulf %395, %308 : vector<8x128xf32>
    %397 = arith.addf %297, %396 : vector<8x128xf32>
    %cst_216 = arith.constant -1.344697 : f32
    %398 = vector.broadcast %cst_216 : f32 to vector<8x128xf32>
    %399 = arith.mulf %398, %325 : vector<8x128xf32>
    %400 = arith.addf %397, %399 : vector<8x128xf32>
    %cst_217 = arith.constant 1.11330283 : f32
    %401 = vector.broadcast %cst_217 : f32 to vector<8x128xf32>
    %402 = arith.mulf %401, %342 : vector<8x128xf32>
    %403 = arith.addf %400, %402 : vector<8x128xf32>
    %cst_218 = arith.constant 0.0348011367 : f32
    %404 = vector.broadcast %cst_218 : f32 to vector<8x128xf32>
    %405 = arith.mulf %404, %365 : vector<8x128xf32>
    %406 = arith.addf %403, %405 : vector<8x128xf32>
    %cst_219 = arith.constant -0.0341914147 : f32
    %407 = vector.broadcast %cst_219 : f32 to vector<8x128xf32>
    %408 = arith.mulf %407, %391 : vector<8x128xf32>
    %409 = arith.addf %406, %408 : vector<8x128xf32>
    %410 = arith.addf %409, %6 : vector<8x128xf32>
    %cst_220 = arith.constant 0.000000e+00 : f32
    %411 = vector.broadcast %cst_220 : f32 to vector<8x128xf32>
    %412 = arith.maximumf %410, %411 : vector<8x128xf32>
    %c0_221 = arith.constant 0 : index
    %c0_222 = arith.constant 0 : index
    %413 = vector.load %arg6[%c0_221, %c0_222] : memref<128x128xf32, #tpu.memory_space<vmem>>, vector<128x128xf32>
    %cst_223 = arith.constant dense<0.000000e+00> : vector<8x128xf32>
    %414 = tpu.matmul %412, %413, %cst_223 {dimension_numbers = #tpu.dot_dimension_numbers<[1], [0], [0], [1], [0, 0, 1, 1], [], []>} : vector<8x128xf32>, vector<128x128xf32>, vector<8x128xf32> -> vector<8x128xf32>
    %415 = arith.addf %414, %9 : vector<8x128xf32>
    %cst_224 = arith.constant 0.000000e+00 : f32
    %416 = vector.broadcast %cst_224 : f32 to vector<8x128xf32>
    %417 = arith.maximumf %415, %416 : vector<8x128xf32>
    %c0_225 = arith.constant 0 : index
    %c0_226 = arith.constant 0 : index
    %418 = vector.load %arg8[%c0_225, %c0_226] : memref<128x128xf32, #tpu.memory_space<vmem>>, vector<128x128xf32>
    %cst_227 = arith.constant dense<0.000000e+00> : vector<8x128xf32>
    %419 = tpu.matmul %417, %418, %cst_227 {dimension_numbers = #tpu.dot_dimension_numbers<[1], [0], [0], [1], [0, 0, 1, 1], [], []>} : vector<8x128xf32>, vector<128x128xf32>, vector<8x128xf32> -> vector<8x128xf32>
    %420 = arith.addf %419, %12 : vector<8x128xf32>
    %cst_228 = arith.constant 0.0163690485 : f32
    %421 = vector.broadcast %cst_228 : f32 to vector<8x128xf32>
    %422 = arith.mulf %421, %417 : vector<8x128xf32>
    %423 = arith.addf %394, %422 : vector<8x128xf32>
    %cst_229 = arith.constant 0.0113932295 : f32
    %424 = vector.broadcast %cst_229 : f32 to vector<8x128xf32>
    %425 = arith.mulf %424, %308 : vector<8x128xf32>
    %426 = arith.addf %297, %425 : vector<8x128xf32>
    %cst_230 = arith.constant 0.0561545379 : f32
    %427 = vector.broadcast %cst_230 : f32 to vector<8x128xf32>
    %428 = arith.mulf %427, %342 : vector<8x128xf32>
    %429 = arith.addf %426, %428 : vector<8x128xf32>
    %cst_231 = arith.constant 0.0813802108 : f32
    %430 = vector.broadcast %cst_231 : f32 to vector<8x128xf32>
    %431 = arith.mulf %430, %365 : vector<8x128xf32>
    %432 = arith.addf %429, %431 : vector<8x128xf32>
    %cst_232 = arith.constant -0.040297024 : f32
    %433 = vector.broadcast %cst_232 : f32 to vector<8x128xf32>
    %434 = arith.mulf %433, %391 : vector<8x128xf32>
    %435 = arith.addf %432, %434 : vector<8x128xf32>
    %cst_233 = arith.constant 0.0163690485 : f32
    %436 = vector.broadcast %cst_233 : f32 to vector<8x128xf32>
    %437 = arith.mulf %436, %420 : vector<8x128xf32>
    %438 = arith.addf %435, %437 : vector<8x128xf32>
    %c3_i32 = arith.constant 3 : i32
    %439 = arith.addf %438, %6 : vector<8x128xf32>
    %cst_234 = arith.constant 0.000000e+00 : f32
    %440 = vector.broadcast %cst_234 : f32 to vector<8x128xf32>
    %441 = arith.maximumf %439, %440 : vector<8x128xf32>
    %c0_235 = arith.constant 0 : index
    %c0_236 = arith.constant 0 : index
    %442 = vector.load %arg6[%c0_235, %c0_236] : memref<128x128xf32, #tpu.memory_space<vmem>>, vector<128x128xf32>
    %cst_237 = arith.constant dense<0.000000e+00> : vector<8x128xf32>
    %443 = tpu.matmul %441, %442, %cst_237 {dimension_numbers = #tpu.dot_dimension_numbers<[1], [0], [0], [1], [0, 0, 1, 1], [], []>} : vector<8x128xf32>, vector<128x128xf32>, vector<8x128xf32> -> vector<8x128xf32>
    %444 = arith.addf %443, %9 : vector<8x128xf32>
    %cst_238 = arith.constant 0.000000e+00 : f32
    %445 = vector.broadcast %cst_238 : f32 to vector<8x128xf32>
    %446 = arith.maximumf %444, %445 : vector<8x128xf32>
    %c0_239 = arith.constant 0 : index
    %c0_240 = arith.constant 0 : index
    %447 = vector.load %arg8[%c0_239, %c0_240] : memref<128x128xf32, #tpu.memory_space<vmem>>, vector<128x128xf32>
    %cst_241 = arith.constant dense<0.000000e+00> : vector<8x128xf32>
    %448 = tpu.matmul %446, %447, %cst_241 {dimension_numbers = #tpu.dot_dimension_numbers<[1], [0], [0], [1], [0, 0, 1, 1], [], []>} : vector<8x128xf32>, vector<128x128xf32>, vector<8x128xf32> -> vector<8x128xf32>
    %449 = arith.addf %448, %12 : vector<8x128xf32>
    %cst_242 = arith.constant 0.0113932295 : f32
    %450 = vector.broadcast %cst_242 : f32 to vector<8x128xf32>
    %451 = arith.mulf %450, %446 : vector<8x128xf32>
    %452 = arith.addf %423, %451 : vector<8x128xf32>
    %cst_243 = arith.constant 2.500000e-02 : f32
    %453 = vector.broadcast %cst_243 : f32 to vector<8x128xf32>
    %454 = arith.mulf %453, %449 : vector<8x128xf32>
    %455 = arith.addf %438, %454 : vector<8x128xf32>
    %456 = arith.addf %455, %6 : vector<8x128xf32>
    %cst_244 = arith.constant 0.000000e+00 : f32
    %457 = vector.broadcast %cst_244 : f32 to vector<8x128xf32>
    %458 = arith.maximumf %456, %457 : vector<8x128xf32>
    %c0_245 = arith.constant 0 : index
    %c0_246 = arith.constant 0 : index
    %459 = vector.load %arg6[%c0_245, %c0_246] : memref<128x128xf32, #tpu.memory_space<vmem>>, vector<128x128xf32>
    %cst_247 = arith.constant dense<0.000000e+00> : vector<8x128xf32>
    %460 = tpu.matmul %458, %459, %cst_247 {dimension_numbers = #tpu.dot_dimension_numbers<[1], [0], [0], [1], [0, 0, 1, 1], [], []>} : vector<8x128xf32>, vector<128x128xf32>, vector<8x128xf32> -> vector<8x128xf32>
    %461 = arith.addf %460, %9 : vector<8x128xf32>
    %cst_248 = arith.constant 0.000000e+00 : f32
    %462 = vector.broadcast %cst_248 : f32 to vector<8x128xf32>
    %463 = arith.maximumf %461, %462 : vector<8x128xf32>
    %c0_249 = arith.constant 0 : index
    %c0_250 = arith.constant 0 : index
    %464 = vector.load %arg8[%c0_249, %c0_250] : memref<128x128xf32, #tpu.memory_space<vmem>>, vector<128x128xf32>
    %cst_251 = arith.constant dense<0.000000e+00> : vector<8x128xf32>
    %465 = tpu.matmul %463, %464, %cst_251 {dimension_numbers = #tpu.dot_dimension_numbers<[1], [0], [0], [1], [0, 0, 1, 1], [], []>} : vector<8x128xf32>, vector<128x128xf32>, vector<8x128xf32> -> vector<8x128xf32>
    %466 = arith.addf %465, %12 : vector<8x128xf32>
    %cst_252 = arith.constant 9.375000e-03 : f32
    %467 = vector.broadcast %cst_252 : f32 to vector<8x128xf32>
    %468 = arith.mulf %467, %449 : vector<8x128xf32>
    %469 = arith.addf %438, %468 : vector<8x128xf32>
    %cst_253 = arith.constant 2.812500e-02 : f32
    %470 = vector.broadcast %cst_253 : f32 to vector<8x128xf32>
    %471 = arith.mulf %470, %466 : vector<8x128xf32>
    %472 = arith.addf %469, %471 : vector<8x128xf32>
    %473 = arith.addf %472, %6 : vector<8x128xf32>
    %cst_254 = arith.constant 0.000000e+00 : f32
    %474 = vector.broadcast %cst_254 : f32 to vector<8x128xf32>
    %475 = arith.maximumf %473, %474 : vector<8x128xf32>
    %c0_255 = arith.constant 0 : index
    %c0_256 = arith.constant 0 : index
    %476 = vector.load %arg6[%c0_255, %c0_256] : memref<128x128xf32, #tpu.memory_space<vmem>>, vector<128x128xf32>
    %cst_257 = arith.constant dense<0.000000e+00> : vector<8x128xf32>
    %477 = tpu.matmul %475, %476, %cst_257 {dimension_numbers = #tpu.dot_dimension_numbers<[1], [0], [0], [1], [0, 0, 1, 1], [], []>} : vector<8x128xf32>, vector<128x128xf32>, vector<8x128xf32> -> vector<8x128xf32>
    %478 = arith.addf %477, %9 : vector<8x128xf32>
    %cst_258 = arith.constant 0.000000e+00 : f32
    %479 = vector.broadcast %cst_258 : f32 to vector<8x128xf32>
    %480 = arith.maximumf %478, %479 : vector<8x128xf32>
    %c0_259 = arith.constant 0 : index
    %c0_260 = arith.constant 0 : index
    %481 = vector.load %arg8[%c0_259, %c0_260] : memref<128x128xf32, #tpu.memory_space<vmem>>, vector<128x128xf32>
    %cst_261 = arith.constant dense<0.000000e+00> : vector<8x128xf32>
    %482 = tpu.matmul %480, %481, %cst_261 {dimension_numbers = #tpu.dot_dimension_numbers<[1], [0], [0], [1], [0, 0, 1, 1], [], []>} : vector<8x128xf32>, vector<128x128xf32>, vector<8x128xf32> -> vector<8x128xf32>
    %483 = arith.addf %482, %12 : vector<8x128xf32>
    %cst_262 = arith.constant 0.0561545379 : f32
    %484 = vector.broadcast %cst_262 : f32 to vector<8x128xf32>
    %485 = arith.mulf %484, %480 : vector<8x128xf32>
    %486 = arith.addf %452, %485 : vector<8x128xf32>
    %cst_263 = arith.constant 0.122222222 : f32
    %487 = vector.broadcast %cst_263 : f32 to vector<8x128xf32>
    %488 = arith.mulf %487, %449 : vector<8x128xf32>
    %489 = arith.addf %438, %488 : vector<8x128xf32>
    %cst_264 = arith.constant -0.466666669 : f32
    %490 = vector.broadcast %cst_264 : f32 to vector<8x128xf32>
    %491 = arith.mulf %490, %466 : vector<8x128xf32>
    %492 = arith.addf %489, %491 : vector<8x128xf32>
    %cst_265 = arith.constant 0.444444448 : f32
    %493 = vector.broadcast %cst_265 : f32 to vector<8x128xf32>
    %494 = arith.mulf %493, %483 : vector<8x128xf32>
    %495 = arith.addf %492, %494 : vector<8x128xf32>
    %496 = arith.addf %495, %6 : vector<8x128xf32>
    %cst_266 = arith.constant 0.000000e+00 : f32
    %497 = vector.broadcast %cst_266 : f32 to vector<8x128xf32>
    %498 = arith.maximumf %496, %497 : vector<8x128xf32>
    %c0_267 = arith.constant 0 : index
    %c0_268 = arith.constant 0 : index
    %499 = vector.load %arg6[%c0_267, %c0_268] : memref<128x128xf32, #tpu.memory_space<vmem>>, vector<128x128xf32>
    %cst_269 = arith.constant dense<0.000000e+00> : vector<8x128xf32>
    %500 = tpu.matmul %498, %499, %cst_269 {dimension_numbers = #tpu.dot_dimension_numbers<[1], [0], [0], [1], [0, 0, 1, 1], [], []>} : vector<8x128xf32>, vector<128x128xf32>, vector<8x128xf32> -> vector<8x128xf32>
    %501 = arith.addf %500, %9 : vector<8x128xf32>
    %cst_270 = arith.constant 0.000000e+00 : f32
    %502 = vector.broadcast %cst_270 : f32 to vector<8x128xf32>
    %503 = arith.maximumf %501, %502 : vector<8x128xf32>
    %c0_271 = arith.constant 0 : index
    %c0_272 = arith.constant 0 : index
    %504 = vector.load %arg8[%c0_271, %c0_272] : memref<128x128xf32, #tpu.memory_space<vmem>>, vector<128x128xf32>
    %cst_273 = arith.constant dense<0.000000e+00> : vector<8x128xf32>
    %505 = tpu.matmul %503, %504, %cst_273 {dimension_numbers = #tpu.dot_dimension_numbers<[1], [0], [0], [1], [0, 0, 1, 1], [], []>} : vector<8x128xf32>, vector<128x128xf32>, vector<8x128xf32> -> vector<8x128xf32>
    %506 = arith.addf %505, %12 : vector<8x128xf32>
    %cst_274 = arith.constant 0.0813802108 : f32
    %507 = vector.broadcast %cst_274 : f32 to vector<8x128xf32>
    %508 = arith.mulf %507, %503 : vector<8x128xf32>
    %509 = arith.addf %486, %508 : vector<8x128xf32>
    %cst_275 = arith.constant 0.369074821 : f32
    %510 = vector.broadcast %cst_275 : f32 to vector<8x128xf32>
    %511 = arith.mulf %510, %449 : vector<8x128xf32>
    %512 = arith.addf %438, %511 : vector<8x128xf32>
    %cst_276 = arith.constant -1.44947422 : f32
    %513 = vector.broadcast %cst_276 : f32 to vector<8x128xf32>
    %514 = arith.mulf %513, %466 : vector<8x128xf32>
    %515 = arith.addf %512, %514 : vector<8x128xf32>
    %cst_277 = arith.constant 1.22786164 : f32
    %516 = vector.broadcast %cst_277 : f32 to vector<8x128xf32>
    %517 = arith.mulf %516, %483 : vector<8x128xf32>
    %518 = arith.addf %515, %517 : vector<8x128xf32>
    %cst_278 = arith.constant -0.0363511667 : f32
    %519 = vector.broadcast %cst_278 : f32 to vector<8x128xf32>
    %520 = arith.mulf %519, %506 : vector<8x128xf32>
    %521 = arith.addf %518, %520 : vector<8x128xf32>
    %522 = arith.addf %521, %6 : vector<8x128xf32>
    %cst_279 = arith.constant 0.000000e+00 : f32
    %523 = vector.broadcast %cst_279 : f32 to vector<8x128xf32>
    %524 = arith.maximumf %522, %523 : vector<8x128xf32>
    %c0_280 = arith.constant 0 : index
    %c0_281 = arith.constant 0 : index
    %525 = vector.load %arg6[%c0_280, %c0_281] : memref<128x128xf32, #tpu.memory_space<vmem>>, vector<128x128xf32>
    %cst_282 = arith.constant dense<0.000000e+00> : vector<8x128xf32>
    %526 = tpu.matmul %524, %525, %cst_282 {dimension_numbers = #tpu.dot_dimension_numbers<[1], [0], [0], [1], [0, 0, 1, 1], [], []>} : vector<8x128xf32>, vector<128x128xf32>, vector<8x128xf32> -> vector<8x128xf32>
    %527 = arith.addf %526, %9 : vector<8x128xf32>
    %cst_283 = arith.constant 0.000000e+00 : f32
    %528 = vector.broadcast %cst_283 : f32 to vector<8x128xf32>
    %529 = arith.maximumf %527, %528 : vector<8x128xf32>
    %c0_284 = arith.constant 0 : index
    %c0_285 = arith.constant 0 : index
    %530 = vector.load %arg8[%c0_284, %c0_285] : memref<128x128xf32, #tpu.memory_space<vmem>>, vector<128x128xf32>
    %cst_286 = arith.constant dense<0.000000e+00> : vector<8x128xf32>
    %531 = tpu.matmul %529, %530, %cst_286 {dimension_numbers = #tpu.dot_dimension_numbers<[1], [0], [0], [1], [0, 0, 1, 1], [], []>} : vector<8x128xf32>, vector<128x128xf32>, vector<8x128xf32> -> vector<8x128xf32>
    %532 = arith.addf %531, %12 : vector<8x128xf32>
    %cst_287 = arith.constant -0.040297024 : f32
    %533 = vector.broadcast %cst_287 : f32 to vector<8x128xf32>
    %534 = arith.mulf %533, %529 : vector<8x128xf32>
    %535 = arith.addf %509, %534 : vector<8x128xf32>
    %cst_288 = arith.constant 0.355784416 : f32
    %536 = vector.broadcast %cst_288 : f32 to vector<8x128xf32>
    %537 = arith.mulf %536, %449 : vector<8x128xf32>
    %538 = arith.addf %438, %537 : vector<8x128xf32>
    %cst_289 = arith.constant -1.344697 : f32
    %539 = vector.broadcast %cst_289 : f32 to vector<8x128xf32>
    %540 = arith.mulf %539, %466 : vector<8x128xf32>
    %541 = arith.addf %538, %540 : vector<8x128xf32>
    %cst_290 = arith.constant 1.11330283 : f32
    %542 = vector.broadcast %cst_290 : f32 to vector<8x128xf32>
    %543 = arith.mulf %542, %483 : vector<8x128xf32>
    %544 = arith.addf %541, %543 : vector<8x128xf32>
    %cst_291 = arith.constant 0.0348011367 : f32
    %545 = vector.broadcast %cst_291 : f32 to vector<8x128xf32>
    %546 = arith.mulf %545, %506 : vector<8x128xf32>
    %547 = arith.addf %544, %546 : vector<8x128xf32>
    %cst_292 = arith.constant -0.0341914147 : f32
    %548 = vector.broadcast %cst_292 : f32 to vector<8x128xf32>
    %549 = arith.mulf %548, %532 : vector<8x128xf32>
    %550 = arith.addf %547, %549 : vector<8x128xf32>
    %551 = arith.addf %550, %6 : vector<8x128xf32>
    %cst_293 = arith.constant 0.000000e+00 : f32
    %552 = vector.broadcast %cst_293 : f32 to vector<8x128xf32>
    %553 = arith.maximumf %551, %552 : vector<8x128xf32>
    %c0_294 = arith.constant 0 : index
    %c0_295 = arith.constant 0 : index
    %554 = vector.load %arg6[%c0_294, %c0_295] : memref<128x128xf32, #tpu.memory_space<vmem>>, vector<128x128xf32>
    %cst_296 = arith.constant dense<0.000000e+00> : vector<8x128xf32>
    %555 = tpu.matmul %553, %554, %cst_296 {dimension_numbers = #tpu.dot_dimension_numbers<[1], [0], [0], [1], [0, 0, 1, 1], [], []>} : vector<8x128xf32>, vector<128x128xf32>, vector<8x128xf32> -> vector<8x128xf32>
    %556 = arith.addf %555, %9 : vector<8x128xf32>
    %cst_297 = arith.constant 0.000000e+00 : f32
    %557 = vector.broadcast %cst_297 : f32 to vector<8x128xf32>
    %558 = arith.maximumf %556, %557 : vector<8x128xf32>
    %c0_298 = arith.constant 0 : index
    %c0_299 = arith.constant 0 : index
    %559 = vector.load %arg8[%c0_298, %c0_299] : memref<128x128xf32, #tpu.memory_space<vmem>>, vector<128x128xf32>
    %cst_300 = arith.constant dense<0.000000e+00> : vector<8x128xf32>
    %560 = tpu.matmul %558, %559, %cst_300 {dimension_numbers = #tpu.dot_dimension_numbers<[1], [0], [0], [1], [0, 0, 1, 1], [], []>} : vector<8x128xf32>, vector<128x128xf32>, vector<8x128xf32> -> vector<8x128xf32>
    %561 = arith.addf %560, %12 : vector<8x128xf32>
    %cst_301 = arith.constant 0.0163690485 : f32
    %562 = vector.broadcast %cst_301 : f32 to vector<8x128xf32>
    %563 = arith.mulf %562, %558 : vector<8x128xf32>
    %564 = arith.addf %535, %563 : vector<8x128xf32>
    %cst_302 = arith.constant 0.0113932295 : f32
    %565 = vector.broadcast %cst_302 : f32 to vector<8x128xf32>
    %566 = arith.mulf %565, %449 : vector<8x128xf32>
    %567 = arith.addf %438, %566 : vector<8x128xf32>
    %cst_303 = arith.constant 0.0561545379 : f32
    %568 = vector.broadcast %cst_303 : f32 to vector<8x128xf32>
    %569 = arith.mulf %568, %483 : vector<8x128xf32>
    %570 = arith.addf %567, %569 : vector<8x128xf32>
    %cst_304 = arith.constant 0.0813802108 : f32
    %571 = vector.broadcast %cst_304 : f32 to vector<8x128xf32>
    %572 = arith.mulf %571, %506 : vector<8x128xf32>
    %573 = arith.addf %570, %572 : vector<8x128xf32>
    %cst_305 = arith.constant -0.040297024 : f32
    %574 = vector.broadcast %cst_305 : f32 to vector<8x128xf32>
    %575 = arith.mulf %574, %532 : vector<8x128xf32>
    %576 = arith.addf %573, %575 : vector<8x128xf32>
    %cst_306 = arith.constant 0.0163690485 : f32
    %577 = vector.broadcast %cst_306 : f32 to vector<8x128xf32>
    %578 = arith.mulf %577, %561 : vector<8x128xf32>
    %579 = arith.addf %576, %578 : vector<8x128xf32>
    %c4_i32 = arith.constant 4 : i32
    %580 = arith.addf %579, %6 : vector<8x128xf32>
    %cst_307 = arith.constant 0.000000e+00 : f32
    %581 = vector.broadcast %cst_307 : f32 to vector<8x128xf32>
    %582 = arith.maximumf %580, %581 : vector<8x128xf32>
    %c0_308 = arith.constant 0 : index
    %c0_309 = arith.constant 0 : index
    %583 = vector.load %arg6[%c0_308, %c0_309] : memref<128x128xf32, #tpu.memory_space<vmem>>, vector<128x128xf32>
    %cst_310 = arith.constant dense<0.000000e+00> : vector<8x128xf32>
    %584 = tpu.matmul %582, %583, %cst_310 {dimension_numbers = #tpu.dot_dimension_numbers<[1], [0], [0], [1], [0, 0, 1, 1], [], []>} : vector<8x128xf32>, vector<128x128xf32>, vector<8x128xf32> -> vector<8x128xf32>
    %585 = arith.addf %584, %9 : vector<8x128xf32>
    %cst_311 = arith.constant 0.000000e+00 : f32
    %586 = vector.broadcast %cst_311 : f32 to vector<8x128xf32>
    %587 = arith.maximumf %585, %586 : vector<8x128xf32>
    %c0_312 = arith.constant 0 : index
    %c0_313 = arith.constant 0 : index
    %588 = vector.load %arg8[%c0_312, %c0_313] : memref<128x128xf32, #tpu.memory_space<vmem>>, vector<128x128xf32>
    %cst_314 = arith.constant dense<0.000000e+00> : vector<8x128xf32>
    %589 = tpu.matmul %587, %588, %cst_314 {dimension_numbers = #tpu.dot_dimension_numbers<[1], [0], [0], [1], [0, 0, 1, 1], [], []>} : vector<8x128xf32>, vector<128x128xf32>, vector<8x128xf32> -> vector<8x128xf32>
    %590 = arith.addf %589, %12 : vector<8x128xf32>
    %cst_315 = arith.constant 0.0113932295 : f32
    %591 = vector.broadcast %cst_315 : f32 to vector<8x128xf32>
    %592 = arith.mulf %591, %587 : vector<8x128xf32>
    %593 = arith.addf %564, %592 : vector<8x128xf32>
    %cst_316 = arith.constant 2.500000e-02 : f32
    %594 = vector.broadcast %cst_316 : f32 to vector<8x128xf32>
    %595 = arith.mulf %594, %590 : vector<8x128xf32>
    %596 = arith.addf %579, %595 : vector<8x128xf32>
    %597 = arith.addf %596, %6 : vector<8x128xf32>
    %cst_317 = arith.constant 0.000000e+00 : f32
    %598 = vector.broadcast %cst_317 : f32 to vector<8x128xf32>
    %599 = arith.maximumf %597, %598 : vector<8x128xf32>
    %c0_318 = arith.constant 0 : index
    %c0_319 = arith.constant 0 : index
    %600 = vector.load %arg6[%c0_318, %c0_319] : memref<128x128xf32, #tpu.memory_space<vmem>>, vector<128x128xf32>
    %cst_320 = arith.constant dense<0.000000e+00> : vector<8x128xf32>
    %601 = tpu.matmul %599, %600, %cst_320 {dimension_numbers = #tpu.dot_dimension_numbers<[1], [0], [0], [1], [0, 0, 1, 1], [], []>} : vector<8x128xf32>, vector<128x128xf32>, vector<8x128xf32> -> vector<8x128xf32>
    %602 = arith.addf %601, %9 : vector<8x128xf32>
    %cst_321 = arith.constant 0.000000e+00 : f32
    %603 = vector.broadcast %cst_321 : f32 to vector<8x128xf32>
    %604 = arith.maximumf %602, %603 : vector<8x128xf32>
    %c0_322 = arith.constant 0 : index
    %c0_323 = arith.constant 0 : index
    %605 = vector.load %arg8[%c0_322, %c0_323] : memref<128x128xf32, #tpu.memory_space<vmem>>, vector<128x128xf32>
    %cst_324 = arith.constant dense<0.000000e+00> : vector<8x128xf32>
    %606 = tpu.matmul %604, %605, %cst_324 {dimension_numbers = #tpu.dot_dimension_numbers<[1], [0], [0], [1], [0, 0, 1, 1], [], []>} : vector<8x128xf32>, vector<128x128xf32>, vector<8x128xf32> -> vector<8x128xf32>
    %607 = arith.addf %606, %12 : vector<8x128xf32>
    %cst_325 = arith.constant 9.375000e-03 : f32
    %608 = vector.broadcast %cst_325 : f32 to vector<8x128xf32>
    %609 = arith.mulf %608, %590 : vector<8x128xf32>
    %610 = arith.addf %579, %609 : vector<8x128xf32>
    %cst_326 = arith.constant 2.812500e-02 : f32
    %611 = vector.broadcast %cst_326 : f32 to vector<8x128xf32>
    %612 = arith.mulf %611, %607 : vector<8x128xf32>
    %613 = arith.addf %610, %612 : vector<8x128xf32>
    %614 = arith.addf %613, %6 : vector<8x128xf32>
    %cst_327 = arith.constant 0.000000e+00 : f32
    %615 = vector.broadcast %cst_327 : f32 to vector<8x128xf32>
    %616 = arith.maximumf %614, %615 : vector<8x128xf32>
    %c0_328 = arith.constant 0 : index
    %c0_329 = arith.constant 0 : index
    %617 = vector.load %arg6[%c0_328, %c0_329] : memref<128x128xf32, #tpu.memory_space<vmem>>, vector<128x128xf32>
    %cst_330 = arith.constant dense<0.000000e+00> : vector<8x128xf32>
    %618 = tpu.matmul %616, %617, %cst_330 {dimension_numbers = #tpu.dot_dimension_numbers<[1], [0], [0], [1], [0, 0, 1, 1], [], []>} : vector<8x128xf32>, vector<128x128xf32>, vector<8x128xf32> -> vector<8x128xf32>
    %619 = arith.addf %618, %9 : vector<8x128xf32>
    %cst_331 = arith.constant 0.000000e+00 : f32
    %620 = vector.broadcast %cst_331 : f32 to vector<8x128xf32>
    %621 = arith.maximumf %619, %620 : vector<8x128xf32>
    %c0_332 = arith.constant 0 : index
    %c0_333 = arith.constant 0 : index
    %622 = vector.load %arg8[%c0_332, %c0_333] : memref<128x128xf32, #tpu.memory_space<vmem>>, vector<128x128xf32>
    %cst_334 = arith.constant dense<0.000000e+00> : vector<8x128xf32>
    %623 = tpu.matmul %621, %622, %cst_334 {dimension_numbers = #tpu.dot_dimension_numbers<[1], [0], [0], [1], [0, 0, 1, 1], [], []>} : vector<8x128xf32>, vector<128x128xf32>, vector<8x128xf32> -> vector<8x128xf32>
    %624 = arith.addf %623, %12 : vector<8x128xf32>
    %cst_335 = arith.constant 0.0561545379 : f32
    %625 = vector.broadcast %cst_335 : f32 to vector<8x128xf32>
    %626 = arith.mulf %625, %621 : vector<8x128xf32>
    %627 = arith.addf %593, %626 : vector<8x128xf32>
    %cst_336 = arith.constant 0.122222222 : f32
    %628 = vector.broadcast %cst_336 : f32 to vector<8x128xf32>
    %629 = arith.mulf %628, %590 : vector<8x128xf32>
    %630 = arith.addf %579, %629 : vector<8x128xf32>
    %cst_337 = arith.constant -0.466666669 : f32
    %631 = vector.broadcast %cst_337 : f32 to vector<8x128xf32>
    %632 = arith.mulf %631, %607 : vector<8x128xf32>
    %633 = arith.addf %630, %632 : vector<8x128xf32>
    %cst_338 = arith.constant 0.444444448 : f32
    %634 = vector.broadcast %cst_338 : f32 to vector<8x128xf32>
    %635 = arith.mulf %634, %624 : vector<8x128xf32>
    %636 = arith.addf %633, %635 : vector<8x128xf32>
    %637 = arith.addf %636, %6 : vector<8x128xf32>
    %cst_339 = arith.constant 0.000000e+00 : f32
    %638 = vector.broadcast %cst_339 : f32 to vector<8x128xf32>
    %639 = arith.maximumf %637, %638 : vector<8x128xf32>
    %c0_340 = arith.constant 0 : index
    %c0_341 = arith.constant 0 : index
    %640 = vector.load %arg6[%c0_340, %c0_341] : memref<128x128xf32, #tpu.memory_space<vmem>>, vector<128x128xf32>
    %cst_342 = arith.constant dense<0.000000e+00> : vector<8x128xf32>
    %641 = tpu.matmul %639, %640, %cst_342 {dimension_numbers = #tpu.dot_dimension_numbers<[1], [0], [0], [1], [0, 0, 1, 1], [], []>} : vector<8x128xf32>, vector<128x128xf32>, vector<8x128xf32> -> vector<8x128xf32>
    %642 = arith.addf %641, %9 : vector<8x128xf32>
    %cst_343 = arith.constant 0.000000e+00 : f32
    %643 = vector.broadcast %cst_343 : f32 to vector<8x128xf32>
    %644 = arith.maximumf %642, %643 : vector<8x128xf32>
    %c0_344 = arith.constant 0 : index
    %c0_345 = arith.constant 0 : index
    %645 = vector.load %arg8[%c0_344, %c0_345] : memref<128x128xf32, #tpu.memory_space<vmem>>, vector<128x128xf32>
    %cst_346 = arith.constant dense<0.000000e+00> : vector<8x128xf32>
    %646 = tpu.matmul %644, %645, %cst_346 {dimension_numbers = #tpu.dot_dimension_numbers<[1], [0], [0], [1], [0, 0, 1, 1], [], []>} : vector<8x128xf32>, vector<128x128xf32>, vector<8x128xf32> -> vector<8x128xf32>
    %647 = arith.addf %646, %12 : vector<8x128xf32>
    %cst_347 = arith.constant 0.0813802108 : f32
    %648 = vector.broadcast %cst_347 : f32 to vector<8x128xf32>
    %649 = arith.mulf %648, %644 : vector<8x128xf32>
    %650 = arith.addf %627, %649 : vector<8x128xf32>
    %cst_348 = arith.constant 0.369074821 : f32
    %651 = vector.broadcast %cst_348 : f32 to vector<8x128xf32>
    %652 = arith.mulf %651, %590 : vector<8x128xf32>
    %653 = arith.addf %579, %652 : vector<8x128xf32>
    %cst_349 = arith.constant -1.44947422 : f32
    %654 = vector.broadcast %cst_349 : f32 to vector<8x128xf32>
    %655 = arith.mulf %654, %607 : vector<8x128xf32>
    %656 = arith.addf %653, %655 : vector<8x128xf32>
    %cst_350 = arith.constant 1.22786164 : f32
    %657 = vector.broadcast %cst_350 : f32 to vector<8x128xf32>
    %658 = arith.mulf %657, %624 : vector<8x128xf32>
    %659 = arith.addf %656, %658 : vector<8x128xf32>
    %cst_351 = arith.constant -0.0363511667 : f32
    %660 = vector.broadcast %cst_351 : f32 to vector<8x128xf32>
    %661 = arith.mulf %660, %647 : vector<8x128xf32>
    %662 = arith.addf %659, %661 : vector<8x128xf32>
    %663 = arith.addf %662, %6 : vector<8x128xf32>
    %cst_352 = arith.constant 0.000000e+00 : f32
    %664 = vector.broadcast %cst_352 : f32 to vector<8x128xf32>
    %665 = arith.maximumf %663, %664 : vector<8x128xf32>
    %c0_353 = arith.constant 0 : index
    %c0_354 = arith.constant 0 : index
    %666 = vector.load %arg6[%c0_353, %c0_354] : memref<128x128xf32, #tpu.memory_space<vmem>>, vector<128x128xf32>
    %cst_355 = arith.constant dense<0.000000e+00> : vector<8x128xf32>
    %667 = tpu.matmul %665, %666, %cst_355 {dimension_numbers = #tpu.dot_dimension_numbers<[1], [0], [0], [1], [0, 0, 1, 1], [], []>} : vector<8x128xf32>, vector<128x128xf32>, vector<8x128xf32> -> vector<8x128xf32>
    %668 = arith.addf %667, %9 : vector<8x128xf32>
    %cst_356 = arith.constant 0.000000e+00 : f32
    %669 = vector.broadcast %cst_356 : f32 to vector<8x128xf32>
    %670 = arith.maximumf %668, %669 : vector<8x128xf32>
    %c0_357 = arith.constant 0 : index
    %c0_358 = arith.constant 0 : index
    %671 = vector.load %arg8[%c0_357, %c0_358] : memref<128x128xf32, #tpu.memory_space<vmem>>, vector<128x128xf32>
    %cst_359 = arith.constant dense<0.000000e+00> : vector<8x128xf32>
    %672 = tpu.matmul %670, %671, %cst_359 {dimension_numbers = #tpu.dot_dimension_numbers<[1], [0], [0], [1], [0, 0, 1, 1], [], []>} : vector<8x128xf32>, vector<128x128xf32>, vector<8x128xf32> -> vector<8x128xf32>
    %673 = arith.addf %672, %12 : vector<8x128xf32>
    %cst_360 = arith.constant -0.040297024 : f32
    %674 = vector.broadcast %cst_360 : f32 to vector<8x128xf32>
    %675 = arith.mulf %674, %670 : vector<8x128xf32>
    %676 = arith.addf %650, %675 : vector<8x128xf32>
    %cst_361 = arith.constant 0.355784416 : f32
    %677 = vector.broadcast %cst_361 : f32 to vector<8x128xf32>
    %678 = arith.mulf %677, %590 : vector<8x128xf32>
    %679 = arith.addf %579, %678 : vector<8x128xf32>
    %cst_362 = arith.constant -1.344697 : f32
    %680 = vector.broadcast %cst_362 : f32 to vector<8x128xf32>
    %681 = arith.mulf %680, %607 : vector<8x128xf32>
    %682 = arith.addf %679, %681 : vector<8x128xf32>
    %cst_363 = arith.constant 1.11330283 : f32
    %683 = vector.broadcast %cst_363 : f32 to vector<8x128xf32>
    %684 = arith.mulf %683, %624 : vector<8x128xf32>
    %685 = arith.addf %682, %684 : vector<8x128xf32>
    %cst_364 = arith.constant 0.0348011367 : f32
    %686 = vector.broadcast %cst_364 : f32 to vector<8x128xf32>
    %687 = arith.mulf %686, %647 : vector<8x128xf32>
    %688 = arith.addf %685, %687 : vector<8x128xf32>
    %cst_365 = arith.constant -0.0341914147 : f32
    %689 = vector.broadcast %cst_365 : f32 to vector<8x128xf32>
    %690 = arith.mulf %689, %673 : vector<8x128xf32>
    %691 = arith.addf %688, %690 : vector<8x128xf32>
    %692 = arith.addf %691, %6 : vector<8x128xf32>
    %cst_366 = arith.constant 0.000000e+00 : f32
    %693 = vector.broadcast %cst_366 : f32 to vector<8x128xf32>
    %694 = arith.maximumf %692, %693 : vector<8x128xf32>
    %c0_367 = arith.constant 0 : index
    %c0_368 = arith.constant 0 : index
    %695 = vector.load %arg6[%c0_367, %c0_368] : memref<128x128xf32, #tpu.memory_space<vmem>>, vector<128x128xf32>
    %cst_369 = arith.constant dense<0.000000e+00> : vector<8x128xf32>
    %696 = tpu.matmul %694, %695, %cst_369 {dimension_numbers = #tpu.dot_dimension_numbers<[1], [0], [0], [1], [0, 0, 1, 1], [], []>} : vector<8x128xf32>, vector<128x128xf32>, vector<8x128xf32> -> vector<8x128xf32>
    %697 = arith.addf %696, %9 : vector<8x128xf32>
    %cst_370 = arith.constant 0.000000e+00 : f32
    %698 = vector.broadcast %cst_370 : f32 to vector<8x128xf32>
    %699 = arith.maximumf %697, %698 : vector<8x128xf32>
    %c0_371 = arith.constant 0 : index
    %c0_372 = arith.constant 0 : index
    %700 = vector.load %arg8[%c0_371, %c0_372] : memref<128x128xf32, #tpu.memory_space<vmem>>, vector<128x128xf32>
    %cst_373 = arith.constant dense<0.000000e+00> : vector<8x128xf32>
    %701 = tpu.matmul %699, %700, %cst_373 {dimension_numbers = #tpu.dot_dimension_numbers<[1], [0], [0], [1], [0, 0, 1, 1], [], []>} : vector<8x128xf32>, vector<128x128xf32>, vector<8x128xf32> -> vector<8x128xf32>
    %702 = arith.addf %701, %12 : vector<8x128xf32>
    %cst_374 = arith.constant 0.0163690485 : f32
    %703 = vector.broadcast %cst_374 : f32 to vector<8x128xf32>
    %704 = arith.mulf %703, %699 : vector<8x128xf32>
    %705 = arith.addf %676, %704 : vector<8x128xf32>
    %cst_375 = arith.constant 0.0113932295 : f32
    %706 = vector.broadcast %cst_375 : f32 to vector<8x128xf32>
    %707 = arith.mulf %706, %590 : vector<8x128xf32>
    %708 = arith.addf %579, %707 : vector<8x128xf32>
    %cst_376 = arith.constant 0.0561545379 : f32
    %709 = vector.broadcast %cst_376 : f32 to vector<8x128xf32>
    %710 = arith.mulf %709, %624 : vector<8x128xf32>
    %711 = arith.addf %708, %710 : vector<8x128xf32>
    %cst_377 = arith.constant 0.0813802108 : f32
    %712 = vector.broadcast %cst_377 : f32 to vector<8x128xf32>
    %713 = arith.mulf %712, %647 : vector<8x128xf32>
    %714 = arith.addf %711, %713 : vector<8x128xf32>
    %cst_378 = arith.constant -0.040297024 : f32
    %715 = vector.broadcast %cst_378 : f32 to vector<8x128xf32>
    %716 = arith.mulf %715, %673 : vector<8x128xf32>
    %717 = arith.addf %714, %716 : vector<8x128xf32>
    %cst_379 = arith.constant 0.0163690485 : f32
    %718 = vector.broadcast %cst_379 : f32 to vector<8x128xf32>
    %719 = arith.mulf %718, %702 : vector<8x128xf32>
    %720 = arith.addf %717, %719 : vector<8x128xf32>
    %c5_i32 = arith.constant 5 : i32
    %721 = arith.addf %720, %6 : vector<8x128xf32>
    %cst_380 = arith.constant 0.000000e+00 : f32
    %722 = vector.broadcast %cst_380 : f32 to vector<8x128xf32>
    %723 = arith.maximumf %721, %722 : vector<8x128xf32>
    %c0_381 = arith.constant 0 : index
    %c0_382 = arith.constant 0 : index
    %724 = vector.load %arg6[%c0_381, %c0_382] : memref<128x128xf32, #tpu.memory_space<vmem>>, vector<128x128xf32>
    %cst_383 = arith.constant dense<0.000000e+00> : vector<8x128xf32>
    %725 = tpu.matmul %723, %724, %cst_383 {dimension_numbers = #tpu.dot_dimension_numbers<[1], [0], [0], [1], [0, 0, 1, 1], [], []>} : vector<8x128xf32>, vector<128x128xf32>, vector<8x128xf32> -> vector<8x128xf32>
    %726 = arith.addf %725, %9 : vector<8x128xf32>
    %cst_384 = arith.constant 0.000000e+00 : f32
    %727 = vector.broadcast %cst_384 : f32 to vector<8x128xf32>
    %728 = arith.maximumf %726, %727 : vector<8x128xf32>
    %c0_385 = arith.constant 0 : index
    %c0_386 = arith.constant 0 : index
    %729 = vector.load %arg8[%c0_385, %c0_386] : memref<128x128xf32, #tpu.memory_space<vmem>>, vector<128x128xf32>
    %cst_387 = arith.constant dense<0.000000e+00> : vector<8x128xf32>
    %730 = tpu.matmul %728, %729, %cst_387 {dimension_numbers = #tpu.dot_dimension_numbers<[1], [0], [0], [1], [0, 0, 1, 1], [], []>} : vector<8x128xf32>, vector<128x128xf32>, vector<8x128xf32> -> vector<8x128xf32>
    %731 = arith.addf %730, %12 : vector<8x128xf32>
    %cst_388 = arith.constant 0.0113932295 : f32
    %732 = vector.broadcast %cst_388 : f32 to vector<8x128xf32>
    %733 = arith.mulf %732, %728 : vector<8x128xf32>
    %734 = arith.addf %705, %733 : vector<8x128xf32>
    %cst_389 = arith.constant 2.500000e-02 : f32
    %735 = vector.broadcast %cst_389 : f32 to vector<8x128xf32>
    %736 = arith.mulf %735, %731 : vector<8x128xf32>
    %737 = arith.addf %720, %736 : vector<8x128xf32>
    %738 = arith.addf %737, %6 : vector<8x128xf32>
    %cst_390 = arith.constant 0.000000e+00 : f32
    %739 = vector.broadcast %cst_390 : f32 to vector<8x128xf32>
    %740 = arith.maximumf %738, %739 : vector<8x128xf32>
    %c0_391 = arith.constant 0 : index
    %c0_392 = arith.constant 0 : index
    %741 = vector.load %arg6[%c0_391, %c0_392] : memref<128x128xf32, #tpu.memory_space<vmem>>, vector<128x128xf32>
    %cst_393 = arith.constant dense<0.000000e+00> : vector<8x128xf32>
    %742 = tpu.matmul %740, %741, %cst_393 {dimension_numbers = #tpu.dot_dimension_numbers<[1], [0], [0], [1], [0, 0, 1, 1], [], []>} : vector<8x128xf32>, vector<128x128xf32>, vector<8x128xf32> -> vector<8x128xf32>
    %743 = arith.addf %742, %9 : vector<8x128xf32>
    %cst_394 = arith.constant 0.000000e+00 : f32
    %744 = vector.broadcast %cst_394 : f32 to vector<8x128xf32>
    %745 = arith.maximumf %743, %744 : vector<8x128xf32>
    %c0_395 = arith.constant 0 : index
    %c0_396 = arith.constant 0 : index
    %746 = vector.load %arg8[%c0_395, %c0_396] : memref<128x128xf32, #tpu.memory_space<vmem>>, vector<128x128xf32>
    %cst_397 = arith.constant dense<0.000000e+00> : vector<8x128xf32>
    %747 = tpu.matmul %745, %746, %cst_397 {dimension_numbers = #tpu.dot_dimension_numbers<[1], [0], [0], [1], [0, 0, 1, 1], [], []>} : vector<8x128xf32>, vector<128x128xf32>, vector<8x128xf32> -> vector<8x128xf32>
    %748 = arith.addf %747, %12 : vector<8x128xf32>
    %cst_398 = arith.constant 9.375000e-03 : f32
    %749 = vector.broadcast %cst_398 : f32 to vector<8x128xf32>
    %750 = arith.mulf %749, %731 : vector<8x128xf32>
    %751 = arith.addf %720, %750 : vector<8x128xf32>
    %cst_399 = arith.constant 2.812500e-02 : f32
    %752 = vector.broadcast %cst_399 : f32 to vector<8x128xf32>
    %753 = arith.mulf %752, %748 : vector<8x128xf32>
    %754 = arith.addf %751, %753 : vector<8x128xf32>
    %755 = arith.addf %754, %6 : vector<8x128xf32>
    %cst_400 = arith.constant 0.000000e+00 : f32
    %756 = vector.broadcast %cst_400 : f32 to vector<8x128xf32>
    %757 = arith.maximumf %755, %756 : vector<8x128xf32>
    %c0_401 = arith.constant 0 : index
    %c0_402 = arith.constant 0 : index
    %758 = vector.load %arg6[%c0_401, %c0_402] : memref<128x128xf32, #tpu.memory_space<vmem>>, vector<128x128xf32>
    %cst_403 = arith.constant dense<0.000000e+00> : vector<8x128xf32>
    %759 = tpu.matmul %757, %758, %cst_403 {dimension_numbers = #tpu.dot_dimension_numbers<[1], [0], [0], [1], [0, 0, 1, 1], [], []>} : vector<8x128xf32>, vector<128x128xf32>, vector<8x128xf32> -> vector<8x128xf32>
    %760 = arith.addf %759, %9 : vector<8x128xf32>
    %cst_404 = arith.constant 0.000000e+00 : f32
    %761 = vector.broadcast %cst_404 : f32 to vector<8x128xf32>
    %762 = arith.maximumf %760, %761 : vector<8x128xf32>
    %c0_405 = arith.constant 0 : index
    %c0_406 = arith.constant 0 : index
    %763 = vector.load %arg8[%c0_405, %c0_406] : memref<128x128xf32, #tpu.memory_space<vmem>>, vector<128x128xf32>
    %cst_407 = arith.constant dense<0.000000e+00> : vector<8x128xf32>
    %764 = tpu.matmul %762, %763, %cst_407 {dimension_numbers = #tpu.dot_dimension_numbers<[1], [0], [0], [1], [0, 0, 1, 1], [], []>} : vector<8x128xf32>, vector<128x128xf32>, vector<8x128xf32> -> vector<8x128xf32>
    %765 = arith.addf %764, %12 : vector<8x128xf32>
    %cst_408 = arith.constant 0.0561545379 : f32
    %766 = vector.broadcast %cst_408 : f32 to vector<8x128xf32>
    %767 = arith.mulf %766, %762 : vector<8x128xf32>
    %768 = arith.addf %734, %767 : vector<8x128xf32>
    %cst_409 = arith.constant 0.122222222 : f32
    %769 = vector.broadcast %cst_409 : f32 to vector<8x128xf32>
    %770 = arith.mulf %769, %731 : vector<8x128xf32>
    %771 = arith.addf %720, %770 : vector<8x128xf32>
    %cst_410 = arith.constant -0.466666669 : f32
    %772 = vector.broadcast %cst_410 : f32 to vector<8x128xf32>
    %773 = arith.mulf %772, %748 : vector<8x128xf32>
    %774 = arith.addf %771, %773 : vector<8x128xf32>
    %cst_411 = arith.constant 0.444444448 : f32
    %775 = vector.broadcast %cst_411 : f32 to vector<8x128xf32>
    %776 = arith.mulf %775, %765 : vector<8x128xf32>
    %777 = arith.addf %774, %776 : vector<8x128xf32>
    %778 = arith.addf %777, %6 : vector<8x128xf32>
    %cst_412 = arith.constant 0.000000e+00 : f32
    %779 = vector.broadcast %cst_412 : f32 to vector<8x128xf32>
    %780 = arith.maximumf %778, %779 : vector<8x128xf32>
    %c0_413 = arith.constant 0 : index
    %c0_414 = arith.constant 0 : index
    %781 = vector.load %arg6[%c0_413, %c0_414] : memref<128x128xf32, #tpu.memory_space<vmem>>, vector<128x128xf32>
    %cst_415 = arith.constant dense<0.000000e+00> : vector<8x128xf32>
    %782 = tpu.matmul %780, %781, %cst_415 {dimension_numbers = #tpu.dot_dimension_numbers<[1], [0], [0], [1], [0, 0, 1, 1], [], []>} : vector<8x128xf32>, vector<128x128xf32>, vector<8x128xf32> -> vector<8x128xf32>
    %783 = arith.addf %782, %9 : vector<8x128xf32>
    %cst_416 = arith.constant 0.000000e+00 : f32
    %784 = vector.broadcast %cst_416 : f32 to vector<8x128xf32>
    %785 = arith.maximumf %783, %784 : vector<8x128xf32>
    %c0_417 = arith.constant 0 : index
    %c0_418 = arith.constant 0 : index
    %786 = vector.load %arg8[%c0_417, %c0_418] : memref<128x128xf32, #tpu.memory_space<vmem>>, vector<128x128xf32>
    %cst_419 = arith.constant dense<0.000000e+00> : vector<8x128xf32>
    %787 = tpu.matmul %785, %786, %cst_419 {dimension_numbers = #tpu.dot_dimension_numbers<[1], [0], [0], [1], [0, 0, 1, 1], [], []>} : vector<8x128xf32>, vector<128x128xf32>, vector<8x128xf32> -> vector<8x128xf32>
    %788 = arith.addf %787, %12 : vector<8x128xf32>
    %cst_420 = arith.constant 0.0813802108 : f32
    %789 = vector.broadcast %cst_420 : f32 to vector<8x128xf32>
    %790 = arith.mulf %789, %785 : vector<8x128xf32>
    %791 = arith.addf %768, %790 : vector<8x128xf32>
    %cst_421 = arith.constant 0.369074821 : f32
    %792 = vector.broadcast %cst_421 : f32 to vector<8x128xf32>
    %793 = arith.mulf %792, %731 : vector<8x128xf32>
    %794 = arith.addf %720, %793 : vector<8x128xf32>
    %cst_422 = arith.constant -1.44947422 : f32
    %795 = vector.broadcast %cst_422 : f32 to vector<8x128xf32>
    %796 = arith.mulf %795, %748 : vector<8x128xf32>
    %797 = arith.addf %794, %796 : vector<8x128xf32>
    %cst_423 = arith.constant 1.22786164 : f32
    %798 = vector.broadcast %cst_423 : f32 to vector<8x128xf32>
    %799 = arith.mulf %798, %765 : vector<8x128xf32>
    %800 = arith.addf %797, %799 : vector<8x128xf32>
    %cst_424 = arith.constant -0.0363511667 : f32
    %801 = vector.broadcast %cst_424 : f32 to vector<8x128xf32>
    %802 = arith.mulf %801, %788 : vector<8x128xf32>
    %803 = arith.addf %800, %802 : vector<8x128xf32>
    %804 = arith.addf %803, %6 : vector<8x128xf32>
    %cst_425 = arith.constant 0.000000e+00 : f32
    %805 = vector.broadcast %cst_425 : f32 to vector<8x128xf32>
    %806 = arith.maximumf %804, %805 : vector<8x128xf32>
    %c0_426 = arith.constant 0 : index
    %c0_427 = arith.constant 0 : index
    %807 = vector.load %arg6[%c0_426, %c0_427] : memref<128x128xf32, #tpu.memory_space<vmem>>, vector<128x128xf32>
    %cst_428 = arith.constant dense<0.000000e+00> : vector<8x128xf32>
    %808 = tpu.matmul %806, %807, %cst_428 {dimension_numbers = #tpu.dot_dimension_numbers<[1], [0], [0], [1], [0, 0, 1, 1], [], []>} : vector<8x128xf32>, vector<128x128xf32>, vector<8x128xf32> -> vector<8x128xf32>
    %809 = arith.addf %808, %9 : vector<8x128xf32>
    %cst_429 = arith.constant 0.000000e+00 : f32
    %810 = vector.broadcast %cst_429 : f32 to vector<8x128xf32>
    %811 = arith.maximumf %809, %810 : vector<8x128xf32>
    %c0_430 = arith.constant 0 : index
    %c0_431 = arith.constant 0 : index
    %812 = vector.load %arg8[%c0_430, %c0_431] : memref<128x128xf32, #tpu.memory_space<vmem>>, vector<128x128xf32>
    %cst_432 = arith.constant dense<0.000000e+00> : vector<8x128xf32>
    %813 = tpu.matmul %811, %812, %cst_432 {dimension_numbers = #tpu.dot_dimension_numbers<[1], [0], [0], [1], [0, 0, 1, 1], [], []>} : vector<8x128xf32>, vector<128x128xf32>, vector<8x128xf32> -> vector<8x128xf32>
    %814 = arith.addf %813, %12 : vector<8x128xf32>
    %cst_433 = arith.constant -0.040297024 : f32
    %815 = vector.broadcast %cst_433 : f32 to vector<8x128xf32>
    %816 = arith.mulf %815, %811 : vector<8x128xf32>
    %817 = arith.addf %791, %816 : vector<8x128xf32>
    %cst_434 = arith.constant 0.355784416 : f32
    %818 = vector.broadcast %cst_434 : f32 to vector<8x128xf32>
    %819 = arith.mulf %818, %731 : vector<8x128xf32>
    %820 = arith.addf %720, %819 : vector<8x128xf32>
    %cst_435 = arith.constant -1.344697 : f32
    %821 = vector.broadcast %cst_435 : f32 to vector<8x128xf32>
    %822 = arith.mulf %821, %748 : vector<8x128xf32>
    %823 = arith.addf %820, %822 : vector<8x128xf32>
    %cst_436 = arith.constant 1.11330283 : f32
    %824 = vector.broadcast %cst_436 : f32 to vector<8x128xf32>
    %825 = arith.mulf %824, %765 : vector<8x128xf32>
    %826 = arith.addf %823, %825 : vector<8x128xf32>
    %cst_437 = arith.constant 0.0348011367 : f32
    %827 = vector.broadcast %cst_437 : f32 to vector<8x128xf32>
    %828 = arith.mulf %827, %788 : vector<8x128xf32>
    %829 = arith.addf %826, %828 : vector<8x128xf32>
    %cst_438 = arith.constant -0.0341914147 : f32
    %830 = vector.broadcast %cst_438 : f32 to vector<8x128xf32>
    %831 = arith.mulf %830, %814 : vector<8x128xf32>
    %832 = arith.addf %829, %831 : vector<8x128xf32>
    %833 = arith.addf %832, %6 : vector<8x128xf32>
    %cst_439 = arith.constant 0.000000e+00 : f32
    %834 = vector.broadcast %cst_439 : f32 to vector<8x128xf32>
    %835 = arith.maximumf %833, %834 : vector<8x128xf32>
    %c0_440 = arith.constant 0 : index
    %c0_441 = arith.constant 0 : index
    %836 = vector.load %arg6[%c0_440, %c0_441] : memref<128x128xf32, #tpu.memory_space<vmem>>, vector<128x128xf32>
    %cst_442 = arith.constant dense<0.000000e+00> : vector<8x128xf32>
    %837 = tpu.matmul %835, %836, %cst_442 {dimension_numbers = #tpu.dot_dimension_numbers<[1], [0], [0], [1], [0, 0, 1, 1], [], []>} : vector<8x128xf32>, vector<128x128xf32>, vector<8x128xf32> -> vector<8x128xf32>
    %838 = arith.addf %837, %9 : vector<8x128xf32>
    %cst_443 = arith.constant 0.000000e+00 : f32
    %839 = vector.broadcast %cst_443 : f32 to vector<8x128xf32>
    %840 = arith.maximumf %838, %839 : vector<8x128xf32>
    %c0_444 = arith.constant 0 : index
    %c0_445 = arith.constant 0 : index
    %841 = vector.load %arg8[%c0_444, %c0_445] : memref<128x128xf32, #tpu.memory_space<vmem>>, vector<128x128xf32>
    %cst_446 = arith.constant dense<0.000000e+00> : vector<8x128xf32>
    %842 = tpu.matmul %840, %841, %cst_446 {dimension_numbers = #tpu.dot_dimension_numbers<[1], [0], [0], [1], [0, 0, 1, 1], [], []>} : vector<8x128xf32>, vector<128x128xf32>, vector<8x128xf32> -> vector<8x128xf32>
    %843 = arith.addf %842, %12 : vector<8x128xf32>
    %cst_447 = arith.constant 0.0163690485 : f32
    %844 = vector.broadcast %cst_447 : f32 to vector<8x128xf32>
    %845 = arith.mulf %844, %840 : vector<8x128xf32>
    %846 = arith.addf %817, %845 : vector<8x128xf32>
    %cst_448 = arith.constant 0.0113932295 : f32
    %847 = vector.broadcast %cst_448 : f32 to vector<8x128xf32>
    %848 = arith.mulf %847, %731 : vector<8x128xf32>
    %849 = arith.addf %720, %848 : vector<8x128xf32>
    %cst_449 = arith.constant 0.0561545379 : f32
    %850 = vector.broadcast %cst_449 : f32 to vector<8x128xf32>
    %851 = arith.mulf %850, %765 : vector<8x128xf32>
    %852 = arith.addf %849, %851 : vector<8x128xf32>
    %cst_450 = arith.constant 0.0813802108 : f32
    %853 = vector.broadcast %cst_450 : f32 to vector<8x128xf32>
    %854 = arith.mulf %853, %788 : vector<8x128xf32>
    %855 = arith.addf %852, %854 : vector<8x128xf32>
    %cst_451 = arith.constant -0.040297024 : f32
    %856 = vector.broadcast %cst_451 : f32 to vector<8x128xf32>
    %857 = arith.mulf %856, %814 : vector<8x128xf32>
    %858 = arith.addf %855, %857 : vector<8x128xf32>
    %cst_452 = arith.constant 0.0163690485 : f32
    %859 = vector.broadcast %cst_452 : f32 to vector<8x128xf32>
    %860 = arith.mulf %859, %843 : vector<8x128xf32>
    %861 = arith.addf %858, %860 : vector<8x128xf32>
    %c6_i32 = arith.constant 6 : i32
    %862 = arith.addf %861, %6 : vector<8x128xf32>
    %cst_453 = arith.constant 0.000000e+00 : f32
    %863 = vector.broadcast %cst_453 : f32 to vector<8x128xf32>
    %864 = arith.maximumf %862, %863 : vector<8x128xf32>
    %c0_454 = arith.constant 0 : index
    %c0_455 = arith.constant 0 : index
    %865 = vector.load %arg6[%c0_454, %c0_455] : memref<128x128xf32, #tpu.memory_space<vmem>>, vector<128x128xf32>
    %cst_456 = arith.constant dense<0.000000e+00> : vector<8x128xf32>
    %866 = tpu.matmul %864, %865, %cst_456 {dimension_numbers = #tpu.dot_dimension_numbers<[1], [0], [0], [1], [0, 0, 1, 1], [], []>} : vector<8x128xf32>, vector<128x128xf32>, vector<8x128xf32> -> vector<8x128xf32>
    %867 = arith.addf %866, %9 : vector<8x128xf32>
    %cst_457 = arith.constant 0.000000e+00 : f32
    %868 = vector.broadcast %cst_457 : f32 to vector<8x128xf32>
    %869 = arith.maximumf %867, %868 : vector<8x128xf32>
    %c0_458 = arith.constant 0 : index
    %c0_459 = arith.constant 0 : index
    %870 = vector.load %arg8[%c0_458, %c0_459] : memref<128x128xf32, #tpu.memory_space<vmem>>, vector<128x128xf32>
    %cst_460 = arith.constant dense<0.000000e+00> : vector<8x128xf32>
    %871 = tpu.matmul %869, %870, %cst_460 {dimension_numbers = #tpu.dot_dimension_numbers<[1], [0], [0], [1], [0, 0, 1, 1], [], []>} : vector<8x128xf32>, vector<128x128xf32>, vector<8x128xf32> -> vector<8x128xf32>
    %872 = arith.addf %871, %12 : vector<8x128xf32>
    %cst_461 = arith.constant 0.0113932295 : f32
    %873 = vector.broadcast %cst_461 : f32 to vector<8x128xf32>
    %874 = arith.mulf %873, %869 : vector<8x128xf32>
    %875 = arith.addf %846, %874 : vector<8x128xf32>
    %cst_462 = arith.constant 2.500000e-02 : f32
    %876 = vector.broadcast %cst_462 : f32 to vector<8x128xf32>
    %877 = arith.mulf %876, %872 : vector<8x128xf32>
    %878 = arith.addf %861, %877 : vector<8x128xf32>
    %879 = arith.addf %878, %6 : vector<8x128xf32>
    %cst_463 = arith.constant 0.000000e+00 : f32
    %880 = vector.broadcast %cst_463 : f32 to vector<8x128xf32>
    %881 = arith.maximumf %879, %880 : vector<8x128xf32>
    %c0_464 = arith.constant 0 : index
    %c0_465 = arith.constant 0 : index
    %882 = vector.load %arg6[%c0_464, %c0_465] : memref<128x128xf32, #tpu.memory_space<vmem>>, vector<128x128xf32>
    %cst_466 = arith.constant dense<0.000000e+00> : vector<8x128xf32>
    %883 = tpu.matmul %881, %882, %cst_466 {dimension_numbers = #tpu.dot_dimension_numbers<[1], [0], [0], [1], [0, 0, 1, 1], [], []>} : vector<8x128xf32>, vector<128x128xf32>, vector<8x128xf32> -> vector<8x128xf32>
    %884 = arith.addf %883, %9 : vector<8x128xf32>
    %cst_467 = arith.constant 0.000000e+00 : f32
    %885 = vector.broadcast %cst_467 : f32 to vector<8x128xf32>
    %886 = arith.maximumf %884, %885 : vector<8x128xf32>
    %c0_468 = arith.constant 0 : index
    %c0_469 = arith.constant 0 : index
    %887 = vector.load %arg8[%c0_468, %c0_469] : memref<128x128xf32, #tpu.memory_space<vmem>>, vector<128x128xf32>
    %cst_470 = arith.constant dense<0.000000e+00> : vector<8x128xf32>
    %888 = tpu.matmul %886, %887, %cst_470 {dimension_numbers = #tpu.dot_dimension_numbers<[1], [0], [0], [1], [0, 0, 1, 1], [], []>} : vector<8x128xf32>, vector<128x128xf32>, vector<8x128xf32> -> vector<8x128xf32>
    %889 = arith.addf %888, %12 : vector<8x128xf32>
    %cst_471 = arith.constant 9.375000e-03 : f32
    %890 = vector.broadcast %cst_471 : f32 to vector<8x128xf32>
    %891 = arith.mulf %890, %872 : vector<8x128xf32>
    %892 = arith.addf %861, %891 : vector<8x128xf32>
    %cst_472 = arith.constant 2.812500e-02 : f32
    %893 = vector.broadcast %cst_472 : f32 to vector<8x128xf32>
    %894 = arith.mulf %893, %889 : vector<8x128xf32>
    %895 = arith.addf %892, %894 : vector<8x128xf32>
    %896 = arith.addf %895, %6 : vector<8x128xf32>
    %cst_473 = arith.constant 0.000000e+00 : f32
    %897 = vector.broadcast %cst_473 : f32 to vector<8x128xf32>
    %898 = arith.maximumf %896, %897 : vector<8x128xf32>
    %c0_474 = arith.constant 0 : index
    %c0_475 = arith.constant 0 : index
    %899 = vector.load %arg6[%c0_474, %c0_475] : memref<128x128xf32, #tpu.memory_space<vmem>>, vector<128x128xf32>
    %cst_476 = arith.constant dense<0.000000e+00> : vector<8x128xf32>
    %900 = tpu.matmul %898, %899, %cst_476 {dimension_numbers = #tpu.dot_dimension_numbers<[1], [0], [0], [1], [0, 0, 1, 1], [], []>} : vector<8x128xf32>, vector<128x128xf32>, vector<8x128xf32> -> vector<8x128xf32>
    %901 = arith.addf %900, %9 : vector<8x128xf32>
    %cst_477 = arith.constant 0.000000e+00 : f32
    %902 = vector.broadcast %cst_477 : f32 to vector<8x128xf32>
    %903 = arith.maximumf %901, %902 : vector<8x128xf32>
    %c0_478 = arith.constant 0 : index
    %c0_479 = arith.constant 0 : index
    %904 = vector.load %arg8[%c0_478, %c0_479] : memref<128x128xf32, #tpu.memory_space<vmem>>, vector<128x128xf32>
    %cst_480 = arith.constant dense<0.000000e+00> : vector<8x128xf32>
    %905 = tpu.matmul %903, %904, %cst_480 {dimension_numbers = #tpu.dot_dimension_numbers<[1], [0], [0], [1], [0, 0, 1, 1], [], []>} : vector<8x128xf32>, vector<128x128xf32>, vector<8x128xf32> -> vector<8x128xf32>
    %906 = arith.addf %905, %12 : vector<8x128xf32>
    %cst_481 = arith.constant 0.0561545379 : f32
    %907 = vector.broadcast %cst_481 : f32 to vector<8x128xf32>
    %908 = arith.mulf %907, %903 : vector<8x128xf32>
    %909 = arith.addf %875, %908 : vector<8x128xf32>
    %cst_482 = arith.constant 0.122222222 : f32
    %910 = vector.broadcast %cst_482 : f32 to vector<8x128xf32>
    %911 = arith.mulf %910, %872 : vector<8x128xf32>
    %912 = arith.addf %861, %911 : vector<8x128xf32>
    %cst_483 = arith.constant -0.466666669 : f32
    %913 = vector.broadcast %cst_483 : f32 to vector<8x128xf32>
    %914 = arith.mulf %913, %889 : vector<8x128xf32>
    %915 = arith.addf %912, %914 : vector<8x128xf32>
    %cst_484 = arith.constant 0.444444448 : f32
    %916 = vector.broadcast %cst_484 : f32 to vector<8x128xf32>
    %917 = arith.mulf %916, %906 : vector<8x128xf32>
    %918 = arith.addf %915, %917 : vector<8x128xf32>
    %919 = arith.addf %918, %6 : vector<8x128xf32>
    %cst_485 = arith.constant 0.000000e+00 : f32
    %920 = vector.broadcast %cst_485 : f32 to vector<8x128xf32>
    %921 = arith.maximumf %919, %920 : vector<8x128xf32>
    %c0_486 = arith.constant 0 : index
    %c0_487 = arith.constant 0 : index
    %922 = vector.load %arg6[%c0_486, %c0_487] : memref<128x128xf32, #tpu.memory_space<vmem>>, vector<128x128xf32>
    %cst_488 = arith.constant dense<0.000000e+00> : vector<8x128xf32>
    %923 = tpu.matmul %921, %922, %cst_488 {dimension_numbers = #tpu.dot_dimension_numbers<[1], [0], [0], [1], [0, 0, 1, 1], [], []>} : vector<8x128xf32>, vector<128x128xf32>, vector<8x128xf32> -> vector<8x128xf32>
    %924 = arith.addf %923, %9 : vector<8x128xf32>
    %cst_489 = arith.constant 0.000000e+00 : f32
    %925 = vector.broadcast %cst_489 : f32 to vector<8x128xf32>
    %926 = arith.maximumf %924, %925 : vector<8x128xf32>
    %c0_490 = arith.constant 0 : index
    %c0_491 = arith.constant 0 : index
    %927 = vector.load %arg8[%c0_490, %c0_491] : memref<128x128xf32, #tpu.memory_space<vmem>>, vector<128x128xf32>
    %cst_492 = arith.constant dense<0.000000e+00> : vector<8x128xf32>
    %928 = tpu.matmul %926, %927, %cst_492 {dimension_numbers = #tpu.dot_dimension_numbers<[1], [0], [0], [1], [0, 0, 1, 1], [], []>} : vector<8x128xf32>, vector<128x128xf32>, vector<8x128xf32> -> vector<8x128xf32>
    %929 = arith.addf %928, %12 : vector<8x128xf32>
    %cst_493 = arith.constant 0.0813802108 : f32
    %930 = vector.broadcast %cst_493 : f32 to vector<8x128xf32>
    %931 = arith.mulf %930, %926 : vector<8x128xf32>
    %932 = arith.addf %909, %931 : vector<8x128xf32>
    %cst_494 = arith.constant 0.369074821 : f32
    %933 = vector.broadcast %cst_494 : f32 to vector<8x128xf32>
    %934 = arith.mulf %933, %872 : vector<8x128xf32>
    %935 = arith.addf %861, %934 : vector<8x128xf32>
    %cst_495 = arith.constant -1.44947422 : f32
    %936 = vector.broadcast %cst_495 : f32 to vector<8x128xf32>
    %937 = arith.mulf %936, %889 : vector<8x128xf32>
    %938 = arith.addf %935, %937 : vector<8x128xf32>
    %cst_496 = arith.constant 1.22786164 : f32
    %939 = vector.broadcast %cst_496 : f32 to vector<8x128xf32>
    %940 = arith.mulf %939, %906 : vector<8x128xf32>
    %941 = arith.addf %938, %940 : vector<8x128xf32>
    %cst_497 = arith.constant -0.0363511667 : f32
    %942 = vector.broadcast %cst_497 : f32 to vector<8x128xf32>
    %943 = arith.mulf %942, %929 : vector<8x128xf32>
    %944 = arith.addf %941, %943 : vector<8x128xf32>
    %945 = arith.addf %944, %6 : vector<8x128xf32>
    %cst_498 = arith.constant 0.000000e+00 : f32
    %946 = vector.broadcast %cst_498 : f32 to vector<8x128xf32>
    %947 = arith.maximumf %945, %946 : vector<8x128xf32>
    %c0_499 = arith.constant 0 : index
    %c0_500 = arith.constant 0 : index
    %948 = vector.load %arg6[%c0_499, %c0_500] : memref<128x128xf32, #tpu.memory_space<vmem>>, vector<128x128xf32>
    %cst_501 = arith.constant dense<0.000000e+00> : vector<8x128xf32>
    %949 = tpu.matmul %947, %948, %cst_501 {dimension_numbers = #tpu.dot_dimension_numbers<[1], [0], [0], [1], [0, 0, 1, 1], [], []>} : vector<8x128xf32>, vector<128x128xf32>, vector<8x128xf32> -> vector<8x128xf32>
    %950 = arith.addf %949, %9 : vector<8x128xf32>
    %cst_502 = arith.constant 0.000000e+00 : f32
    %951 = vector.broadcast %cst_502 : f32 to vector<8x128xf32>
    %952 = arith.maximumf %950, %951 : vector<8x128xf32>
    %c0_503 = arith.constant 0 : index
    %c0_504 = arith.constant 0 : index
    %953 = vector.load %arg8[%c0_503, %c0_504] : memref<128x128xf32, #tpu.memory_space<vmem>>, vector<128x128xf32>
    %cst_505 = arith.constant dense<0.000000e+00> : vector<8x128xf32>
    %954 = tpu.matmul %952, %953, %cst_505 {dimension_numbers = #tpu.dot_dimension_numbers<[1], [0], [0], [1], [0, 0, 1, 1], [], []>} : vector<8x128xf32>, vector<128x128xf32>, vector<8x128xf32> -> vector<8x128xf32>
    %955 = arith.addf %954, %12 : vector<8x128xf32>
    %cst_506 = arith.constant -0.040297024 : f32
    %956 = vector.broadcast %cst_506 : f32 to vector<8x128xf32>
    %957 = arith.mulf %956, %952 : vector<8x128xf32>
    %958 = arith.addf %932, %957 : vector<8x128xf32>
    %cst_507 = arith.constant 0.355784416 : f32
    %959 = vector.broadcast %cst_507 : f32 to vector<8x128xf32>
    %960 = arith.mulf %959, %872 : vector<8x128xf32>
    %961 = arith.addf %861, %960 : vector<8x128xf32>
    %cst_508 = arith.constant -1.344697 : f32
    %962 = vector.broadcast %cst_508 : f32 to vector<8x128xf32>
    %963 = arith.mulf %962, %889 : vector<8x128xf32>
    %964 = arith.addf %961, %963 : vector<8x128xf32>
    %cst_509 = arith.constant 1.11330283 : f32
    %965 = vector.broadcast %cst_509 : f32 to vector<8x128xf32>
    %966 = arith.mulf %965, %906 : vector<8x128xf32>
    %967 = arith.addf %964, %966 : vector<8x128xf32>
    %cst_510 = arith.constant 0.0348011367 : f32
    %968 = vector.broadcast %cst_510 : f32 to vector<8x128xf32>
    %969 = arith.mulf %968, %929 : vector<8x128xf32>
    %970 = arith.addf %967, %969 : vector<8x128xf32>
    %cst_511 = arith.constant -0.0341914147 : f32
    %971 = vector.broadcast %cst_511 : f32 to vector<8x128xf32>
    %972 = arith.mulf %971, %955 : vector<8x128xf32>
    %973 = arith.addf %970, %972 : vector<8x128xf32>
    %974 = arith.addf %973, %6 : vector<8x128xf32>
    %cst_512 = arith.constant 0.000000e+00 : f32
    %975 = vector.broadcast %cst_512 : f32 to vector<8x128xf32>
    %976 = arith.maximumf %974, %975 : vector<8x128xf32>
    %c0_513 = arith.constant 0 : index
    %c0_514 = arith.constant 0 : index
    %977 = vector.load %arg6[%c0_513, %c0_514] : memref<128x128xf32, #tpu.memory_space<vmem>>, vector<128x128xf32>
    %cst_515 = arith.constant dense<0.000000e+00> : vector<8x128xf32>
    %978 = tpu.matmul %976, %977, %cst_515 {dimension_numbers = #tpu.dot_dimension_numbers<[1], [0], [0], [1], [0, 0, 1, 1], [], []>} : vector<8x128xf32>, vector<128x128xf32>, vector<8x128xf32> -> vector<8x128xf32>
    %979 = arith.addf %978, %9 : vector<8x128xf32>
    %cst_516 = arith.constant 0.000000e+00 : f32
    %980 = vector.broadcast %cst_516 : f32 to vector<8x128xf32>
    %981 = arith.maximumf %979, %980 : vector<8x128xf32>
    %c0_517 = arith.constant 0 : index
    %c0_518 = arith.constant 0 : index
    %982 = vector.load %arg8[%c0_517, %c0_518] : memref<128x128xf32, #tpu.memory_space<vmem>>, vector<128x128xf32>
    %cst_519 = arith.constant dense<0.000000e+00> : vector<8x128xf32>
    %983 = tpu.matmul %981, %982, %cst_519 {dimension_numbers = #tpu.dot_dimension_numbers<[1], [0], [0], [1], [0, 0, 1, 1], [], []>} : vector<8x128xf32>, vector<128x128xf32>, vector<8x128xf32> -> vector<8x128xf32>
    %984 = arith.addf %983, %12 : vector<8x128xf32>
    %cst_520 = arith.constant 0.0163690485 : f32
    %985 = vector.broadcast %cst_520 : f32 to vector<8x128xf32>
    %986 = arith.mulf %985, %981 : vector<8x128xf32>
    %987 = arith.addf %958, %986 : vector<8x128xf32>
    %cst_521 = arith.constant 0.0113932295 : f32
    %988 = vector.broadcast %cst_521 : f32 to vector<8x128xf32>
    %989 = arith.mulf %988, %872 : vector<8x128xf32>
    %990 = arith.addf %861, %989 : vector<8x128xf32>
    %cst_522 = arith.constant 0.0561545379 : f32
    %991 = vector.broadcast %cst_522 : f32 to vector<8x128xf32>
    %992 = arith.mulf %991, %906 : vector<8x128xf32>
    %993 = arith.addf %990, %992 : vector<8x128xf32>
    %cst_523 = arith.constant 0.0813802108 : f32
    %994 = vector.broadcast %cst_523 : f32 to vector<8x128xf32>
    %995 = arith.mulf %994, %929 : vector<8x128xf32>
    %996 = arith.addf %993, %995 : vector<8x128xf32>
    %cst_524 = arith.constant -0.040297024 : f32
    %997 = vector.broadcast %cst_524 : f32 to vector<8x128xf32>
    %998 = arith.mulf %997, %955 : vector<8x128xf32>
    %999 = arith.addf %996, %998 : vector<8x128xf32>
    %cst_525 = arith.constant 0.0163690485 : f32
    %1000 = vector.broadcast %cst_525 : f32 to vector<8x128xf32>
    %1001 = arith.mulf %1000, %984 : vector<8x128xf32>
    %1002 = arith.addf %999, %1001 : vector<8x128xf32>
    %c7_i32 = arith.constant 7 : i32
    %1003 = arith.addf %1002, %6 : vector<8x128xf32>
    %cst_526 = arith.constant 0.000000e+00 : f32
    %1004 = vector.broadcast %cst_526 : f32 to vector<8x128xf32>
    %1005 = arith.maximumf %1003, %1004 : vector<8x128xf32>
    %c0_527 = arith.constant 0 : index
    %c0_528 = arith.constant 0 : index
    %1006 = vector.load %arg6[%c0_527, %c0_528] : memref<128x128xf32, #tpu.memory_space<vmem>>, vector<128x128xf32>
    %cst_529 = arith.constant dense<0.000000e+00> : vector<8x128xf32>
    %1007 = tpu.matmul %1005, %1006, %cst_529 {dimension_numbers = #tpu.dot_dimension_numbers<[1], [0], [0], [1], [0, 0, 1, 1], [], []>} : vector<8x128xf32>, vector<128x128xf32>, vector<8x128xf32> -> vector<8x128xf32>
    %1008 = arith.addf %1007, %9 : vector<8x128xf32>
    %cst_530 = arith.constant 0.000000e+00 : f32
    %1009 = vector.broadcast %cst_530 : f32 to vector<8x128xf32>
    %1010 = arith.maximumf %1008, %1009 : vector<8x128xf32>
    %c0_531 = arith.constant 0 : index
    %c0_532 = arith.constant 0 : index
    %1011 = vector.load %arg8[%c0_531, %c0_532] : memref<128x128xf32, #tpu.memory_space<vmem>>, vector<128x128xf32>
    %cst_533 = arith.constant dense<0.000000e+00> : vector<8x128xf32>
    %1012 = tpu.matmul %1010, %1011, %cst_533 {dimension_numbers = #tpu.dot_dimension_numbers<[1], [0], [0], [1], [0, 0, 1, 1], [], []>} : vector<8x128xf32>, vector<128x128xf32>, vector<8x128xf32> -> vector<8x128xf32>
    %1013 = arith.addf %1012, %12 : vector<8x128xf32>
    %cst_534 = arith.constant 0.0113932295 : f32
    %1014 = vector.broadcast %cst_534 : f32 to vector<8x128xf32>
    %1015 = arith.mulf %1014, %1010 : vector<8x128xf32>
    %1016 = arith.addf %987, %1015 : vector<8x128xf32>
    %cst_535 = arith.constant 2.500000e-02 : f32
    %1017 = vector.broadcast %cst_535 : f32 to vector<8x128xf32>
    %1018 = arith.mulf %1017, %1013 : vector<8x128xf32>
    %1019 = arith.addf %1002, %1018 : vector<8x128xf32>
    %1020 = arith.addf %1019, %6 : vector<8x128xf32>
    %cst_536 = arith.constant 0.000000e+00 : f32
    %1021 = vector.broadcast %cst_536 : f32 to vector<8x128xf32>
    %1022 = arith.maximumf %1020, %1021 : vector<8x128xf32>
    %c0_537 = arith.constant 0 : index
    %c0_538 = arith.constant 0 : index
    %1023 = vector.load %arg6[%c0_537, %c0_538] : memref<128x128xf32, #tpu.memory_space<vmem>>, vector<128x128xf32>
    %cst_539 = arith.constant dense<0.000000e+00> : vector<8x128xf32>
    %1024 = tpu.matmul %1022, %1023, %cst_539 {dimension_numbers = #tpu.dot_dimension_numbers<[1], [0], [0], [1], [0, 0, 1, 1], [], []>} : vector<8x128xf32>, vector<128x128xf32>, vector<8x128xf32> -> vector<8x128xf32>
    %1025 = arith.addf %1024, %9 : vector<8x128xf32>
    %cst_540 = arith.constant 0.000000e+00 : f32
    %1026 = vector.broadcast %cst_540 : f32 to vector<8x128xf32>
    %1027 = arith.maximumf %1025, %1026 : vector<8x128xf32>
    %c0_541 = arith.constant 0 : index
    %c0_542 = arith.constant 0 : index
    %1028 = vector.load %arg8[%c0_541, %c0_542] : memref<128x128xf32, #tpu.memory_space<vmem>>, vector<128x128xf32>
    %cst_543 = arith.constant dense<0.000000e+00> : vector<8x128xf32>
    %1029 = tpu.matmul %1027, %1028, %cst_543 {dimension_numbers = #tpu.dot_dimension_numbers<[1], [0], [0], [1], [0, 0, 1, 1], [], []>} : vector<8x128xf32>, vector<128x128xf32>, vector<8x128xf32> -> vector<8x128xf32>
    %1030 = arith.addf %1029, %12 : vector<8x128xf32>
    %cst_544 = arith.constant 9.375000e-03 : f32
    %1031 = vector.broadcast %cst_544 : f32 to vector<8x128xf32>
    %1032 = arith.mulf %1031, %1013 : vector<8x128xf32>
    %1033 = arith.addf %1002, %1032 : vector<8x128xf32>
    %cst_545 = arith.constant 2.812500e-02 : f32
    %1034 = vector.broadcast %cst_545 : f32 to vector<8x128xf32>
    %1035 = arith.mulf %1034, %1030 : vector<8x128xf32>
    %1036 = arith.addf %1033, %1035 : vector<8x128xf32>
    %1037 = arith.addf %1036, %6 : vector<8x128xf32>
    %cst_546 = arith.constant 0.000000e+00 : f32
    %1038 = vector.broadcast %cst_546 : f32 to vector<8x128xf32>
    %1039 = arith.maximumf %1037, %1038 : vector<8x128xf32>
    %c0_547 = arith.constant 0 : index
    %c0_548 = arith.constant 0 : index
    %1040 = vector.load %arg6[%c0_547, %c0_548] : memref<128x128xf32, #tpu.memory_space<vmem>>, vector<128x128xf32>
    %cst_549 = arith.constant dense<0.000000e+00> : vector<8x128xf32>
    %1041 = tpu.matmul %1039, %1040, %cst_549 {dimension_numbers = #tpu.dot_dimension_numbers<[1], [0], [0], [1], [0, 0, 1, 1], [], []>} : vector<8x128xf32>, vector<128x128xf32>, vector<8x128xf32> -> vector<8x128xf32>
    %1042 = arith.addf %1041, %9 : vector<8x128xf32>
    %cst_550 = arith.constant 0.000000e+00 : f32
    %1043 = vector.broadcast %cst_550 : f32 to vector<8x128xf32>
    %1044 = arith.maximumf %1042, %1043 : vector<8x128xf32>
    %c0_551 = arith.constant 0 : index
    %c0_552 = arith.constant 0 : index
    %1045 = vector.load %arg8[%c0_551, %c0_552] : memref<128x128xf32, #tpu.memory_space<vmem>>, vector<128x128xf32>
    %cst_553 = arith.constant dense<0.000000e+00> : vector<8x128xf32>
    %1046 = tpu.matmul %1044, %1045, %cst_553 {dimension_numbers = #tpu.dot_dimension_numbers<[1], [0], [0], [1], [0, 0, 1, 1], [], []>} : vector<8x128xf32>, vector<128x128xf32>, vector<8x128xf32> -> vector<8x128xf32>
    %1047 = arith.addf %1046, %12 : vector<8x128xf32>
    %cst_554 = arith.constant 0.0561545379 : f32
    %1048 = vector.broadcast %cst_554 : f32 to vector<8x128xf32>
    %1049 = arith.mulf %1048, %1044 : vector<8x128xf32>
    %1050 = arith.addf %1016, %1049 : vector<8x128xf32>
    %cst_555 = arith.constant 0.122222222 : f32
    %1051 = vector.broadcast %cst_555 : f32 to vector<8x128xf32>
    %1052 = arith.mulf %1051, %1013 : vector<8x128xf32>
    %1053 = arith.addf %1002, %1052 : vector<8x128xf32>
    %cst_556 = arith.constant -0.466666669 : f32
    %1054 = vector.broadcast %cst_556 : f32 to vector<8x128xf32>
    %1055 = arith.mulf %1054, %1030 : vector<8x128xf32>
    %1056 = arith.addf %1053, %1055 : vector<8x128xf32>
    %cst_557 = arith.constant 0.444444448 : f32
    %1057 = vector.broadcast %cst_557 : f32 to vector<8x128xf32>
    %1058 = arith.mulf %1057, %1047 : vector<8x128xf32>
    %1059 = arith.addf %1056, %1058 : vector<8x128xf32>
    %1060 = arith.addf %1059, %6 : vector<8x128xf32>
    %cst_558 = arith.constant 0.000000e+00 : f32
    %1061 = vector.broadcast %cst_558 : f32 to vector<8x128xf32>
    %1062 = arith.maximumf %1060, %1061 : vector<8x128xf32>
    %c0_559 = arith.constant 0 : index
    %c0_560 = arith.constant 0 : index
    %1063 = vector.load %arg6[%c0_559, %c0_560] : memref<128x128xf32, #tpu.memory_space<vmem>>, vector<128x128xf32>
    %cst_561 = arith.constant dense<0.000000e+00> : vector<8x128xf32>
    %1064 = tpu.matmul %1062, %1063, %cst_561 {dimension_numbers = #tpu.dot_dimension_numbers<[1], [0], [0], [1], [0, 0, 1, 1], [], []>} : vector<8x128xf32>, vector<128x128xf32>, vector<8x128xf32> -> vector<8x128xf32>
    %1065 = arith.addf %1064, %9 : vector<8x128xf32>
    %cst_562 = arith.constant 0.000000e+00 : f32
    %1066 = vector.broadcast %cst_562 : f32 to vector<8x128xf32>
    %1067 = arith.maximumf %1065, %1066 : vector<8x128xf32>
    %c0_563 = arith.constant 0 : index
    %c0_564 = arith.constant 0 : index
    %1068 = vector.load %arg8[%c0_563, %c0_564] : memref<128x128xf32, #tpu.memory_space<vmem>>, vector<128x128xf32>
    %cst_565 = arith.constant dense<0.000000e+00> : vector<8x128xf32>
    %1069 = tpu.matmul %1067, %1068, %cst_565 {dimension_numbers = #tpu.dot_dimension_numbers<[1], [0], [0], [1], [0, 0, 1, 1], [], []>} : vector<8x128xf32>, vector<128x128xf32>, vector<8x128xf32> -> vector<8x128xf32>
    %1070 = arith.addf %1069, %12 : vector<8x128xf32>
    %cst_566 = arith.constant 0.0813802108 : f32
    %1071 = vector.broadcast %cst_566 : f32 to vector<8x128xf32>
    %1072 = arith.mulf %1071, %1067 : vector<8x128xf32>
    %1073 = arith.addf %1050, %1072 : vector<8x128xf32>
    %cst_567 = arith.constant 0.369074821 : f32
    %1074 = vector.broadcast %cst_567 : f32 to vector<8x128xf32>
    %1075 = arith.mulf %1074, %1013 : vector<8x128xf32>
    %1076 = arith.addf %1002, %1075 : vector<8x128xf32>
    %cst_568 = arith.constant -1.44947422 : f32
    %1077 = vector.broadcast %cst_568 : f32 to vector<8x128xf32>
    %1078 = arith.mulf %1077, %1030 : vector<8x128xf32>
    %1079 = arith.addf %1076, %1078 : vector<8x128xf32>
    %cst_569 = arith.constant 1.22786164 : f32
    %1080 = vector.broadcast %cst_569 : f32 to vector<8x128xf32>
    %1081 = arith.mulf %1080, %1047 : vector<8x128xf32>
    %1082 = arith.addf %1079, %1081 : vector<8x128xf32>
    %cst_570 = arith.constant -0.0363511667 : f32
    %1083 = vector.broadcast %cst_570 : f32 to vector<8x128xf32>
    %1084 = arith.mulf %1083, %1070 : vector<8x128xf32>
    %1085 = arith.addf %1082, %1084 : vector<8x128xf32>
    %1086 = arith.addf %1085, %6 : vector<8x128xf32>
    %cst_571 = arith.constant 0.000000e+00 : f32
    %1087 = vector.broadcast %cst_571 : f32 to vector<8x128xf32>
    %1088 = arith.maximumf %1086, %1087 : vector<8x128xf32>
    %c0_572 = arith.constant 0 : index
    %c0_573 = arith.constant 0 : index
    %1089 = vector.load %arg6[%c0_572, %c0_573] : memref<128x128xf32, #tpu.memory_space<vmem>>, vector<128x128xf32>
    %cst_574 = arith.constant dense<0.000000e+00> : vector<8x128xf32>
    %1090 = tpu.matmul %1088, %1089, %cst_574 {dimension_numbers = #tpu.dot_dimension_numbers<[1], [0], [0], [1], [0, 0, 1, 1], [], []>} : vector<8x128xf32>, vector<128x128xf32>, vector<8x128xf32> -> vector<8x128xf32>
    %1091 = arith.addf %1090, %9 : vector<8x128xf32>
    %cst_575 = arith.constant 0.000000e+00 : f32
    %1092 = vector.broadcast %cst_575 : f32 to vector<8x128xf32>
    %1093 = arith.maximumf %1091, %1092 : vector<8x128xf32>
    %c0_576 = arith.constant 0 : index
    %c0_577 = arith.constant 0 : index
    %1094 = vector.load %arg8[%c0_576, %c0_577] : memref<128x128xf32, #tpu.memory_space<vmem>>, vector<128x128xf32>
    %cst_578 = arith.constant dense<0.000000e+00> : vector<8x128xf32>
    %1095 = tpu.matmul %1093, %1094, %cst_578 {dimension_numbers = #tpu.dot_dimension_numbers<[1], [0], [0], [1], [0, 0, 1, 1], [], []>} : vector<8x128xf32>, vector<128x128xf32>, vector<8x128xf32> -> vector<8x128xf32>
    %1096 = arith.addf %1095, %12 : vector<8x128xf32>
    %cst_579 = arith.constant -0.040297024 : f32
    %1097 = vector.broadcast %cst_579 : f32 to vector<8x128xf32>
    %1098 = arith.mulf %1097, %1093 : vector<8x128xf32>
    %1099 = arith.addf %1073, %1098 : vector<8x128xf32>
    %cst_580 = arith.constant 0.355784416 : f32
    %1100 = vector.broadcast %cst_580 : f32 to vector<8x128xf32>
    %1101 = arith.mulf %1100, %1013 : vector<8x128xf32>
    %1102 = arith.addf %1002, %1101 : vector<8x128xf32>
    %cst_581 = arith.constant -1.344697 : f32
    %1103 = vector.broadcast %cst_581 : f32 to vector<8x128xf32>
    %1104 = arith.mulf %1103, %1030 : vector<8x128xf32>
    %1105 = arith.addf %1102, %1104 : vector<8x128xf32>
    %cst_582 = arith.constant 1.11330283 : f32
    %1106 = vector.broadcast %cst_582 : f32 to vector<8x128xf32>
    %1107 = arith.mulf %1106, %1047 : vector<8x128xf32>
    %1108 = arith.addf %1105, %1107 : vector<8x128xf32>
    %cst_583 = arith.constant 0.0348011367 : f32
    %1109 = vector.broadcast %cst_583 : f32 to vector<8x128xf32>
    %1110 = arith.mulf %1109, %1070 : vector<8x128xf32>
    %1111 = arith.addf %1108, %1110 : vector<8x128xf32>
    %cst_584 = arith.constant -0.0341914147 : f32
    %1112 = vector.broadcast %cst_584 : f32 to vector<8x128xf32>
    %1113 = arith.mulf %1112, %1096 : vector<8x128xf32>
    %1114 = arith.addf %1111, %1113 : vector<8x128xf32>
    %1115 = arith.addf %1114, %6 : vector<8x128xf32>
    %cst_585 = arith.constant 0.000000e+00 : f32
    %1116 = vector.broadcast %cst_585 : f32 to vector<8x128xf32>
    %1117 = arith.maximumf %1115, %1116 : vector<8x128xf32>
    %c0_586 = arith.constant 0 : index
    %c0_587 = arith.constant 0 : index
    %1118 = vector.load %arg6[%c0_586, %c0_587] : memref<128x128xf32, #tpu.memory_space<vmem>>, vector<128x128xf32>
    %cst_588 = arith.constant dense<0.000000e+00> : vector<8x128xf32>
    %1119 = tpu.matmul %1117, %1118, %cst_588 {dimension_numbers = #tpu.dot_dimension_numbers<[1], [0], [0], [1], [0, 0, 1, 1], [], []>} : vector<8x128xf32>, vector<128x128xf32>, vector<8x128xf32> -> vector<8x128xf32>
    %1120 = arith.addf %1119, %9 : vector<8x128xf32>
    %cst_589 = arith.constant 0.000000e+00 : f32
    %1121 = vector.broadcast %cst_589 : f32 to vector<8x128xf32>
    %1122 = arith.maximumf %1120, %1121 : vector<8x128xf32>
    %c0_590 = arith.constant 0 : index
    %c0_591 = arith.constant 0 : index
    %1123 = vector.load %arg8[%c0_590, %c0_591] : memref<128x128xf32, #tpu.memory_space<vmem>>, vector<128x128xf32>
    %cst_592 = arith.constant dense<0.000000e+00> : vector<8x128xf32>
    %1124 = tpu.matmul %1122, %1123, %cst_592 {dimension_numbers = #tpu.dot_dimension_numbers<[1], [0], [0], [1], [0, 0, 1, 1], [], []>} : vector<8x128xf32>, vector<128x128xf32>, vector<8x128xf32> -> vector<8x128xf32>
    %1125 = arith.addf %1124, %12 : vector<8x128xf32>
    %cst_593 = arith.constant 0.0163690485 : f32
    %1126 = vector.broadcast %cst_593 : f32 to vector<8x128xf32>
    %1127 = arith.mulf %1126, %1122 : vector<8x128xf32>
    %1128 = arith.addf %1099, %1127 : vector<8x128xf32>
    %cst_594 = arith.constant 0.0113932295 : f32
    %1129 = vector.broadcast %cst_594 : f32 to vector<8x128xf32>
    %1130 = arith.mulf %1129, %1013 : vector<8x128xf32>
    %1131 = arith.addf %1002, %1130 : vector<8x128xf32>
    %cst_595 = arith.constant 0.0561545379 : f32
    %1132 = vector.broadcast %cst_595 : f32 to vector<8x128xf32>
    %1133 = arith.mulf %1132, %1047 : vector<8x128xf32>
    %1134 = arith.addf %1131, %1133 : vector<8x128xf32>
    %cst_596 = arith.constant 0.0813802108 : f32
    %1135 = vector.broadcast %cst_596 : f32 to vector<8x128xf32>
    %1136 = arith.mulf %1135, %1070 : vector<8x128xf32>
    %1137 = arith.addf %1134, %1136 : vector<8x128xf32>
    %cst_597 = arith.constant -0.040297024 : f32
    %1138 = vector.broadcast %cst_597 : f32 to vector<8x128xf32>
    %1139 = arith.mulf %1138, %1096 : vector<8x128xf32>
    %1140 = arith.addf %1137, %1139 : vector<8x128xf32>
    %cst_598 = arith.constant 0.0163690485 : f32
    %1141 = vector.broadcast %cst_598 : f32 to vector<8x128xf32>
    %1142 = arith.mulf %1141, %1125 : vector<8x128xf32>
    %1143 = arith.addf %1140, %1142 : vector<8x128xf32>
    %c0_599 = arith.constant 0 : index
    %c0_600 = arith.constant 0 : index
    %1144 = vector.load %arg10[%c0_599, %c0_600] : memref<128x4xf32, #tpu.memory_space<vmem>>, vector<128x4xf32>
    %cst_601 = arith.constant dense<0.000000e+00> : vector<8x4xf32>
    %1145 = tpu.matmul %1128, %1144, %cst_601 {dimension_numbers = #tpu.dot_dimension_numbers<[1], [0], [0], [1], [0, 0, 1, 1], [], []>} : vector<8x128xf32>, vector<128x4xf32>, vector<8x4xf32> -> vector<8x4xf32>
    %1146 = arith.addf %0, %1145 : vector<8x4xf32>
    %c0_602 = arith.constant 0 : index
    %c0_603 = arith.constant 0 : index
    %1147 = vector.load %arg11[%c0_602, %c0_603] : memref<1x4xf32, #tpu.memory_space<vmem>>, vector<1x4xf32>
    %cst_604 = arith.constant 1.000000e+00 : f32
    %1148 = vector.broadcast %cst_604 : f32 to vector<1x4xf32>
    %1149 = arith.mulf %1148, %1147 : vector<1x4xf32>
    %1150 = vector.broadcast %1149 : vector<1x4xf32> to vector<8x4xf32>
    %1151 = arith.addf %1146, %1150 : vector<8x4xf32>
    %c0_605 = arith.constant 0 : index
    %c0_606 = arith.constant 0 : index
    %1152 = vector.load %arg12[%c0_605, %c0_606] : memref<8x4xf32, #tpu.memory_space<vmem>>, vector<8x4xf32>
    tpu.vector_store %arg12[%c0_605, %c0_606], %1151 {strides = array<i32>} : memref<8x4xf32, #tpu.memory_space<vmem>>, vector<8x4xf32>,
    return
  }
  func.func @transform_0(%arg0: i32) -> (i32, i32) {
    %c0_i32 = arith.constant 0 : i32
    %c0_i32_0 = arith.constant 0 : i32
    return %arg0, %c0_i32 : i32, i32
  }
  func.func @transform_1(%arg0: i32) -> (i32, i32) {
    %c0_i32 = arith.constant 0 : i32
    %c0_i32_0 = arith.constant 0 : i32
    return %arg0, %c0_i32 : i32, i32
  }
  func.func @transform_2(%arg0: i32) -> (i32, i32) {
    %c0_i32 = arith.constant 0 : i32
    %c0_i32_0 = arith.constant 0 : i32
    %c0_i32_1 = arith.constant 0 : i32
    return %c0_i32, %c0_i32_0 : i32, i32
  }
  func.func @transform_3(%arg0: i32) -> (i32, i32) {
    %c0_i32 = arith.constant 0 : i32
    %c0_i32_0 = arith.constant 0 : i32
    %c0_i32_1 = arith.constant 0 : i32
    return %c0_i32, %c0_i32_0 : i32, i32
  }
  func.func @transform_4(%arg0: i32) -> (i32, i32) {
    %c0_i32 = arith.constant 0 : i32
    %c0_i32_0 = arith.constant 0 : i32
    %c0_i32_1 = arith.constant 0 : i32
    return %c0_i32, %c0_i32_0 : i32, i32
  }
  func.func @transform_5(%arg0: i32) -> (i32, i32) {
    %c0_i32 = arith.constant 0 : i32
    %c0_i32_0 = arith.constant 0 : i32
    %c0_i32_1 = arith.constant 0 : i32
    return %c0_i32, %c0_i32_0 : i32, i32
  }
  func.func @transform_6(%arg0: i32) -> (i32, i32) {
    %c0_i32 = arith.constant 0 : i32
    %c0_i32_0 = arith.constant 0 : i32
    %c0_i32_1 = arith.constant 0 : i32
    return %c0_i32, %c0_i32_0 : i32, i32
  }
  func.func @transform_7(%arg0: i32) -> (i32, i32) {
    %c0_i32 = arith.constant 0 : i32
    %c0_i32_0 = arith.constant 0 : i32
    %c0_i32_1 = arith.constant 0 : i32
    return %c0_i32, %c0_i32_0 : i32, i32
  }
  func.func @transform_8(%arg0: i32) -> (i32, i32) {
    %c0_i32 = arith.constant 0 : i32
    %c0_i32_0 = arith.constant 0 : i32
    %c0_i32_1 = arith.constant 0 : i32
    return %c0_i32, %c0_i32_0 : i32, i32
  }
  func.func @transform_9(%arg0: i32) -> (i32, i32) {
    %c0_i32 = arith.constant 0 : i32
    %c0_i32_0 = arith.constant 0 : i32
    %c0_i32_1 = arith.constant 0 : i32
    return %c0_i32, %c0_i32_0 : i32, i32
  }
  func.func @transform_10(%arg0: i32) -> (i32, i32) {
    %c0_i32 = arith.constant 0 : i32
    %c0_i32_0 = arith.constant 0 : i32
    %c0_i32_1 = arith.constant 0 : i32
    return %c0_i32, %c0_i32_0 : i32, i32
  }
  func.func @transform_11(%arg0: i32) -> (i32, i32) {
    %c0_i32 = arith.constant 0 : i32
    %c0_i32_0 = arith.constant 0 : i32
    return %arg0, %c0_i32 : i32, i32
  }
}

</mosaic_0001>

<llo_original>
// kernel: tpu_custom_call.1
$region0: #{tpu_custom_call.1}
  #allocation0 [shape = 'u32[]', space=smem, size = 0x4, offset = 0x4, fixed_abs, tag = 'smem constant byte address 0x4 - core index']
  #allocation1 [shape = 'u32[144,128]{1,0:T(1,128)}', space=vmem, size = 0x12000, scoped, tag = 'internal scratch']
  %s0 = inlined_call_operand.vmem [shape: f32[8,4], index: 0, kind: input, shape index: {}]
  %s1 = inlined_call_operand.vmem [shape: f32[8,2], index: 1, kind: input, shape index: {}]
  %s2 = inlined_call_operand.vmem [shape: f32[4,128], index: 2, kind: input, shape index: {}]
  %s3 = inlined_call_operand.vmem [shape: f32[2,128], index: 3, kind: input, shape index: {}]
  %s4 = inlined_call_operand.vmem [shape: f32[1,128], index: 4, kind: input, shape index: {}]
  %s5 = inlined_call_operand.vmem [shape: f32[128,128], index: 5, kind: input, shape index: {}]
  %s6 = inlined_call_operand.vmem [shape: f32[1,128], index: 6, kind: input, shape index: {}]
  %s7 = inlined_call_operand.hbm [shape: f32[128,128], index: 7, kind: input, shape index: {}]
  %s8 = inlined_call_operand.vmem [shape: f32[1,128], index: 8, kind: input, shape index: {}]
  %s9 = inlined_call_operand.vmem [shape: f32[128,4], index: 9, kind: input, shape index: {}]
  %s10 = inlined_call_operand.vmem [shape: f32[1,4], index: 10, kind: input, shape index: {}]
  %s11 = inlined_call_operand.vmem [shape: f32[8,4], index: 11, kind: output, shape index: {}]
  %s12 = sld [smem:[#allocation0]]
  $region58: #{tpu_custom_call.1} parent=0
    _
  %s14 = ssub.s32 1, %s12
  %s15 = scalar_select 0, %s14, %s12
  $region1: #{tpu_custom_call.1} parent=0
    #allocation2 [shape = 'u8[65536]{0}', space=vmem, size = 0x10000, scoped, tag = 'input window, operand 7, single buffered']
    #allocation3 [shape = 's32[1]{0}', space=sflag, size = 0x4, scoped, tag = 'scoped memory for tpu_custom_call.1']
    %16 = vsyncpa [#allocation3], 0
    // Predicated region
    $region2: #{tpu_custom_call.1} parent=1 // pred_check
      _
    $region3: #{tpu_custom_call.1} parent=1 // pred_check_branch
      %18 = sbr.rel (0) target = $region5
    $region4: #{tpu_custom_call.1} parent=1 // pred_region
      _
    $region5: #{tpu_custom_call.1} parent=1 // pred_fallthru
      _
    // Predicated region
    $region6: #{tpu_custom_call.1} parent=1 // pred_check
      _
    $region7: #{tpu_custom_call.1} parent=1 // pred_check_branch
      %20 = sbr.rel (0) target = $region9
    $region8: #{tpu_custom_call.1} parent=1 // pred_region
      _
    $region9: #{tpu_custom_call.1} parent=1 // pred_fallthru
      _
    // Predicated region
    $region10: #{tpu_custom_call.1} parent=1 // pred_check
      _
    $region11: #{tpu_custom_call.1} parent=1 // pred_check_branch
      %22 = sbr.rel (0) target = $region13
    $region12: #{tpu_custom_call.1} parent=1 // pred_region
      _
    $region13: #{tpu_custom_call.1} parent=1 // pred_fallthru
      _
    // Predicated region
    $region14: #{tpu_custom_call.1} parent=1 // pred_check
      _
    $region15: #{tpu_custom_call.1} parent=1 // pred_check_branch
      %24 = sbr.rel (0) target = $region17
    $region16: #{tpu_custom_call.1} parent=1 // pred_region
      _
    $region17: #{tpu_custom_call.1} parent=1 // pred_fallthru
      _
    // Predicated region
    $region18: #{tpu_custom_call.1} parent=1 // pred_check
      _
    $region19: #{tpu_custom_call.1} parent=1 // pred_check_branch
      %26 = sbr.rel (0) target = $region21
    $region20: #{tpu_custom_call.1} parent=1 // pred_region
      _
    $region21: #{tpu_custom_call.1} parent=1 // pred_fallthru
      _
    // Predicated region
    $region22: #{tpu_custom_call.1} parent=1 // pred_check
      _
    $region23: #{tpu_custom_call.1} parent=1 // pred_check_branch
      %28 = sbr.rel (0) target = $region25
    $region24: #{tpu_custom_call.1} parent=1 // pred_region
      _
    $region25: #{tpu_custom_call.1} parent=1 // pred_fallthru
      _
    // Predicated region
    $region26: #{tpu_custom_call.1} parent=1 // pred_check
      _
    $region27: #{tpu_custom_call.1} parent=1 // pred_check_branch
      %30 = sbr.rel (0) target = $region29
    $region28: #{tpu_custom_call.1} parent=1 // pred_region
      _
    $region29: #{tpu_custom_call.1} parent=1 // pred_fallthru
      _
    // Predicated region
    $region30: #{tpu_custom_call.1} parent=1 // pred_check
      _
    $region31: #{tpu_custom_call.1} parent=1 // pred_check_branch
      %32 = sbr.rel (0) target = $region33
    $region32: #{tpu_custom_call.1} parent=1 // pred_region
      %s34 = ssub.s32 2048, 2048
      %35 = vsyncadd [#allocation3], %s34
      %s36 = sshll.u32 [#allocation2], 4
      %s37 = int_to_ptr.vmem [resolvable:$true] %s36
      %42 = dma.hbm_to_vmem [thread:$0]  %s7, 2048, %s37, [#allocation3], 128, 128, 8
    $region33: #{tpu_custom_call.1} parent=1 // pred_fallthru
      _
    // Predicated region
    $region34: #{tpu_custom_call.1} parent=1 // pred_check
      _
    $region35: #{tpu_custom_call.1} parent=1 // pred_check_branch
      %44 = sbr.rel (0) target = $region37
    $region36: #{tpu_custom_call.1} parent=1 // pred_region
      _
    $region37: #{tpu_custom_call.1} parent=1 // pred_fallthru
      _
    // Predicated region
    $region38: #{tpu_custom_call.1} parent=1 // pred_check
      _
    $region39: #{tpu_custom_call.1} parent=1 // pred_check_branch
      %46 = sbr.rel (0) target = $region41
    $region40: #{tpu_custom_call.1} parent=1 // pred_region
      _
    $region41: #{tpu_custom_call.1} parent=1 // pred_fallthru
      _
    // Predicated region
    $region42: #{tpu_custom_call.1} parent=1 // pred_check
      _
    $region43: #{tpu_custom_call.1} parent=1 // pred_check_branch
      %48 = sbr.rel (0) target = $region45
    $region44: #{tpu_custom_call.1} parent=1 // pred_region
      _
    $region45: #{tpu_custom_call.1} parent=1 // pred_fallthru
      _
    // Predicated region
    $region46: #{tpu_custom_call.1} parent=1 // pred_check
      _
    $region47: #{tpu_custom_call.1} parent=1 // pred_check_branch
      %50 = sbr.rel (0) target = $region49
    $region48: #{tpu_custom_call.1} parent=1 // pred_region
      %51 = dma.done [#allocation3], 2048
    $region49: #{tpu_custom_call.1} parent=1 // pred_fallthru
      _
    %v52 = vld [vmem:[%s0] sm:$0xff]
    %v53 = vld [vmem:[%s1] sm:$0xff]
    %v54 = vld [vmem:[%s3] sm:$0x3]
    %v55 = vld [vmem:[%s4] sm:$0x1]
    %v57 = vlaneseq
    %v58 = vshrl.u32 %v57, 7
    %v59 = vsub.s32 0, %v58
    %v60 = vrot.slane %v55, %v59
    %vm62 = vcmask 15360
    %v64 = vsel %vm62, %v53, 0
    %vm66 = vcmask 1041408
    %v68 = vsel %vm66, %v54, 0
    %70 = vmatprep.subr.mxu0 0.0
    %71 = vmatpush1.msra.mxu0 0.0
    %72 = vmatprep.subr.mxu0 0.0
    %73 = vmatpush1.msra.mxu0 0.0
    %74 = vmatprep.subr.mxu0 0.0
    %75 = vmatpush1.msra.mxu0 0.0
    %76 = vmatprep.subr.mxu0 0.0
    %77 = vmatpush1.msra.mxu0 0.0
    %78 = vmatprep.subr.mxu0 0.0
    %79 = vmatpush1.msra.mxu0 0.0
    %80 = vmatprep.subr.mxu0 0.0
    %81 = vmatpush1.msra.mxu0 0.0
    %82 = vmatprep.subr.mxu0 0.0
    %83 = vmatpush1.msra.mxu0 0.0
    %84 = vmatprep.subr.mxu0 0.0
    %85 = vmatpush1.msra.mxu0 0.0
    %86 = vmatprep.subr.mxu0 0.0
    %87 = vmatpush1.msra.mxu0 0.0
    %88 = vmatprep.subr.mxu0 0.0
    %89 = vmatpush1.msra.mxu0 0.0
    %90 = vmatprep.subr.mxu0 0.0
    %91 = vmatpush1.msra.mxu0 0.0
    %92 = vmatprep.subr.mxu0 0.0
    %93 = vmatpush1.msra.mxu0 0.0
    %94 = vmatprep.subr.mxu0 0.0
    %95 = vmatpush1.msra.mxu0 0.0
    %96 = vmatprep.subr.mxu0 0.0
    %97 = vmatpush1.msra.mxu0 0.0
    %98 = vmatprep.subr.mxu0 0.0
    %99 = vmatpush1.msra.mxu0 0.0
    %100 = vmatprep.subr.mxu0 0.0
    %101 = vmatpush1.msra.mxu0 %v68
    %102 = vmatprep.subr.mxu0 0.0
    %103 = vmatpush2.msra.mxu0 0.0
    %104 = vmatprep.subr.mxu0 0.0
    %105 = vmatpush2.msra.mxu0 0.0
    %106 = vmatprep.subr.mxu0 0.0
    %107 = vmatpush2.msra.mxu0 0.0
    %108 = vmatprep.subr.mxu0 0.0
    %109 = vmatpush2.msra.mxu0 0.0
    %110 = vmatprep.subr.mxu0 0.0
    %111 = vmatpush2.msra.mxu0 0.0
    %112 = vmatprep.subr.mxu0 0.0
    %113 = vmatpush2.msra.mxu0 0.0
    %114 = vmatprep.subr.mxu0 0.0
    %115 = vmatpush2.msra.mxu0 0.0
    %116 = vmatprep.subr.mxu0 0.0
    %117 = vmatpush2.msra.mxu0 0.0
    %118 = vmatprep.subr.mxu0 0.0
    %119 = vmatpush2.msra.mxu0 0.0
    %120 = vmatprep.subr.mxu0 0.0
    %121 = vmatpush2.msra.mxu0 0.0
    %122 = vmatprep.subr.mxu0 0.0
    %123 = vmatpush2.msra.mxu0 0.0
    %124 = vmatprep.subr.mxu0 0.0
    %125 = vmatpush2.msra.mxu0 0.0
    %126 = vmatprep.subr.mxu0 0.0
    %127 = vmatpush2.msra.mxu0 0.0
    %128 = vmatprep.subr.mxu0 0.0
    %129 = vmatpush2.msra.mxu0 0.0
    %130 = vmatprep.subr.mxu0 0.0
    %131 = vmatpush2.msra.mxu0 0.0
    %132 = vmatprep.subr.mxu0 0.0
    %133 = vmatpush2.msra.mxu0 0.0
    %134 = vmatprep.mubr.f32.mxu0 0.0
    %135 = vmatmul.mubr.f32.gmra.mxu0 %v64
    %v136 = vpop.f32.mrf.mxu0
    %v137 = vadd.f32 %v60, %v136
    %v138 = vpop.f32.mrf.mxu0
    %139 = vdwg.mxu0
    %v140 = vld [vmem:[%s6] sm:$0x1]
    %v142 = vlaneseq
    %v143 = vshrl.u32 %v142, 7
    %v144 = vsub.s32 0, %v143
    %v145 = vrot.slane %v140, %v144
    %v147 = vld [vmem:[%s8] sm:$0x1]
    %v149 = vlaneseq
    %v150 = vshrl.u32 %v149, 7
    %v151 = vsub.s32 0, %v150
    %v152 = vrot.slane %v147, %v151
    %v154 = vld [vmem:[%s2] sm:$0xf]
    %vm155 = vcmask 31744
    %v157 = vsel %vm155, %v52, 0
    %vm159 = vcmask 1043456
    %v161 = vsel %vm159, %v154, 0
    %163 = vmatprep.subr.mxu0 0.0
    %164 = vmatpush1.msra.mxu0 0.0
    %165 = vmatprep.subr.mxu0 0.0
    %166 = vmatpush1.msra.mxu0 0.0
    %167 = vmatprep.subr.mxu0 0.0
    %168 = vmatpush1.msra.mxu0 0.0
    %169 = vmatprep.subr.mxu0 0.0
    %170 = vmatpush1.msra.mxu0 0.0
    %171 = vmatprep.subr.mxu0 0.0
    %172 = vmatpush1.msra.mxu0 0.0
    %173 = vmatprep.subr.mxu0 0.0
    %174 = vmatpush1.msra.mxu0 0.0
    %175 = vmatprep.subr.mxu0 0.0
    %176 = vmatpush1.msra.mxu0 0.0
    %177 = vmatprep.subr.mxu0 0.0
    %178 = vmatpush1.msra.mxu0 0.0
    %179 = vmatprep.subr.mxu0 0.0
    %180 = vmatpush1.msra.mxu0 0.0
    %181 = vmatprep.subr.mxu0 0.0
    %182 = vmatpush1.msra.mxu0 0.0
    %183 = vmatprep.subr.mxu0 0.0
    %184 = vmatpush1.msra.mxu0 0.0
    %185 = vmatprep.subr.mxu0 0.0
    %186 = vmatpush1.msra.mxu0 0.0
    %187 = vmatprep.subr.mxu0 0.0
    %188 = vmatpush1.msra.mxu0 0.0
    %189 = vmatprep.subr.mxu0 0.0
    %190 = vmatpush1.msra.mxu0 0.0
    %191 = vmatprep.subr.mxu0 0.0
    %192 = vmatpush1.msra.mxu0 0.0
    %193 = vmatprep.subr.mxu0 0.0
    %194 = vmatpush1.msra.mxu0 %v161
    %195 = vmatprep.subr.mxu0 0.0
    %196 = vmatpush2.msra.mxu0 0.0
    %197 = vmatprep.subr.mxu0 0.0
    %198 = vmatpush2.msra.mxu0 0.0
    %199 = vmatprep.subr.mxu0 0.0
    %200 = vmatpush2.msra.mxu0 0.0
    %201 = vmatprep.subr.mxu0 0.0
    %202 = vmatpush2.msra.mxu0 0.0
    %203 = vmatprep.subr.mxu0 0.0
    %204 = vmatpush2.msra.mxu0 0.0
    %205 = vmatprep.subr.mxu0 0.0
    %206 = vmatpush2.msra.mxu0 0.0
    %207 = vmatprep.subr.mxu0 0.0
    %208 = vmatpush2.msra.mxu0 0.0
    %209 = vmatprep.subr.mxu0 0.0
    %210 = vmatpush2.msra.mxu0 0.0
    %211 = vmatprep.subr.mxu0 0.0
    %212 = vmatpush2.msra.mxu0 0.0
    %213 = vmatprep.subr.mxu0 0.0
    %214 = vmatpush2.msra.mxu0 0.0
    %215 = vmatprep.subr.mxu0 0.0
    %216 = vmatpush2.msra.mxu0 0.0
    %217 = vmatprep.subr.mxu0 0.0
    %218 = vmatpush2.msra.mxu0 0.0
    %219 = vmatprep.subr.mxu0 0.0
    %220 = vmatpush2.msra.mxu0 0.0
    %221 = vmatprep.subr.mxu0 0.0
    %222 = vmatpush2.msra.mxu0 0.0
    %223 = vmatprep.subr.mxu0 0.0
    %224 = vmatpush2.msra.mxu0 0.0
    %225 = vmatprep.subr.mxu0 0.0
    %226 = vmatpush2.msra.mxu0 0.0
    %227 = vmatprep.mubr.f32.mxu0 0.0
    %228 = vmatmul.mubr.f32.gmra.mxu0 %v157
    %v229 = vpop.f32.mrf.mxu0
    %v230 = vadd.f32 0.0, %v229
    %v231 = vpop.f32.mrf.mxu0
    %232 = vdwg.mxu0
    %v233 = vadd.f32 %v230, %v137
    %v234 = vmax.f32 %v233, 0.0
    %v235 = vld [vmem:[%s5] sm:$0xff]
    %v236 = vld [vmem:[%s5 + $0x8] sm:$0xff]
    %v237 = vld [vmem:[%s5 + $0x10] sm:$0xff]
    %v238 = vld [vmem:[%s5 + $0x18] sm:$0xff]
    %v239 = vld [vmem:[%s5 + $0x20] sm:$0xff]
    %v240 = vld [vmem:[%s5 + $0x28] sm:$0xff]
    %v241 = vld [vmem:[%s5 + $0x30] sm:$0xff]
    %v242 = vld [vmem:[%s5 + $0x38] sm:$0xff]
    %v243 = vld [vmem:[%s5 + $0x40] sm:$0xff]
    %v244 = vld [vmem:[%s5 + $0x48] sm:$0xff]
    %v245 = vld [vmem:[%s5 + $0x50] sm:$0xff]
    %v246 = vld [vmem:[%s5 + $0x58] sm:$0xff]
    %v247 = vld [vmem:[%s5 + $0x60] sm:$0xff]
    %v248 = vld [vmem:[%s5 + $0x68] sm:$0xff]
    %v249 = vld [vmem:[%s5 + $0x70] sm:$0xff]
    %v250 = vld [vmem:[%s5 + $0x78] sm:$0xff]
    %251 = vmatprep.subr.mxu0 0.0
    %252 = vmatpush1.msra.mxu0 %v250
    %253 = vmatprep.subr.mxu0 0.0
    %254 = vmatpush1.msra.mxu0 %v249
    %255 = vmatprep.subr.mxu0 0.0
    %256 = vmatpush1.msra.mxu0 %v248
    %257 = vmatprep.subr.mxu0 0.0
    %258 = vmatpush1.msra.mxu0 %v247
    %259 = vmatprep.subr.mxu0 0.0
    %260 = vmatpush1.msra.mxu0 %v246
    %261 = vmatprep.subr.mxu0 0.0
    %262 = vmatpush1.msra.mxu0 %v245
    %263 = vmatprep.subr.mxu0 0.0
    %264 = vmatpush1.msra.mxu0 %v244
    %265 = vmatprep.subr.mxu0 0.0
    %266 = vmatpush1.msra.mxu0 %v243
    %267 = vmatprep.subr.mxu0 0.0
    %268 = vmatpush1.msra.mxu0 %v242
    %269 = vmatprep.subr.mxu0 0.0
    %270 = vmatpush1.msra.mxu0 %v241
    %271 = vmatprep.subr.mxu0 0.0
    %272 = vmatpush1.msra.mxu0 %v240
    %273 = vmatprep.subr.mxu0 0.0
    %274 = vmatpush1.msra.mxu0 %v239
    %275 = vmatprep.subr.mxu0 0.0
    %276 = vmatpush1.msra.mxu0 %v238
    %277 = vmatprep.subr.mxu0 0.0
    %278 = vmatpush1.msra.mxu0 %v237
    %279 = vmatprep.subr.mxu0 0.0
    %280 = vmatpush1.msra.mxu0 %v236
    %281 = vmatprep.subr.mxu0 0.0
    %282 = vmatpush1.msra.mxu0 %v235
    %283 = vmatprep.subr.mxu0 0.0
    %284 = vmatpush2.msra.mxu0 0.0
    %285 = vmatprep.subr.mxu0 0.0
    %286 = vmatpush2.msra.mxu0 0.0
    %287 = vmatprep.subr.mxu0 0.0
    %288 = vmatpush2.msra.mxu0 0.0
    %289 = vmatprep.subr.mxu0 0.0
    %290 = vmatpush2.msra.mxu0 0.0
    %291 = vmatprep.subr.mxu0 0.0
    %292 = vmatpush2.msra.mxu0 0.0
    %293 = vmatprep.subr.mxu0 0.0
    %294 = vmatpush2.msra.mxu0 0.0
    %295 = vmatprep.subr.mxu0 0.0
    %296 = vmatpush2.msra.mxu0 0.0
    %297 = vmatprep.subr.mxu0 0.0
    %298 = vmatpush2.msra.mxu0 0.0
    %299 = vmatprep.subr.mxu0 0.0
    %300 = vmatpush2.msra.mxu0 0.0
    %301 = vmatprep.subr.mxu0 0.0
    %302 = vmatpush2.msra.mxu0 0.0
    %303 = vmatprep.subr.mxu0 0.0
    %304 = vmatpush2.msra.mxu0 0.0
    %305 = vmatprep.subr.mxu0 0.0
    %306 = vmatpush2.msra.mxu0 0.0
    %307 = vmatprep.subr.mxu0 0.0
    %308 = vmatpush2.msra.mxu0 0.0
    %309 = vmatprep.subr.mxu0 0.0
    %310 = vmatpush2.msra.mxu0 0.0
    %311 = vmatprep.subr.mxu0 0.0
    %312 = vmatpush2.msra.mxu0 0.0
    %313 = vmatprep.subr.mxu0 0.0
    %314 = vmatpush2.msra.mxu0 0.0
    %315 = vmatprep.mubr.f32.mxu0 0.0
    %316 = vmatmul.mubr.f32.gmra.mxu0 %v234
    %v317 = vpop.f32.mrf.mxu0
    %v318 = vadd.f32 %v145, %v317
    %v319 = vpop.f32.mrf.mxu0
    %320 = vdwg.mxu0
    %v321 = vmax.f32 %v318, 0.0
    %v322 = vld [vmem:[#allocation2] sm:$0xff]
    %v323 = vld [vmem:[#allocation2 + $0x8] sm:$0xff]
    %v324 = vld [vmem:[#allocation2 + $0x10] sm:$0xff]
    %v325 = vld [vmem:[#allocation2 + $0x18] sm:$0xff]
    %v326 = vld [vmem:[#allocation2 + $0x20] sm:$0xff]
    %v327 = vld [vmem:[#allocation2 + $0x28] sm:$0xff]
    %v328 = vld [vmem:[#allocation2 + $0x30] sm:$0xff]
    %v329 = vld [vmem:[#allocation2 + $0x38] sm:$0xff]
    %v330 = vld [vmem:[#allocation2 + $0x40] sm:$0xff]
    %v331 = vld [vmem:[#allocation2 + $0x48] sm:$0xff]
    %v332 = vld [vmem:[#allocation2 + $0x50] sm:$0xff]
    %v333 = vld [vmem:[#allocation2 + $0x58] sm:$0xff]
    %v334 = vld [vmem:[#allocation2 + $0x60] sm:$0xff]
    %v335 = vld [vmem:[#allocation2 + $0x68] sm:$0xff]
    %v336 = vld [vmem:[#allocation2 + $0x70] sm:$0xff]
    %v337 = vld [vmem:[#allocation2 + $0x78] sm:$0xff]
    %338 = vmatprep.subr.mxu0 0.0
    %339 = vmatpush1.msra.mxu0 %v337
    %340 = vmatprep.subr.mxu0 0.0
    %341 = vmatpush1.msra.mxu0 %v336
    %342 = vmatprep.subr.mxu0 0.0
    %343 = vmatpush1.msra.mxu0 %v335
    %344 = vmatprep.subr.mxu0 0.0
    %345 = vmatpush1.msra.mxu0 %v334
    %346 = vmatprep.subr.mxu0 0.0
    %347 = vmatpush1.msra.mxu0 %v333
    %348 = vmatprep.subr.mxu0 0.0
    %349 = vmatpush1.msra.mxu0 %v332
    %350 = vmatprep.subr.mxu0 0.0
    %351 = vmatpush1.msra.mxu0 %v331
    %352 = vmatprep.subr.mxu0 0.0
    %353 = vmatpush1.msra.mxu0 %v330
    %354 = vmatprep.subr.mxu0 0.0
    %355 = vmatpush1.msra.mxu0 %v329
    %356 = vmatprep.subr.mxu0 0.0
    %357 = vmatpush1.msra.mxu0 %v328
    %358 = vmatprep.subr.mxu0 0.0
    %359 = vmatpush1.msra.mxu0 %v327
    %360 = vmatprep.subr.mxu0 0.0
    %361 = vmatpush1.msra.mxu0 %v326
    %362 = vmatprep.subr.mxu0 0.0
    %363 = vmatpush1.msra.mxu0 %v325
    %364 = vmatprep.subr.mxu0 0.0
    %365 = vmatpush1.msra.mxu0 %v324
    %366 = vmatprep.subr.mxu0 0.0
    %367 = vmatpush1.msra.mxu0 %v323
    %368 = vmatprep.subr.mxu0 0.0
    %369 = vmatpush1.msra.mxu0 %v322
    %370 = vmatprep.subr.mxu0 0.0
    %371 = vmatpush2.msra.mxu0 0.0
    %372 = vmatprep.subr.mxu0 0.0
    %373 = vmatpush2.msra.mxu0 0.0
    %374 = vmatprep.subr.mxu0 0.0
    %375 = vmatpush2.msra.mxu0 0.0
    %376 = vmatprep.subr.mxu0 0.0
    %377 = vmatpush2.msra.mxu0 0.0
    %378 = vmatprep.subr.mxu0 0.0
    %379 = vmatpush2.msra.mxu0 0.0
    %380 = vmatprep.subr.mxu0 0.0
    %381 = vmatpush2.msra.mxu0 0.0
    %382 = vmatprep.subr.mxu0 0.0
    %383 = vmatpush2.msra.mxu0 0.0
    %384 = vmatprep.subr.mxu0 0.0
    %385 = vmatpush2.msra.mxu0 0.0
    %386 = vmatprep.subr.mxu0 0.0
    %387 = vmatpush2.msra.mxu0 0.0
    %388 = vmatprep.subr.mxu0 0.0
    %389 = vmatpush2.msra.mxu0 0.0
    %390 = vmatprep.subr.mxu0 0.0
    %391 = vmatpush2.msra.mxu0 0.0
    %392 = vmatprep.subr.mxu0 0.0
    %393 = vmatpush2.msra.mxu0 0.0
    %394 = vmatprep.subr.mxu0 0.0
    %395 = vmatpush2.msra.mxu0 0.0
    %396 = vmatprep.subr.mxu0 0.0
    %397 = vmatpush2.msra.mxu0 0.0
    %398 = vmatprep.subr.mxu0 0.0
    %399 = vmatpush2.msra.mxu0 0.0
    %400 = vmatprep.subr.mxu0 0.0
    %401 = vmatpush2.msra.mxu0 0.0
    %402 = vmatprep.mubr.f32.mxu0 0.0
    %403 = vmatmul.mubr.f32.gmra.mxu0 %v321
    %v404 = vpop.f32.mrf.mxu0
    %v405 = vadd.f32 %v152, %v404
    %v406 = vpop.f32.mrf.mxu0
    %407 = vdwg.mxu0
    %v408 = vmul.f32 %v321, 0.0113932295
    %v409 = vadd.f32 %v408, 0.0
    %v410 = vmul.f32 %v405, 0.025
    %v411 = vadd.f32 %v230, %v410
    %v412 = vadd.f32 %v411, %v137
    %v413 = vmax.f32 %v412, 0.0
    %414 = vmatprep.subr.mxu0 0.0
    %415 = vmatpush1.msra.mxu0 %v250
    %416 = vmatprep.subr.mxu0 0.0
    %417 = vmatpush1.msra.mxu0 %v249
    %418 = vmatprep.subr.mxu0 0.0
    %419 = vmatpush1.msra.mxu0 %v248
    %420 = vmatprep.subr.mxu0 0.0
    %421 = vmatpush1.msra.mxu0 %v247
    %422 = vmatprep.subr.mxu0 0.0
    %423 = vmatpush1.msra.mxu0 %v246
    %424 = vmatprep.subr.mxu0 0.0
    %425 = vmatpush1.msra.mxu0 %v245
    %426 = vmatprep.subr.mxu0 0.0
    %427 = vmatpush1.msra.mxu0 %v244
    %428 = vmatprep.subr.mxu0 0.0
    %429 = vmatpush1.msra.mxu0 %v243
    %430 = vmatprep.subr.mxu0 0.0
    %431 = vmatpush1.msra.mxu0 %v242
    %432 = vmatprep.subr.mxu0 0.0
    %433 = vmatpush1.msra.mxu0 %v241
    %434 = vmatprep.subr.mxu0 0.0
    %435 = vmatpush1.msra.mxu0 %v240
    %436 = vmatprep.subr.mxu0 0.0
    %437 = vmatpush1.msra.mxu0 %v239
    %438 = vmatprep.subr.mxu0 0.0
    %439 = vmatpush1.msra.mxu0 %v238
    %440 = vmatprep.subr.mxu0 0.0
    %441 = vmatpush1.msra.mxu0 %v237
    %442 = vmatprep.subr.mxu0 0.0
    %443 = vmatpush1.msra.mxu0 %v236
    %444 = vmatprep.subr.mxu0 0.0
    %445 = vmatpush1.msra.mxu0 %v235
    %446 = vmatprep.subr.mxu0 0.0
    %447 = vmatpush2.msra.mxu0 0.0
    %448 = vmatprep.subr.mxu0 0.0
    %449 = vmatpush2.msra.mxu0 0.0
    %450 = vmatprep.subr.mxu0 0.0
    %451 = vmatpush2.msra.mxu0 0.0
    %452 = vmatprep.subr.mxu0 0.0
    %453 = vmatpush2.msra.mxu0 0.0
    %454 = vmatprep.subr.mxu0 0.0
    %455 = vmatpush2.msra.mxu0 0.0
    %456 = vmatprep.subr.mxu0 0.0
    %457 = vmatpush2.msra.mxu0 0.0
    %458 = vmatprep.subr.mxu0 0.0
    %459 = vmatpush2.msra.mxu0 0.0
    %460 = vmatprep.subr.mxu0 0.0
    %461 = vmatpush2.msra.mxu0 0.0
    %462 = vmatprep.subr.mxu0 0.0
    %463 = vmatpush2.msra.mxu0 0.0
    %464 = vmatprep.subr.mxu0 0.0
    %465 = vmatpush2.msra.mxu0 0.0
    %466 = vmatprep.subr.mxu0 0.0
    %467 = vmatpush2.msra.mxu0 0.0
    %468 = vmatprep.subr.mxu0 0.0
    %469 = vmatpush2.msra.mxu0 0.0
    %470 = vmatprep.subr.mxu0 0.0
    %471 = vmatpush2.msra.mxu0 0.0
    %472 = vmatprep.subr.mxu0 0.0
    %473 = vmatpush2.msra.mxu0 0.0
    %474 = vmatprep.subr.mxu0 0.0
    %475 = vmatpush2.msra.mxu0 0.0
    %476 = vmatprep.subr.mxu0 0.0
    %477 = vmatpush2.msra.mxu0 0.0
    %478 = vmatprep.mubr.f32.mxu0 0.0
    %479 = vmatmul.mubr.f32.gmra.mxu0 %v413
    %v480 = vpop.f32.mrf.mxu0
    %v481 = vadd.f32 %v145, %v480
    %v482 = vpop.f32.mrf.mxu0
    %483 = vdwg.mxu0
    %v484 = vmax.f32 %v481, 0.0
    %485 = vmatprep.subr.mxu0 0.0
    %486 = vmatpush1.msra.mxu0 %v337
    %487 = vmatprep.subr.mxu0 0.0
    %488 = vmatpush1.msra.mxu0 %v336
    %489 = vmatprep.subr.mxu0 0.0
    %490 = vmatpush1.msra.mxu0 %v335
    %491 = vmatprep.subr.mxu0 0.0
    %492 = vmatpush1.msra.mxu0 %v334
    %493 = vmatprep.subr.mxu0 0.0
    %494 = vmatpush1.msra.mxu0 %v333
    %495 = vmatprep.subr.mxu0 0.0
    %496 = vmatpush1.msra.mxu0 %v332
    %497 = vmatprep.subr.mxu0 0.0
    %498 = vmatpush1.msra.mxu0 %v331
    %499 = vmatprep.subr.mxu0 0.0
    %500 = vmatpush1.msra.mxu0 %v330
    %501 = vmatprep.subr.mxu0 0.0
    %502 = vmatpush1.msra.mxu0 %v329
    %503 = vmatprep.subr.mxu0 0.0
    %504 = vmatpush1.msra.mxu0 %v328
    %505 = vmatprep.subr.mxu0 0.0
    %506 = vmatpush1.msra.mxu0 %v327
    %507 = vmatprep.subr.mxu0 0.0
    %508 = vmatpush1.msra.mxu0 %v326
    %509 = vmatprep.subr.mxu0 0.0
    %510 = vmatpush1.msra.mxu0 %v325
    %511 = vmatprep.subr.mxu0 0.0
    %512 = vmatpush1.msra.mxu0 %v324
    %513 = vmatprep.subr.mxu0 0.0
    %514 = vmatpush1.msra.mxu0 %v323
    %515 = vmatprep.subr.mxu0 0.0
    %516 = vmatpush1.msra.mxu0 %v322
    %517 = vmatprep.subr.mxu0 0.0
    %518 = vmatpush2.msra.mxu0 0.0
    %519 = vmatprep.subr.mxu0 0.0
    %520 = vmatpush2.msra.mxu0 0.0
    %521 = vmatprep.subr.mxu0 0.0
    %522 = vmatpush2.msra.mxu0 0.0
    %523 = vmatprep.subr.mxu0 0.0
    %524 = vmatpush2.msra.mxu0 0.0
    %525 = vmatprep.subr.mxu0 0.0
    %526 = vmatpush2.msra.mxu0 0.0
    %527 = vmatprep.subr.mxu0 0.0
    %528 = vmatpush2.msra.mxu0 0.0
    %529 = vmatprep.subr.mxu0 0.0
    %530 = vmatpush2.msra.mxu0 0.0
    %531 = vmatprep.subr.mxu0 0.0
    %532 = vmatpush2.msra.mxu0 0.0
    %533 = vmatprep.subr.mxu0 0.0
    %534 = vmatpush2.msra.mxu0 0.0
    %535 = vmatprep.subr.mxu0 0.0
    %536 = vmatpush2.msra.mxu0 0.0
    %537 = vmatprep.subr.mxu0 0.0
    %538 = vmatpush2.msra.mxu0 0.0
    %539 = vmatprep.subr.mxu0 0.0
    %540 = vmatpush2.msra.mxu0 0.0
    %541 = vmatprep.subr.mxu0 0.0
    %542 = vmatpush2.msra.mxu0 0.0
    %543 = vmatprep.subr.mxu0 0.0
    %544 = vmatpush2.msra.mxu0 0.0
    %545 = vmatprep.subr.mxu0 0.0
    %546 = vmatpush2.msra.mxu0 0.0
    %547 = vmatprep.subr.mxu0 0.0
    %548 = vmatpush2.msra.mxu0 0.0
    %549 = vmatprep.mubr.f32.mxu0 0.0
    %550 = vmatmul.mubr.f32.gmra.mxu0 %v484
    %v551 = vpop.f32.mrf.mxu0
    %v552 = vadd.f32 %v152, %v551
    %v553 = vpop.f32.mrf.mxu0
    %554 = vdwg.mxu0
    %v555 = vmul.f32 %v405, 0.009375
    %v556 = vadd.f32 %v230, %v555
    %v557 = vmul.f32 %v552, 0.028125
    %v558 = vadd.f32 %v556, %v557
    %v559 = vadd.f32 %v558, %v137
    %v560 = vmax.f32 %v559, 0.0
    %561 = vmatprep.subr.mxu0 0.0
    %562 = vmatpush1.msra.mxu0 %v250
    %563 = vmatprep.subr.mxu0 0.0
    %564 = vmatpush1.msra.mxu0 %v249
    %565 = vmatprep.subr.mxu0 0.0
    %566 = vmatpush1.msra.mxu0 %v248
    %567 = vmatprep.subr.mxu0 0.0
    %568 = vmatpush1.msra.mxu0 %v247
    %569 = vmatprep.subr.mxu0 0.0
    %570 = vmatpush1.msra.mxu0 %v246
    %571 = vmatprep.subr.mxu0 0.0
    %572 = vmatpush1.msra.mxu0 %v245
    %573 = vmatprep.subr.mxu0 0.0
    %574 = vmatpush1.msra.mxu0 %v244
    %575 = vmatprep.subr.mxu0 0.0
    %576 = vmatpush1.msra.mxu0 %v243
    %577 = vmatprep.subr.mxu0 0.0
    %578 = vmatpush1.msra.mxu0 %v242
    %579 = vmatprep.subr.mxu0 0.0
    %580 = vmatpush1.msra.mxu0 %v241
    %581 = vmatprep.subr.mxu0 0.0
    %582 = vmatpush1.msra.mxu0 %v240
    %583 = vmatprep.subr.mxu0 0.0
    %584 = vmatpush1.msra.mxu0 %v239
    %585 = vmatprep.subr.mxu0 0.0
    %586 = vmatpush1.msra.mxu0 %v238
    %587 = vmatprep.subr.mxu0 0.0
    %588 = vmatpush1.msra.mxu0 %v237
    %589 = vmatprep.subr.mxu0 0.0
    %590 = vmatpush1.msra.mxu0 %v236
    %591 = vmatprep.subr.mxu0 0.0
    %592 = vmatpush1.msra.mxu0 %v235
    %593 = vmatprep.subr.mxu0 0.0
    %594 = vmatpush2.msra.mxu0 0.0
    %595 = vmatprep.subr.mxu0 0.0
    %596 = vmatpush2.msra.mxu0 0.0
    %597 = vmatprep.subr.mxu0 0.0
    %598 = vmatpush2.msra.mxu0 0.0
    %599 = vmatprep.subr.mxu0 0.0
    %600 = vmatpush2.msra.mxu0 0.0
    %601 = vmatprep.subr.mxu0 0.0
    %602 = vmatpush2.msra.mxu0 0.0
    %603 = vmatprep.subr.mxu0 0.0
    %604 = vmatpush2.msra.mxu0 0.0
    %605 = vmatprep.subr.mxu0 0.0
    %606 = vmatpush2.msra.mxu0 0.0
    %607 = vmatprep.subr.mxu0 0.0
    %608 = vmatpush2.msra.mxu0 0.0
    %609 = vmatprep.subr.mxu0 0.0
    %610 = vmatpush2.msra.mxu0 0.0
    %611 = vmatprep.subr.mxu0 0.0
    %612 = vmatpush2.msra.mxu0 0.0
    %613 = vmatprep.subr.mxu0 0.0
    %614 = vmatpush2.msra.mxu0 0.0
    %615 = vmatprep.subr.mxu0 0.0
    %616 = vmatpush2.msra.mxu0 0.0
    %617 = vmatprep.subr.mxu0 0.0
    %618 = vmatpush2.msra.mxu0 0.0
    %619 = vmatprep.subr.mxu0 0.0
    %620 = vmatpush2.msra.mxu0 0.0
    %621 = vmatprep.subr.mxu0 0.0
    %622 = vmatpush2.msra.mxu0 0.0
    %623 = vmatprep.subr.mxu0 0.0
    %624 = vmatpush2.msra.mxu0 0.0
    %625 = vmatprep.mubr.f32.mxu0 0.0
    %626 = vmatmul.mubr.f32.gmra.mxu0 %v560
    %v627 = vpop.f32.mrf.mxu0
    %v628 = vadd.f32 %v145, %v627
    %v629 = vpop.f32.mrf.mxu0
    %630 = vdwg.mxu0
    %v631 = vmax.f32 %v628, 0.0
    %632 = vmatprep.subr.mxu0 0.0
    %633 = vmatpush1.msra.mxu0 %v337
    %634 = vmatprep.subr.mxu0 0.0
    %635 = vmatpush1.msra.mxu0 %v336
    %636 = vmatprep.subr.mxu0 0.0
    %637 = vmatpush1.msra.mxu0 %v335
    %638 = vmatprep.subr.mxu0 0.0
    %639 = vmatpush1.msra.mxu0 %v334
    %640 = vmatprep.subr.mxu0 0.0
    %641 = vmatpush1.msra.mxu0 %v333
    %642 = vmatprep.subr.mxu0 0.0
    %643 = vmatpush1.msra.mxu0 %v332
    %644 = vmatprep.subr.mxu0 0.0
    %645 = vmatpush1.msra.mxu0 %v331
    %646 = vmatprep.subr.mxu0 0.0
    %647 = vmatpush1.msra.mxu0 %v330
    %648 = vmatprep.subr.mxu0 0.0
    %649 = vmatpush1.msra.mxu0 %v329
    %650 = vmatprep.subr.mxu0 0.0
    %651 = vmatpush1.msra.mxu0 %v328
    %652 = vmatprep.subr.mxu0 0.0
    %653 = vmatpush1.msra.mxu0 %v327
    %654 = vmatprep.subr.mxu0 0.0
    %655 = vmatpush1.msra.mxu0 %v326
    %656 = vmatprep.subr.mxu0 0.0
    %657 = vmatpush1.msra.mxu0 %v325
    %658 = vmatprep.subr.mxu0 0.0
    %659 = vmatpush1.msra.mxu0 %v324
    %660 = vmatprep.subr.mxu0 0.0
    %661 = vmatpush1.msra.mxu0 %v323
    %662 = vmatprep.subr.mxu0 0.0
    %663 = vmatpush1.msra.mxu0 %v322
    %664 = vmatprep.subr.mxu0 0.0
    %665 = vmatpush2.msra.mxu0 0.0
    %666 = vmatprep.subr.mxu0 0.0
    %667 = vmatpush2.msra.mxu0 0.0
    %668 = vmatprep.subr.mxu0 0.0
    %669 = vmatpush2.msra.mxu0 0.0
    %670 = vmatprep.subr.mxu0 0.0
    %671 = vmatpush2.msra.mxu0 0.0
    %672 = vmatprep.subr.mxu0 0.0
    %673 = vmatpush2.msra.mxu0 0.0
    %674 = vmatprep.subr.mxu0 0.0
    %675 = vmatpush2.msra.mxu0 0.0
    %676 = vmatprep.subr.mxu0 0.0
    %677 = vmatpush2.msra.mxu0 0.0
    %678 = vmatprep.subr.mxu0 0.0
    %679 = vmatpush2.msra.mxu0 0.0
    %680 = vmatprep.subr.mxu0 0.0
    %681 = vmatpush2.msra.mxu0 0.0
    %682 = vmatprep.subr.mxu0 0.0
    %683 = vmatpush2.msra.mxu0 0.0
    %684 = vmatprep.subr.mxu0 0.0
    %685 = vmatpush2.msra.mxu0 0.0
    %686 = vmatprep.subr.mxu0 0.0
    %687 = vmatpush2.msra.mxu0 0.0
    %688 = vmatprep.subr.mxu0 0.0
    %689 = vmatpush2.msra.mxu0 0.0
    %690 = vmatprep.subr.mxu0 0.0
    %691 = vmatpush2.msra.mxu0 0.0
    %692 = vmatprep.subr.mxu0 0.0
    %693 = vmatpush2.msra.mxu0 0.0
    %694 = vmatprep.subr.mxu0 0.0
    %695 = vmatpush2.msra.mxu0 0.0
    %696 = vmatprep.mubr.f32.mxu0 0.0
    %697 = vmatmul.mubr.f32.gmra.mxu0 %v631
    %v698 = vpop.f32.mrf.mxu0
    %v699 = vadd.f32 %v152, %v698
    %v700 = vpop.f32.mrf.mxu0
    %701 = vdwg.mxu0
    %v702 = vmul.f32 %v631, 0.056154538
    %v703 = vadd.f32 %v409, %v702
    %v704 = vmul.f32 %v405, 0.12222222
    %v705 = vadd.f32 %v230, %v704
    %v706 = vmul.f32 %v552, -0.46666667
    %v707 = vadd.f32 %v705, %v706
    %v708 = vmul.f32 %v699, 0.44444445
    %v709 = vadd.f32 %v707, %v708
    %v710 = vadd.f32 %v709, %v137
    %v711 = vmax.f32 %v710, 0.0
    %712 = vmatprep.subr.mxu0 0.0
    %713 = vmatpush1.msra.mxu0 %v250
    %714 = vmatprep.subr.mxu0 0.0
    %715 = vmatpush1.msra.mxu0 %v249
    %716 = vmatprep.subr.mxu0 0.0
    %717 = vmatpush1.msra.mxu0 %v248
    %718 = vmatprep.subr.mxu0 0.0
    %719 = vmatpush1.msra.mxu0 %v247
    %720 = vmatprep.subr.mxu0 0.0
    %721 = vmatpush1.msra.mxu0 %v246
    %722 = vmatprep.subr.mxu0 0.0
    %723 = vmatpush1.msra.mxu0 %v245
    %724 = vmatprep.subr.mxu0 0.0
    %725 = vmatpush1.msra.mxu0 %v244
    %726 = vmatprep.subr.mxu0 0.0
    %727 = vmatpush1.msra.mxu0 %v243
    %728 = vmatprep.subr.mxu0 0.0
    %729 = vmatpush1.msra.mxu0 %v242
    %730 = vmatprep.subr.mxu0 0.0
    %731 = vmatpush1.msra.mxu0 %v241
    %732 = vmatprep.subr.mxu0 0.0
    %733 = vmatpush1.msra.mxu0 %v240
    %734 = vmatprep.subr.mxu0 0.0
    %735 = vmatpush1.msra.mxu0 %v239
    %736 = vmatprep.subr.mxu0 0.0
    %737 = vmatpush1.msra.mxu0 %v238
    %738 = vmatprep.subr.mxu0 0.0
    %739 = vmatpush1.msra.mxu0 %v237
    %740 = vmatprep.subr.mxu0 0.0
    %741 = vmatpush1.msra.mxu0 %v236
    %742 = vmatprep.subr.mxu0 0.0
    %743 = vmatpush1.msra.mxu0 %v235
    %744 = vmatprep.subr.mxu0 0.0
    %745 = vmatpush2.msra.mxu0 0.0
    %746 = vmatprep.subr.mxu0 0.0
    %747 = vmatpush2.msra.mxu0 0.0
    %748 = vmatprep.subr.mxu0 0.0
    %749 = vmatpush2.msra.mxu0 0.0
    %750 = vmatprep.subr.mxu0 0.0
    %751 = vmatpush2.msra.mxu0 0.0
    %752 = vmatprep.subr.mxu0 0.0
    %753 = vmatpush2.msra.mxu0 0.0
    %754 = vmatprep.subr.mxu0 0.0
    %755 = vmatpush2.msra.mxu0 0.0
    %756 = vmatprep.subr.mxu0 0.0
    %757 = vmatpush2.msra.mxu0 0.0
    %758 = vmatprep.subr.mxu0 0.0
    %759 = vmatpush2.msra.mxu0 0.0
    %760 = vmatprep.subr.mxu0 0.0
    %761 = vmatpush2.msra.mxu0 0.0
    %762 = vmatprep.subr.mxu0 0.0
    %763 = vmatpush2.msra.mxu0 0.0
    %764 = vmatprep.subr.mxu0 0.0
    %765 = vmatpush2.msra.mxu0 0.0
    %766 = vmatprep.subr.mxu0 0.0
    %767 = vmatpush2.msra.mxu0 0.0
    %768 = vmatprep.subr.mxu0 0.0
    %769 = vmatpush2.msra.mxu0 0.0
    %770 = vmatprep.subr.mxu0 0.0
    %771 = vmatpush2.msra.mxu0 0.0
    %772 = vmatprep.subr.mxu0 0.0
    %773 = vmatpush2.msra.mxu0 0.0
    %774 = vmatprep.subr.mxu0 0.0
    %775 = vmatpush2.msra.mxu0 0.0
    %776 = vmatprep.mubr.f32.mxu0 0.0
    %777 = vmatmul.mubr.f32.gmra.mxu0 %v711
    %v778 = vpop.f32.mrf.mxu0
    %v779 = vadd.f32 %v145, %v778
    %v780 = vpop.f32.mrf.mxu0
    %781 = vdwg.mxu0
    %v782 = vmax.f32 %v779, 0.0
    %783 = vmatprep.subr.mxu0 0.0
    %784 = vmatpush1.msra.mxu0 %v337
    %785 = vmatprep.subr.mxu0 0.0
    %786 = vmatpush1.msra.mxu0 %v336
    %787 = vmatprep.subr.mxu0 0.0
    %788 = vmatpush1.msra.mxu0 %v335
    %789 = vmatprep.subr.mxu0 0.0
    %790 = vmatpush1.msra.mxu0 %v334
    %791 = vmatprep.subr.mxu0 0.0
    %792 = vmatpush1.msra.mxu0 %v333
    %793 = vmatprep.subr.mxu0 0.0
    %794 = vmatpush1.msra.mxu0 %v332
    %795 = vmatprep.subr.mxu0 0.0
    %796 = vmatpush1.msra.mxu0 %v331
    %797 = vmatprep.subr.mxu0 0.0
    %798 = vmatpush1.msra.mxu0 %v330
    %799 = vmatprep.subr.mxu0 0.0
    %800 = vmatpush1.msra.mxu0 %v329
    %801 = vmatprep.subr.mxu0 0.0
    %802 = vmatpush1.msra.mxu0 %v328
    %803 = vmatprep.subr.mxu0 0.0
    %804 = vmatpush1.msra.mxu0 %v327
    %805 = vmatprep.subr.mxu0 0.0
    %806 = vmatpush1.msra.mxu0 %v326
    %807 = vmatprep.subr.mxu0 0.0
    %808 = vmatpush1.msra.mxu0 %v325
    %809 = vmatprep.subr.mxu0 0.0
    %810 = vmatpush1.msra.mxu0 %v324
    %811 = vmatprep.subr.mxu0 0.0
    %812 = vmatpush1.msra.mxu0 %v323
    %813 = vmatprep.subr.mxu0 0.0
    %814 = vmatpush1.msra.mxu0 %v322
    %815 = vmatprep.subr.mxu0 0.0
    %816 = vmatpush2.msra.mxu0 0.0
    %817 = vmatprep.subr.mxu0 0.0
    %818 = vmatpush2.msra.mxu0 0.0
    %819 = vmatprep.subr.mxu0 0.0
    %820 = vmatpush2.msra.mxu0 0.0
    %821 = vmatprep.subr.mxu0 0.0
    %822 = vmatpush2.msra.mxu0 0.0
    %823 = vmatprep.subr.mxu0 0.0
    %824 = vmatpush2.msra.mxu0 0.0
    %825 = vmatprep.subr.mxu0 0.0
    %826 = vmatpush2.msra.mxu0 0.0
    %827 = vmatprep.subr.mxu0 0.0
    %828 = vmatpush2.msra.mxu0 0.0
    %829 = vmatprep.subr.mxu0 0.0
    %830 = vmatpush2.msra.mxu0 0.0
    %831 = vmatprep.subr.mxu0 0.0
    %832 = vmatpush2.msra.mxu0 0.0
    %833 = vmatprep.subr.mxu0 0.0
    %834 = vmatpush2.msra.mxu0 0.0
    %835 = vmatprep.subr.mxu0 0.0
    %836 = vmatpush2.msra.mxu0 0.0
    %837 = vmatprep.subr.mxu0 0.0
    %838 = vmatpush2.msra.mxu0 0.0
    %839 = vmatprep.subr.mxu0 0.0
    %840 = vmatpush2.msra.mxu0 0.0
    %841 = vmatprep.subr.mxu0 0.0
    %842 = vmatpush2.msra.mxu0 0.0
    %843 = vmatprep.subr.mxu0 0.0
    %844 = vmatpush2.msra.mxu0 0.0
    %845 = vmatprep.subr.mxu0 0.0
    %846 = vmatpush2.msra.mxu0 0.0
    %847 = vmatprep.mubr.f32.mxu0 0.0
    %848 = vmatmul.mubr.f32.gmra.mxu0 %v782
    %v849 = vpop.f32.mrf.mxu0
    %v850 = vadd.f32 %v152, %v849
    %v851 = vpop.f32.mrf.mxu0
    %852 = vdwg.mxu0
    %v853 = vmul.f32 %v782, 0.08138021
    %v854 = vadd.f32 %v703, %v853
    %v855 = vmul.f32 %v405, 0.36907482
    %v856 = vadd.f32 %v230, %v855
    %v857 = vmul.f32 %v552, -1.4494742
    %v858 = vadd.f32 %v856, %v857
    %v859 = vmul.f32 %v699, 1.2278616
    %v860 = vadd.f32 %v858, %v859
    %v861 = vmul.f32 %v850, -0.036351167
    %v862 = vadd.f32 %v860, %v861
    %v863 = vadd.f32 %v862, %v137
    %v864 = vmax.f32 %v863, 0.0
    %865 = vmatprep.subr.mxu0 0.0
    %866 = vmatpush1.msra.mxu0 %v250
    %867 = vmatprep.subr.mxu0 0.0
    %868 = vmatpush1.msra.mxu0 %v249
    %869 = vmatprep.subr.mxu0 0.0
    %870 = vmatpush1.msra.mxu0 %v248
    %871 = vmatprep.subr.mxu0 0.0
    %872 = vmatpush1.msra.mxu0 %v247
    %873 = vmatprep.subr.mxu0 0.0
    %874 = vmatpush1.msra.mxu0 %v246
    %875 = vmatprep.subr.mxu0 0.0
    %876 = vmatpush1.msra.mxu0 %v245
    %877 = vmatprep.subr.mxu0 0.0
    %878 = vmatpush1.msra.mxu0 %v244
    %879 = vmatprep.subr.mxu0 0.0
    %880 = vmatpush1.msra.mxu0 %v243
    %881 = vmatprep.subr.mxu0 0.0
    %882 = vmatpush1.msra.mxu0 %v242
    %883 = vmatprep.subr.mxu0 0.0
    %884 = vmatpush1.msra.mxu0 %v241
    %885 = vmatprep.subr.mxu0 0.0
    %886 = vmatpush1.msra.mxu0 %v240
    %887 = vmatprep.subr.mxu0 0.0
    %888 = vmatpush1.msra.mxu0 %v239
    %889 = vmatprep.subr.mxu0 0.0
    %890 = vmatpush1.msra.mxu0 %v238
    %891 = vmatprep.subr.mxu0 0.0
    %892 = vmatpush1.msra.mxu0 %v237
    %893 = vmatprep.subr.mxu0 0.0
    %894 = vmatpush1.msra.mxu0 %v236
    %895 = vmatprep.subr.mxu0 0.0
    %896 = vmatpush1.msra.mxu0 %v235
    %897 = vmatprep.subr.mxu0 0.0
    %898 = vmatpush2.msra.mxu0 0.0
    %899 = vmatprep.subr.mxu0 0.0
    %900 = vmatpush2.msra.mxu0 0.0
    %901 = vmatprep.subr.mxu0 0.0
    %902 = vmatpush2.msra.mxu0 0.0
    %903 = vmatprep.subr.mxu0 0.0
    %904 = vmatpush2.msra.mxu0 0.0
    %905 = vmatprep.subr.mxu0 0.0
    %906 = vmatpush2.msra.mxu0 0.0
    %907 = vmatprep.subr.mxu0 0.0
    %908 = vmatpush2.msra.mxu0 0.0
    %909 = vmatprep.subr.mxu0 0.0
    %910 = vmatpush2.msra.mxu0 0.0
    %911 = vmatprep.subr.mxu0 0.0
    %912 = vmatpush2.msra.mxu0 0.0
    %913 = vmatprep.subr.mxu0 0.0
    %914 = vmatpush2.msra.mxu0 0.0
    %915 = vmatprep.subr.mxu0 0.0
    %916 = vmatpush2.msra.mxu0 0.0
    %917 = vmatprep.subr.mxu0 0.0
    %918 = vmatpush2.msra.mxu0 0.0
    %919 = vmatprep.subr.mxu0 0.0
    %920 = vmatpush2.msra.mxu0 0.0
    %921 = vmatprep.subr.mxu0 0.0
    %922 = vmatpush2.msra.mxu0 0.0
    %923 = vmatprep.subr.mxu0 0.0
    %924 = vmatpush2.msra.mxu0 0.0
    %925 = vmatprep.subr.mxu0 0.0
    %926 = vmatpush2.msra.mxu0 0.0
    %927 = vmatprep.subr.mxu0 0.0
    %928 = vmatpush2.msra.mxu0 0.0
    %929 = vmatprep.mubr.f32.mxu0 0.0
    %930 = vmatmul.mubr.f32.gmra.mxu0 %v864
    %v931 = vpop.f32.mrf.mxu0
    %v932 = vadd.f32 %v145, %v931
    %v933 = vpop.f32.mrf.mxu0
    %934 = vdwg.mxu0
    %v935 = vmax.f32 %v932, 0.0
    %936 = vmatprep.subr.mxu0 0.0
    %937 = vmatpush1.msra.mxu0 %v337
    %938 = vmatprep.subr.mxu0 0.0
    %939 = vmatpush1.msra.mxu0 %v336
    %940 = vmatprep.subr.mxu0 0.0
    %941 = vmatpush1.msra.mxu0 %v335
    %942 = vmatprep.subr.mxu0 0.0
    %943 = vmatpush1.msra.mxu0 %v334
    %944 = vmatprep.subr.mxu0 0.0
    %945 = vmatpush1.msra.mxu0 %v333
    %946 = vmatprep.subr.mxu0 0.0
    %947 = vmatpush1.msra.mxu0 %v332
    %948 = vmatprep.subr.mxu0 0.0
    %949 = vmatpush1.msra.mxu0 %v331
    %950 = vmatprep.subr.mxu0 0.0
    %951 = vmatpush1.msra.mxu0 %v330
    %952 = vmatprep.subr.mxu0 0.0
    %953 = vmatpush1.msra.mxu0 %v329
    %954 = vmatprep.subr.mxu0 0.0
    %955 = vmatpush1.msra.mxu0 %v328
    %956 = vmatprep.subr.mxu0 0.0
    %957 = vmatpush1.msra.mxu0 %v327
    %958 = vmatprep.subr.mxu0 0.0
    %959 = vmatpush1.msra.mxu0 %v326
    %960 = vmatprep.subr.mxu0 0.0
    %961 = vmatpush1.msra.mxu0 %v325
    %962 = vmatprep.subr.mxu0 0.0
    %963 = vmatpush1.msra.mxu0 %v324
    %964 = vmatprep.subr.mxu0 0.0
    %965 = vmatpush1.msra.mxu0 %v323
    %966 = vmatprep.subr.mxu0 0.0
    %967 = vmatpush1.msra.mxu0 %v322
    %968 = vmatprep.subr.mxu0 0.0
    %969 = vmatpush2.msra.mxu0 0.0
    %970 = vmatprep.subr.mxu0 0.0
    %971 = vmatpush2.msra.mxu0 0.0
    %972 = vmatprep.subr.mxu0 0.0
    %973 = vmatpush2.msra.mxu0 0.0
    %974 = vmatprep.subr.mxu0 0.0
    %975 = vmatpush2.msra.mxu0 0.0
    %976 = vmatprep.subr.mxu0 0.0
    %977 = vmatpush2.msra.mxu0 0.0
    %978 = vmatprep.subr.mxu0 0.0
    %979 = vmatpush2.msra.mxu0 0.0
    %980 = vmatprep.subr.mxu0 0.0
    %981 = vmatpush2.msra.mxu0 0.0
    %982 = vmatprep.subr.mxu0 0.0
    %983 = vmatpush2.msra.mxu0 0.0
    %984 = vmatprep.subr.mxu0 0.0
    %985 = vmatpush2.msra.mxu0 0.0
    %986 = vmatprep.subr.mxu0 0.0
    %987 = vmatpush2.msra.mxu0 0.0
    %988 = vmatprep.subr.mxu0 0.0
    %989 = vmatpush2.msra.mxu0 0.0
    %990 = vmatprep.subr.mxu0 0.0
    %991 = vmatpush2.msra.mxu0 0.0
    %992 = vmatprep.subr.mxu0 0.0
    %993 = vmatpush2.msra.mxu0 0.0
    %994 = vmatprep.subr.mxu0 0.0
    %995 = vmatpush2.msra.mxu0 0.0
    %996 = vmatprep.subr.mxu0 0.0
    %997 = vmatpush2.msra.mxu0 0.0
    %998 = vmatprep.subr.mxu0 0.0
    %999 = vmatpush2.msra.mxu0 0.0
    %1000 = vmatprep.mubr.f32.mxu0 0.0
    %1001 = vmatmul.mubr.f32.gmra.mxu0 %v935
    %v1002 = vpop.f32.mrf.mxu0
    %v1003 = vadd.f32 %v152, %v1002
    %v1004 = vpop.f32.mrf.mxu0
    %1005 = vdwg.mxu0
    %v1006 = vmul.f32 %v935, -0.040297024
    %v1007 = vadd.f32 %v854, %v1006
    %v1008 = vmul.f32 %v405, 0.35578442
    %v1009 = vadd.f32 %v230, %v1008
    %v1010 = vmul.f32 %v552, -1.344697
    %v1011 = vadd.f32 %v1009, %v1010
    %v1012 = vmul.f32 %v699, 1.1133028
    %v1013 = vadd.f32 %v1011, %v1012
    %v1014 = vmul.f32 %v850, 0.034801137
    %v1015 = vadd.f32 %v1013, %v1014
    %v1016 = vmul.f32 %v1003, -0.034191415
    %v1017 = vadd.f32 %v1015, %v1016
    %v1018 = vadd.f32 %v1017, %v137
    %v1019 = vmax.f32 %v1018, 0.0
    %1020 = vmatprep.subr.mxu0 0.0
    %1021 = vmatpush1.msra.mxu0 %v250
    %1022 = vmatprep.subr.mxu0 0.0
    %1023 = vmatpush1.msra.mxu0 %v249
    %1024 = vmatprep.subr.mxu0 0.0
    %1025 = vmatpush1.msra.mxu0 %v248
    %1026 = vmatprep.subr.mxu0 0.0
    %1027 = vmatpush1.msra.mxu0 %v247
    %1028 = vmatprep.subr.mxu0 0.0
    %1029 = vmatpush1.msra.mxu0 %v246
    %1030 = vmatprep.subr.mxu0 0.0
    %1031 = vmatpush1.msra.mxu0 %v245
    %1032 = vmatprep.subr.mxu0 0.0
    %1033 = vmatpush1.msra.mxu0 %v244
    %1034 = vmatprep.subr.mxu0 0.0
    %1035 = vmatpush1.msra.mxu0 %v243
    %1036 = vmatprep.subr.mxu0 0.0
    %1037 = vmatpush1.msra.mxu0 %v242
    %1038 = vmatprep.subr.mxu0 0.0
    %1039 = vmatpush1.msra.mxu0 %v241
    %1040 = vmatprep.subr.mxu0 0.0
    %1041 = vmatpush1.msra.mxu0 %v240
    %1042 = vmatprep.subr.mxu0 0.0
    %1043 = vmatpush1.msra.mxu0 %v239
    %1044 = vmatprep.subr.mxu0 0.0
    %1045 = vmatpush1.msra.mxu0 %v238
    %1046 = vmatprep.subr.mxu0 0.0
    %1047 = vmatpush1.msra.mxu0 %v237
    %1048 = vmatprep.subr.mxu0 0.0
    %1049 = vmatpush1.msra.mxu0 %v236
    %1050 = vmatprep.subr.mxu0 0.0
    %1051 = vmatpush1.msra.mxu0 %v235
    %1052 = vmatprep.subr.mxu0 0.0
    %1053 = vmatpush2.msra.mxu0 0.0
    %1054 = vmatprep.subr.mxu0 0.0
    %1055 = vmatpush2.msra.mxu0 0.0
    %1056 = vmatprep.subr.mxu0 0.0
    %1057 = vmatpush2.msra.mxu0 0.0
    %1058 = vmatprep.subr.mxu0 0.0
    %1059 = vmatpush2.msra.mxu0 0.0
    %1060 = vmatprep.subr.mxu0 0.0
    %1061 = vmatpush2.msra.mxu0 0.0
    %1062 = vmatprep.subr.mxu0 0.0
    %1063 = vmatpush2.msra.mxu0 0.0
    %1064 = vmatprep.subr.mxu0 0.0
    %1065 = vmatpush2.msra.mxu0 0.0
    %1066 = vmatprep.subr.mxu0 0.0
    %1067 = vmatpush2.msra.mxu0 0.0
    %1068 = vmatprep.subr.mxu0 0.0
    %1069 = vmatpush2.msra.mxu0 0.0
    %1070 = vmatprep.subr.mxu0 0.0
    %1071 = vmatpush2.msra.mxu0 0.0
    %1072 = vmatprep.subr.mxu0 0.0
    %1073 = vmatpush2.msra.mxu0 0.0
    %1074 = vmatprep.subr.mxu0 0.0
    %1075 = vmatpush2.msra.mxu0 0.0
    %1076 = vmatprep.subr.mxu0 0.0
    %1077 = vmatpush2.msra.mxu0 0.0
    %1078 = vmatprep.subr.mxu0 0.0
    %1079 = vmatpush2.msra.mxu0 0.0
    %1080 = vmatprep.subr.mxu0 0.0
    %1081 = vmatpush2.msra.mxu0 0.0
    %1082 = vmatprep.subr.mxu0 0.0
    %1083 = vmatpush2.msra.mxu0 0.0
    %1084 = vmatprep.mubr.f32.mxu0 0.0
    %1085 = vmatmul.mubr.f32.gmra.mxu0 %v1019
    %v1086 = vpop.f32.mrf.mxu0
    %v1087 = vadd.f32 %v145, %v1086
    %v1088 = vpop.f32.mrf.mxu0
    %1089 = vdwg.mxu0
    %v1090 = vmax.f32 %v1087, 0.0
    %1091 = vmatprep.subr.mxu0 0.0
    %1092 = vmatpush1.msra.mxu0 %v337
    %1093 = vmatprep.subr.mxu0 0.0
    %1094 = vmatpush1.msra.mxu0 %v336
    %1095 = vmatprep.subr.mxu0 0.0
    %1096 = vmatpush1.msra.mxu0 %v335
    %1097 = vmatprep.subr.mxu0 0.0
    %1098 = vmatpush1.msra.mxu0 %v334
    %1099 = vmatprep.subr.mxu0 0.0
    %1100 = vmatpush1.msra.mxu0 %v333
    %1101 = vmatprep.subr.mxu0 0.0
    %1102 = vmatpush1.msra.mxu0 %v332
    %1103 = vmatprep.subr.mxu0 0.0
    %1104 = vmatpush1.msra.mxu0 %v331
    %1105 = vmatprep.subr.mxu0 0.0
    %1106 = vmatpush1.msra.mxu0 %v330
    %1107 = vmatprep.subr.mxu0 0.0
    %1108 = vmatpush1.msra.mxu0 %v329
    %1109 = vmatprep.subr.mxu0 0.0
    %1110 = vmatpush1.msra.mxu0 %v328
    %1111 = vmatprep.subr.mxu0 0.0
    %1112 = vmatpush1.msra.mxu0 %v327
    %1113 = vmatprep.subr.mxu0 0.0
    %1114 = vmatpush1.msra.mxu0 %v326
    %1115 = vmatprep.subr.mxu0 0.0
    %1116 = vmatpush1.msra.mxu0 %v325
    %1117 = vmatprep.subr.mxu0 0.0
    %1118 = vmatpush1.msra.mxu0 %v324
    %1119 = vmatprep.subr.mxu0 0.0
    %1120 = vmatpush1.msra.mxu0 %v323
    %1121 = vmatprep.subr.mxu0 0.0
    %1122 = vmatpush1.msra.mxu0 %v322
    %1123 = vmatprep.subr.mxu0 0.0
    %1124 = vmatpush2.msra.mxu0 0.0
    %1125 = vmatprep.subr.mxu0 0.0
    %1126 = vmatpush2.msra.mxu0 0.0
    %1127 = vmatprep.subr.mxu0 0.0
    %1128 = vmatpush2.msra.mxu0 0.0
    %1129 = vmatprep.subr.mxu0 0.0
    %1130 = vmatpush2.msra.mxu0 0.0
    %1131 = vmatprep.subr.mxu0 0.0
    %1132 = vmatpush2.msra.mxu0 0.0
    %1133 = vmatprep.subr.mxu0 0.0
    %1134 = vmatpush2.msra.mxu0 0.0
    %1135 = vmatprep.subr.mxu0 0.0
    %1136 = vmatpush2.msra.mxu0 0.0
    %1137 = vmatprep.subr.mxu0 0.0
    %1138 = vmatpush2.msra.mxu0 0.0
    %1139 = vmatprep.subr.mxu0 0.0
    %1140 = vmatpush2.msra.mxu0 0.0
    %1141 = vmatprep.subr.mxu0 0.0
    %1142 = vmatpush2.msra.mxu0 0.0
    %1143 = vmatprep.subr.mxu0 0.0
    %1144 = vmatpush2.msra.mxu0 0.0
    %1145 = vmatprep.subr.mxu0 0.0
    %1146 = vmatpush2.msra.mxu0 0.0
    %1147 = vmatprep.subr.mxu0 0.0
    %1148 = vmatpush2.msra.mxu0 0.0
    %1149 = vmatprep.subr.mxu0 0.0
    %1150 = vmatpush2.msra.mxu0 0.0
    %1151 = vmatprep.subr.mxu0 0.0
    %1152 = vmatpush2.msra.mxu0 0.0
    %1153 = vmatprep.subr.mxu0 0.0
    %1154 = vmatpush2.msra.mxu0 0.0
    %1155 = vmatprep.mubr.f32.mxu0 0.0
    %1156 = vmatmul.mubr.f32.gmra.mxu0 %v1090
    %v1157 = vpop.f32.mrf.mxu0
    %v1158 = vadd.f32 %v152, %v1157
    %v1159 = vpop.f32.mrf.mxu0
    %1160 = vdwg.mxu0
    %v1161 = vmul.f32 %v1090, 0.016369049
    %v1162 = vadd.f32 %v1007, %v1161
    %v1163 = vmul.f32 %v405, 0.0113932295
    %v1164 = vadd.f32 %v230, %v1163
    %v1165 = vmul.f32 %v699, 0.056154538
    %v1166 = vadd.f32 %v1164, %v1165
    %v1167 = vmul.f32 %v850, 0.08138021
    %v1168 = vadd.f32 %v1166, %v1167
    %v1169 = vmul.f32 %v1003, -0.040297024
    %v1170 = vadd.f32 %v1168, %v1169
    %v1171 = vmul.f32 %v1158, 0.016369049
    %v1172 = vadd.f32 %v1170, %v1171
    %v1173 = vadd.f32 %v1172, %v137
    %v1174 = vmax.f32 %v1173, 0.0
    %1175 = vmatprep.subr.mxu0 0.0
    %1176 = vmatpush1.msra.mxu0 %v250
    %1177 = vmatprep.subr.mxu0 0.0
    %1178 = vmatpush1.msra.mxu0 %v249
    %1179 = vmatprep.subr.mxu0 0.0
    %1180 = vmatpush1.msra.mxu0 %v248
    %1181 = vmatprep.subr.mxu0 0.0
    %1182 = vmatpush1.msra.mxu0 %v247
    %1183 = vmatprep.subr.mxu0 0.0
    %1184 = vmatpush1.msra.mxu0 %v246
    %1185 = vmatprep.subr.mxu0 0.0
    %1186 = vmatpush1.msra.mxu0 %v245
    %1187 = vmatprep.subr.mxu0 0.0
    %1188 = vmatpush1.msra.mxu0 %v244
    %1189 = vmatprep.subr.mxu0 0.0
    %1190 = vmatpush1.msra.mxu0 %v243
    %1191 = vmatprep.subr.mxu0 0.0
    %1192 = vmatpush1.msra.mxu0 %v242
    %1193 = vmatprep.subr.mxu0 0.0
    %1194 = vmatpush1.msra.mxu0 %v241
    %1195 = vmatprep.subr.mxu0 0.0
    %1196 = vmatpush1.msra.mxu0 %v240
    %1197 = vmatprep.subr.mxu0 0.0
    %1198 = vmatpush1.msra.mxu0 %v239
    %1199 = vmatprep.subr.mxu0 0.0
    %1200 = vmatpush1.msra.mxu0 %v238
    %1201 = vmatprep.subr.mxu0 0.0
    %1202 = vmatpush1.msra.mxu0 %v237
    %1203 = vmatprep.subr.mxu0 0.0
    %1204 = vmatpush1.msra.mxu0 %v236
    %1205 = vmatprep.subr.mxu0 0.0
    %1206 = vmatpush1.msra.mxu0 %v235
    %1207 = vmatprep.subr.mxu0 0.0
    %1208 = vmatpush2.msra.mxu0 0.0
    %1209 = vmatprep.subr.mxu0 0.0
    %1210 = vmatpush2.msra.mxu0 0.0
    %1211 = vmatprep.subr.mxu0 0.0
    %1212 = vmatpush2.msra.mxu0 0.0
    %1213 = vmatprep.subr.mxu0 0.0
    %1214 = vmatpush2.msra.mxu0 0.0
    %1215 = vmatprep.subr.mxu0 0.0
    %1216 = vmatpush2.msra.mxu0 0.0
    %1217 = vmatprep.subr.mxu0 0.0
    %1218 = vmatpush2.msra.mxu0 0.0
    %1219 = vmatprep.subr.mxu0 0.0
    %1220 = vmatpush2.msra.mxu0 0.0
    %1221 = vmatprep.subr.mxu0 0.0
    %1222 = vmatpush2.msra.mxu0 0.0
    %1223 = vmatprep.subr.mxu0 0.0
    %1224 = vmatpush2.msra.mxu0 0.0
    %1225 = vmatprep.subr.mxu0 0.0
    %1226 = vmatpush2.msra.mxu0 0.0
    %1227 = vmatprep.subr.mxu0 0.0
    %1228 = vmatpush2.msra.mxu0 0.0
    %1229 = vmatprep.subr.mxu0 0.0
    %1230 = vmatpush2.msra.mxu0 0.0
    %1231 = vmatprep.subr.mxu0 0.0
    %1232 = vmatpush2.msra.mxu0 0.0
    %1233 = vmatprep.subr.mxu0 0.0
    %1234 = vmatpush2.msra.mxu0 0.0
    %1235 = vmatprep.subr.mxu0 0.0
    %1236 = vmatpush2.msra.mxu0 0.0
    %1237 = vmatprep.subr.mxu0 0.0
    %1238 = vmatpush2.msra.mxu0 0.0
    %1239 = vmatprep.mubr.f32.mxu0 0.0
    %1240 = vmatmul.mubr.f32.gmra.mxu0 %v1174
    %v1241 = vpop.f32.mrf.mxu0
    %v1242 = vadd.f32 %v145, %v1241
    %v1243 = vpop.f32.mrf.mxu0
    %1244 = vdwg.mxu0
    %v1245 = vmax.f32 %v1242, 0.0
    %1246 = vmatprep.subr.mxu0 0.0
    %1247 = vmatpush1.msra.mxu0 %v337
    %1248 = vmatprep.subr.mxu0 0.0
    %1249 = vmatpush1.msra.mxu0 %v336
    %1250 = vmatprep.subr.mxu0 0.0
    %1251 = vmatpush1.msra.mxu0 %v335
    %1252 = vmatprep.subr.mxu0 0.0
    %1253 = vmatpush1.msra.mxu0 %v334
    %1254 = vmatprep.subr.mxu0 0.0
    %1255 = vmatpush1.msra.mxu0 %v333
    %1256 = vmatprep.subr.mxu0 0.0
    %1257 = vmatpush1.msra.mxu0 %v332
    %1258 = vmatprep.subr.mxu0 0.0
    %1259 = vmatpush1.msra.mxu0 %v331
    %1260 = vmatprep.subr.mxu0 0.0
    %1261 = vmatpush1.msra.mxu0 %v330
    %1262 = vmatprep.subr.mxu0 0.0
    %1263 = vmatpush1.msra.mxu0 %v329
    %1264 = vmatprep.subr.mxu0 0.0
    %1265 = vmatpush1.msra.mxu0 %v328
    %1266 = vmatprep.subr.mxu0 0.0
    %1267 = vmatpush1.msra.mxu0 %v327
    %1268 = vmatprep.subr.mxu0 0.0
    %1269 = vmatpush1.msra.mxu0 %v326
    %1270 = vmatprep.subr.mxu0 0.0
    %1271 = vmatpush1.msra.mxu0 %v325
    %1272 = vmatprep.subr.mxu0 0.0
    %1273 = vmatpush1.msra.mxu0 %v324
    %1274 = vmatprep.subr.mxu0 0.0
    %1275 = vmatpush1.msra.mxu0 %v323
    %1276 = vmatprep.subr.mxu0 0.0
    %1277 = vmatpush1.msra.mxu0 %v322
    %1278 = vmatprep.subr.mxu0 0.0
    %1279 = vmatpush2.msra.mxu0 0.0
    %1280 = vmatprep.subr.mxu0 0.0
    %1281 = vmatpush2.msra.mxu0 0.0
    %1282 = vmatprep.subr.mxu0 0.0
    %1283 = vmatpush2.msra.mxu0 0.0
    %1284 = vmatprep.subr.mxu0 0.0
    %1285 = vmatpush2.msra.mxu0 0.0
    %1286 = vmatprep.subr.mxu0 0.0
    %1287 = vmatpush2.msra.mxu0 0.0
    %1288 = vmatprep.subr.mxu0 0.0
    %1289 = vmatpush2.msra.mxu0 0.0
    %1290 = vmatprep.subr.mxu0 0.0
    %1291 = vmatpush2.msra.mxu0 0.0
    %1292 = vmatprep.subr.mxu0 0.0
    %1293 = vmatpush2.msra.mxu0 0.0
    %1294 = vmatprep.subr.mxu0 0.0
    %1295 = vmatpush2.msra.mxu0 0.0
    %1296 = vmatprep.subr.mxu0 0.0
    %1297 = vmatpush2.msra.mxu0 0.0
    %1298 = vmatprep.subr.mxu0 0.0
    %1299 = vmatpush2.msra.mxu0 0.0
    %1300 = vmatprep.subr.mxu0 0.0
    %1301 = vmatpush2.msra.mxu0 0.0
    %1302 = vmatprep.subr.mxu0 0.0
    %1303 = vmatpush2.msra.mxu0 0.0
    %1304 = vmatprep.subr.mxu0 0.0
    %1305 = vmatpush2.msra.mxu0 0.0
    %1306 = vmatprep.subr.mxu0 0.0
    %1307 = vmatpush2.msra.mxu0 0.0
    %1308 = vmatprep.subr.mxu0 0.0
    %1309 = vmatpush2.msra.mxu0 0.0
    %1310 = vmatprep.mubr.f32.mxu0 0.0
    %1311 = vmatmul.mubr.f32.gmra.mxu0 %v1245
    %v1312 = vpop.f32.mrf.mxu0
    %v1313 = vadd.f32 %v152, %v1312
    %v1314 = vpop.f32.mrf.mxu0
    %1315 = vdwg.mxu0
    %v1316 = vmul.f32 %v1245, 0.0113932295
    %v1317 = vadd.f32 %v1162, %v1316
    %v1318 = vmul.f32 %v1313, 0.025
    %v1319 = vadd.f32 %v1172, %v1318
    %v1320 = vadd.f32 %v1319, %v137
    %v1321 = vmax.f32 %v1320, 0.0
    %1322 = vmatprep.subr.mxu0 0.0
    %1323 = vmatpush1.msra.mxu0 %v250
    %1324 = vmatprep.subr.mxu0 0.0
    %1325 = vmatpush1.msra.mxu0 %v249
    %1326 = vmatprep.subr.mxu0 0.0
    %1327 = vmatpush1.msra.mxu0 %v248
    %1328 = vmatprep.subr.mxu0 0.0
    %1329 = vmatpush1.msra.mxu0 %v247
    %1330 = vmatprep.subr.mxu0 0.0
    %1331 = vmatpush1.msra.mxu0 %v246
    %1332 = vmatprep.subr.mxu0 0.0
    %1333 = vmatpush1.msra.mxu0 %v245
    %1334 = vmatprep.subr.mxu0 0.0
    %1335 = vmatpush1.msra.mxu0 %v244
    %1336 = vmatprep.subr.mxu0 0.0
    %1337 = vmatpush1.msra.mxu0 %v243
    %1338 = vmatprep.subr.mxu0 0.0
    %1339 = vmatpush1.msra.mxu0 %v242
    %1340 = vmatprep.subr.mxu0 0.0
    %1341 = vmatpush1.msra.mxu0 %v241
    %1342 = vmatprep.subr.mxu0 0.0
    %1343 = vmatpush1.msra.mxu0 %v240
    %1344 = vmatprep.subr.mxu0 0.0
    %1345 = vmatpush1.msra.mxu0 %v239
    %1346 = vmatprep.subr.mxu0 0.0
    %1347 = vmatpush1.msra.mxu0 %v238
    %1348 = vmatprep.subr.mxu0 0.0
    %1349 = vmatpush1.msra.mxu0 %v237
    %1350 = vmatprep.subr.mxu0 0.0
    %1351 = vmatpush1.msra.mxu0 %v236
    %1352 = vmatprep.subr.mxu0 0.0
    %1353 = vmatpush1.msra.mxu0 %v235
    %1354 = vmatprep.subr.mxu0 0.0
    %1355 = vmatpush2.msra.mxu0 0.0
    %1356 = vmatprep.subr.mxu0 0.0
    %1357 = vmatpush2.msra.mxu0 0.0
    %1358 = vmatprep.subr.mxu0 0.0
    %1359 = vmatpush2.msra.mxu0 0.0
    %1360 = vmatprep.subr.mxu0 0.0
    %1361 = vmatpush2.msra.mxu0 0.0
    %1362 = vmatprep.subr.mxu0 0.0
    %1363 = vmatpush2.msra.mxu0 0.0
    %1364 = vmatprep.subr.mxu0 0.0
    %1365 = vmatpush2.msra.mxu0 0.0
    %1366 = vmatprep.subr.mxu0 0.0
    %1367 = vmatpush2.msra.mxu0 0.0
    %1368 = vmatprep.subr.mxu0 0.0
    %1369 = vmatpush2.msra.mxu0 0.0
    %1370 = vmatprep.subr.mxu0 0.0
    %1371 = vmatpush2.msra.mxu0 0.0
    %1372 = vmatprep.subr.mxu0 0.0
    %1373 = vmatpush2.msra.mxu0 0.0
    %1374 = vmatprep.subr.mxu0 0.0
    %1375 = vmatpush2.msra.mxu0 0.0
    %1376 = vmatprep.subr.mxu0 0.0
    %1377 = vmatpush2.msra.mxu0 0.0
    %1378 = vmatprep.subr.mxu0 0.0
    %1379 = vmatpush2.msra.mxu0 0.0
    %1380 = vmatprep.subr.mxu0 0.0
    %1381 = vmatpush2.msra.mxu0 0.0
    %1382 = vmatprep.subr.mxu0 0.0
    %1383 = vmatpush2.msra.mxu0 0.0
    %1384 = vmatprep.subr.mxu0 0.0
    %1385 = vmatpush2.msra.mxu0 0.0
    %1386 = vmatprep.mubr.f32.mxu0 0.0
    %1387 = vmatmul.mubr.f32.gmra.mxu0 %v1321
    %v1388 = vpop.f32.mrf.mxu0
    %v1389 = vadd.f32 %v145, %v1388
    %v1390 = vpop.f32.mrf.mxu0
    %1391 = vdwg.mxu0
    %v1392 = vmax.f32 %v1389, 0.0
    %1393 = vmatprep.subr.mxu0 0.0
    %1394 = vmatpush1.msra.mxu0 %v337
    %1395 = vmatprep.subr.mxu0 0.0
    %1396 = vmatpush1.msra.mxu0 %v336
    %1397 = vmatprep.subr.mxu0 0.0
    %1398 = vmatpush1.msra.mxu0 %v335
    %1399 = vmatprep.subr.mxu0 0.0
    %1400 = vmatpush1.msra.mxu0 %v334
    %1401 = vmatprep.subr.mxu0 0.0
    %1402 = vmatpush1.msra.mxu0 %v333
    %1403 = vmatprep.subr.mxu0 0.0
    %1404 = vmatpush1.msra.mxu0 %v332
    %1405 = vmatprep.subr.mxu0 0.0
    %1406 = vmatpush1.msra.mxu0 %v331
    %1407 = vmatprep.subr.mxu0 0.0
    %1408 = vmatpush1.msra.mxu0 %v330
    %1409 = vmatprep.subr.mxu0 0.0
    %1410 = vmatpush1.msra.mxu0 %v329
    %1411 = vmatprep.subr.mxu0 0.0
    %1412 = vmatpush1.msra.mxu0 %v328
    %1413 = vmatprep.subr.mxu0 0.0
    %1414 = vmatpush1.msra.mxu0 %v327
    %1415 = vmatprep.subr.mxu0 0.0
    %1416 = vmatpush1.msra.mxu0 %v326
    %1417 = vmatprep.subr.mxu0 0.0
    %1418 = vmatpush1.msra.mxu0 %v325
    %1419 = vmatprep.subr.mxu0 0.0
    %1420 = vmatpush1.msra.mxu0 %v324
    %1421 = vmatprep.subr.mxu0 0.0
    %1422 = vmatpush1.msra.mxu0 %v323
    %1423 = vmatprep.subr.mxu0 0.0
    %1424 = vmatpush1.msra.mxu0 %v322
    %1425 = vmatprep.subr.mxu0 0.0
    %1426 = vmatpush2.msra.mxu0 0.0
    %1427 = vmatprep.subr.mxu0 0.0
    %1428 = vmatpush2.msra.mxu0 0.0
    %1429 = vmatprep.subr.mxu0 0.0
    %1430 = vmatpush2.msra.mxu0 0.0
    %1431 = vmatprep.subr.mxu0 0.0
    %1432 = vmatpush2.msra.mxu0 0.0
    %1433 = vmatprep.subr.mxu0 0.0
    %1434 = vmatpush2.msra.mxu0 0.0
    %1435 = vmatprep.subr.mxu0 0.0
    %1436 = vmatpush2.msra.mxu0 0.0
    %1437 = vmatprep.subr.mxu0 0.0
    %1438 = vmatpush2.msra.mxu0 0.0
    %1439 = vmatprep.subr.mxu0 0.0
    %1440 = vmatpush2.msra.mxu0 0.0
    %1441 = vmatprep.subr.mxu0 0.0
    %1442 = vmatpush2.msra.mxu0 0.0
    %1443 = vmatprep.subr.mxu0 0.0
    %1444 = vmatpush2.msra.mxu0 0.0
    %1445 = vmatprep.subr.mxu0 0.0
    %1446 = vmatpush2.msra.mxu0 0.0
    %1447 = vmatprep.subr.mxu0 0.0
    %1448 = vmatpush2.msra.mxu0 0.0
    %1449 = vmatprep.subr.mxu0 0.0
    %1450 = vmatpush2.msra.mxu0 0.0
    %1451 = vmatprep.subr.mxu0 0.0
    %1452 = vmatpush2.msra.mxu0 0.0
    %1453 = vmatprep.subr.mxu0 0.0
    %1454 = vmatpush2.msra.mxu0 0.0
    %1455 = vmatprep.subr.mxu0 0.0
    %1456 = vmatpush2.msra.mxu0 0.0
    %1457 = vmatprep.mubr.f32.mxu0 0.0
    %1458 = vmatmul.mubr.f32.gmra.mxu0 %v1392
    %v1459 = vpop.f32.mrf.mxu0
    %v1460 = vadd.f32 %v152, %v1459
    %v1461 = vpop.f32.mrf.mxu0
    %1462 = vdwg.mxu0
    %v1463 = vmul.f32 %v1313, 0.009375
    %v1464 = vadd.f32 %v1172, %v1463
    %v1465 = vmul.f32 %v1460, 0.028125
    %v1466 = vadd.f32 %v1464, %v1465
    %v1467 = vadd.f32 %v1466, %v137
    %v1468 = vmax.f32 %v1467, 0.0
    %1469 = vmatprep.subr.mxu0 0.0
    %1470 = vmatpush1.msra.mxu0 %v250
    %1471 = vmatprep.subr.mxu0 0.0
    %1472 = vmatpush1.msra.mxu0 %v249
    %1473 = vmatprep.subr.mxu0 0.0
    %1474 = vmatpush1.msra.mxu0 %v248
    %1475 = vmatprep.subr.mxu0 0.0
    %1476 = vmatpush1.msra.mxu0 %v247
    %1477 = vmatprep.subr.mxu0 0.0
    %1478 = vmatpush1.msra.mxu0 %v246
    %1479 = vmatprep.subr.mxu0 0.0
    %1480 = vmatpush1.msra.mxu0 %v245
    %1481 = vmatprep.subr.mxu0 0.0
    %1482 = vmatpush1.msra.mxu0 %v244
    %1483 = vmatprep.subr.mxu0 0.0
    %1484 = vmatpush1.msra.mxu0 %v243
    %1485 = vmatprep.subr.mxu0 0.0
    %1486 = vmatpush1.msra.mxu0 %v242
    %1487 = vmatprep.subr.mxu0 0.0
    %1488 = vmatpush1.msra.mxu0 %v241
    %1489 = vmatprep.subr.mxu0 0.0
    %1490 = vmatpush1.msra.mxu0 %v240
    %1491 = vmatprep.subr.mxu0 0.0
    %1492 = vmatpush1.msra.mxu0 %v239
    %1493 = vmatprep.subr.mxu0 0.0
    %1494 = vmatpush1.msra.mxu0 %v238
    %1495 = vmatprep.subr.mxu0 0.0
    %1496 = vmatpush1.msra.mxu0 %v237
    %1497 = vmatprep.subr.mxu0 0.0
    %1498 = vmatpush1.msra.mxu0 %v236
    %1499 = vmatprep.subr.mxu0 0.0
    %1500 = vmatpush1.msra.mxu0 %v235
    %1501 = vmatprep.subr.mxu0 0.0
    %1502 = vmatpush2.msra.mxu0 0.0
    %1503 = vmatprep.subr.mxu0 0.0
    %1504 = vmatpush2.msra.mxu0 0.0
    %1505 = vmatprep.subr.mxu0 0.0
    %1506 = vmatpush2.msra.mxu0 0.0
    %1507 = vmatprep.subr.mxu0 0.0
    %1508 = vmatpush2.msra.mxu0 0.0
    %1509 = vmatprep.subr.mxu0 0.0
    %1510 = vmatpush2.msra.mxu0 0.0
    %1511 = vmatprep.subr.mxu0 0.0
    %1512 = vmatpush2.msra.mxu0 0.0
    %1513 = vmatprep.subr.mxu0 0.0
    %1514 = vmatpush2.msra.mxu0 0.0
    %1515 = vmatprep.subr.mxu0 0.0
    %1516 = vmatpush2.msra.mxu0 0.0
    %1517 = vmatprep.subr.mxu0 0.0
    %1518 = vmatpush2.msra.mxu0 0.0
    %1519 = vmatprep.subr.mxu0 0.0
    %1520 = vmatpush2.msra.mxu0 0.0
    %1521 = vmatprep.subr.mxu0 0.0
    %1522 = vmatpush2.msra.mxu0 0.0
    %1523 = vmatprep.subr.mxu0 0.0
    %1524 = vmatpush2.msra.mxu0 0.0
    %1525 = vmatprep.subr.mxu0 0.0
    %1526 = vmatpush2.msra.mxu0 0.0
    %1527 = vmatprep.subr.mxu0 0.0
    %1528 = vmatpush2.msra.mxu0 0.0
    %1529 = vmatprep.subr.mxu0 0.0
    %1530 = vmatpush2.msra.mxu0 0.0
    %1531 = vmatprep.subr.mxu0 0.0
    %1532 = vmatpush2.msra.mxu0 0.0
    %1533 = vmatprep.mubr.f32.mxu0 0.0
    %1534 = vmatmul.mubr.f32.gmra.mxu0 %v1468
    %v1535 = vpop.f32.mrf.mxu0
    %v1536 = vadd.f32 %v145, %v1535
    %v1537 = vpop.f32.mrf.mxu0
    %1538 = vdwg.mxu0
    %v1539 = vmax.f32 %v1536, 0.0
    %1540 = vmatprep.subr.mxu0 0.0
    %1541 = vmatpush1.msra.mxu0 %v337
    %1542 = vmatprep.subr.mxu0 0.0
    %1543 = vmatpush1.msra.mxu0 %v336
    %1544 = vmatprep.subr.mxu0 0.0
    %1545 = vmatpush1.msra.mxu0 %v335
    %1546 = vmatprep.subr.mxu0 0.0
    %1547 = vmatpush1.msra.mxu0 %v334
    %1548 = vmatprep.subr.mxu0 0.0
    %1549 = vmatpush1.msra.mxu0 %v333
    %1550 = vmatprep.subr.mxu0 0.0
    %1551 = vmatpush1.msra.mxu0 %v332
    %1552 = vmatprep.subr.mxu0 0.0
    %1553 = vmatpush1.msra.mxu0 %v331
    %1554 = vmatprep.subr.mxu0 0.0
    %1555 = vmatpush1.msra.mxu0 %v330
    %1556 = vmatprep.subr.mxu0 0.0
    %1557 = vmatpush1.msra.mxu0 %v329
    %1558 = vmatprep.subr.mxu0 0.0
    %1559 = vmatpush1.msra.mxu0 %v328
    %1560 = vmatprep.subr.mxu0 0.0
    %1561 = vmatpush1.msra.mxu0 %v327
    %1562 = vmatprep.subr.mxu0 0.0
    %1563 = vmatpush1.msra.mxu0 %v326
    %1564 = vmatprep.subr.mxu0 0.0
    %1565 = vmatpush1.msra.mxu0 %v325
    %1566 = vmatprep.subr.mxu0 0.0
    %1567 = vmatpush1.msra.mxu0 %v324
    %1568 = vmatprep.subr.mxu0 0.0
    %1569 = vmatpush1.msra.mxu0 %v323
    %1570 = vmatprep.subr.mxu0 0.0
    %1571 = vmatpush1.msra.mxu0 %v322
    %1572 = vmatprep.subr.mxu0 0.0
    %1573 = vmatpush2.msra.mxu0 0.0
    %1574 = vmatprep.subr.mxu0 0.0
    %1575 = vmatpush2.msra.mxu0 0.0
    %1576 = vmatprep.subr.mxu0 0.0
    %1577 = vmatpush2.msra.mxu0 0.0
    %1578 = vmatprep.subr.mxu0 0.0
    %1579 = vmatpush2.msra.mxu0 0.0
    %1580 = vmatprep.subr.mxu0 0.0
    %1581 = vmatpush2.msra.mxu0 0.0
    %1582 = vmatprep.subr.mxu0 0.0
    %1583 = vmatpush2.msra.mxu0 0.0
    %1584 = vmatprep.subr.mxu0 0.0
    %1585 = vmatpush2.msra.mxu0 0.0
    %1586 = vmatprep.subr.mxu0 0.0
    %1587 = vmatpush2.msra.mxu0 0.0
    %1588 = vmatprep.subr.mxu0 0.0
    %1589 = vmatpush2.msra.mxu0 0.0
    %1590 = vmatprep.subr.mxu0 0.0
    %1591 = vmatpush2.msra.mxu0 0.0
    %1592 = vmatprep.subr.mxu0 0.0
    %1593 = vmatpush2.msra.mxu0 0.0
    %1594 = vmatprep.subr.mxu0 0.0
    %1595 = vmatpush2.msra.mxu0 0.0
    %1596 = vmatprep.subr.mxu0 0.0
    %1597 = vmatpush2.msra.mxu0 0.0
    %1598 = vmatprep.subr.mxu0 0.0
    %1599 = vmatpush2.msra.mxu0 0.0
    %1600 = vmatprep.subr.mxu0 0.0
    %1601 = vmatpush2.msra.mxu0 0.0
    %1602 = vmatprep.subr.mxu0 0.0
    %1603 = vmatpush2.msra.mxu0 0.0
    %1604 = vmatprep.mubr.f32.mxu0 0.0
    %1605 = vmatmul.mubr.f32.gmra.mxu0 %v1539
    %v1606 = vpop.f32.mrf.mxu0
    %v1607 = vadd.f32 %v152, %v1606
    %v1608 = vpop.f32.mrf.mxu0
    %1609 = vdwg.mxu0
    %v1610 = vmul.f32 %v1539, 0.056154538
    %v1611 = vadd.f32 %v1317, %v1610
    %v1612 = vmul.f32 %v1313, 0.12222222
    %v1613 = vadd.f32 %v1172, %v1612
    %v1614 = vmul.f32 %v1460, -0.46666667
    %v1615 = vadd.f32 %v1613, %v1614
    %v1616 = vmul.f32 %v1607, 0.44444445
    %v1617 = vadd.f32 %v1615, %v1616
    %v1618 = vadd.f32 %v1617, %v137
    %v1619 = vmax.f32 %v1618, 0.0
    %1620 = vmatprep.subr.mxu0 0.0
    %1621 = vmatpush1.msra.mxu0 %v250
    %1622 = vmatprep.subr.mxu0 0.0
    %1623 = vmatpush1.msra.mxu0 %v249
    %1624 = vmatprep.subr.mxu0 0.0
    %1625 = vmatpush1.msra.mxu0 %v248
    %1626 = vmatprep.subr.mxu0 0.0
    %1627 = vmatpush1.msra.mxu0 %v247
    %1628 = vmatprep.subr.mxu0 0.0
    %1629 = vmatpush1.msra.mxu0 %v246
    %1630 = vmatprep.subr.mxu0 0.0
    %1631 = vmatpush1.msra.mxu0 %v245
    %1632 = vmatprep.subr.mxu0 0.0
    %1633 = vmatpush1.msra.mxu0 %v244
    %1634 = vmatprep.subr.mxu0 0.0
    %1635 = vmatpush1.msra.mxu0 %v243
    %1636 = vmatprep.subr.mxu0 0.0
    %1637 = vmatpush1.msra.mxu0 %v242
    %1638 = vmatprep.subr.mxu0 0.0
    %1639 = vmatpush1.msra.mxu0 %v241
    %1640 = vmatprep.subr.mxu0 0.0
    %1641 = vmatpush1.msra.mxu0 %v240
    %1642 = vmatprep.subr.mxu0 0.0
    %1643 = vmatpush1.msra.mxu0 %v239
    %1644 = vmatprep.subr.mxu0 0.0
    %1645 = vmatpush1.msra.mxu0 %v238
    %1646 = vmatprep.subr.mxu0 0.0
    %1647 = vmatpush1.msra.mxu0 %v237
    %1648 = vmatprep.subr.mxu0 0.0
    %1649 = vmatpush1.msra.mxu0 %v236
    %1650 = vmatprep.subr.mxu0 0.0
    %1651 = vmatpush1.msra.mxu0 %v235
    %1652 = vmatprep.subr.mxu0 0.0
    %1653 = vmatpush2.msra.mxu0 0.0
    %1654 = vmatprep.subr.mxu0 0.0
    %1655 = vmatpush2.msra.mxu0 0.0
    %1656 = vmatprep.subr.mxu0 0.0
    %1657 = vmatpush2.msra.mxu0 0.0
    %1658 = vmatprep.subr.mxu0 0.0
    %1659 = vmatpush2.msra.mxu0 0.0
    %1660 = vmatprep.subr.mxu0 0.0
    %1661 = vmatpush2.msra.mxu0 0.0
    %1662 = vmatprep.subr.mxu0 0.0
    %1663 = vmatpush2.msra.mxu0 0.0
    %1664 = vmatprep.subr.mxu0 0.0
    %1665 = vmatpush2.msra.mxu0 0.0
    %1666 = vmatprep.subr.mxu0 0.0
    %1667 = vmatpush2.msra.mxu0 0.0
    %1668 = vmatprep.subr.mxu0 0.0
    %1669 = vmatpush2.msra.mxu0 0.0
    %1670 = vmatprep.subr.mxu0 0.0
    %1671 = vmatpush2.msra.mxu0 0.0
    %1672 = vmatprep.subr.mxu0 0.0
    %1673 = vmatpush2.msra.mxu0 0.0
    %1674 = vmatprep.subr.mxu0 0.0
    %1675 = vmatpush2.msra.mxu0 0.0
    %1676 = vmatprep.subr.mxu0 0.0
    %1677 = vmatpush2.msra.mxu0 0.0
    %1678 = vmatprep.subr.mxu0 0.0
    %1679 = vmatpush2.msra.mxu0 0.0
    %1680 = vmatprep.subr.mxu0 0.0
    %1681 = vmatpush2.msra.mxu0 0.0
    %1682 = vmatprep.subr.mxu0 0.0
    %1683 = vmatpush2.msra.mxu0 0.0
    %1684 = vmatprep.mubr.f32.mxu0 0.0
    %1685 = vmatmul.mubr.f32.gmra.mxu0 %v1619
    %v1686 = vpop.f32.mrf.mxu0
    %v1687 = vadd.f32 %v145, %v1686
    %v1688 = vpop.f32.mrf.mxu0
    %1689 = vdwg.mxu0
    %v1690 = vmax.f32 %v1687, 0.0
    %1691 = vmatprep.subr.mxu0 0.0
    %1692 = vmatpush1.msra.mxu0 %v337
    %1693 = vmatprep.subr.mxu0 0.0
    %1694 = vmatpush1.msra.mxu0 %v336
    %1695 = vmatprep.subr.mxu0 0.0
    %1696 = vmatpush1.msra.mxu0 %v335
    %1697 = vmatprep.subr.mxu0 0.0
    %1698 = vmatpush1.msra.mxu0 %v334
    %1699 = vmatprep.subr.mxu0 0.0
    %1700 = vmatpush1.msra.mxu0 %v333
    %1701 = vmatprep.subr.mxu0 0.0
    %1702 = vmatpush1.msra.mxu0 %v332
    %1703 = vmatprep.subr.mxu0 0.0
    %1704 = vmatpush1.msra.mxu0 %v331
    %1705 = vmatprep.subr.mxu0 0.0
    %1706 = vmatpush1.msra.mxu0 %v330
    %1707 = vmatprep.subr.mxu0 0.0
    %1708 = vmatpush1.msra.mxu0 %v329
    %1709 = vmatprep.subr.mxu0 0.0
    %1710 = vmatpush1.msra.mxu0 %v328
    %1711 = vmatprep.subr.mxu0 0.0
    %1712 = vmatpush1.msra.mxu0 %v327
    %1713 = vmatprep.subr.mxu0 0.0
    %1714 = vmatpush1.msra.mxu0 %v326
    %1715 = vmatprep.subr.mxu0 0.0
    %1716 = vmatpush1.msra.mxu0 %v325
    %1717 = vmatprep.subr.mxu0 0.0
    %1718 = vmatpush1.msra.mxu0 %v324
    %1719 = vmatprep.subr.mxu0 0.0
    %1720 = vmatpush1.msra.mxu0 %v323
    %1721 = vmatprep.subr.mxu0 0.0
    %1722 = vmatpush1.msra.mxu0 %v322
    %1723 = vmatprep.subr.mxu0 0.0
    %1724 = vmatpush2.msra.mxu0 0.0
    %1725 = vmatprep.subr.mxu0 0.0
    %1726 = vmatpush2.msra.mxu0 0.0
    %1727 = vmatprep.subr.mxu0 0.0
    %1728 = vmatpush2.msra.mxu0 0.0
    %1729 = vmatprep.subr.mxu0 0.0
    %1730 = vmatpush2.msra.mxu0 0.0
    %1731 = vmatprep.subr.mxu0 0.0
    %1732 = vmatpush2.msra.mxu0 0.0
    %1733 = vmatprep.subr.mxu0 0.0
    %1734 = vmatpush2.msra.mxu0 0.0
    %1735 = vmatprep.subr.mxu0 0.0
    %1736 = vmatpush2.msra.mxu0 0.0
    %1737 = vmatprep.subr.mxu0 0.0
    %1738 = vmatpush2.msra.mxu0 0.0
    %1739 = vmatprep.subr.mxu0 0.0
    %1740 = vmatpush2.msra.mxu0 0.0
    %1741 = vmatprep.subr.mxu0 0.0
    %1742 = vmatpush2.msra.mxu0 0.0
    %1743 = vmatprep.subr.mxu0 0.0
    %1744 = vmatpush2.msra.mxu0 0.0
    %1745 = vmatprep.subr.mxu0 0.0
    %1746 = vmatpush2.msra.mxu0 0.0
    %1747 = vmatprep.subr.mxu0 0.0
    %1748 = vmatpush2.msra.mxu0 0.0
    %1749 = vmatprep.subr.mxu0 0.0
    %1750 = vmatpush2.msra.mxu0 0.0
    %1751 = vmatprep.subr.mxu0 0.0
    %1752 = vmatpush2.msra.mxu0 0.0
    %1753 = vmatprep.subr.mxu0 0.0
    %1754 = vmatpush2.msra.mxu0 0.0
    %1755 = vmatprep.mubr.f32.mxu0 0.0
    %1756 = vmatmul.mubr.f32.gmra.mxu0 %v1690
    %v1757 = vpop.f32.mrf.mxu0
    %v1758 = vadd.f32 %v152, %v1757
    %v1759 = vpop.f32.mrf.mxu0
    %1760 = vdwg.mxu0
    %v1761 = vmul.f32 %v1690, 0.08138021
    %v1762 = vadd.f32 %v1611, %v1761
    %v1763 = vmul.f32 %v1313, 0.36907482
    %v1764 = vadd.f32 %v1172, %v1763
    %v1765 = vmul.f32 %v1460, -1.4494742
    %v1766 = vadd.f32 %v1764, %v1765
    %v1767 = vmul.f32 %v1607, 1.2278616
    %v1768 = vadd.f32 %v1766, %v1767
    %v1769 = vmul.f32 %v1758, -0.036351167
    %v1770 = vadd.f32 %v1768, %v1769
    %v1771 = vadd.f32 %v1770, %v137
    %v1772 = vmax.f32 %v1771, 0.0
    %1773 = vmatprep.subr.mxu0 0.0
    %1774 = vmatpush1.msra.mxu0 %v250
    %1775 = vmatprep.subr.mxu0 0.0
    %1776 = vmatpush1.msra.mxu0 %v249
    %1777 = vmatprep.subr.mxu0 0.0
    %1778 = vmatpush1.msra.mxu0 %v248
    %1779 = vmatprep.subr.mxu0 0.0
    %1780 = vmatpush1.msra.mxu0 %v247
    %1781 = vmatprep.subr.mxu0 0.0
    %1782 = vmatpush1.msra.mxu0 %v246
    %1783 = vmatprep.subr.mxu0 0.0
    %1784 = vmatpush1.msra.mxu0 %v245
    %1785 = vmatprep.subr.mxu0 0.0
    %1786 = vmatpush1.msra.mxu0 %v244
    %1787 = vmatprep.subr.mxu0 0.0
    %1788 = vmatpush1.msra.mxu0 %v243
    %1789 = vmatprep.subr.mxu0 0.0
    %1790 = vmatpush1.msra.mxu0 %v242
    %1791 = vmatprep.subr.mxu0 0.0
    %1792 = vmatpush1.msra.mxu0 %v241
    %1793 = vmatprep.subr.mxu0 0.0
    %1794 = vmatpush1.msra.mxu0 %v240
    %1795 = vmatprep.subr.mxu0 0.0
    %1796 = vmatpush1.msra.mxu0 %v239
    %1797 = vmatprep.subr.mxu0 0.0
    %1798 = vmatpush1.msra.mxu0 %v238
    %1799 = vmatprep.subr.mxu0 0.0
    %1800 = vmatpush1.msra.mxu0 %v237
    %1801 = vmatprep.subr.mxu0 0.0
    %1802 = vmatpush1.msra.mxu0 %v236
    %1803 = vmatprep.subr.mxu0 0.0
    %1804 = vmatpush1.msra.mxu0 %v235
    %1805 = vmatprep.subr.mxu0 0.0
    %1806 = vmatpush2.msra.mxu0 0.0
    %1807 = vmatprep.subr.mxu0 0.0
    %1808 = vmatpush2.msra.mxu0 0.0
    %1809 = vmatprep.subr.mxu0 0.0
    %1810 = vmatpush2.msra.mxu0 0.0
    %1811 = vmatprep.subr.mxu0 0.0
    %1812 = vmatpush2.msra.mxu0 0.0
    %1813 = vmatprep.subr.mxu0 0.0
    %1814 = vmatpush2.msra.mxu0 0.0
    %1815 = vmatprep.subr.mxu0 0.0
    %1816 = vmatpush2.msra.mxu0 0.0
    %1817 = vmatprep.subr.mxu0 0.0
    %1818 = vmatpush2.msra.mxu0 0.0
    %1819 = vmatprep.subr.mxu0 0.0
    %1820 = vmatpush2.msra.mxu0 0.0
    %1821 = vmatprep.subr.mxu0 0.0
    %1822 = vmatpush2.msra.mxu0 0.0
    %1823 = vmatprep.subr.mxu0 0.0
    %1824 = vmatpush2.msra.mxu0 0.0
    %1825 = vmatprep.subr.mxu0 0.0
    %1826 = vmatpush2.msra.mxu0 0.0
    %1827 = vmatprep.subr.mxu0 0.0
    %1828 = vmatpush2.msra.mxu0 0.0
    %1829 = vmatprep.subr.mxu0 0.0
    %1830 = vmatpush2.msra.mxu0 0.0
    %1831 = vmatprep.subr.mxu0 0.0
    %1832 = vmatpush2.msra.mxu0 0.0
    %1833 = vmatprep.subr.mxu0 0.0
    %1834 = vmatpush2.msra.mxu0 0.0
    %1835 = vmatprep.subr.mxu0 0.0
    %1836 = vmatpush2.msra.mxu0 0.0
    %1837 = vmatprep.mubr.f32.mxu0 0.0
    %1838 = vmatmul.mubr.f32.gmra.mxu0 %v1772
    %v1839 = vpop.f32.mrf.mxu0
    %v1840 = vadd.f32 %v145, %v1839
    %v1841 = vpop.f32.mrf.mxu0
    %1842 = vdwg.mxu0
    %v1843 = vmax.f32 %v1840, 0.0
    %1844 = vmatprep.subr.mxu0 0.0
    %1845 = vmatpush1.msra.mxu0 %v337
    %1846 = vmatprep.subr.mxu0 0.0
    %1847 = vmatpush1.msra.mxu0 %v336
    %1848 = vmatprep.subr.mxu0 0.0
    %1849 = vmatpush1.msra.mxu0 %v335
    %1850 = vmatprep.subr.mxu0 0.0
    %1851 = vmatpush1.msra.mxu0 %v334
    %1852 = vmatprep.subr.mxu0 0.0
    %1853 = vmatpush1.msra.mxu0 %v333
    %1854 = vmatprep.subr.mxu0 0.0
    %1855 = vmatpush1.msra.mxu0 %v332
    %1856 = vmatprep.subr.mxu0 0.0
    %1857 = vmatpush1.msra.mxu0 %v331
    %1858 = vmatprep.subr.mxu0 0.0
    %1859 = vmatpush1.msra.mxu0 %v330
    %1860 = vmatprep.subr.mxu0 0.0
    %1861 = vmatpush1.msra.mxu0 %v329
    %1862 = vmatprep.subr.mxu0 0.0
    %1863 = vmatpush1.msra.mxu0 %v328
    %1864 = vmatprep.subr.mxu0 0.0
    %1865 = vmatpush1.msra.mxu0 %v327
    %1866 = vmatprep.subr.mxu0 0.0
    %1867 = vmatpush1.msra.mxu0 %v326
    %1868 = vmatprep.subr.mxu0 0.0
    %1869 = vmatpush1.msra.mxu0 %v325
    %1870 = vmatprep.subr.mxu0 0.0
    %1871 = vmatpush1.msra.mxu0 %v324
    %1872 = vmatprep.subr.mxu0 0.0
    %1873 = vmatpush1.msra.mxu0 %v323
    %1874 = vmatprep.subr.mxu0 0.0
    %1875 = vmatpush1.msra.mxu0 %v322
    %1876 = vmatprep.subr.mxu0 0.0
    %1877 = vmatpush2.msra.mxu0 0.0
    %1878 = vmatprep.subr.mxu0 0.0
    %1879 = vmatpush2.msra.mxu0 0.0
    %1880 = vmatprep.subr.mxu0 0.0
    %1881 = vmatpush2.msra.mxu0 0.0
    %1882 = vmatprep.subr.mxu0 0.0
    %1883 = vmatpush2.msra.mxu0 0.0
    %1884 = vmatprep.subr.mxu0 0.0
    %1885 = vmatpush2.msra.mxu0 0.0
    %1886 = vmatprep.subr.mxu0 0.0
    %1887 = vmatpush2.msra.mxu0 0.0
    %1888 = vmatprep.subr.mxu0 0.0
    %1889 = vmatpush2.msra.mxu0 0.0
    %1890 = vmatprep.subr.mxu0 0.0
    %1891 = vmatpush2.msra.mxu0 0.0
    %1892 = vmatprep.subr.mxu0 0.0
    %1893 = vmatpush2.msra.mxu0 0.0
    %1894 = vmatprep.subr.mxu0 0.0
    %1895 = vmatpush2.msra.mxu0 0.0
    %1896 = vmatprep.subr.mxu0 0.0
    %1897 = vmatpush2.msra.mxu0 0.0
    %1898 = vmatprep.subr.mxu0 0.0
    %1899 = vmatpush2.msra.mxu0 0.0
    %1900 = vmatprep.subr.mxu0 0.0
    %1901 = vmatpush2.msra.mxu0 0.0
    %1902 = vmatprep.subr.mxu0 0.0
    %1903 = vmatpush2.msra.mxu0 0.0
    %1904 = vmatprep.subr.mxu0 0.0
    %1905 = vmatpush2.msra.mxu0 0.0
    %1906 = vmatprep.subr.mxu0 0.0
    %1907 = vmatpush2.msra.mxu0 0.0
    %1908 = vmatprep.mubr.f32.mxu0 0.0
    %1909 = vmatmul.mubr.f32.gmra.mxu0 %v1843
    %v1910 = vpop.f32.mrf.mxu0
    %v1911 = vadd.f32 %v152, %v1910
    %v1912 = vpop.f32.mrf.mxu0
    %1913 = vdwg.mxu0
    %v1914 = vmul.f32 %v1843, -0.040297024
    %v1915 = vadd.f32 %v1762, %v1914
    %v1916 = vmul.f32 %v1313, 0.35578442
    %v1917 = vadd.f32 %v1172, %v1916
    %v1918 = vmul.f32 %v1460, -1.344697
    %v1919 = vadd.f32 %v1917, %v1918
    %v1920 = vmul.f32 %v1607, 1.1133028
    %v1921 = vadd.f32 %v1919, %v1920
    %v1922 = vmul.f32 %v1758, 0.034801137
    %v1923 = vadd.f32 %v1921, %v1922
    %v1924 = vmul.f32 %v1911, -0.034191415
    %v1925 = vadd.f32 %v1923, %v1924
    %v1926 = vadd.f32 %v1925, %v137
    %v1927 = vmax.f32 %v1926, 0.0
    %1928 = vmatprep.subr.mxu0 0.0
    %1929 = vmatpush1.msra.mxu0 %v250
    %1930 = vmatprep.subr.mxu0 0.0
    %1931 = vmatpush1.msra.mxu0 %v249
    %1932 = vmatprep.subr.mxu0 0.0
    %1933 = vmatpush1.msra.mxu0 %v248
    %1934 = vmatprep.subr.mxu0 0.0
    %1935 = vmatpush1.msra.mxu0 %v247
    %1936 = vmatprep.subr.mxu0 0.0
    %1937 = vmatpush1.msra.mxu0 %v246
    %1938 = vmatprep.subr.mxu0 0.0
    %1939 = vmatpush1.msra.mxu0 %v245
    %1940 = vmatprep.subr.mxu0 0.0
    %1941 = vmatpush1.msra.mxu0 %v244
    %1942 = vmatprep.subr.mxu0 0.0
    %1943 = vmatpush1.msra.mxu0 %v243
    %1944 = vmatprep.subr.mxu0 0.0
    %1945 = vmatpush1.msra.mxu0 %v242
    %1946 = vmatprep.subr.mxu0 0.0
    %1947 = vmatpush1.msra.mxu0 %v241
    %1948 = vmatprep.subr.mxu0 0.0
    %1949 = vmatpush1.msra.mxu0 %v240
    %1950 = vmatprep.subr.mxu0 0.0
    %1951 = vmatpush1.msra.mxu0 %v239
    %1952 = vmatprep.subr.mxu0 0.0
    %1953 = vmatpush1.msra.mxu0 %v238
    %1954 = vmatprep.subr.mxu0 0.0
    %1955 = vmatpush1.msra.mxu0 %v237
    %1956 = vmatprep.subr.mxu0 0.0
    %1957 = vmatpush1.msra.mxu0 %v236
    %1958 = vmatprep.subr.mxu0 0.0
    %1959 = vmatpush1.msra.mxu0 %v235
    %1960 = vmatprep.subr.mxu0 0.0
    %1961 = vmatpush2.msra.mxu0 0.0
    %1962 = vmatprep.subr.mxu0 0.0
    %1963 = vmatpush2.msra.mxu0 0.0
    %1964 = vmatprep.subr.mxu0 0.0
    %1965 = vmatpush2.msra.mxu0 0.0
    %1966 = vmatprep.subr.mxu0 0.0
    %1967 = vmatpush2.msra.mxu0 0.0
    %1968 = vmatprep.subr.mxu0 0.0
    %1969 = vmatpush2.msra.mxu0 0.0
    %1970 = vmatprep.subr.mxu0 0.0
    %1971 = vmatpush2.msra.mxu0 0.0
    %1972 = vmatprep.subr.mxu0 0.0
    %1973 = vmatpush2.msra.mxu0 0.0
    %1974 = vmatprep.subr.mxu0 0.0
    %1975 = vmatpush2.msra.mxu0 0.0
    %1976 = vmatprep.subr.mxu0 0.0
    %1977 = vmatpush2.msra.mxu0 0.0
    %1978 = vmatprep.subr.mxu0 0.0
    %1979 = vmatpush2.msra.mxu0 0.0
    %1980 = vmatprep.subr.mxu0 0.0
    %1981 = vmatpush2.msra.mxu0 0.0
    %1982 = vmatprep.subr.mxu0 0.0
    %1983 = vmatpush2.msra.mxu0 0.0
    %1984 = vmatprep.subr.mxu0 0.0
    %1985 = vmatpush2.msra.mxu0 0.0
    %1986 = vmatprep.subr.mxu0 0.0
    %1987 = vmatpush2.msra.mxu0 0.0
    %1988 = vmatprep.subr.mxu0 0.0
    %1989 = vmatpush2.msra.mxu0 0.0
    %1990 = vmatprep.subr.mxu0 0.0
    %1991 = vmatpush2.msra.mxu0 0.0
    %1992 = vmatprep.mubr.f32.mxu0 0.0
    %1993 = vmatmul.mubr.f32.gmra.mxu0 %v1927
    %v1994 = vpop.f32.mrf.mxu0
    %v1995 = vadd.f32 %v145, %v1994
    %v1996 = vpop.f32.mrf.mxu0
    %1997 = vdwg.mxu0
    %v1998 = vmax.f32 %v1995, 0.0
    %1999 = vmatprep.subr.mxu0 0.0
    %2000 = vmatpush1.msra.mxu0 %v337
    %2001 = vmatprep.subr.mxu0 0.0
    %2002 = vmatpush1.msra.mxu0 %v336
    %2003 = vmatprep.subr.mxu0 0.0
    %2004 = vmatpush1.msra.mxu0 %v335
    %2005 = vmatprep.subr.mxu0 0.0
    %2006 = vmatpush1.msra.mxu0 %v334
    %2007 = vmatprep.subr.mxu0 0.0
    %2008 = vmatpush1.msra.mxu0 %v333
    %2009 = vmatprep.subr.mxu0 0.0
    %2010 = vmatpush1.msra.mxu0 %v332
    %2011 = vmatprep.subr.mxu0 0.0
    %2012 = vmatpush1.msra.mxu0 %v331
    %2013 = vmatprep.subr.mxu0 0.0
    %2014 = vmatpush1.msra.mxu0 %v330
    %2015 = vmatprep.subr.mxu0 0.0
    %2016 = vmatpush1.msra.mxu0 %v329
    %2017 = vmatprep.subr.mxu0 0.0
    %2018 = vmatpush1.msra.mxu0 %v328
    %2019 = vmatprep.subr.mxu0 0.0
    %2020 = vmatpush1.msra.mxu0 %v327
    %2021 = vmatprep.subr.mxu0 0.0
    %2022 = vmatpush1.msra.mxu0 %v326
    %2023 = vmatprep.subr.mxu0 0.0
    %2024 = vmatpush1.msra.mxu0 %v325
    %2025 = vmatprep.subr.mxu0 0.0
    %2026 = vmatpush1.msra.mxu0 %v324
    %2027 = vmatprep.subr.mxu0 0.0
    %2028 = vmatpush1.msra.mxu0 %v323
    %2029 = vmatprep.subr.mxu0 0.0
    %2030 = vmatpush1.msra.mxu0 %v322
    %2031 = vmatprep.subr.mxu0 0.0
    %2032 = vmatpush2.msra.mxu0 0.0
    %2033 = vmatprep.subr.mxu0 0.0
    %2034 = vmatpush2.msra.mxu0 0.0
    %2035 = vmatprep.subr.mxu0 0.0
    %2036 = vmatpush2.msra.mxu0 0.0
    %2037 = vmatprep.subr.mxu0 0.0
    %2038 = vmatpush2.msra.mxu0 0.0
    %2039 = vmatprep.subr.mxu0 0.0
    %2040 = vmatpush2.msra.mxu0 0.0
    %2041 = vmatprep.subr.mxu0 0.0
    %2042 = vmatpush2.msra.mxu0 0.0
    %2043 = vmatprep.subr.mxu0 0.0
    %2044 = vmatpush2.msra.mxu0 0.0
    %2045 = vmatprep.subr.mxu0 0.0
    %2046 = vmatpush2.msra.mxu0 0.0
    %2047 = vmatprep.subr.mxu0 0.0
    %2048 = vmatpush2.msra.mxu0 0.0
    %2049 = vmatprep.subr.mxu0 0.0
    %2050 = vmatpush2.msra.mxu0 0.0
    %2051 = vmatprep.subr.mxu0 0.0
    %2052 = vmatpush2.msra.mxu0 0.0
    %2053 = vmatprep.subr.mxu0 0.0
    %2054 = vmatpush2.msra.mxu0 0.0
    %2055 = vmatprep.subr.mxu0 0.0
    %2056 = vmatpush2.msra.mxu0 0.0
    %2057 = vmatprep.subr.mxu0 0.0
    %2058 = vmatpush2.msra.mxu0 0.0
    %2059 = vmatprep.subr.mxu0 0.0
    %2060 = vmatpush2.msra.mxu0 0.0
    %2061 = vmatprep.subr.mxu0 0.0
    %2062 = vmatpush2.msra.mxu0 0.0
    %2063 = vmatprep.mubr.f32.mxu0 0.0
    %2064 = vmatmul.mubr.f32.gmra.mxu0 %v1998
    %v2065 = vpop.f32.mrf.mxu0
    %v2066 = vadd.f32 %v152, %v2065
    %v2067 = vpop.f32.mrf.mxu0
    %2068 = vdwg.mxu0
    %v2069 = vmul.f32 %v1998, 0.016369049
    %v2070 = vadd.f32 %v1915, %v2069
    %v2071 = vmul.f32 %v1313, 0.0113932295
    %v2072 = vadd.f32 %v1172, %v2071
    %v2073 = vmul.f32 %v1607, 0.056154538
    %v2074 = vadd.f32 %v2072, %v2073
    %v2075 = vmul.f32 %v1758, 0.08138021
    %v2076 = vadd.f32 %v2074, %v2075
    %v2077 = vmul.f32 %v1911, -0.040297024
    %v2078 = vadd.f32 %v2076, %v2077
    %v2079 = vmul.f32 %v2066, 0.016369049
    %v2080 = vadd.f32 %v2078, %v2079
    %v2081 = vadd.f32 %v2080, %v137
    %v2082 = vmax.f32 %v2081, 0.0
    %2083 = vmatprep.subr.mxu0 0.0
    %2084 = vmatpush1.msra.mxu0 %v250
    %2085 = vmatprep.subr.mxu0 0.0
    %2086 = vmatpush1.msra.mxu0 %v249
    %2087 = vmatprep.subr.mxu0 0.0
    %2088 = vmatpush1.msra.mxu0 %v248
    %2089 = vmatprep.subr.mxu0 0.0
    %2090 = vmatpush1.msra.mxu0 %v247
    %2091 = vmatprep.subr.mxu0 0.0
    %2092 = vmatpush1.msra.mxu0 %v246
    %2093 = vmatprep.subr.mxu0 0.0
    %2094 = vmatpush1.msra.mxu0 %v245
    %2095 = vmatprep.subr.mxu0 0.0
    %2096 = vmatpush1.msra.mxu0 %v244
    %2097 = vmatprep.subr.mxu0 0.0
    %2098 = vmatpush1.msra.mxu0 %v243
    %2099 = vmatprep.subr.mxu0 0.0
    %2100 = vmatpush1.msra.mxu0 %v242
    %2101 = vmatprep.subr.mxu0 0.0
    %2102 = vmatpush1.msra.mxu0 %v241
    %2103 = vmatprep.subr.mxu0 0.0
    %2104 = vmatpush1.msra.mxu0 %v240
    %2105 = vmatprep.subr.mxu0 0.0
    %2106 = vmatpush1.msra.mxu0 %v239
    %2107 = vmatprep.subr.mxu0 0.0
    %2108 = vmatpush1.msra.mxu0 %v238
    %2109 = vmatprep.subr.mxu0 0.0
    %2110 = vmatpush1.msra.mxu0 %v237
    %2111 = vmatprep.subr.mxu0 0.0
    %2112 = vmatpush1.msra.mxu0 %v236
    %2113 = vmatprep.subr.mxu0 0.0
    %2114 = vmatpush1.msra.mxu0 %v235
    %2115 = vmatprep.subr.mxu0 0.0
    %2116 = vmatpush2.msra.mxu0 0.0
    %2117 = vmatprep.subr.mxu0 0.0
    %2118 = vmatpush2.msra.mxu0 0.0
    %2119 = vmatprep.subr.mxu0 0.0
    %2120 = vmatpush2.msra.mxu0 0.0
    %2121 = vmatprep.subr.mxu0 0.0
    %2122 = vmatpush2.msra.mxu0 0.0
    %2123 = vmatprep.subr.mxu0 0.0
    %2124 = vmatpush2.msra.mxu0 0.0
    %2125 = vmatprep.subr.mxu0 0.0
    %2126 = vmatpush2.msra.mxu0 0.0
    %2127 = vmatprep.subr.mxu0 0.0
    %2128 = vmatpush2.msra.mxu0 0.0
    %2129 = vmatprep.subr.mxu0 0.0
    %2130 = vmatpush2.msra.mxu0 0.0
    %2131 = vmatprep.subr.mxu0 0.0
    %2132 = vmatpush2.msra.mxu0 0.0
    %2133 = vmatprep.subr.mxu0 0.0
    %2134 = vmatpush2.msra.mxu0 0.0
    %2135 = vmatprep.subr.mxu0 0.0
    %2136 = vmatpush2.msra.mxu0 0.0
    %2137 = vmatprep.subr.mxu0 0.0
    %2138 = vmatpush2.msra.mxu0 0.0
    %2139 = vmatprep.subr.mxu0 0.0
    %2140 = vmatpush2.msra.mxu0 0.0
    %2141 = vmatprep.subr.mxu0 0.0
    %2142 = vmatpush2.msra.mxu0 0.0
    %2143 = vmatprep.subr.mxu0 0.0
    %2144 = vmatpush2.msra.mxu0 0.0
    %2145 = vmatprep.subr.mxu0 0.0
    %2146 = vmatpush2.msra.mxu0 0.0
    %2147 = vmatprep.mubr.f32.mxu0 0.0
    %2148 = vmatmul.mubr.f32.gmra.mxu0 %v2082
    %v2149 = vpop.f32.mrf.mxu0
    %v2150 = vadd.f32 %v145, %v2149
    %v2151 = vpop.f32.mrf.mxu0
    %2152 = vdwg.mxu0
    %v2153 = vmax.f32 %v2150, 0.0
    %2154 = vmatprep.subr.mxu0 0.0
    %2155 = vmatpush1.msra.mxu0 %v337
    %2156 = vmatprep.subr.mxu0 0.0
    %2157 = vmatpush1.msra.mxu0 %v336
    %2158 = vmatprep.subr.mxu0 0.0
    %2159 = vmatpush1.msra.mxu0 %v335
    %2160 = vmatprep.subr.mxu0 0.0
    %2161 = vmatpush1.msra.mxu0 %v334
    %2162 = vmatprep.subr.mxu0 0.0
    %2163 = vmatpush1.msra.mxu0 %v333
    %2164 = vmatprep.subr.mxu0 0.0
    %2165 = vmatpush1.msra.mxu0 %v332
    %2166 = vmatprep.subr.mxu0 0.0
    %2167 = vmatpush1.msra.mxu0 %v331
    %2168 = vmatprep.subr.mxu0 0.0
    %2169 = vmatpush1.msra.mxu0 %v330
    %2170 = vmatprep.subr.mxu0 0.0
    %2171 = vmatpush1.msra.mxu0 %v329
    %2172 = vmatprep.subr.mxu0 0.0
    %2173 = vmatpush1.msra.mxu0 %v328
    %2174 = vmatprep.subr.mxu0 0.0
    %2175 = vmatpush1.msra.mxu0 %v327
    %2176 = vmatprep.subr.mxu0 0.0
    %2177 = vmatpush1.msra.mxu0 %v326
    %2178 = vmatprep.subr.mxu0 0.0
    %2179 = vmatpush1.msra.mxu0 %v325
    %2180 = vmatprep.subr.mxu0 0.0
    %2181 = vmatpush1.msra.mxu0 %v324
    %2182 = vmatprep.subr.mxu0 0.0
    %2183 = vmatpush1.msra.mxu0 %v323
    %2184 = vmatprep.subr.mxu0 0.0
    %2185 = vmatpush1.msra.mxu0 %v322
    %2186 = vmatprep.subr.mxu0 0.0
    %2187 = vmatpush2.msra.mxu0 0.0
    %2188 = vmatprep.subr.mxu0 0.0
    %2189 = vmatpush2.msra.mxu0 0.0
    %2190 = vmatprep.subr.mxu0 0.0
    %2191 = vmatpush2.msra.mxu0 0.0
    %2192 = vmatprep.subr.mxu0 0.0
    %2193 = vmatpush2.msra.mxu0 0.0
    %2194 = vmatprep.subr.mxu0 0.0
    %2195 = vmatpush2.msra.mxu0 0.0
    %2196 = vmatprep.subr.mxu0 0.0
    %2197 = vmatpush2.msra.mxu0 0.0
    %2198 = vmatprep.subr.mxu0 0.0
    %2199 = vmatpush2.msra.mxu0 0.0
    %2200 = vmatprep.subr.mxu0 0.0
    %2201 = vmatpush2.msra.mxu0 0.0
    %2202 = vmatprep.subr.mxu0 0.0
    %2203 = vmatpush2.msra.mxu0 0.0
    %2204 = vmatprep.subr.mxu0 0.0
    %2205 = vmatpush2.msra.mxu0 0.0
    %2206 = vmatprep.subr.mxu0 0.0
    %2207 = vmatpush2.msra.mxu0 0.0
    %2208 = vmatprep.subr.mxu0 0.0
    %2209 = vmatpush2.msra.mxu0 0.0
    %2210 = vmatprep.subr.mxu0 0.0
    %2211 = vmatpush2.msra.mxu0 0.0
    %2212 = vmatprep.subr.mxu0 0.0
    %2213 = vmatpush2.msra.mxu0 0.0
    %2214 = vmatprep.subr.mxu0 0.0
    %2215 = vmatpush2.msra.mxu0 0.0
    %2216 = vmatprep.subr.mxu0 0.0
    %2217 = vmatpush2.msra.mxu0 0.0
    %2218 = vmatprep.mubr.f32.mxu0 0.0
    %2219 = vmatmul.mubr.f32.gmra.mxu0 %v2153
    %v2220 = vpop.f32.mrf.mxu0
    %v2221 = vadd.f32 %v152, %v2220
    %v2222 = vpop.f32.mrf.mxu0
    %2223 = vdwg.mxu0
    %v2224 = vmul.f32 %v2153, 0.0113932295
    %v2225 = vadd.f32 %v2070, %v2224
    %v2226 = vmul.f32 %v2221, 0.025
    %v2227 = vadd.f32 %v2080, %v2226
    %v2228 = vadd.f32 %v2227, %v137
    %v2229 = vmax.f32 %v2228, 0.0
    %2230 = vmatprep.subr.mxu0 0.0
    %2231 = vmatpush1.msra.mxu0 %v250
    %2232 = vmatprep.subr.mxu0 0.0
    %2233 = vmatpush1.msra.mxu0 %v249
    %2234 = vmatprep.subr.mxu0 0.0
    %2235 = vmatpush1.msra.mxu0 %v248
    %2236 = vmatprep.subr.mxu0 0.0
    %2237 = vmatpush1.msra.mxu0 %v247
    %2238 = vmatprep.subr.mxu0 0.0
    %2239 = vmatpush1.msra.mxu0 %v246
    %2240 = vmatprep.subr.mxu0 0.0
    %2241 = vmatpush1.msra.mxu0 %v245
    %2242 = vmatprep.subr.mxu0 0.0
    %2243 = vmatpush1.msra.mxu0 %v244
    %2244 = vmatprep.subr.mxu0 0.0
    %2245 = vmatpush1.msra.mxu0 %v243
    %2246 = vmatprep.subr.mxu0 0.0
    %2247 = vmatpush1.msra.mxu0 %v242
    %2248 = vmatprep.subr.mxu0 0.0
    %2249 = vmatpush1.msra.mxu0 %v241
    %2250 = vmatprep.subr.mxu0 0.0
    %2251 = vmatpush1.msra.mxu0 %v240
    %2252 = vmatprep.subr.mxu0 0.0
    %2253 = vmatpush1.msra.mxu0 %v239
    %2254 = vmatprep.subr.mxu0 0.0
    %2255 = vmatpush1.msra.mxu0 %v238
    %2256 = vmatprep.subr.mxu0 0.0
    %2257 = vmatpush1.msra.mxu0 %v237
    %2258 = vmatprep.subr.mxu0 0.0
    %2259 = vmatpush1.msra.mxu0 %v236
    %2260 = vmatprep.subr.mxu0 0.0
    %2261 = vmatpush1.msra.mxu0 %v235
    %2262 = vmatprep.subr.mxu0 0.0
    %2263 = vmatpush2.msra.mxu0 0.0
    %2264 = vmatprep.subr.mxu0 0.0
    %2265 = vmatpush2.msra.mxu0 0.0
    %2266 = vmatprep.subr.mxu0 0.0
    %2267 = vmatpush2.msra.mxu0 0.0
    %2268 = vmatprep.subr.mxu0 0.0
    %2269 = vmatpush2.msra.mxu0 0.0
    %2270 = vmatprep.subr.mxu0 0.0
    %2271 = vmatpush2.msra.mxu0 0.0
    %2272 = vmatprep.subr.mxu0 0.0
    %2273 = vmatpush2.msra.mxu0 0.0
    %2274 = vmatprep.subr.mxu0 0.0
    %2275 = vmatpush2.msra.mxu0 0.0
    %2276 = vmatprep.subr.mxu0 0.0
    %2277 = vmatpush2.msra.mxu0 0.0
    %2278 = vmatprep.subr.mxu0 0.0
    %2279 = vmatpush2.msra.mxu0 0.0
    %2280 = vmatprep.subr.mxu0 0.0
    %2281 = vmatpush2.msra.mxu0 0.0
    %2282 = vmatprep.subr.mxu0 0.0
    %2283 = vmatpush2.msra.mxu0 0.0
    %2284 = vmatprep.subr.mxu0 0.0
    %2285 = vmatpush2.msra.mxu0 0.0
    %2286 = vmatprep.subr.mxu0 0.0
    %2287 = vmatpush2.msra.mxu0 0.0
    %2288 = vmatprep.subr.mxu0 0.0
    %2289 = vmatpush2.msra.mxu0 0.0
    %2290 = vmatprep.subr.mxu0 0.0
    %2291 = vmatpush2.msra.mxu0 0.0
    %2292 = vmatprep.subr.mxu0 0.0
    %2293 = vmatpush2.msra.mxu0 0.0
    %2294 = vmatprep.mubr.f32.mxu0 0.0
    %2295 = vmatmul.mubr.f32.gmra.mxu0 %v2229
    %v2296 = vpop.f32.mrf.mxu0
    %v2297 = vadd.f32 %v145, %v2296
    %v2298 = vpop.f32.mrf.mxu0
    %2299 = vdwg.mxu0
    %v2300 = vmax.f32 %v2297, 0.0
    %2301 = vmatprep.subr.mxu0 0.0
    %2302 = vmatpush1.msra.mxu0 %v337
    %2303 = vmatprep.subr.mxu0 0.0
    %2304 = vmatpush1.msra.mxu0 %v336
    %2305 = vmatprep.subr.mxu0 0.0
    %2306 = vmatpush1.msra.mxu0 %v335
    %2307 = vmatprep.subr.mxu0 0.0
    %2308 = vmatpush1.msra.mxu0 %v334
    %2309 = vmatprep.subr.mxu0 0.0
    %2310 = vmatpush1.msra.mxu0 %v333
    %2311 = vmatprep.subr.mxu0 0.0
    %2312 = vmatpush1.msra.mxu0 %v332
    %2313 = vmatprep.subr.mxu0 0.0
    %2314 = vmatpush1.msra.mxu0 %v331
    %2315 = vmatprep.subr.mxu0 0.0
    %2316 = vmatpush1.msra.mxu0 %v330
    %2317 = vmatprep.subr.mxu0 0.0
    %2318 = vmatpush1.msra.mxu0 %v329
    %2319 = vmatprep.subr.mxu0 0.0
    %2320 = vmatpush1.msra.mxu0 %v328
    %2321 = vmatprep.subr.mxu0 0.0
    %2322 = vmatpush1.msra.mxu0 %v327
    %2323 = vmatprep.subr.mxu0 0.0
    %2324 = vmatpush1.msra.mxu0 %v326
    %2325 = vmatprep.subr.mxu0 0.0
    %2326 = vmatpush1.msra.mxu0 %v325
    %2327 = vmatprep.subr.mxu0 0.0
    %2328 = vmatpush1.msra.mxu0 %v324
    %2329 = vmatprep.subr.mxu0 0.0
    %2330 = vmatpush1.msra.mxu0 %v323
    %2331 = vmatprep.subr.mxu0 0.0
    %2332 = vmatpush1.msra.mxu0 %v322
    %2333 = vmatprep.subr.mxu0 0.0
    %2334 = vmatpush2.msra.mxu0 0.0
    %2335 = vmatprep.subr.mxu0 0.0
    %2336 = vmatpush2.msra.mxu0 0.0
    %2337 = vmatprep.subr.mxu0 0.0
    %2338 = vmatpush2.msra.mxu0 0.0
    %2339 = vmatprep.subr.mxu0 0.0
    %2340 = vmatpush2.msra.mxu0 0.0
    %2341 = vmatprep.subr.mxu0 0.0
    %2342 = vmatpush2.msra.mxu0 0.0
    %2343 = vmatprep.subr.mxu0 0.0
    %2344 = vmatpush2.msra.mxu0 0.0
    %2345 = vmatprep.subr.mxu0 0.0
    %2346 = vmatpush2.msra.mxu0 0.0
    %2347 = vmatprep.subr.mxu0 0.0
    %2348 = vmatpush2.msra.mxu0 0.0
    %2349 = vmatprep.subr.mxu0 0.0
    %2350 = vmatpush2.msra.mxu0 0.0
    %2351 = vmatprep.subr.mxu0 0.0
    %2352 = vmatpush2.msra.mxu0 0.0
    %2353 = vmatprep.subr.mxu0 0.0
    %2354 = vmatpush2.msra.mxu0 0.0
    %2355 = vmatprep.subr.mxu0 0.0
    %2356 = vmatpush2.msra.mxu0 0.0
    %2357 = vmatprep.subr.mxu0 0.0
    %2358 = vmatpush2.msra.mxu0 0.0
    %2359 = vmatprep.subr.mxu0 0.0
    %2360 = vmatpush2.msra.mxu0 0.0
    %2361 = vmatprep.subr.mxu0 0.0
    %2362 = vmatpush2.msra.mxu0 0.0
    %2363 = vmatprep.subr.mxu0 0.0
    %2364 = vmatpush2.msra.mxu0 0.0
    %2365 = vmatprep.mubr.f32.mxu0 0.0
    %2366 = vmatmul.mubr.f32.gmra.mxu0 %v2300
    %v2367 = vpop.f32.mrf.mxu0
    %v2368 = vadd.f32 %v152, %v2367
    %v2369 = vpop.f32.mrf.mxu0
    %2370 = vdwg.mxu0
    %v2371 = vmul.f32 %v2221, 0.009375
    %v2372 = vadd.f32 %v2080, %v2371
    %v2373 = vmul.f32 %v2368, 0.028125
    %v2374 = vadd.f32 %v2372, %v2373
    %v2375 = vadd.f32 %v2374, %v137
    %v2376 = vmax.f32 %v2375, 0.0
    %2377 = vmatprep.subr.mxu0 0.0
    %2378 = vmatpush1.msra.mxu0 %v250
    %2379 = vmatprep.subr.mxu0 0.0
    %2380 = vmatpush1.msra.mxu0 %v249
    %2381 = vmatprep.subr.mxu0 0.0
    %2382 = vmatpush1.msra.mxu0 %v248
    %2383 = vmatprep.subr.mxu0 0.0
    %2384 = vmatpush1.msra.mxu0 %v247
    %2385 = vmatprep.subr.mxu0 0.0
    %2386 = vmatpush1.msra.mxu0 %v246
    %2387 = vmatprep.subr.mxu0 0.0
    %2388 = vmatpush1.msra.mxu0 %v245
    %2389 = vmatprep.subr.mxu0 0.0
    %2390 = vmatpush1.msra.mxu0 %v244
    %2391 = vmatprep.subr.mxu0 0.0
    %2392 = vmatpush1.msra.mxu0 %v243
    %2393 = vmatprep.subr.mxu0 0.0
    %2394 = vmatpush1.msra.mxu0 %v242
    %2395 = vmatprep.subr.mxu0 0.0
    %2396 = vmatpush1.msra.mxu0 %v241
    %2397 = vmatprep.subr.mxu0 0.0
    %2398 = vmatpush1.msra.mxu0 %v240
    %2399 = vmatprep.subr.mxu0 0.0
    %2400 = vmatpush1.msra.mxu0 %v239
    %2401 = vmatprep.subr.mxu0 0.0
    %2402 = vmatpush1.msra.mxu0 %v238
    %2403 = vmatprep.subr.mxu0 0.0
    %2404 = vmatpush1.msra.mxu0 %v237
    %2405 = vmatprep.subr.mxu0 0.0
    %2406 = vmatpush1.msra.mxu0 %v236
    %2407 = vmatprep.subr.mxu0 0.0
    %2408 = vmatpush1.msra.mxu0 %v235
    %2409 = vmatprep.subr.mxu0 0.0
    %2410 = vmatpush2.msra.mxu0 0.0
    %2411 = vmatprep.subr.mxu0 0.0
    %2412 = vmatpush2.msra.mxu0 0.0
    %2413 = vmatprep.subr.mxu0 0.0
    %2414 = vmatpush2.msra.mxu0 0.0
    %2415 = vmatprep.subr.mxu0 0.0
    %2416 = vmatpush2.msra.mxu0 0.0
    %2417 = vmatprep.subr.mxu0 0.0
    %2418 = vmatpush2.msra.mxu0 0.0
    %2419 = vmatprep.subr.mxu0 0.0
    %2420 = vmatpush2.msra.mxu0 0.0
    %2421 = vmatprep.subr.mxu0 0.0
    %2422 = vmatpush2.msra.mxu0 0.0
    %2423 = vmatprep.subr.mxu0 0.0
    %2424 = vmatpush2.msra.mxu0 0.0
    %2425 = vmatprep.subr.mxu0 0.0
    %2426 = vmatpush2.msra.mxu0 0.0
    %2427 = vmatprep.subr.mxu0 0.0
    %2428 = vmatpush2.msra.mxu0 0.0
    %2429 = vmatprep.subr.mxu0 0.0
    %2430 = vmatpush2.msra.mxu0 0.0
    %2431 = vmatprep.subr.mxu0 0.0
    %2432 = vmatpush2.msra.mxu0 0.0
    %2433 = vmatprep.subr.mxu0 0.0
    %2434 = vmatpush2.msra.mxu0 0.0
    %2435 = vmatprep.subr.mxu0 0.0
    %2436 = vmatpush2.msra.mxu0 0.0
    %2437 = vmatprep.subr.mxu0 0.0
    %2438 = vmatpush2.msra.mxu0 0.0
    %2439 = vmatprep.subr.mxu0 0.0
    %2440 = vmatpush2.msra.mxu0 0.0
    %2441 = vmatprep.mubr.f32.mxu0 0.0
    %2442 = vmatmul.mubr.f32.gmra.mxu0 %v2376
    %v2443 = vpop.f32.mrf.mxu0
    %v2444 = vadd.f32 %v145, %v2443
    %v2445 = vpop.f32.mrf.mxu0
    %2446 = vdwg.mxu0
    %v2447 = vmax.f32 %v2444, 0.0
    %2448 = vmatprep.subr.mxu0 0.0
    %2449 = vmatpush1.msra.mxu0 %v337
    %2450 = vmatprep.subr.mxu0 0.0
    %2451 = vmatpush1.msra.mxu0 %v336
    %2452 = vmatprep.subr.mxu0 0.0
    %2453 = vmatpush1.msra.mxu0 %v335
    %2454 = vmatprep.subr.mxu0 0.0
    %2455 = vmatpush1.msra.mxu0 %v334
    %2456 = vmatprep.subr.mxu0 0.0
    %2457 = vmatpush1.msra.mxu0 %v333
    %2458 = vmatprep.subr.mxu0 0.0
    %2459 = vmatpush1.msra.mxu0 %v332
    %2460 = vmatprep.subr.mxu0 0.0
    %2461 = vmatpush1.msra.mxu0 %v331
    %2462 = vmatprep.subr.mxu0 0.0
    %2463 = vmatpush1.msra.mxu0 %v330
    %2464 = vmatprep.subr.mxu0 0.0
    %2465 = vmatpush1.msra.mxu0 %v329
    %2466 = vmatprep.subr.mxu0 0.0
    %2467 = vmatpush1.msra.mxu0 %v328
    %2468 = vmatprep.subr.mxu0 0.0
    %2469 = vmatpush1.msra.mxu0 %v327
    %2470 = vmatprep.subr.mxu0 0.0
    %2471 = vmatpush1.msra.mxu0 %v326
    %2472 = vmatprep.subr.mxu0 0.0
    %2473 = vmatpush1.msra.mxu0 %v325
    %2474 = vmatprep.subr.mxu0 0.0
    %2475 = vmatpush1.msra.mxu0 %v324
    %2476 = vmatprep.subr.mxu0 0.0
    %2477 = vmatpush1.msra.mxu0 %v323
    %2478 = vmatprep.subr.mxu0 0.0
    %2479 = vmatpush1.msra.mxu0 %v322
    %2480 = vmatprep.subr.mxu0 0.0
    %2481 = vmatpush2.msra.mxu0 0.0
    %2482 = vmatprep.subr.mxu0 0.0
    %2483 = vmatpush2.msra.mxu0 0.0
    %2484 = vmatprep.subr.mxu0 0.0
    %2485 = vmatpush2.msra.mxu0 0.0
    %2486 = vmatprep.subr.mxu0 0.0
    %2487 = vmatpush2.msra.mxu0 0.0
    %2488 = vmatprep.subr.mxu0 0.0
    %2489 = vmatpush2.msra.mxu0 0.0
    %2490 = vmatprep.subr.mxu0 0.0
    %2491 = vmatpush2.msra.mxu0 0.0
    %2492 = vmatprep.subr.mxu0 0.0
    %2493 = vmatpush2.msra.mxu0 0.0
    %2494 = vmatprep.subr.mxu0 0.0
    %2495 = vmatpush2.msra.mxu0 0.0
    %2496 = vmatprep.subr.mxu0 0.0
    %2497 = vmatpush2.msra.mxu0 0.0
    %2498 = vmatprep.subr.mxu0 0.0
    %2499 = vmatpush2.msra.mxu0 0.0
    %2500 = vmatprep.subr.mxu0 0.0
    %2501 = vmatpush2.msra.mxu0 0.0
    %2502 = vmatprep.subr.mxu0 0.0
    %2503 = vmatpush2.msra.mxu0 0.0
    %2504 = vmatprep.subr.mxu0 0.0
    %2505 = vmatpush2.msra.mxu0 0.0
    %2506 = vmatprep.subr.mxu0 0.0
    %2507 = vmatpush2.msra.mxu0 0.0
    %2508 = vmatprep.subr.mxu0 0.0
    %2509 = vmatpush2.msra.mxu0 0.0
    %2510 = vmatprep.subr.mxu0 0.0
    %2511 = vmatpush2.msra.mxu0 0.0
    %2512 = vmatprep.mubr.f32.mxu0 0.0
    %2513 = vmatmul.mubr.f32.gmra.mxu0 %v2447
    %v2514 = vpop.f32.mrf.mxu0
    %v2515 = vadd.f32 %v152, %v2514
    %v2516 = vpop.f32.mrf.mxu0
    %2517 = vdwg.mxu0
    %v2518 = vmul.f32 %v2447, 0.056154538
    %v2519 = vadd.f32 %v2225, %v2518
    %v2520 = vmul.f32 %v2221, 0.12222222
    %v2521 = vadd.f32 %v2080, %v2520
    %v2522 = vmul.f32 %v2368, -0.46666667
    %v2523 = vadd.f32 %v2521, %v2522
    %v2524 = vmul.f32 %v2515, 0.44444445
    %v2525 = vadd.f32 %v2523, %v2524
    %v2526 = vadd.f32 %v2525, %v137
    %v2527 = vmax.f32 %v2526, 0.0
    %2528 = vmatprep.subr.mxu0 0.0
    %2529 = vmatpush1.msra.mxu0 %v250
    %2530 = vmatprep.subr.mxu0 0.0
    %2531 = vmatpush1.msra.mxu0 %v249
    %2532 = vmatprep.subr.mxu0 0.0
    %2533 = vmatpush1.msra.mxu0 %v248
    %2534 = vmatprep.subr.mxu0 0.0
    %2535 = vmatpush1.msra.mxu0 %v247
    %2536 = vmatprep.subr.mxu0 0.0
    %2537 = vmatpush1.msra.mxu0 %v246
    %2538 = vmatprep.subr.mxu0 0.0
    %2539 = vmatpush1.msra.mxu0 %v245
    %2540 = vmatprep.subr.mxu0 0.0
    %2541 = vmatpush1.msra.mxu0 %v244
    %2542 = vmatprep.subr.mxu0 0.0
    %2543 = vmatpush1.msra.mxu0 %v243
    %2544 = vmatprep.subr.mxu0 0.0
    %2545 = vmatpush1.msra.mxu0 %v242
    %2546 = vmatprep.subr.mxu0 0.0
    %2547 = vmatpush1.msra.mxu0 %v241
    %2548 = vmatprep.subr.mxu0 0.0
    %2549 = vmatpush1.msra.mxu0 %v240
    %2550 = vmatprep.subr.mxu0 0.0
    %2551 = vmatpush1.msra.mxu0 %v239
    %2552 = vmatprep.subr.mxu0 0.0
    %2553 = vmatpush1.msra.mxu0 %v238
    %2554 = vmatprep.subr.mxu0 0.0
    %2555 = vmatpush1.msra.mxu0 %v237
    %2556 = vmatprep.subr.mxu0 0.0
    %2557 = vmatpush1.msra.mxu0 %v236
    %2558 = vmatprep.subr.mxu0 0.0
    %2559 = vmatpush1.msra.mxu0 %v235
    %2560 = vmatprep.subr.mxu0 0.0
    %2561 = vmatpush2.msra.mxu0 0.0
    %2562 = vmatprep.subr.mxu0 0.0
    %2563 = vmatpush2.msra.mxu0 0.0
    %2564 = vmatprep.subr.mxu0 0.0
    %2565 = vmatpush2.msra.mxu0 0.0
    %2566 = vmatprep.subr.mxu0 0.0
    %2567 = vmatpush2.msra.mxu0 0.0
    %2568 = vmatprep.subr.mxu0 0.0
    %2569 = vmatpush2.msra.mxu0 0.0
    %2570 = vmatprep.subr.mxu0 0.0
    %2571 = vmatpush2.msra.mxu0 0.0
    %2572 = vmatprep.subr.mxu0 0.0
    %2573 = vmatpush2.msra.mxu0 0.0
    %2574 = vmatprep.subr.mxu0 0.0
    %2575 = vmatpush2.msra.mxu0 0.0
    %2576 = vmatprep.subr.mxu0 0.0
    %2577 = vmatpush2.msra.mxu0 0.0
    %2578 = vmatprep.subr.mxu0 0.0
    %2579 = vmatpush2.msra.mxu0 0.0
    %2580 = vmatprep.subr.mxu0 0.0
    %2581 = vmatpush2.msra.mxu0 0.0
    %2582 = vmatprep.subr.mxu0 0.0
    %2583 = vmatpush2.msra.mxu0 0.0
    %2584 = vmatprep.subr.mxu0 0.0
    %2585 = vmatpush2.msra.mxu0 0.0
    %2586 = vmatprep.subr.mxu0 0.0
    %2587 = vmatpush2.msra.mxu0 0.0
    %2588 = vmatprep.subr.mxu0 0.0
    %2589 = vmatpush2.msra.mxu0 0.0
    %2590 = vmatprep.subr.mxu0 0.0
    %2591 = vmatpush2.msra.mxu0 0.0
    %2592 = vmatprep.mubr.f32.mxu0 0.0
    %2593 = vmatmul.mubr.f32.gmra.mxu0 %v2527
    %v2594 = vpop.f32.mrf.mxu0
    %v2595 = vadd.f32 %v145, %v2594
    %v2596 = vpop.f32.mrf.mxu0
    %2597 = vdwg.mxu0
    %v2598 = vmax.f32 %v2595, 0.0
    %2599 = vmatprep.subr.mxu0 0.0
    %2600 = vmatpush1.msra.mxu0 %v337
    %2601 = vmatprep.subr.mxu0 0.0
    %2602 = vmatpush1.msra.mxu0 %v336
    %2603 = vmatprep.subr.mxu0 0.0
    %2604 = vmatpush1.msra.mxu0 %v335
    %2605 = vmatprep.subr.mxu0 0.0
    %2606 = vmatpush1.msra.mxu0 %v334
    %2607 = vmatprep.subr.mxu0 0.0
    %2608 = vmatpush1.msra.mxu0 %v333
    %2609 = vmatprep.subr.mxu0 0.0
    %2610 = vmatpush1.msra.mxu0 %v332
    %2611 = vmatprep.subr.mxu0 0.0
    %2612 = vmatpush1.msra.mxu0 %v331
    %2613 = vmatprep.subr.mxu0 0.0
    %2614 = vmatpush1.msra.mxu0 %v330
    %2615 = vmatprep.subr.mxu0 0.0
    %2616 = vmatpush1.msra.mxu0 %v329
    %2617 = vmatprep.subr.mxu0 0.0
    %2618 = vmatpush1.msra.mxu0 %v328
    %2619 = vmatprep.subr.mxu0 0.0
    %2620 = vmatpush1.msra.mxu0 %v327
    %2621 = vmatprep.subr.mxu0 0.0
    %2622 = vmatpush1.msra.mxu0 %v326
    %2623 = vmatprep.subr.mxu0 0.0
    %2624 = vmatpush1.msra.mxu0 %v325
    %2625 = vmatprep.subr.mxu0 0.0
    %2626 = vmatpush1.msra.mxu0 %v324
    %2627 = vmatprep.subr.mxu0 0.0
    %2628 = vmatpush1.msra.mxu0 %v323
    %2629 = vmatprep.subr.mxu0 0.0
    %2630 = vmatpush1.msra.mxu0 %v322
    %2631 = vmatprep.subr.mxu0 0.0
    %2632 = vmatpush2.msra.mxu0 0.0
    %2633 = vmatprep.subr.mxu0 0.0
    %2634 = vmatpush2.msra.mxu0 0.0
    %2635 = vmatprep.subr.mxu0 0.0
    %2636 = vmatpush2.msra.mxu0 0.0
    %2637 = vmatprep.subr.mxu0 0.0
    %2638 = vmatpush2.msra.mxu0 0.0
    %2639 = vmatprep.subr.mxu0 0.0
    %2640 = vmatpush2.msra.mxu0 0.0
    %2641 = vmatprep.subr.mxu0 0.0
    %2642 = vmatpush2.msra.mxu0 0.0
    %2643 = vmatprep.subr.mxu0 0.0
    %2644 = vmatpush2.msra.mxu0 0.0
    %2645 = vmatprep.subr.mxu0 0.0
    %2646 = vmatpush2.msra.mxu0 0.0
    %2647 = vmatprep.subr.mxu0 0.0
    %2648 = vmatpush2.msra.mxu0 0.0
    %2649 = vmatprep.subr.mxu0 0.0
    %2650 = vmatpush2.msra.mxu0 0.0
    %2651 = vmatprep.subr.mxu0 0.0
    %2652 = vmatpush2.msra.mxu0 0.0
    %2653 = vmatprep.subr.mxu0 0.0
    %2654 = vmatpush2.msra.mxu0 0.0
    %2655 = vmatprep.subr.mxu0 0.0
    %2656 = vmatpush2.msra.mxu0 0.0
    %2657 = vmatprep.subr.mxu0 0.0
    %2658 = vmatpush2.msra.mxu0 0.0
    %2659 = vmatprep.subr.mxu0 0.0
    %2660 = vmatpush2.msra.mxu0 0.0
    %2661 = vmatprep.subr.mxu0 0.0
    %2662 = vmatpush2.msra.mxu0 0.0
    %2663 = vmatprep.mubr.f32.mxu0 0.0
    %2664 = vmatmul.mubr.f32.gmra.mxu0 %v2598
    %v2665 = vpop.f32.mrf.mxu0
    %v2666 = vadd.f32 %v152, %v2665
    %v2667 = vpop.f32.mrf.mxu0
    %2668 = vdwg.mxu0
    %v2669 = vmul.f32 %v2598, 0.08138021
    %v2670 = vadd.f32 %v2519, %v2669
    %v2671 = vmul.f32 %v2221, 0.36907482
    %v2672 = vadd.f32 %v2080, %v2671
    %v2673 = vmul.f32 %v2368, -1.4494742
    %v2674 = vadd.f32 %v2672, %v2673
    %v2675 = vmul.f32 %v2515, 1.2278616
    %v2676 = vadd.f32 %v2674, %v2675
    %v2677 = vmul.f32 %v2666, -0.036351167
    %v2678 = vadd.f32 %v2676, %v2677
    %v2679 = vadd.f32 %v2678, %v137
    %v2680 = vmax.f32 %v2679, 0.0
    %2681 = vmatprep.subr.mxu0 0.0
    %2682 = vmatpush1.msra.mxu0 %v250
    %2683 = vmatprep.subr.mxu0 0.0
    %2684 = vmatpush1.msra.mxu0 %v249
    %2685 = vmatprep.subr.mxu0 0.0
    %2686 = vmatpush1.msra.mxu0 %v248
    %2687 = vmatprep.subr.mxu0 0.0
    %2688 = vmatpush1.msra.mxu0 %v247
    %2689 = vmatprep.subr.mxu0 0.0
    %2690 = vmatpush1.msra.mxu0 %v246
    %2691 = vmatprep.subr.mxu0 0.0
    %2692 = vmatpush1.msra.mxu0 %v245
    %2693 = vmatprep.subr.mxu0 0.0
    %2694 = vmatpush1.msra.mxu0 %v244
    %2695 = vmatprep.subr.mxu0 0.0
    %2696 = vmatpush1.msra.mxu0 %v243
    %2697 = vmatprep.subr.mxu0 0.0
    %2698 = vmatpush1.msra.mxu0 %v242
    %2699 = vmatprep.subr.mxu0 0.0
    %2700 = vmatpush1.msra.mxu0 %v241
    %2701 = vmatprep.subr.mxu0 0.0
    %2702 = vmatpush1.msra.mxu0 %v240
    %2703 = vmatprep.subr.mxu0 0.0
    %2704 = vmatpush1.msra.mxu0 %v239
    %2705 = vmatprep.subr.mxu0 0.0
    %2706 = vmatpush1.msra.mxu0 %v238
    %2707 = vmatprep.subr.mxu0 0.0
    %2708 = vmatpush1.msra.mxu0 %v237
    %2709 = vmatprep.subr.mxu0 0.0
    %2710 = vmatpush1.msra.mxu0 %v236
    %2711 = vmatprep.subr.mxu0 0.0
    %2712 = vmatpush1.msra.mxu0 %v235
    %2713 = vmatprep.subr.mxu0 0.0
    %2714 = vmatpush2.msra.mxu0 0.0
    %2715 = vmatprep.subr.mxu0 0.0
    %2716 = vmatpush2.msra.mxu0 0.0
    %2717 = vmatprep.subr.mxu0 0.0
    %2718 = vmatpush2.msra.mxu0 0.0
    %2719 = vmatprep.subr.mxu0 0.0
    %2720 = vmatpush2.msra.mxu0 0.0
    %2721 = vmatprep.subr.mxu0 0.0
    %2722 = vmatpush2.msra.mxu0 0.0
    %2723 = vmatprep.subr.mxu0 0.0
    %2724 = vmatpush2.msra.mxu0 0.0
    %2725 = vmatprep.subr.mxu0 0.0
    %2726 = vmatpush2.msra.mxu0 0.0
    %2727 = vmatprep.subr.mxu0 0.0
    %2728 = vmatpush2.msra.mxu0 0.0
    %2729 = vmatprep.subr.mxu0 0.0
    %2730 = vmatpush2.msra.mxu0 0.0
    %2731 = vmatprep.subr.mxu0 0.0
    %2732 = vmatpush2.msra.mxu0 0.0
    %2733 = vmatprep.subr.mxu0 0.0
    %2734 = vmatpush2.msra.mxu0 0.0
    %2735 = vmatprep.subr.mxu0 0.0
    %2736 = vmatpush2.msra.mxu0 0.0
    %2737 = vmatprep.subr.mxu0 0.0
    %2738 = vmatpush2.msra.mxu0 0.0
    %2739 = vmatprep.subr.mxu0 0.0
    %2740 = vmatpush2.msra.mxu0 0.0
    %2741 = vmatprep.subr.mxu0 0.0
    %2742 = vmatpush2.msra.mxu0 0.0
    %2743 = vmatprep.subr.mxu0 0.0
    %2744 = vmatpush2.msra.mxu0 0.0
    %2745 = vmatprep.mubr.f32.mxu0 0.0
    %2746 = vmatmul.mubr.f32.gmra.mxu0 %v2680
    %v2747 = vpop.f32.mrf.mxu0
    %v2748 = vadd.f32 %v145, %v2747
    %v2749 = vpop.f32.mrf.mxu0
    %2750 = vdwg.mxu0
    %v2751 = vmax.f32 %v2748, 0.0
    %2752 = vmatprep.subr.mxu0 0.0
    %2753 = vmatpush1.msra.mxu0 %v337
    %2754 = vmatprep.subr.mxu0 0.0
    %2755 = vmatpush1.msra.mxu0 %v336
    %2756 = vmatprep.subr.mxu0 0.0
    %2757 = vmatpush1.msra.mxu0 %v335
    %2758 = vmatprep.subr.mxu0 0.0
    %2759 = vmatpush1.msra.mxu0 %v334
    %2760 = vmatprep.subr.mxu0 0.0
    %2761 = vmatpush1.msra.mxu0 %v333
    %2762 = vmatprep.subr.mxu0 0.0
    %2763 = vmatpush1.msra.mxu0 %v332
    %2764 = vmatprep.subr.mxu0 0.0
    %2765 = vmatpush1.msra.mxu0 %v331
    %2766 = vmatprep.subr.mxu0 0.0
    %2767 = vmatpush1.msra.mxu0 %v330
    %2768 = vmatprep.subr.mxu0 0.0
    %2769 = vmatpush1.msra.mxu0 %v329
    %2770 = vmatprep.subr.mxu0 0.0
    %2771 = vmatpush1.msra.mxu0 %v328
    %2772 = vmatprep.subr.mxu0 0.0
    %2773 = vmatpush1.msra.mxu0 %v327
    %2774 = vmatprep.subr.mxu0 0.0
    %2775 = vmatpush1.msra.mxu0 %v326
    %2776 = vmatprep.subr.mxu0 0.0
    %2777 = vmatpush1.msra.mxu0 %v325
    %2778 = vmatprep.subr.mxu0 0.0
    %2779 = vmatpush1.msra.mxu0 %v324
    %2780 = vmatprep.subr.mxu0 0.0
    %2781 = vmatpush1.msra.mxu0 %v323
    %2782 = vmatprep.subr.mxu0 0.0
    %2783 = vmatpush1.msra.mxu0 %v322
    %2784 = vmatprep.subr.mxu0 0.0
    %2785 = vmatpush2.msra.mxu0 0.0
    %2786 = vmatprep.subr.mxu0 0.0
    %2787 = vmatpush2.msra.mxu0 0.0
    %2788 = vmatprep.subr.mxu0 0.0
    %2789 = vmatpush2.msra.mxu0 0.0
    %2790 = vmatprep.subr.mxu0 0.0
    %2791 = vmatpush2.msra.mxu0 0.0
    %2792 = vmatprep.subr.mxu0 0.0
    %2793 = vmatpush2.msra.mxu0 0.0
    %2794 = vmatprep.subr.mxu0 0.0
    %2795 = vmatpush2.msra.mxu0 0.0
    %2796 = vmatprep.subr.mxu0 0.0
    %2797 = vmatpush2.msra.mxu0 0.0
    %2798 = vmatprep.subr.mxu0 0.0
    %2799 = vmatpush2.msra.mxu0 0.0
    %2800 = vmatprep.subr.mxu0 0.0
    %2801 = vmatpush2.msra.mxu0 0.0
    %2802 = vmatprep.subr.mxu0 0.0
    %2803 = vmatpush2.msra.mxu0 0.0
    %2804 = vmatprep.subr.mxu0 0.0
    %2805 = vmatpush2.msra.mxu0 0.0
    %2806 = vmatprep.subr.mxu0 0.0
    %2807 = vmatpush2.msra.mxu0 0.0
    %2808 = vmatprep.subr.mxu0 0.0
    %2809 = vmatpush2.msra.mxu0 0.0
    %2810 = vmatprep.subr.mxu0 0.0
    %2811 = vmatpush2.msra.mxu0 0.0
    %2812 = vmatprep.subr.mxu0 0.0
    %2813 = vmatpush2.msra.mxu0 0.0
    %2814 = vmatprep.subr.mxu0 0.0
    %2815 = vmatpush2.msra.mxu0 0.0
    %2816 = vmatprep.mubr.f32.mxu0 0.0
    %2817 = vmatmul.mubr.f32.gmra.mxu0 %v2751
    %v2818 = vpop.f32.mrf.mxu0
    %v2819 = vadd.f32 %v152, %v2818
    %v2820 = vpop.f32.mrf.mxu0
    %2821 = vdwg.mxu0
    %v2822 = vmul.f32 %v2751, -0.040297024
    %v2823 = vadd.f32 %v2670, %v2822
    %v2824 = vmul.f32 %v2221, 0.35578442
    %v2825 = vadd.f32 %v2080, %v2824
    %v2826 = vmul.f32 %v2368, -1.344697
    %v2827 = vadd.f32 %v2825, %v2826
    %v2828 = vmul.f32 %v2515, 1.1133028
    %v2829 = vadd.f32 %v2827, %v2828
    %v2830 = vmul.f32 %v2666, 0.034801137
    %v2831 = vadd.f32 %v2829, %v2830
    %v2832 = vmul.f32 %v2819, -0.034191415
    %v2833 = vadd.f32 %v2831, %v2832
    %v2834 = vadd.f32 %v2833, %v137
    %v2835 = vmax.f32 %v2834, 0.0
    %2836 = vmatprep.subr.mxu0 0.0
    %2837 = vmatpush1.msra.mxu0 %v250
    %2838 = vmatprep.subr.mxu0 0.0
    %2839 = vmatpush1.msra.mxu0 %v249
    %2840 = vmatprep.subr.mxu0 0.0
    %2841 = vmatpush1.msra.mxu0 %v248
    %2842 = vmatprep.subr.mxu0 0.0
    %2843 = vmatpush1.msra.mxu0 %v247
    %2844 = vmatprep.subr.mxu0 0.0
    %2845 = vmatpush1.msra.mxu0 %v246
    %2846 = vmatprep.subr.mxu0 0.0
    %2847 = vmatpush1.msra.mxu0 %v245
    %2848 = vmatprep.subr.mxu0 0.0
    %2849 = vmatpush1.msra.mxu0 %v244
    %2850 = vmatprep.subr.mxu0 0.0
    %2851 = vmatpush1.msra.mxu0 %v243
    %2852 = vmatprep.subr.mxu0 0.0
    %2853 = vmatpush1.msra.mxu0 %v242
    %2854 = vmatprep.subr.mxu0 0.0
    %2855 = vmatpush1.msra.mxu0 %v241
    %2856 = vmatprep.subr.mxu0 0.0
    %2857 = vmatpush1.msra.mxu0 %v240
    %2858 = vmatprep.subr.mxu0 0.0
    %2859 = vmatpush1.msra.mxu0 %v239
    %2860 = vmatprep.subr.mxu0 0.0
    %2861 = vmatpush1.msra.mxu0 %v238
    %2862 = vmatprep.subr.mxu0 0.0
    %2863 = vmatpush1.msra.mxu0 %v237
    %2864 = vmatprep.subr.mxu0 0.0
    %2865 = vmatpush1.msra.mxu0 %v236
    %2866 = vmatprep.subr.mxu0 0.0
    %2867 = vmatpush1.msra.mxu0 %v235
    %2868 = vmatprep.subr.mxu0 0.0
    %2869 = vmatpush2.msra.mxu0 0.0
    %2870 = vmatprep.subr.mxu0 0.0
    %2871 = vmatpush2.msra.mxu0 0.0
    %2872 = vmatprep.subr.mxu0 0.0
    %2873 = vmatpush2.msra.mxu0 0.0
    %2874 = vmatprep.subr.mxu0 0.0
    %2875 = vmatpush2.msra.mxu0 0.0
    %2876 = vmatprep.subr.mxu0 0.0
    %2877 = vmatpush2.msra.mxu0 0.0
    %2878 = vmatprep.subr.mxu0 0.0
    %2879 = vmatpush2.msra.mxu0 0.0
    %2880 = vmatprep.subr.mxu0 0.0
    %2881 = vmatpush2.msra.mxu0 0.0
    %2882 = vmatprep.subr.mxu0 0.0
    %2883 = vmatpush2.msra.mxu0 0.0
    %2884 = vmatprep.subr.mxu0 0.0
    %2885 = vmatpush2.msra.mxu0 0.0
    %2886 = vmatprep.subr.mxu0 0.0
    %2887 = vmatpush2.msra.mxu0 0.0
    %2888 = vmatprep.subr.mxu0 0.0
    %2889 = vmatpush2.msra.mxu0 0.0
    %2890 = vmatprep.subr.mxu0 0.0
    %2891 = vmatpush2.msra.mxu0 0.0
    %2892 = vmatprep.subr.mxu0 0.0
    %2893 = vmatpush2.msra.mxu0 0.0
    %2894 = vmatprep.subr.mxu0 0.0
    %2895 = vmatpush2.msra.mxu0 0.0
    %2896 = vmatprep.subr.mxu0 0.0
    %2897 = vmatpush2.msra.mxu0 0.0
    %2898 = vmatprep.subr.mxu0 0.0
    %2899 = vmatpush2.msra.mxu0 0.0
    %2900 = vmatprep.mubr.f32.mxu0 0.0
    %2901 = vmatmul.mubr.f32.gmra.mxu0 %v2835
    %v2902 = vpop.f32.mrf.mxu0
    %v2903 = vadd.f32 %v145, %v2902
    %v2904 = vpop.f32.mrf.mxu0
    %2905 = vdwg.mxu0
    %v2906 = vmax.f32 %v2903, 0.0
    %2907 = vmatprep.subr.mxu0 0.0
    %2908 = vmatpush1.msra.mxu0 %v337
    %2909 = vmatprep.subr.mxu0 0.0
    %2910 = vmatpush1.msra.mxu0 %v336
    %2911 = vmatprep.subr.mxu0 0.0
    %2912 = vmatpush1.msra.mxu0 %v335
    %2913 = vmatprep.subr.mxu0 0.0
    %2914 = vmatpush1.msra.mxu0 %v334
    %2915 = vmatprep.subr.mxu0 0.0
    %2916 = vmatpush1.msra.mxu0 %v333
    %2917 = vmatprep.subr.mxu0 0.0
    %2918 = vmatpush1.msra.mxu0 %v332
    %2919 = vmatprep.subr.mxu0 0.0
    %2920 = vmatpush1.msra.mxu0 %v331
    %2921 = vmatprep.subr.mxu0 0.0
    %2922 = vmatpush1.msra.mxu0 %v330
    %2923 = vmatprep.subr.mxu0 0.0
    %2924 = vmatpush1.msra.mxu0 %v329
    %2925 = vmatprep.subr.mxu0 0.0
    %2926 = vmatpush1.msra.mxu0 %v328
    %2927 = vmatprep.subr.mxu0 0.0
    %2928 = vmatpush1.msra.mxu0 %v327
    %2929 = vmatprep.subr.mxu0 0.0
    %2930 = vmatpush1.msra.mxu0 %v326
    %2931 = vmatprep.subr.mxu0 0.0
    %2932 = vmatpush1.msra.mxu0 %v325
    %2933 = vmatprep.subr.mxu0 0.0
    %2934 = vmatpush1.msra.mxu0 %v324
    %2935 = vmatprep.subr.mxu0 0.0
    %2936 = vmatpush1.msra.mxu0 %v323
    %2937 = vmatprep.subr.mxu0 0.0
    %2938 = vmatpush1.msra.mxu0 %v322
    %2939 = vmatprep.subr.mxu0 0.0
    %2940 = vmatpush2.msra.mxu0 0.0
    %2941 = vmatprep.subr.mxu0 0.0
    %2942 = vmatpush2.msra.mxu0 0.0
    %2943 = vmatprep.subr.mxu0 0.0
    %2944 = vmatpush2.msra.mxu0 0.0
    %2945 = vmatprep.subr.mxu0 0.0
    %2946 = vmatpush2.msra.mxu0 0.0
    %2947 = vmatprep.subr.mxu0 0.0
    %2948 = vmatpush2.msra.mxu0 0.0
    %2949 = vmatprep.subr.mxu0 0.0
    %2950 = vmatpush2.msra.mxu0 0.0
    %2951 = vmatprep.subr.mxu0 0.0
    %2952 = vmatpush2.msra.mxu0 0.0
    %2953 = vmatprep.subr.mxu0 0.0
    %2954 = vmatpush2.msra.mxu0 0.0
    %2955 = vmatprep.subr.mxu0 0.0
    %2956 = vmatpush2.msra.mxu0 0.0
    %2957 = vmatprep.subr.mxu0 0.0
    %2958 = vmatpush2.msra.mxu0 0.0
    %2959 = vmatprep.subr.mxu0 0.0
    %2960 = vmatpush2.msra.mxu0 0.0
    %2961 = vmatprep.subr.mxu0 0.0
    %2962 = vmatpush2.msra.mxu0 0.0
    %2963 = vmatprep.subr.mxu0 0.0
    %2964 = vmatpush2.msra.mxu0 0.0
    %2965 = vmatprep.subr.mxu0 0.0
    %2966 = vmatpush2.msra.mxu0 0.0
    %2967 = vmatprep.subr.mxu0 0.0
    %2968 = vmatpush2.msra.mxu0 0.0
    %2969 = vmatprep.subr.mxu0 0.0
    %2970 = vmatpush2.msra.mxu0 0.0
    %2971 = vmatprep.mubr.f32.mxu0 0.0
    %2972 = vmatmul.mubr.f32.gmra.mxu0 %v2906
    %v2973 = vpop.f32.mrf.mxu0
    %v2974 = vadd.f32 %v152, %v2973
    %v2975 = vpop.f32.mrf.mxu0
    %2976 = vdwg.mxu0
    %v2977 = vmul.f32 %v2906, 0.016369049
    %v2978 = vadd.f32 %v2823, %v2977
    %v2979 = vmul.f32 %v2221, 0.0113932295
    %v2980 = vadd.f32 %v2080, %v2979
    %v2981 = vmul.f32 %v2515, 0.056154538
    %v2982 = vadd.f32 %v2980, %v2981
    %v2983 = vmul.f32 %v2666, 0.08138021
    %v2984 = vadd.f32 %v2982, %v2983
    %v2985 = vmul.f32 %v2819, -0.040297024
    %v2986 = vadd.f32 %v2984, %v2985
    %v2987 = vmul.f32 %v2974, 0.016369049
    %v2988 = vadd.f32 %v2986, %v2987
    %v2989 = vadd.f32 %v2988, %v137
    %v2990 = vmax.f32 %v2989, 0.0
    %2991 = vmatprep.subr.mxu0 0.0
    %2992 = vmatpush1.msra.mxu0 %v250
    %2993 = vmatprep.subr.mxu0 0.0
    %2994 = vmatpush1.msra.mxu0 %v249
    %2995 = vmatprep.subr.mxu0 0.0
    %2996 = vmatpush1.msra.mxu0 %v248
    %2997 = vmatprep.subr.mxu0 0.0
    %2998 = vmatpush1.msra.mxu0 %v247
    %2999 = vmatprep.subr.mxu0 0.0
    %3000 = vmatpush1.msra.mxu0 %v246
    %3001 = vmatprep.subr.mxu0 0.0
    %3002 = vmatpush1.msra.mxu0 %v245
    %3003 = vmatprep.subr.mxu0 0.0
    %3004 = vmatpush1.msra.mxu0 %v244
    %3005 = vmatprep.subr.mxu0 0.0
    %3006 = vmatpush1.msra.mxu0 %v243
    %3007 = vmatprep.subr.mxu0 0.0
    %3008 = vmatpush1.msra.mxu0 %v242
    %3009 = vmatprep.subr.mxu0 0.0
    %3010 = vmatpush1.msra.mxu0 %v241
    %3011 = vmatprep.subr.mxu0 0.0
    %3012 = vmatpush1.msra.mxu0 %v240
    %3013 = vmatprep.subr.mxu0 0.0
    %3014 = vmatpush1.msra.mxu0 %v239
    %3015 = vmatprep.subr.mxu0 0.0
    %3016 = vmatpush1.msra.mxu0 %v238
    %3017 = vmatprep.subr.mxu0 0.0
    %3018 = vmatpush1.msra.mxu0 %v237
    %3019 = vmatprep.subr.mxu0 0.0
    %3020 = vmatpush1.msra.mxu0 %v236
    %3021 = vmatprep.subr.mxu0 0.0
    %3022 = vmatpush1.msra.mxu0 %v235
    %3023 = vmatprep.subr.mxu0 0.0
    %3024 = vmatpush2.msra.mxu0 0.0
    %3025 = vmatprep.subr.mxu0 0.0
    %3026 = vmatpush2.msra.mxu0 0.0
    %3027 = vmatprep.subr.mxu0 0.0
    %3028 = vmatpush2.msra.mxu0 0.0
    %3029 = vmatprep.subr.mxu0 0.0
    %3030 = vmatpush2.msra.mxu0 0.0
    %3031 = vmatprep.subr.mxu0 0.0
    %3032 = vmatpush2.msra.mxu0 0.0
    %3033 = vmatprep.subr.mxu0 0.0
    %3034 = vmatpush2.msra.mxu0 0.0
    %3035 = vmatprep.subr.mxu0 0.0
    %3036 = vmatpush2.msra.mxu0 0.0
    %3037 = vmatprep.subr.mxu0 0.0
    %3038 = vmatpush2.msra.mxu0 0.0
    %3039 = vmatprep.subr.mxu0 0.0
    %3040 = vmatpush2.msra.mxu0 0.0
    %3041 = vmatprep.subr.mxu0 0.0
    %3042 = vmatpush2.msra.mxu0 0.0
    %3043 = vmatprep.subr.mxu0 0.0
    %3044 = vmatpush2.msra.mxu0 0.0
    %3045 = vmatprep.subr.mxu0 0.0
    %3046 = vmatpush2.msra.mxu0 0.0
    %3047 = vmatprep.subr.mxu0 0.0
    %3048 = vmatpush2.msra.mxu0 0.0
    %3049 = vmatprep.subr.mxu0 0.0
    %3050 = vmatpush2.msra.mxu0 0.0
    %3051 = vmatprep.subr.mxu0 0.0
    %3052 = vmatpush2.msra.mxu0 0.0
    %3053 = vmatprep.subr.mxu0 0.0
    %3054 = vmatpush2.msra.mxu0 0.0
    %3055 = vmatprep.mubr.f32.mxu0 0.0
    %3056 = vmatmul.mubr.f32.gmra.mxu0 %v2990
    %v3057 = vpop.f32.mrf.mxu0
    %v3058 = vadd.f32 %v145, %v3057
    %v3059 = vpop.f32.mrf.mxu0
    %3060 = vdwg.mxu0
    %v3061 = vmax.f32 %v3058, 0.0
    %3062 = vmatprep.subr.mxu0 0.0
    %3063 = vmatpush1.msra.mxu0 %v337
    %3064 = vmatprep.subr.mxu0 0.0
    %3065 = vmatpush1.msra.mxu0 %v336
    %3066 = vmatprep.subr.mxu0 0.0
    %3067 = vmatpush1.msra.mxu0 %v335
    %3068 = vmatprep.subr.mxu0 0.0
    %3069 = vmatpush1.msra.mxu0 %v334
    %3070 = vmatprep.subr.mxu0 0.0
    %3071 = vmatpush1.msra.mxu0 %v333
    %3072 = vmatprep.subr.mxu0 0.0
    %3073 = vmatpush1.msra.mxu0 %v332
    %3074 = vmatprep.subr.mxu0 0.0
    %3075 = vmatpush1.msra.mxu0 %v331
    %3076 = vmatprep.subr.mxu0 0.0
    %3077 = vmatpush1.msra.mxu0 %v330
    %3078 = vmatprep.subr.mxu0 0.0
    %3079 = vmatpush1.msra.mxu0 %v329
    %3080 = vmatprep.subr.mxu0 0.0
    %3081 = vmatpush1.msra.mxu0 %v328
    %3082 = vmatprep.subr.mxu0 0.0
    %3083 = vmatpush1.msra.mxu0 %v327
    %3084 = vmatprep.subr.mxu0 0.0
    %3085 = vmatpush1.msra.mxu0 %v326
    %3086 = vmatprep.subr.mxu0 0.0
    %3087 = vmatpush1.msra.mxu0 %v325
    %3088 = vmatprep.subr.mxu0 0.0
    %3089 = vmatpush1.msra.mxu0 %v324
    %3090 = vmatprep.subr.mxu0 0.0
    %3091 = vmatpush1.msra.mxu0 %v323
    %3092 = vmatprep.subr.mxu0 0.0
    %3093 = vmatpush1.msra.mxu0 %v322
    %3094 = vmatprep.subr.mxu0 0.0
    %3095 = vmatpush2.msra.mxu0 0.0
    %3096 = vmatprep.subr.mxu0 0.0
    %3097 = vmatpush2.msra.mxu0 0.0
    %3098 = vmatprep.subr.mxu0 0.0
    %3099 = vmatpush2.msra.mxu0 0.0
    %3100 = vmatprep.subr.mxu0 0.0
    %3101 = vmatpush2.msra.mxu0 0.0
    %3102 = vmatprep.subr.mxu0 0.0
    %3103 = vmatpush2.msra.mxu0 0.0
    %3104 = vmatprep.subr.mxu0 0.0
    %3105 = vmatpush2.msra.mxu0 0.0
    %3106 = vmatprep.subr.mxu0 0.0
    %3107 = vmatpush2.msra.mxu0 0.0
    %3108 = vmatprep.subr.mxu0 0.0
    %3109 = vmatpush2.msra.mxu0 0.0
    %3110 = vmatprep.subr.mxu0 0.0
    %3111 = vmatpush2.msra.mxu0 0.0
    %3112 = vmatprep.subr.mxu0 0.0
    %3113 = vmatpush2.msra.mxu0 0.0
    %3114 = vmatprep.subr.mxu0 0.0
    %3115 = vmatpush2.msra.mxu0 0.0
    %3116 = vmatprep.subr.mxu0 0.0
    %3117 = vmatpush2.msra.mxu0 0.0
    %3118 = vmatprep.subr.mxu0 0.0
    %3119 = vmatpush2.msra.mxu0 0.0
    %3120 = vmatprep.subr.mxu0 0.0
    %3121 = vmatpush2.msra.mxu0 0.0
    %3122 = vmatprep.subr.mxu0 0.0
    %3123 = vmatpush2.msra.mxu0 0.0
    %3124 = vmatprep.subr.mxu0 0.0
    %3125 = vmatpush2.msra.mxu0 0.0
    %3126 = vmatprep.mubr.f32.mxu0 0.0
    %3127 = vmatmul.mubr.f32.gmra.mxu0 %v3061
    %v3128 = vpop.f32.mrf.mxu0
    %v3129 = vadd.f32 %v152, %v3128
    %v3130 = vpop.f32.mrf.mxu0
    %3131 = vdwg.mxu0
    %v3132 = vmul.f32 %v3061, 0.0113932295
    %v3133 = vadd.f32 %v2978, %v3132
    %v3134 = vmul.f32 %v3129, 0.025
    %v3135 = vadd.f32 %v2988, %v3134
    %v3136 = vadd.f32 %v3135, %v137
    %v3137 = vmax.f32 %v3136, 0.0
    %3138 = vmatprep.subr.mxu0 0.0
    %3139 = vmatpush1.msra.mxu0 %v250
    %3140 = vmatprep.subr.mxu0 0.0
    %3141 = vmatpush1.msra.mxu0 %v249
    %3142 = vmatprep.subr.mxu0 0.0
    %3143 = vmatpush1.msra.mxu0 %v248
    %3144 = vmatprep.subr.mxu0 0.0
    %3145 = vmatpush1.msra.mxu0 %v247
    %3146 = vmatprep.subr.mxu0 0.0
    %3147 = vmatpush1.msra.mxu0 %v246
    %3148 = vmatprep.subr.mxu0 0.0
    %3149 = vmatpush1.msra.mxu0 %v245
    %3150 = vmatprep.subr.mxu0 0.0
    %3151 = vmatpush1.msra.mxu0 %v244
    %3152 = vmatprep.subr.mxu0 0.0
    %3153 = vmatpush1.msra.mxu0 %v243
    %3154 = vmatprep.subr.mxu0 0.0
    %3155 = vmatpush1.msra.mxu0 %v242
    %3156 = vmatprep.subr.mxu0 0.0
    %3157 = vmatpush1.msra.mxu0 %v241
    %3158 = vmatprep.subr.mxu0 0.0
    %3159 = vmatpush1.msra.mxu0 %v240
    %3160 = vmatprep.subr.mxu0 0.0
    %3161 = vmatpush1.msra.mxu0 %v239
    %3162 = vmatprep.subr.mxu0 0.0
    %3163 = vmatpush1.msra.mxu0 %v238
    %3164 = vmatprep.subr.mxu0 0.0
    %3165 = vmatpush1.msra.mxu0 %v237
    %3166 = vmatprep.subr.mxu0 0.0
    %3167 = vmatpush1.msra.mxu0 %v236
    %3168 = vmatprep.subr.mxu0 0.0
    %3169 = vmatpush1.msra.mxu0 %v235
    %3170 = vmatprep.subr.mxu0 0.0
    %3171 = vmatpush2.msra.mxu0 0.0
    %3172 = vmatprep.subr.mxu0 0.0
    %3173 = vmatpush2.msra.mxu0 0.0
    %3174 = vmatprep.subr.mxu0 0.0
    %3175 = vmatpush2.msra.mxu0 0.0
    %3176 = vmatprep.subr.mxu0 0.0
    %3177 = vmatpush2.msra.mxu0 0.0
    %3178 = vmatprep.subr.mxu0 0.0
    %3179 = vmatpush2.msra.mxu0 0.0
    %3180 = vmatprep.subr.mxu0 0.0
    %3181 = vmatpush2.msra.mxu0 0.0
    %3182 = vmatprep.subr.mxu0 0.0
    %3183 = vmatpush2.msra.mxu0 0.0
    %3184 = vmatprep.subr.mxu0 0.0
    %3185 = vmatpush2.msra.mxu0 0.0
    %3186 = vmatprep.subr.mxu0 0.0
    %3187 = vmatpush2.msra.mxu0 0.0
    %3188 = vmatprep.subr.mxu0 0.0
    %3189 = vmatpush2.msra.mxu0 0.0
    %3190 = vmatprep.subr.mxu0 0.0
    %3191 = vmatpush2.msra.mxu0 0.0
    %3192 = vmatprep.subr.mxu0 0.0
    %3193 = vmatpush2.msra.mxu0 0.0
    %3194 = vmatprep.subr.mxu0 0.0
    %3195 = vmatpush2.msra.mxu0 0.0
    %3196 = vmatprep.subr.mxu0 0.0
    %3197 = vmatpush2.msra.mxu0 0.0
    %3198 = vmatprep.subr.mxu0 0.0
    %3199 = vmatpush2.msra.mxu0 0.0
    %3200 = vmatprep.subr.mxu0 0.0
    %3201 = vmatpush2.msra.mxu0 0.0
    %3202 = vmatprep.mubr.f32.mxu0 0.0
    %3203 = vmatmul.mubr.f32.gmra.mxu0 %v3137
    %v3204 = vpop.f32.mrf.mxu0
    %v3205 = vadd.f32 %v145, %v3204
    %v3206 = vpop.f32.mrf.mxu0
    %3207 = vdwg.mxu0
    %v3208 = vmax.f32 %v3205, 0.0
    %3209 = vmatprep.subr.mxu0 0.0
    %3210 = vmatpush1.msra.mxu0 %v337
    %3211 = vmatprep.subr.mxu0 0.0
    %3212 = vmatpush1.msra.mxu0 %v336
    %3213 = vmatprep.subr.mxu0 0.0
    %3214 = vmatpush1.msra.mxu0 %v335
    %3215 = vmatprep.subr.mxu0 0.0
    %3216 = vmatpush1.msra.mxu0 %v334
    %3217 = vmatprep.subr.mxu0 0.0
    %3218 = vmatpush1.msra.mxu0 %v333
    %3219 = vmatprep.subr.mxu0 0.0
    %3220 = vmatpush1.msra.mxu0 %v332
    %3221 = vmatprep.subr.mxu0 0.0
    %3222 = vmatpush1.msra.mxu0 %v331
    %3223 = vmatprep.subr.mxu0 0.0
    %3224 = vmatpush1.msra.mxu0 %v330
    %3225 = vmatprep.subr.mxu0 0.0
    %3226 = vmatpush1.msra.mxu0 %v329
    %3227 = vmatprep.subr.mxu0 0.0
    %3228 = vmatpush1.msra.mxu0 %v328
    %3229 = vmatprep.subr.mxu0 0.0
    %3230 = vmatpush1.msra.mxu0 %v327
    %3231 = vmatprep.subr.mxu0 0.0
    %3232 = vmatpush1.msra.mxu0 %v326
    %3233 = vmatprep.subr.mxu0 0.0
    %3234 = vmatpush1.msra.mxu0 %v325
    %3235 = vmatprep.subr.mxu0 0.0
    %3236 = vmatpush1.msra.mxu0 %v324
    %3237 = vmatprep.subr.mxu0 0.0
    %3238 = vmatpush1.msra.mxu0 %v323
    %3239 = vmatprep.subr.mxu0 0.0
    %3240 = vmatpush1.msra.mxu0 %v322
    %3241 = vmatprep.subr.mxu0 0.0
    %3242 = vmatpush2.msra.mxu0 0.0
    %3243 = vmatprep.subr.mxu0 0.0
    %3244 = vmatpush2.msra.mxu0 0.0
    %3245 = vmatprep.subr.mxu0 0.0
    %3246 = vmatpush2.msra.mxu0 0.0
    %3247 = vmatprep.subr.mxu0 0.0
    %3248 = vmatpush2.msra.mxu0 0.0
    %3249 = vmatprep.subr.mxu0 0.0
    %3250 = vmatpush2.msra.mxu0 0.0
    %3251 = vmatprep.subr.mxu0 0.0
    %3252 = vmatpush2.msra.mxu0 0.0
    %3253 = vmatprep.subr.mxu0 0.0
    %3254 = vmatpush2.msra.mxu0 0.0
    %3255 = vmatprep.subr.mxu0 0.0
    %3256 = vmatpush2.msra.mxu0 0.0
    %3257 = vmatprep.subr.mxu0 0.0
    %3258 = vmatpush2.msra.mxu0 0.0
    %3259 = vmatprep.subr.mxu0 0.0
    %3260 = vmatpush2.msra.mxu0 0.0
    %3261 = vmatprep.subr.mxu0 0.0
    %3262 = vmatpush2.msra.mxu0 0.0
    %3263 = vmatprep.subr.mxu0 0.0
    %3264 = vmatpush2.msra.mxu0 0.0
    %3265 = vmatprep.subr.mxu0 0.0
    %3266 = vmatpush2.msra.mxu0 0.0
    %3267 = vmatprep.subr.mxu0 0.0
    %3268 = vmatpush2.msra.mxu0 0.0
    %3269 = vmatprep.subr.mxu0 0.0
    %3270 = vmatpush2.msra.mxu0 0.0
    %3271 = vmatprep.subr.mxu0 0.0
    %3272 = vmatpush2.msra.mxu0 0.0
    %3273 = vmatprep.mubr.f32.mxu0 0.0
    %3274 = vmatmul.mubr.f32.gmra.mxu0 %v3208
    %v3275 = vpop.f32.mrf.mxu0
    %v3276 = vadd.f32 %v152, %v3275
    %v3277 = vpop.f32.mrf.mxu0
    %3278 = vdwg.mxu0
    %v3279 = vmul.f32 %v3129, 0.009375
    %v3280 = vadd.f32 %v2988, %v3279
    %v3281 = vmul.f32 %v3276, 0.028125
    %v3282 = vadd.f32 %v3280, %v3281
    %v3283 = vadd.f32 %v3282, %v137
    %v3284 = vmax.f32 %v3283, 0.0
    %3285 = vmatprep.subr.mxu0 0.0
    %3286 = vmatpush1.msra.mxu0 %v250
    %3287 = vmatprep.subr.mxu0 0.0
    %3288 = vmatpush1.msra.mxu0 %v249
    %3289 = vmatprep.subr.mxu0 0.0
    %3290 = vmatpush1.msra.mxu0 %v248
    %3291 = vmatprep.subr.mxu0 0.0
    %3292 = vmatpush1.msra.mxu0 %v247
    %3293 = vmatprep.subr.mxu0 0.0
    %3294 = vmatpush1.msra.mxu0 %v246
    %3295 = vmatprep.subr.mxu0 0.0
    %3296 = vmatpush1.msra.mxu0 %v245
    %3297 = vmatprep.subr.mxu0 0.0
    %3298 = vmatpush1.msra.mxu0 %v244
    %3299 = vmatprep.subr.mxu0 0.0
    %3300 = vmatpush1.msra.mxu0 %v243
    %3301 = vmatprep.subr.mxu0 0.0
    %3302 = vmatpush1.msra.mxu0 %v242
    %3303 = vmatprep.subr.mxu0 0.0
    %3304 = vmatpush1.msra.mxu0 %v241
    %3305 = vmatprep.subr.mxu0 0.0
    %3306 = vmatpush1.msra.mxu0 %v240
    %3307 = vmatprep.subr.mxu0 0.0
    %3308 = vmatpush1.msra.mxu0 %v239
    %3309 = vmatprep.subr.mxu0 0.0
    %3310 = vmatpush1.msra.mxu0 %v238
    %3311 = vmatprep.subr.mxu0 0.0
    %3312 = vmatpush1.msra.mxu0 %v237
    %3313 = vmatprep.subr.mxu0 0.0
    %3314 = vmatpush1.msra.mxu0 %v236
    %3315 = vmatprep.subr.mxu0 0.0
    %3316 = vmatpush1.msra.mxu0 %v235
    %3317 = vmatprep.subr.mxu0 0.0
    %3318 = vmatpush2.msra.mxu0 0.0
    %3319 = vmatprep.subr.mxu0 0.0
    %3320 = vmatpush2.msra.mxu0 0.0
    %3321 = vmatprep.subr.mxu0 0.0
    %3322 = vmatpush2.msra.mxu0 0.0
    %3323 = vmatprep.subr.mxu0 0.0
    %3324 = vmatpush2.msra.mxu0 0.0
    %3325 = vmatprep.subr.mxu0 0.0
    %3326 = vmatpush2.msra.mxu0 0.0
    %3327 = vmatprep.subr.mxu0 0.0
    %3328 = vmatpush2.msra.mxu0 0.0
    %3329 = vmatprep.subr.mxu0 0.0
    %3330 = vmatpush2.msra.mxu0 0.0
    %3331 = vmatprep.subr.mxu0 0.0
    %3332 = vmatpush2.msra.mxu0 0.0
    %3333 = vmatprep.subr.mxu0 0.0
    %3334 = vmatpush2.msra.mxu0 0.0
    %3335 = vmatprep.subr.mxu0 0.0
    %3336 = vmatpush2.msra.mxu0 0.0
    %3337 = vmatprep.subr.mxu0 0.0
    %3338 = vmatpush2.msra.mxu0 0.0
    %3339 = vmatprep.subr.mxu0 0.0
    %3340 = vmatpush2.msra.mxu0 0.0
    %3341 = vmatprep.subr.mxu0 0.0
    %3342 = vmatpush2.msra.mxu0 0.0
    %3343 = vmatprep.subr.mxu0 0.0
    %3344 = vmatpush2.msra.mxu0 0.0
    %3345 = vmatprep.subr.mxu0 0.0
    %3346 = vmatpush2.msra.mxu0 0.0
    %3347 = vmatprep.subr.mxu0 0.0
    %3348 = vmatpush2.msra.mxu0 0.0
    %3349 = vmatprep.mubr.f32.mxu0 0.0
    %3350 = vmatmul.mubr.f32.gmra.mxu0 %v3284
    %v3351 = vpop.f32.mrf.mxu0
    %v3352 = vadd.f32 %v145, %v3351
    %v3353 = vpop.f32.mrf.mxu0
    %3354 = vdwg.mxu0
    %v3355 = vmax.f32 %v3352, 0.0
    %3356 = vmatprep.subr.mxu0 0.0
    %3357 = vmatpush1.msra.mxu0 %v337
    %3358 = vmatprep.subr.mxu0 0.0
    %3359 = vmatpush1.msra.mxu0 %v336
    %3360 = vmatprep.subr.mxu0 0.0
    %3361 = vmatpush1.msra.mxu0 %v335
    %3362 = vmatprep.subr.mxu0 0.0
    %3363 = vmatpush1.msra.mxu0 %v334
    %3364 = vmatprep.subr.mxu0 0.0
    %3365 = vmatpush1.msra.mxu0 %v333
    %3366 = vmatprep.subr.mxu0 0.0
    %3367 = vmatpush1.msra.mxu0 %v332
    %3368 = vmatprep.subr.mxu0 0.0
    %3369 = vmatpush1.msra.mxu0 %v331
    %3370 = vmatprep.subr.mxu0 0.0
    %3371 = vmatpush1.msra.mxu0 %v330
    %3372 = vmatprep.subr.mxu0 0.0
    %3373 = vmatpush1.msra.mxu0 %v329
    %3374 = vmatprep.subr.mxu0 0.0
    %3375 = vmatpush1.msra.mxu0 %v328
    %3376 = vmatprep.subr.mxu0 0.0
    %3377 = vmatpush1.msra.mxu0 %v327
    %3378 = vmatprep.subr.mxu0 0.0
    %3379 = vmatpush1.msra.mxu0 %v326
    %3380 = vmatprep.subr.mxu0 0.0
    %3381 = vmatpush1.msra.mxu0 %v325
    %3382 = vmatprep.subr.mxu0 0.0
    %3383 = vmatpush1.msra.mxu0 %v324
    %3384 = vmatprep.subr.mxu0 0.0
    %3385 = vmatpush1.msra.mxu0 %v323
    %3386 = vmatprep.subr.mxu0 0.0
    %3387 = vmatpush1.msra.mxu0 %v322
    %3388 = vmatprep.subr.mxu0 0.0
    %3389 = vmatpush2.msra.mxu0 0.0
    %3390 = vmatprep.subr.mxu0 0.0
    %3391 = vmatpush2.msra.mxu0 0.0
    %3392 = vmatprep.subr.mxu0 0.0
    %3393 = vmatpush2.msra.mxu0 0.0
    %3394 = vmatprep.subr.mxu0 0.0
    %3395 = vmatpush2.msra.mxu0 0.0
    %3396 = vmatprep.subr.mxu0 0.0
    %3397 = vmatpush2.msra.mxu0 0.0
    %3398 = vmatprep.subr.mxu0 0.0
    %3399 = vmatpush2.msra.mxu0 0.0
    %3400 = vmatprep.subr.mxu0 0.0
    %3401 = vmatpush2.msra.mxu0 0.0
    %3402 = vmatprep.subr.mxu0 0.0
    %3403 = vmatpush2.msra.mxu0 0.0
    %3404 = vmatprep.subr.mxu0 0.0
    %3405 = vmatpush2.msra.mxu0 0.0
    %3406 = vmatprep.subr.mxu0 0.0
    %3407 = vmatpush2.msra.mxu0 0.0
    %3408 = vmatprep.subr.mxu0 0.0
    %3409 = vmatpush2.msra.mxu0 0.0
    %3410 = vmatprep.subr.mxu0 0.0
    %3411 = vmatpush2.msra.mxu0 0.0
    %3412 = vmatprep.subr.mxu0 0.0
    %3413 = vmatpush2.msra.mxu0 0.0
    %3414 = vmatprep.subr.mxu0 0.0
    %3415 = vmatpush2.msra.mxu0 0.0
    %3416 = vmatprep.subr.mxu0 0.0
    %3417 = vmatpush2.msra.mxu0 0.0
    %3418 = vmatprep.subr.mxu0 0.0
    %3419 = vmatpush2.msra.mxu0 0.0
    %3420 = vmatprep.mubr.f32.mxu0 0.0
    %3421 = vmatmul.mubr.f32.gmra.mxu0 %v3355
    %v3422 = vpop.f32.mrf.mxu0
    %v3423 = vadd.f32 %v152, %v3422
    %v3424 = vpop.f32.mrf.mxu0
    %3425 = vdwg.mxu0
    %v3426 = vmul.f32 %v3355, 0.056154538
    %v3427 = vadd.f32 %v3133, %v3426
    %v3428 = vmul.f32 %v3129, 0.12222222
    %v3429 = vadd.f32 %v2988, %v3428
    %v3430 = vmul.f32 %v3276, -0.46666667
    %v3431 = vadd.f32 %v3429, %v3430
    %v3432 = vmul.f32 %v3423, 0.44444445
    %v3433 = vadd.f32 %v3431, %v3432
    %v3434 = vadd.f32 %v3433, %v137
    %v3435 = vmax.f32 %v3434, 0.0
    %3436 = vmatprep.subr.mxu0 0.0
    %3437 = vmatpush1.msra.mxu0 %v250
    %3438 = vmatprep.subr.mxu0 0.0
    %3439 = vmatpush1.msra.mxu0 %v249
    %3440 = vmatprep.subr.mxu0 0.0
    %3441 = vmatpush1.msra.mxu0 %v248
    %3442 = vmatprep.subr.mxu0 0.0
    %3443 = vmatpush1.msra.mxu0 %v247
    %3444 = vmatprep.subr.mxu0 0.0
    %3445 = vmatpush1.msra.mxu0 %v246
    %3446 = vmatprep.subr.mxu0 0.0
    %3447 = vmatpush1.msra.mxu0 %v245
    %3448 = vmatprep.subr.mxu0 0.0
    %3449 = vmatpush1.msra.mxu0 %v244
    %3450 = vmatprep.subr.mxu0 0.0
    %3451 = vmatpush1.msra.mxu0 %v243
    %3452 = vmatprep.subr.mxu0 0.0
    %3453 = vmatpush1.msra.mxu0 %v242
    %3454 = vmatprep.subr.mxu0 0.0
    %3455 = vmatpush1.msra.mxu0 %v241
    %3456 = vmatprep.subr.mxu0 0.0
    %3457 = vmatpush1.msra.mxu0 %v240
    %3458 = vmatprep.subr.mxu0 0.0
    %3459 = vmatpush1.msra.mxu0 %v239
    %3460 = vmatprep.subr.mxu0 0.0
    %3461 = vmatpush1.msra.mxu0 %v238
    %3462 = vmatprep.subr.mxu0 0.0
    %3463 = vmatpush1.msra.mxu0 %v237
    %3464 = vmatprep.subr.mxu0 0.0
    %3465 = vmatpush1.msra.mxu0 %v236
    %3466 = vmatprep.subr.mxu0 0.0
    %3467 = vmatpush1.msra.mxu0 %v235
    %3468 = vmatprep.subr.mxu0 0.0
    %3469 = vmatpush2.msra.mxu0 0.0
    %3470 = vmatprep.subr.mxu0 0.0
    %3471 = vmatpush2.msra.mxu0 0.0
    %3472 = vmatprep.subr.mxu0 0.0
    %3473 = vmatpush2.msra.mxu0 0.0
    %3474 = vmatprep.subr.mxu0 0.0
    %3475 = vmatpush2.msra.mxu0 0.0
    %3476 = vmatprep.subr.mxu0 0.0
    %3477 = vmatpush2.msra.mxu0 0.0
    %3478 = vmatprep.subr.mxu0 0.0
    %3479 = vmatpush2.msra.mxu0 0.0
    %3480 = vmatprep.subr.mxu0 0.0
    %3481 = vmatpush2.msra.mxu0 0.0
    %3482 = vmatprep.subr.mxu0 0.0
    %3483 = vmatpush2.msra.mxu0 0.0
    %3484 = vmatprep.subr.mxu0 0.0
    %3485 = vmatpush2.msra.mxu0 0.0
    %3486 = vmatprep.subr.mxu0 0.0
    %3487 = vmatpush2.msra.mxu0 0.0
    %3488 = vmatprep.subr.mxu0 0.0
    %3489 = vmatpush2.msra.mxu0 0.0
    %3490 = vmatprep.subr.mxu0 0.0
    %3491 = vmatpush2.msra.mxu0 0.0
    %3492 = vmatprep.subr.mxu0 0.0
    %3493 = vmatpush2.msra.mxu0 0.0
    %3494 = vmatprep.subr.mxu0 0.0
    %3495 = vmatpush2.msra.mxu0 0.0
    %3496 = vmatprep.subr.mxu0 0.0
    %3497 = vmatpush2.msra.mxu0 0.0
    %3498 = vmatprep.subr.mxu0 0.0
    %3499 = vmatpush2.msra.mxu0 0.0
    %3500 = vmatprep.mubr.f32.mxu0 0.0
    %3501 = vmatmul.mubr.f32.gmra.mxu0 %v3435
    %v3502 = vpop.f32.mrf.mxu0
    %v3503 = vadd.f32 %v145, %v3502
    %v3504 = vpop.f32.mrf.mxu0
    %3505 = vdwg.mxu0
    %v3506 = vmax.f32 %v3503, 0.0
    %3507 = vmatprep.subr.mxu0 0.0
    %3508 = vmatpush1.msra.mxu0 %v337
    %3509 = vmatprep.subr.mxu0 0.0
    %3510 = vmatpush1.msra.mxu0 %v336
    %3511 = vmatprep.subr.mxu0 0.0
    %3512 = vmatpush1.msra.mxu0 %v335
    %3513 = vmatprep.subr.mxu0 0.0
    %3514 = vmatpush1.msra.mxu0 %v334
    %3515 = vmatprep.subr.mxu0 0.0
    %3516 = vmatpush1.msra.mxu0 %v333
    %3517 = vmatprep.subr.mxu0 0.0
    %3518 = vmatpush1.msra.mxu0 %v332
    %3519 = vmatprep.subr.mxu0 0.0
    %3520 = vmatpush1.msra.mxu0 %v331
    %3521 = vmatprep.subr.mxu0 0.0
    %3522 = vmatpush1.msra.mxu0 %v330
    %3523 = vmatprep.subr.mxu0 0.0
    %3524 = vmatpush1.msra.mxu0 %v329
    %3525 = vmatprep.subr.mxu0 0.0
    %3526 = vmatpush1.msra.mxu0 %v328
    %3527 = vmatprep.subr.mxu0 0.0
    %3528 = vmatpush1.msra.mxu0 %v327
    %3529 = vmatprep.subr.mxu0 0.0
    %3530 = vmatpush1.msra.mxu0 %v326
    %3531 = vmatprep.subr.mxu0 0.0
    %3532 = vmatpush1.msra.mxu0 %v325
    %3533 = vmatprep.subr.mxu0 0.0
    %3534 = vmatpush1.msra.mxu0 %v324
    %3535 = vmatprep.subr.mxu0 0.0
    %3536 = vmatpush1.msra.mxu0 %v323
    %3537 = vmatprep.subr.mxu0 0.0
    %3538 = vmatpush1.msra.mxu0 %v322
    %3539 = vmatprep.subr.mxu0 0.0
    %3540 = vmatpush2.msra.mxu0 0.0
    %3541 = vmatprep.subr.mxu0 0.0
    %3542 = vmatpush2.msra.mxu0 0.0
    %3543 = vmatprep.subr.mxu0 0.0
    %3544 = vmatpush2.msra.mxu0 0.0
    %3545 = vmatprep.subr.mxu0 0.0
    %3546 = vmatpush2.msra.mxu0 0.0
    %3547 = vmatprep.subr.mxu0 0.0
    %3548 = vmatpush2.msra.mxu0 0.0
    %3549 = vmatprep.subr.mxu0 0.0
    %3550 = vmatpush2.msra.mxu0 0.0
    %3551 = vmatprep.subr.mxu0 0.0
    %3552 = vmatpush2.msra.mxu0 0.0
    %3553 = vmatprep.subr.mxu0 0.0
    %3554 = vmatpush2.msra.mxu0 0.0
    %3555 = vmatprep.subr.mxu0 0.0
    %3556 = vmatpush2.msra.mxu0 0.0
    %3557 = vmatprep.subr.mxu0 0.0
    %3558 = vmatpush2.msra.mxu0 0.0
    %3559 = vmatprep.subr.mxu0 0.0
    %3560 = vmatpush2.msra.mxu0 0.0
    %3561 = vmatprep.subr.mxu0 0.0
    %3562 = vmatpush2.msra.mxu0 0.0
    %3563 = vmatprep.subr.mxu0 0.0
    %3564 = vmatpush2.msra.mxu0 0.0
    %3565 = vmatprep.subr.mxu0 0.0
    %3566 = vmatpush2.msra.mxu0 0.0
    %3567 = vmatprep.subr.mxu0 0.0
    %3568 = vmatpush2.msra.mxu0 0.0
    %3569 = vmatprep.subr.mxu0 0.0
    %3570 = vmatpush2.msra.mxu0 0.0
    %3571 = vmatprep.mubr.f32.mxu0 0.0
    %3572 = vmatmul.mubr.f32.gmra.mxu0 %v3506
    %v3573 = vpop.f32.mrf.mxu0
    %v3574 = vadd.f32 %v152, %v3573
    %v3575 = vpop.f32.mrf.mxu0
    %3576 = vdwg.mxu0
    %v3577 = vmul.f32 %v3506, 0.08138021
    %v3578 = vadd.f32 %v3427, %v3577
    %v3579 = vmul.f32 %v3129, 0.36907482
    %v3580 = vadd.f32 %v2988, %v3579
    %v3581 = vmul.f32 %v3276, -1.4494742
    %v3582 = vadd.f32 %v3580, %v3581
    %v3583 = vmul.f32 %v3423, 1.2278616
    %v3584 = vadd.f32 %v3582, %v3583
    %v3585 = vmul.f32 %v3574, -0.036351167
    %v3586 = vadd.f32 %v3584, %v3585
    %v3587 = vadd.f32 %v3586, %v137
    %v3588 = vmax.f32 %v3587, 0.0
    %3589 = vmatprep.subr.mxu0 0.0
    %3590 = vmatpush1.msra.mxu0 %v250
    %3591 = vmatprep.subr.mxu0 0.0
    %3592 = vmatpush1.msra.mxu0 %v249
    %3593 = vmatprep.subr.mxu0 0.0
    %3594 = vmatpush1.msra.mxu0 %v248
    %3595 = vmatprep.subr.mxu0 0.0
    %3596 = vmatpush1.msra.mxu0 %v247
    %3597 = vmatprep.subr.mxu0 0.0
    %3598 = vmatpush1.msra.mxu0 %v246
    %3599 = vmatprep.subr.mxu0 0.0
    %3600 = vmatpush1.msra.mxu0 %v245
    %3601 = vmatprep.subr.mxu0 0.0
    %3602 = vmatpush1.msra.mxu0 %v244
    %3603 = vmatprep.subr.mxu0 0.0
    %3604 = vmatpush1.msra.mxu0 %v243
    %3605 = vmatprep.subr.mxu0 0.0
    %3606 = vmatpush1.msra.mxu0 %v242
    %3607 = vmatprep.subr.mxu0 0.0
    %3608 = vmatpush1.msra.mxu0 %v241
    %3609 = vmatprep.subr.mxu0 0.0
    %3610 = vmatpush1.msra.mxu0 %v240
    %3611 = vmatprep.subr.mxu0 0.0
    %3612 = vmatpush1.msra.mxu0 %v239
    %3613 = vmatprep.subr.mxu0 0.0
    %3614 = vmatpush1.msra.mxu0 %v238
    %3615 = vmatprep.subr.mxu0 0.0
    %3616 = vmatpush1.msra.mxu0 %v237
    %3617 = vmatprep.subr.mxu0 0.0
    %3618 = vmatpush1.msra.mxu0 %v236
    %3619 = vmatprep.subr.mxu0 0.0
    %3620 = vmatpush1.msra.mxu0 %v235
    %3621 = vmatprep.subr.mxu0 0.0
    %3622 = vmatpush2.msra.mxu0 0.0
    %3623 = vmatprep.subr.mxu0 0.0
    %3624 = vmatpush2.msra.mxu0 0.0
    %3625 = vmatprep.subr.mxu0 0.0
    %3626 = vmatpush2.msra.mxu0 0.0
    %3627 = vmatprep.subr.mxu0 0.0
    %3628 = vmatpush2.msra.mxu0 0.0
    %3629 = vmatprep.subr.mxu0 0.0
    %3630 = vmatpush2.msra.mxu0 0.0
    %3631 = vmatprep.subr.mxu0 0.0
    %3632 = vmatpush2.msra.mxu0 0.0
    %3633 = vmatprep.subr.mxu0 0.0
    %3634 = vmatpush2.msra.mxu0 0.0
    %3635 = vmatprep.subr.mxu0 0.0
    %3636 = vmatpush2.msra.mxu0 0.0
    %3637 = vmatprep.subr.mxu0 0.0
    %3638 = vmatpush2.msra.mxu0 0.0
    %3639 = vmatprep.subr.mxu0 0.0
    %3640 = vmatpush2.msra.mxu0 0.0
    %3641 = vmatprep.subr.mxu0 0.0
    %3642 = vmatpush2.msra.mxu0 0.0
    %3643 = vmatprep.subr.mxu0 0.0
    %3644 = vmatpush2.msra.mxu0 0.0
    %3645 = vmatprep.subr.mxu0 0.0
    %3646 = vmatpush2.msra.mxu0 0.0
    %3647 = vmatprep.subr.mxu0 0.0
    %3648 = vmatpush2.msra.mxu0 0.0
    %3649 = vmatprep.subr.mxu0 0.0
    %3650 = vmatpush2.msra.mxu0 0.0
    %3651 = vmatprep.subr.mxu0 0.0
    %3652 = vmatpush2.msra.mxu0 0.0
    %3653 = vmatprep.mubr.f32.mxu0 0.0
    %3654 = vmatmul.mubr.f32.gmra.mxu0 %v3588
    %v3655 = vpop.f32.mrf.mxu0
    %v3656 = vadd.f32 %v145, %v3655
    %v3657 = vpop.f32.mrf.mxu0
    %3658 = vdwg.mxu0
    %v3659 = vmax.f32 %v3656, 0.0
    %3660 = vmatprep.subr.mxu0 0.0
    %3661 = vmatpush1.msra.mxu0 %v337
    %3662 = vmatprep.subr.mxu0 0.0
    %3663 = vmatpush1.msra.mxu0 %v336
    %3664 = vmatprep.subr.mxu0 0.0
    %3665 = vmatpush1.msra.mxu0 %v335
    %3666 = vmatprep.subr.mxu0 0.0
    %3667 = vmatpush1.msra.mxu0 %v334
    %3668 = vmatprep.subr.mxu0 0.0
    %3669 = vmatpush1.msra.mxu0 %v333
    %3670 = vmatprep.subr.mxu0 0.0
    %3671 = vmatpush1.msra.mxu0 %v332
    %3672 = vmatprep.subr.mxu0 0.0
    %3673 = vmatpush1.msra.mxu0 %v331
    %3674 = vmatprep.subr.mxu0 0.0
    %3675 = vmatpush1.msra.mxu0 %v330
    %3676 = vmatprep.subr.mxu0 0.0
    %3677 = vmatpush1.msra.mxu0 %v329
    %3678 = vmatprep.subr.mxu0 0.0
    %3679 = vmatpush1.msra.mxu0 %v328
    %3680 = vmatprep.subr.mxu0 0.0
    %3681 = vmatpush1.msra.mxu0 %v327
    %3682 = vmatprep.subr.mxu0 0.0
    %3683 = vmatpush1.msra.mxu0 %v326
    %3684 = vmatprep.subr.mxu0 0.0
    %3685 = vmatpush1.msra.mxu0 %v325
    %3686 = vmatprep.subr.mxu0 0.0
    %3687 = vmatpush1.msra.mxu0 %v324
    %3688 = vmatprep.subr.mxu0 0.0
    %3689 = vmatpush1.msra.mxu0 %v323
    %3690 = vmatprep.subr.mxu0 0.0
    %3691 = vmatpush1.msra.mxu0 %v322
    %3692 = vmatprep.subr.mxu0 0.0
    %3693 = vmatpush2.msra.mxu0 0.0
    %3694 = vmatprep.subr.mxu0 0.0
    %3695 = vmatpush2.msra.mxu0 0.0
    %3696 = vmatprep.subr.mxu0 0.0
    %3697 = vmatpush2.msra.mxu0 0.0
    %3698 = vmatprep.subr.mxu0 0.0
    %3699 = vmatpush2.msra.mxu0 0.0
    %3700 = vmatprep.subr.mxu0 0.0
    %3701 = vmatpush2.msra.mxu0 0.0
    %3702 = vmatprep.subr.mxu0 0.0
    %3703 = vmatpush2.msra.mxu0 0.0
    %3704 = vmatprep.subr.mxu0 0.0
    %3705 = vmatpush2.msra.mxu0 0.0
    %3706 = vmatprep.subr.mxu0 0.0
    %3707 = vmatpush2.msra.mxu0 0.0
    %3708 = vmatprep.subr.mxu0 0.0
    %3709 = vmatpush2.msra.mxu0 0.0
    %3710 = vmatprep.subr.mxu0 0.0
    %3711 = vmatpush2.msra.mxu0 0.0
    %3712 = vmatprep.subr.mxu0 0.0
    %3713 = vmatpush2.msra.mxu0 0.0
    %3714 = vmatprep.subr.mxu0 0.0
    %3715 = vmatpush2.msra.mxu0 0.0
    %3716 = vmatprep.subr.mxu0 0.0
    %3717 = vmatpush2.msra.mxu0 0.0
    %3718 = vmatprep.subr.mxu0 0.0
    %3719 = vmatpush2.msra.mxu0 0.0
    %3720 = vmatprep.subr.mxu0 0.0
    %3721 = vmatpush2.msra.mxu0 0.0
    %3722 = vmatprep.subr.mxu0 0.0
    %3723 = vmatpush2.msra.mxu0 0.0
    %3724 = vmatprep.mubr.f32.mxu0 0.0
    %3725 = vmatmul.mubr.f32.gmra.mxu0 %v3659
    %v3726 = vpop.f32.mrf.mxu0
    %v3727 = vadd.f32 %v152, %v3726
    %v3728 = vpop.f32.mrf.mxu0
    %3729 = vdwg.mxu0
    %v3730 = vmul.f32 %v3659, -0.040297024
    %v3731 = vadd.f32 %v3578, %v3730
    %v3732 = vmul.f32 %v3129, 0.35578442
    %v3733 = vadd.f32 %v2988, %v3732
    %v3734 = vmul.f32 %v3276, -1.344697
    %v3735 = vadd.f32 %v3733, %v3734
    %v3736 = vmul.f32 %v3423, 1.1133028
    %v3737 = vadd.f32 %v3735, %v3736
    %v3738 = vmul.f32 %v3574, 0.034801137
    %v3739 = vadd.f32 %v3737, %v3738
    %v3740 = vmul.f32 %v3727, -0.034191415
    %v3741 = vadd.f32 %v3739, %v3740
    %v3742 = vadd.f32 %v3741, %v137
    %v3743 = vmax.f32 %v3742, 0.0
    %3744 = vmatprep.subr.mxu0 0.0
    %3745 = vmatpush1.msra.mxu0 %v250
    %3746 = vmatprep.subr.mxu0 0.0
    %3747 = vmatpush1.msra.mxu0 %v249
    %3748 = vmatprep.subr.mxu0 0.0
    %3749 = vmatpush1.msra.mxu0 %v248
    %3750 = vmatprep.subr.mxu0 0.0
    %3751 = vmatpush1.msra.mxu0 %v247
    %3752 = vmatprep.subr.mxu0 0.0
    %3753 = vmatpush1.msra.mxu0 %v246
    %3754 = vmatprep.subr.mxu0 0.0
    %3755 = vmatpush1.msra.mxu0 %v245
    %3756 = vmatprep.subr.mxu0 0.0
    %3757 = vmatpush1.msra.mxu0 %v244
    %3758 = vmatprep.subr.mxu0 0.0
    %3759 = vmatpush1.msra.mxu0 %v243
    %3760 = vmatprep.subr.mxu0 0.0
    %3761 = vmatpush1.msra.mxu0 %v242
    %3762 = vmatprep.subr.mxu0 0.0
    %3763 = vmatpush1.msra.mxu0 %v241
    %3764 = vmatprep.subr.mxu0 0.0
    %3765 = vmatpush1.msra.mxu0 %v240
    %3766 = vmatprep.subr.mxu0 0.0
    %3767 = vmatpush1.msra.mxu0 %v239
    %3768 = vmatprep.subr.mxu0 0.0
    %3769 = vmatpush1.msra.mxu0 %v238
    %3770 = vmatprep.subr.mxu0 0.0
    %3771 = vmatpush1.msra.mxu0 %v237
    %3772 = vmatprep.subr.mxu0 0.0
    %3773 = vmatpush1.msra.mxu0 %v236
    %3774 = vmatprep.subr.mxu0 0.0
    %3775 = vmatpush1.msra.mxu0 %v235
    %3776 = vmatprep.subr.mxu0 0.0
    %3777 = vmatpush2.msra.mxu0 0.0
    %3778 = vmatprep.subr.mxu0 0.0
    %3779 = vmatpush2.msra.mxu0 0.0
    %3780 = vmatprep.subr.mxu0 0.0
    %3781 = vmatpush2.msra.mxu0 0.0
    %3782 = vmatprep.subr.mxu0 0.0
    %3783 = vmatpush2.msra.mxu0 0.0
    %3784 = vmatprep.subr.mxu0 0.0
    %3785 = vmatpush2.msra.mxu0 0.0
    %3786 = vmatprep.subr.mxu0 0.0
    %3787 = vmatpush2.msra.mxu0 0.0
    %3788 = vmatprep.subr.mxu0 0.0
    %3789 = vmatpush2.msra.mxu0 0.0
    %3790 = vmatprep.subr.mxu0 0.0
    %3791 = vmatpush2.msra.mxu0 0.0
    %3792 = vmatprep.subr.mxu0 0.0
    %3793 = vmatpush2.msra.mxu0 0.0
    %3794 = vmatprep.subr.mxu0 0.0
    %3795 = vmatpush2.msra.mxu0 0.0
    %3796 = vmatprep.subr.mxu0 0.0
    %3797 = vmatpush2.msra.mxu0 0.0
    %3798 = vmatprep.subr.mxu0 0.0
    %3799 = vmatpush2.msra.mxu0 0.0
    %3800 = vmatprep.subr.mxu0 0.0
    %3801 = vmatpush2.msra.mxu0 0.0
    %3802 = vmatprep.subr.mxu0 0.0
    %3803 = vmatpush2.msra.mxu0 0.0
    %3804 = vmatprep.subr.mxu0 0.0
    %3805 = vmatpush2.msra.mxu0 0.0
    %3806 = vmatprep.subr.mxu0 0.0
    %3807 = vmatpush2.msra.mxu0 0.0
    %3808 = vmatprep.mubr.f32.mxu0 0.0
    %3809 = vmatmul.mubr.f32.gmra.mxu0 %v3743
    %v3810 = vpop.f32.mrf.mxu0
    %v3811 = vadd.f32 %v145, %v3810
    %v3812 = vpop.f32.mrf.mxu0
    %3813 = vdwg.mxu0
    %v3814 = vmax.f32 %v3811, 0.0
    %3815 = vmatprep.subr.mxu0 0.0
    %3816 = vmatpush1.msra.mxu0 %v337
    %3817 = vmatprep.subr.mxu0 0.0
    %3818 = vmatpush1.msra.mxu0 %v336
    %3819 = vmatprep.subr.mxu0 0.0
    %3820 = vmatpush1.msra.mxu0 %v335
    %3821 = vmatprep.subr.mxu0 0.0
    %3822 = vmatpush1.msra.mxu0 %v334
    %3823 = vmatprep.subr.mxu0 0.0
    %3824 = vmatpush1.msra.mxu0 %v333
    %3825 = vmatprep.subr.mxu0 0.0
    %3826 = vmatpush1.msra.mxu0 %v332
    %3827 = vmatprep.subr.mxu0 0.0
    %3828 = vmatpush1.msra.mxu0 %v331
    %3829 = vmatprep.subr.mxu0 0.0
    %3830 = vmatpush1.msra.mxu0 %v330
    %3831 = vmatprep.subr.mxu0 0.0
    %3832 = vmatpush1.msra.mxu0 %v329
    %3833 = vmatprep.subr.mxu0 0.0
    %3834 = vmatpush1.msra.mxu0 %v328
    %3835 = vmatprep.subr.mxu0 0.0
    %3836 = vmatpush1.msra.mxu0 %v327
    %3837 = vmatprep.subr.mxu0 0.0
    %3838 = vmatpush1.msra.mxu0 %v326
    %3839 = vmatprep.subr.mxu0 0.0
    %3840 = vmatpush1.msra.mxu0 %v325
    %3841 = vmatprep.subr.mxu0 0.0
    %3842 = vmatpush1.msra.mxu0 %v324
    %3843 = vmatprep.subr.mxu0 0.0
    %3844 = vmatpush1.msra.mxu0 %v323
    %3845 = vmatprep.subr.mxu0 0.0
    %3846 = vmatpush1.msra.mxu0 %v322
    %3847 = vmatprep.subr.mxu0 0.0
    %3848 = vmatpush2.msra.mxu0 0.0
    %3849 = vmatprep.subr.mxu0 0.0
    %3850 = vmatpush2.msra.mxu0 0.0
    %3851 = vmatprep.subr.mxu0 0.0
    %3852 = vmatpush2.msra.mxu0 0.0
    %3853 = vmatprep.subr.mxu0 0.0
    %3854 = vmatpush2.msra.mxu0 0.0
    %3855 = vmatprep.subr.mxu0 0.0
    %3856 = vmatpush2.msra.mxu0 0.0
    %3857 = vmatprep.subr.mxu0 0.0
    %3858 = vmatpush2.msra.mxu0 0.0
    %3859 = vmatprep.subr.mxu0 0.0
    %3860 = vmatpush2.msra.mxu0 0.0
    %3861 = vmatprep.subr.mxu0 0.0
    %3862 = vmatpush2.msra.mxu0 0.0
    %3863 = vmatprep.subr.mxu0 0.0
    %3864 = vmatpush2.msra.mxu0 0.0
    %3865 = vmatprep.subr.mxu0 0.0
    %3866 = vmatpush2.msra.mxu0 0.0
    %3867 = vmatprep.subr.mxu0 0.0
    %3868 = vmatpush2.msra.mxu0 0.0
    %3869 = vmatprep.subr.mxu0 0.0
    %3870 = vmatpush2.msra.mxu0 0.0
    %3871 = vmatprep.subr.mxu0 0.0
    %3872 = vmatpush2.msra.mxu0 0.0
    %3873 = vmatprep.subr.mxu0 0.0
    %3874 = vmatpush2.msra.mxu0 0.0
    %3875 = vmatprep.subr.mxu0 0.0
    %3876 = vmatpush2.msra.mxu0 0.0
    %3877 = vmatprep.subr.mxu0 0.0
    %3878 = vmatpush2.msra.mxu0 0.0
    %3879 = vmatprep.mubr.f32.mxu0 0.0
    %3880 = vmatmul.mubr.f32.gmra.mxu0 %v3814
    %v3881 = vpop.f32.mrf.mxu0
    %v3882 = vadd.f32 %v152, %v3881
    %v3883 = vpop.f32.mrf.mxu0
    %3884 = vdwg.mxu0
    %v3885 = vmul.f32 %v3814, 0.016369049
    %v3886 = vadd.f32 %v3731, %v3885
    %v3887 = vmul.f32 %v3129, 0.0113932295
    %v3888 = vadd.f32 %v2988, %v3887
    %v3889 = vmul.f32 %v3423, 0.056154538
    %v3890 = vadd.f32 %v3888, %v3889
    %v3891 = vmul.f32 %v3574, 0.08138021
    %v3892 = vadd.f32 %v3890, %v3891
    %v3893 = vmul.f32 %v3727, -0.040297024
    %v3894 = vadd.f32 %v3892, %v3893
    %v3895 = vmul.f32 %v3882, 0.016369049
    %v3896 = vadd.f32 %v3894, %v3895
    %v3897 = vadd.f32 %v3896, %v137
    %v3898 = vmax.f32 %v3897, 0.0
    %3899 = vmatprep.subr.mxu0 0.0
    %3900 = vmatpush1.msra.mxu0 %v250
    %3901 = vmatprep.subr.mxu0 0.0
    %3902 = vmatpush1.msra.mxu0 %v249
    %3903 = vmatprep.subr.mxu0 0.0
    %3904 = vmatpush1.msra.mxu0 %v248
    %3905 = vmatprep.subr.mxu0 0.0
    %3906 = vmatpush1.msra.mxu0 %v247
    %3907 = vmatprep.subr.mxu0 0.0
    %3908 = vmatpush1.msra.mxu0 %v246
    %3909 = vmatprep.subr.mxu0 0.0
    %3910 = vmatpush1.msra.mxu0 %v245
    %3911 = vmatprep.subr.mxu0 0.0
    %3912 = vmatpush1.msra.mxu0 %v244
    %3913 = vmatprep.subr.mxu0 0.0
    %3914 = vmatpush1.msra.mxu0 %v243
    %3915 = vmatprep.subr.mxu0 0.0
    %3916 = vmatpush1.msra.mxu0 %v242
    %3917 = vmatprep.subr.mxu0 0.0
    %3918 = vmatpush1.msra.mxu0 %v241
    %3919 = vmatprep.subr.mxu0 0.0
    %3920 = vmatpush1.msra.mxu0 %v240
    %3921 = vmatprep.subr.mxu0 0.0
    %3922 = vmatpush1.msra.mxu0 %v239
    %3923 = vmatprep.subr.mxu0 0.0
    %3924 = vmatpush1.msra.mxu0 %v238
    %3925 = vmatprep.subr.mxu0 0.0
    %3926 = vmatpush1.msra.mxu0 %v237
    %3927 = vmatprep.subr.mxu0 0.0
    %3928 = vmatpush1.msra.mxu0 %v236
    %3929 = vmatprep.subr.mxu0 0.0
    %3930 = vmatpush1.msra.mxu0 %v235
    %3931 = vmatprep.subr.mxu0 0.0
    %3932 = vmatpush2.msra.mxu0 0.0
    %3933 = vmatprep.subr.mxu0 0.0
    %3934 = vmatpush2.msra.mxu0 0.0
    %3935 = vmatprep.subr.mxu0 0.0
    %3936 = vmatpush2.msra.mxu0 0.0
    %3937 = vmatprep.subr.mxu0 0.0
    %3938 = vmatpush2.msra.mxu0 0.0
    %3939 = vmatprep.subr.mxu0 0.0
    %3940 = vmatpush2.msra.mxu0 0.0
    %3941 = vmatprep.subr.mxu0 0.0
    %3942 = vmatpush2.msra.mxu0 0.0
    %3943 = vmatprep.subr.mxu0 0.0
    %3944 = vmatpush2.msra.mxu0 0.0
    %3945 = vmatprep.subr.mxu0 0.0
    %3946 = vmatpush2.msra.mxu0 0.0
    %3947 = vmatprep.subr.mxu0 0.0
    %3948 = vmatpush2.msra.mxu0 0.0
    %3949 = vmatprep.subr.mxu0 0.0
    %3950 = vmatpush2.msra.mxu0 0.0
    %3951 = vmatprep.subr.mxu0 0.0
    %3952 = vmatpush2.msra.mxu0 0.0
    %3953 = vmatprep.subr.mxu0 0.0
    %3954 = vmatpush2.msra.mxu0 0.0
    %3955 = vmatprep.subr.mxu0 0.0
    %3956 = vmatpush2.msra.mxu0 0.0
    %3957 = vmatprep.subr.mxu0 0.0
    %3958 = vmatpush2.msra.mxu0 0.0
    %3959 = vmatprep.subr.mxu0 0.0
    %3960 = vmatpush2.msra.mxu0 0.0
    %3961 = vmatprep.subr.mxu0 0.0
    %3962 = vmatpush2.msra.mxu0 0.0
    %3963 = vmatprep.mubr.f32.mxu0 0.0
    %3964 = vmatmul.mubr.f32.gmra.mxu0 %v3898
    %v3965 = vpop.f32.mrf.mxu0
    %v3966 = vadd.f32 %v145, %v3965
    %v3967 = vpop.f32.mrf.mxu0
    %3968 = vdwg.mxu0
    %v3969 = vmax.f32 %v3966, 0.0
    %3970 = vmatprep.subr.mxu0 0.0
    %3971 = vmatpush1.msra.mxu0 %v337
    %3972 = vmatprep.subr.mxu0 0.0
    %3973 = vmatpush1.msra.mxu0 %v336
    %3974 = vmatprep.subr.mxu0 0.0
    %3975 = vmatpush1.msra.mxu0 %v335
    %3976 = vmatprep.subr.mxu0 0.0
    %3977 = vmatpush1.msra.mxu0 %v334
    %3978 = vmatprep.subr.mxu0 0.0
    %3979 = vmatpush1.msra.mxu0 %v333
    %3980 = vmatprep.subr.mxu0 0.0
    %3981 = vmatpush1.msra.mxu0 %v332
    %3982 = vmatprep.subr.mxu0 0.0
    %3983 = vmatpush1.msra.mxu0 %v331
    %3984 = vmatprep.subr.mxu0 0.0
    %3985 = vmatpush1.msra.mxu0 %v330
    %3986 = vmatprep.subr.mxu0 0.0
    %3987 = vmatpush1.msra.mxu0 %v329
    %3988 = vmatprep.subr.mxu0 0.0
    %3989 = vmatpush1.msra.mxu0 %v328
    %3990 = vmatprep.subr.mxu0 0.0
    %3991 = vmatpush1.msra.mxu0 %v327
    %3992 = vmatprep.subr.mxu0 0.0
    %3993 = vmatpush1.msra.mxu0 %v326
    %3994 = vmatprep.subr.mxu0 0.0
    %3995 = vmatpush1.msra.mxu0 %v325
    %3996 = vmatprep.subr.mxu0 0.0
    %3997 = vmatpush1.msra.mxu0 %v324
    %3998 = vmatprep.subr.mxu0 0.0
    %3999 = vmatpush1.msra.mxu0 %v323
    %4000 = vmatprep.subr.mxu0 0.0
    %4001 = vmatpush1.msra.mxu0 %v322
    %4002 = vmatprep.subr.mxu0 0.0
    %4003 = vmatpush2.msra.mxu0 0.0
    %4004 = vmatprep.subr.mxu0 0.0
    %4005 = vmatpush2.msra.mxu0 0.0
    %4006 = vmatprep.subr.mxu0 0.0
    %4007 = vmatpush2.msra.mxu0 0.0
    %4008 = vmatprep.subr.mxu0 0.0
    %4009 = vmatpush2.msra.mxu0 0.0
    %4010 = vmatprep.subr.mxu0 0.0
    %4011 = vmatpush2.msra.mxu0 0.0
    %4012 = vmatprep.subr.mxu0 0.0
    %4013 = vmatpush2.msra.mxu0 0.0
    %4014 = vmatprep.subr.mxu0 0.0
    %4015 = vmatpush2.msra.mxu0 0.0
    %4016 = vmatprep.subr.mxu0 0.0
    %4017 = vmatpush2.msra.mxu0 0.0
    %4018 = vmatprep.subr.mxu0 0.0
    %4019 = vmatpush2.msra.mxu0 0.0
    %4020 = vmatprep.subr.mxu0 0.0
    %4021 = vmatpush2.msra.mxu0 0.0
    %4022 = vmatprep.subr.mxu0 0.0
    %4023 = vmatpush2.msra.mxu0 0.0
    %4024 = vmatprep.subr.mxu0 0.0
    %4025 = vmatpush2.msra.mxu0 0.0
    %4026 = vmatprep.subr.mxu0 0.0
    %4027 = vmatpush2.msra.mxu0 0.0
    %4028 = vmatprep.subr.mxu0 0.0
    %4029 = vmatpush2.msra.mxu0 0.0
    %4030 = vmatprep.subr.mxu0 0.0
    %4031 = vmatpush2.msra.mxu0 0.0
    %4032 = vmatprep.subr.mxu0 0.0
    %4033 = vmatpush2.msra.mxu0 0.0
    %4034 = vmatprep.mubr.f32.mxu0 0.0
    %4035 = vmatmul.mubr.f32.gmra.mxu0 %v3969
    %v4036 = vpop.f32.mrf.mxu0
    %v4037 = vadd.f32 %v152, %v4036
    %v4038 = vpop.f32.mrf.mxu0
    %4039 = vdwg.mxu0
    %v4040 = vmul.f32 %v3969, 0.0113932295
    %v4041 = vadd.f32 %v3886, %v4040
    %v4042 = vmul.f32 %v4037, 0.025
    %v4043 = vadd.f32 %v3896, %v4042
    %v4044 = vadd.f32 %v4043, %v137
    %v4045 = vmax.f32 %v4044, 0.0
    %4046 = vmatprep.subr.mxu0 0.0
    %4047 = vmatpush1.msra.mxu0 %v250
    %4048 = vmatprep.subr.mxu0 0.0
    %4049 = vmatpush1.msra.mxu0 %v249
    %4050 = vmatprep.subr.mxu0 0.0
    %4051 = vmatpush1.msra.mxu0 %v248
    %4052 = vmatprep.subr.mxu0 0.0
    %4053 = vmatpush1.msra.mxu0 %v247
    %4054 = vmatprep.subr.mxu0 0.0
    %4055 = vmatpush1.msra.mxu0 %v246
    %4056 = vmatprep.subr.mxu0 0.0
    %4057 = vmatpush1.msra.mxu0 %v245
    %4058 = vmatprep.subr.mxu0 0.0
    %4059 = vmatpush1.msra.mxu0 %v244
    %4060 = vmatprep.subr.mxu0 0.0
    %4061 = vmatpush1.msra.mxu0 %v243
    %4062 = vmatprep.subr.mxu0 0.0
    %4063 = vmatpush1.msra.mxu0 %v242
    %4064 = vmatprep.subr.mxu0 0.0
    %4065 = vmatpush1.msra.mxu0 %v241
    %4066 = vmatprep.subr.mxu0 0.0
    %4067 = vmatpush1.msra.mxu0 %v240
    %4068 = vmatprep.subr.mxu0 0.0
    %4069 = vmatpush1.msra.mxu0 %v239
    %4070 = vmatprep.subr.mxu0 0.0
    %4071 = vmatpush1.msra.mxu0 %v238
    %4072 = vmatprep.subr.mxu0 0.0
    %4073 = vmatpush1.msra.mxu0 %v237
    %4074 = vmatprep.subr.mxu0 0.0
    %4075 = vmatpush1.msra.mxu0 %v236
    %4076 = vmatprep.subr.mxu0 0.0
    %4077 = vmatpush1.msra.mxu0 %v235
    %4078 = vmatprep.subr.mxu0 0.0
    %4079 = vmatpush2.msra.mxu0 0.0
    %4080 = vmatprep.subr.mxu0 0.0
    %4081 = vmatpush2.msra.mxu0 0.0
    %4082 = vmatprep.subr.mxu0 0.0
    %4083 = vmatpush2.msra.mxu0 0.0
    %4084 = vmatprep.subr.mxu0 0.0
    %4085 = vmatpush2.msra.mxu0 0.0
    %4086 = vmatprep.subr.mxu0 0.0
    %4087 = vmatpush2.msra.mxu0 0.0
    %4088 = vmatprep.subr.mxu0 0.0
    %4089 = vmatpush2.msra.mxu0 0.0
    %4090 = vmatprep.subr.mxu0 0.0
    %4091 = vmatpush2.msra.mxu0 0.0
    %4092 = vmatprep.subr.mxu0 0.0
    %4093 = vmatpush2.msra.mxu0 0.0
    %4094 = vmatprep.subr.mxu0 0.0
    %4095 = vmatpush2.msra.mxu0 0.0
    %4096 = vmatprep.subr.mxu0 0.0
    %4097 = vmatpush2.msra.mxu0 0.0
    %4098 = vmatprep.subr.mxu0 0.0
    %4099 = vmatpush2.msra.mxu0 0.0
    %4100 = vmatprep.subr.mxu0 0.0
    %4101 = vmatpush2.msra.mxu0 0.0
    %4102 = vmatprep.subr.mxu0 0.0
    %4103 = vmatpush2.msra.mxu0 0.0
    %4104 = vmatprep.subr.mxu0 0.0
    %4105 = vmatpush2.msra.mxu0 0.0
    %4106 = vmatprep.subr.mxu0 0.0
    %4107 = vmatpush2.msra.mxu0 0.0
    %4108 = vmatprep.subr.mxu0 0.0
    %4109 = vmatpush2.msra.mxu0 0.0
    %4110 = vmatprep.mubr.f32.mxu0 0.0
    %4111 = vmatmul.mubr.f32.gmra.mxu0 %v4045
    %v4112 = vpop.f32.mrf.mxu0
    %v4113 = vadd.f32 %v145, %v4112
    %v4114 = vpop.f32.mrf.mxu0
    %4115 = vdwg.mxu0
    %v4116 = vmax.f32 %v4113, 0.0
    %4117 = vmatprep.subr.mxu0 0.0
    %4118 = vmatpush1.msra.mxu0 %v337
    %4119 = vmatprep.subr.mxu0 0.0
    %4120 = vmatpush1.msra.mxu0 %v336
    %4121 = vmatprep.subr.mxu0 0.0
    %4122 = vmatpush1.msra.mxu0 %v335
    %4123 = vmatprep.subr.mxu0 0.0
    %4124 = vmatpush1.msra.mxu0 %v334
    %4125 = vmatprep.subr.mxu0 0.0
    %4126 = vmatpush1.msra.mxu0 %v333
    %4127 = vmatprep.subr.mxu0 0.0
    %4128 = vmatpush1.msra.mxu0 %v332
    %4129 = vmatprep.subr.mxu0 0.0
    %4130 = vmatpush1.msra.mxu0 %v331
    %4131 = vmatprep.subr.mxu0 0.0
    %4132 = vmatpush1.msra.mxu0 %v330
    %4133 = vmatprep.subr.mxu0 0.0
    %4134 = vmatpush1.msra.mxu0 %v329
    %4135 = vmatprep.subr.mxu0 0.0
    %4136 = vmatpush1.msra.mxu0 %v328
    %4137 = vmatprep.subr.mxu0 0.0
    %4138 = vmatpush1.msra.mxu0 %v327
    %4139 = vmatprep.subr.mxu0 0.0
    %4140 = vmatpush1.msra.mxu0 %v326
    %4141 = vmatprep.subr.mxu0 0.0
    %4142 = vmatpush1.msra.mxu0 %v325
    %4143 = vmatprep.subr.mxu0 0.0
    %4144 = vmatpush1.msra.mxu0 %v324
    %4145 = vmatprep.subr.mxu0 0.0
    %4146 = vmatpush1.msra.mxu0 %v323
    %4147 = vmatprep.subr.mxu0 0.0
    %4148 = vmatpush1.msra.mxu0 %v322
    %4149 = vmatprep.subr.mxu0 0.0
    %4150 = vmatpush2.msra.mxu0 0.0
    %4151 = vmatprep.subr.mxu0 0.0
    %4152 = vmatpush2.msra.mxu0 0.0
    %4153 = vmatprep.subr.mxu0 0.0
    %4154 = vmatpush2.msra.mxu0 0.0
    %4155 = vmatprep.subr.mxu0 0.0
    %4156 = vmatpush2.msra.mxu0 0.0
    %4157 = vmatprep.subr.mxu0 0.0
    %4158 = vmatpush2.msra.mxu0 0.0
    %4159 = vmatprep.subr.mxu0 0.0
    %4160 = vmatpush2.msra.mxu0 0.0
    %4161 = vmatprep.subr.mxu0 0.0
    %4162 = vmatpush2.msra.mxu0 0.0
    %4163 = vmatprep.subr.mxu0 0.0
    %4164 = vmatpush2.msra.mxu0 0.0
    %4165 = vmatprep.subr.mxu0 0.0
    %4166 = vmatpush2.msra.mxu0 0.0
    %4167 = vmatprep.subr.mxu0 0.0
    %4168 = vmatpush2.msra.mxu0 0.0
    %4169 = vmatprep.subr.mxu0 0.0
    %4170 = vmatpush2.msra.mxu0 0.0
    %4171 = vmatprep.subr.mxu0 0.0
    %4172 = vmatpush2.msra.mxu0 0.0
    %4173 = vmatprep.subr.mxu0 0.0
    %4174 = vmatpush2.msra.mxu0 0.0
    %4175 = vmatprep.subr.mxu0 0.0
    %4176 = vmatpush2.msra.mxu0 0.0
    %4177 = vmatprep.subr.mxu0 0.0
    %4178 = vmatpush2.msra.mxu0 0.0
    %4179 = vmatprep.subr.mxu0 0.0
    %4180 = vmatpush2.msra.mxu0 0.0
    %4181 = vmatprep.mubr.f32.mxu0 0.0
    %4182 = vmatmul.mubr.f32.gmra.mxu0 %v4116
    %v4183 = vpop.f32.mrf.mxu0
    %v4184 = vadd.f32 %v152, %v4183
    %v4185 = vpop.f32.mrf.mxu0
    %4186 = vdwg.mxu0
    %v4187 = vmul.f32 %v4037, 0.009375
    %v4188 = vadd.f32 %v3896, %v4187
    %v4189 = vmul.f32 %v4184, 0.028125
    %v4190 = vadd.f32 %v4188, %v4189
    %v4191 = vadd.f32 %v4190, %v137
    %v4192 = vmax.f32 %v4191, 0.0
    %4193 = vmatprep.subr.mxu0 0.0
    %4194 = vmatpush1.msra.mxu0 %v250
    %4195 = vmatprep.subr.mxu0 0.0
    %4196 = vmatpush1.msra.mxu0 %v249
    %4197 = vmatprep.subr.mxu0 0.0
    %4198 = vmatpush1.msra.mxu0 %v248
    %4199 = vmatprep.subr.mxu0 0.0
    %4200 = vmatpush1.msra.mxu0 %v247
    %4201 = vmatprep.subr.mxu0 0.0
    %4202 = vmatpush1.msra.mxu0 %v246
    %4203 = vmatprep.subr.mxu0 0.0
    %4204 = vmatpush1.msra.mxu0 %v245
    %4205 = vmatprep.subr.mxu0 0.0
    %4206 = vmatpush1.msra.mxu0 %v244
    %4207 = vmatprep.subr.mxu0 0.0
    %4208 = vmatpush1.msra.mxu0 %v243
    %4209 = vmatprep.subr.mxu0 0.0
    %4210 = vmatpush1.msra.mxu0 %v242
    %4211 = vmatprep.subr.mxu0 0.0
    %4212 = vmatpush1.msra.mxu0 %v241
    %4213 = vmatprep.subr.mxu0 0.0
    %4214 = vmatpush1.msra.mxu0 %v240
    %4215 = vmatprep.subr.mxu0 0.0
    %4216 = vmatpush1.msra.mxu0 %v239
    %4217 = vmatprep.subr.mxu0 0.0
    %4218 = vmatpush1.msra.mxu0 %v238
    %4219 = vmatprep.subr.mxu0 0.0
    %4220 = vmatpush1.msra.mxu0 %v237
    %4221 = vmatprep.subr.mxu0 0.0
    %4222 = vmatpush1.msra.mxu0 %v236
    %4223 = vmatprep.subr.mxu0 0.0
    %4224 = vmatpush1.msra.mxu0 %v235
    %4225 = vmatprep.subr.mxu0 0.0
    %4226 = vmatpush2.msra.mxu0 0.0
    %4227 = vmatprep.subr.mxu0 0.0
    %4228 = vmatpush2.msra.mxu0 0.0
    %4229 = vmatprep.subr.mxu0 0.0
    %4230 = vmatpush2.msra.mxu0 0.0
    %4231 = vmatprep.subr.mxu0 0.0
    %4232 = vmatpush2.msra.mxu0 0.0
    %4233 = vmatprep.subr.mxu0 0.0
    %4234 = vmatpush2.msra.mxu0 0.0
    %4235 = vmatprep.subr.mxu0 0.0
    %4236 = vmatpush2.msra.mxu0 0.0
    %4237 = vmatprep.subr.mxu0 0.0
    %4238 = vmatpush2.msra.mxu0 0.0
    %4239 = vmatprep.subr.mxu0 0.0
    %4240 = vmatpush2.msra.mxu0 0.0
    %4241 = vmatprep.subr.mxu0 0.0
    %4242 = vmatpush2.msra.mxu0 0.0
    %4243 = vmatprep.subr.mxu0 0.0
    %4244 = vmatpush2.msra.mxu0 0.0
    %4245 = vmatprep.subr.mxu0 0.0
    %4246 = vmatpush2.msra.mxu0 0.0
    %4247 = vmatprep.subr.mxu0 0.0
    %4248 = vmatpush2.msra.mxu0 0.0
    %4249 = vmatprep.subr.mxu0 0.0
    %4250 = vmatpush2.msra.mxu0 0.0
    %4251 = vmatprep.subr.mxu0 0.0
    %4252 = vmatpush2.msra.mxu0 0.0
    %4253 = vmatprep.subr.mxu0 0.0
    %4254 = vmatpush2.msra.mxu0 0.0
    %4255 = vmatprep.subr.mxu0 0.0
    %4256 = vmatpush2.msra.mxu0 0.0
    %4257 = vmatprep.mubr.f32.mxu0 0.0
    %4258 = vmatmul.mubr.f32.gmra.mxu0 %v4192
    %v4259 = vpop.f32.mrf.mxu0
    %v4260 = vadd.f32 %v145, %v4259
    %v4261 = vpop.f32.mrf.mxu0
    %4262 = vdwg.mxu0
    %v4263 = vmax.f32 %v4260, 0.0
    %4264 = vmatprep.subr.mxu0 0.0
    %4265 = vmatpush1.msra.mxu0 %v337
    %4266 = vmatprep.subr.mxu0 0.0
    %4267 = vmatpush1.msra.mxu0 %v336
    %4268 = vmatprep.subr.mxu0 0.0
    %4269 = vmatpush1.msra.mxu0 %v335
    %4270 = vmatprep.subr.mxu0 0.0
    %4271 = vmatpush1.msra.mxu0 %v334
    %4272 = vmatprep.subr.mxu0 0.0
    %4273 = vmatpush1.msra.mxu0 %v333
    %4274 = vmatprep.subr.mxu0 0.0
    %4275 = vmatpush1.msra.mxu0 %v332
    %4276 = vmatprep.subr.mxu0 0.0
    %4277 = vmatpush1.msra.mxu0 %v331
    %4278 = vmatprep.subr.mxu0 0.0
    %4279 = vmatpush1.msra.mxu0 %v330
    %4280 = vmatprep.subr.mxu0 0.0
    %4281 = vmatpush1.msra.mxu0 %v329
    %4282 = vmatprep.subr.mxu0 0.0
    %4283 = vmatpush1.msra.mxu0 %v328
    %4284 = vmatprep.subr.mxu0 0.0
    %4285 = vmatpush1.msra.mxu0 %v327
    %4286 = vmatprep.subr.mxu0 0.0
    %4287 = vmatpush1.msra.mxu0 %v326
    %4288 = vmatprep.subr.mxu0 0.0
    %4289 = vmatpush1.msra.mxu0 %v325
    %4290 = vmatprep.subr.mxu0 0.0
    %4291 = vmatpush1.msra.mxu0 %v324
    %4292 = vmatprep.subr.mxu0 0.0
    %4293 = vmatpush1.msra.mxu0 %v323
    %4294 = vmatprep.subr.mxu0 0.0
    %4295 = vmatpush1.msra.mxu0 %v322
    %4296 = vmatprep.subr.mxu0 0.0
    %4297 = vmatpush2.msra.mxu0 0.0
    %4298 = vmatprep.subr.mxu0 0.0
    %4299 = vmatpush2.msra.mxu0 0.0
    %4300 = vmatprep.subr.mxu0 0.0
    %4301 = vmatpush2.msra.mxu0 0.0
    %4302 = vmatprep.subr.mxu0 0.0
    %4303 = vmatpush2.msra.mxu0 0.0
    %4304 = vmatprep.subr.mxu0 0.0
    %4305 = vmatpush2.msra.mxu0 0.0
    %4306 = vmatprep.subr.mxu0 0.0
    %4307 = vmatpush2.msra.mxu0 0.0
    %4308 = vmatprep.subr.mxu0 0.0
    %4309 = vmatpush2.msra.mxu0 0.0
    %4310 = vmatprep.subr.mxu0 0.0
    %4311 = vmatpush2.msra.mxu0 0.0
    %4312 = vmatprep.subr.mxu0 0.0
    %4313 = vmatpush2.msra.mxu0 0.0
    %4314 = vmatprep.subr.mxu0 0.0
    %4315 = vmatpush2.msra.mxu0 0.0
    %4316 = vmatprep.subr.mxu0 0.0
    %4317 = vmatpush2.msra.mxu0 0.0
    %4318 = vmatprep.subr.mxu0 0.0
    %4319 = vmatpush2.msra.mxu0 0.0
    %4320 = vmatprep.subr.mxu0 0.0
    %4321 = vmatpush2.msra.mxu0 0.0
    %4322 = vmatprep.subr.mxu0 0.0
    %4323 = vmatpush2.msra.mxu0 0.0
    %4324 = vmatprep.subr.mxu0 0.0
    %4325 = vmatpush2.msra.mxu0 0.0
    %4326 = vmatprep.subr.mxu0 0.0
    %4327 = vmatpush2.msra.mxu0 0.0
    %4328 = vmatprep.mubr.f32.mxu0 0.0
    %4329 = vmatmul.mubr.f32.gmra.mxu0 %v4263
    %v4330 = vpop.f32.mrf.mxu0
    %v4331 = vadd.f32 %v152, %v4330
    %v4332 = vpop.f32.mrf.mxu0
    %4333 = vdwg.mxu0
    %v4334 = vmul.f32 %v4263, 0.056154538
    %v4335 = vadd.f32 %v4041, %v4334
    %v4336 = vmul.f32 %v4037, 0.12222222
    %v4337 = vadd.f32 %v3896, %v4336
    %v4338 = vmul.f32 %v4184, -0.46666667
    %v4339 = vadd.f32 %v4337, %v4338
    %v4340 = vmul.f32 %v4331, 0.44444445
    %v4341 = vadd.f32 %v4339, %v4340
    %v4342 = vadd.f32 %v4341, %v137
    %v4343 = vmax.f32 %v4342, 0.0
    %4344 = vmatprep.subr.mxu0 0.0
    %4345 = vmatpush1.msra.mxu0 %v250
    %4346 = vmatprep.subr.mxu0 0.0
    %4347 = vmatpush1.msra.mxu0 %v249
    %4348 = vmatprep.subr.mxu0 0.0
    %4349 = vmatpush1.msra.mxu0 %v248
    %4350 = vmatprep.subr.mxu0 0.0
    %4351 = vmatpush1.msra.mxu0 %v247
    %4352 = vmatprep.subr.mxu0 0.0
    %4353 = vmatpush1.msra.mxu0 %v246
    %4354 = vmatprep.subr.mxu0 0.0
    %4355 = vmatpush1.msra.mxu0 %v245
    %4356 = vmatprep.subr.mxu0 0.0
    %4357 = vmatpush1.msra.mxu0 %v244
    %4358 = vmatprep.subr.mxu0 0.0
    %4359 = vmatpush1.msra.mxu0 %v243
    %4360 = vmatprep.subr.mxu0 0.0
    %4361 = vmatpush1.msra.mxu0 %v242
    %4362 = vmatprep.subr.mxu0 0.0
    %4363 = vmatpush1.msra.mxu0 %v241
    %4364 = vmatprep.subr.mxu0 0.0
    %4365 = vmatpush1.msra.mxu0 %v240
    %4366 = vmatprep.subr.mxu0 0.0
    %4367 = vmatpush1.msra.mxu0 %v239
    %4368 = vmatprep.subr.mxu0 0.0
    %4369 = vmatpush1.msra.mxu0 %v238
    %4370 = vmatprep.subr.mxu0 0.0
    %4371 = vmatpush1.msra.mxu0 %v237
    %4372 = vmatprep.subr.mxu0 0.0
    %4373 = vmatpush1.msra.mxu0 %v236
    %4374 = vmatprep.subr.mxu0 0.0
    %4375 = vmatpush1.msra.mxu0 %v235
    %4376 = vmatprep.subr.mxu0 0.0
    %4377 = vmatpush2.msra.mxu0 0.0
    %4378 = vmatprep.subr.mxu0 0.0
    %4379 = vmatpush2.msra.mxu0 0.0
    %4380 = vmatprep.subr.mxu0 0.0
    %4381 = vmatpush2.msra.mxu0 0.0
    %4382 = vmatprep.subr.mxu0 0.0
    %4383 = vmatpush2.msra.mxu0 0.0
    %4384 = vmatprep.subr.mxu0 0.0
    %4385 = vmatpush2.msra.mxu0 0.0
    %4386 = vmatprep.subr.mxu0 0.0
    %4387 = vmatpush2.msra.mxu0 0.0
    %4388 = vmatprep.subr.mxu0 0.0
    %4389 = vmatpush2.msra.mxu0 0.0
    %4390 = vmatprep.subr.mxu0 0.0
    %4391 = vmatpush2.msra.mxu0 0.0
    %4392 = vmatprep.subr.mxu0 0.0
    %4393 = vmatpush2.msra.mxu0 0.0
    %4394 = vmatprep.subr.mxu0 0.0
    %4395 = vmatpush2.msra.mxu0 0.0
    %4396 = vmatprep.subr.mxu0 0.0
    %4397 = vmatpush2.msra.mxu0 0.0
    %4398 = vmatprep.subr.mxu0 0.0
    %4399 = vmatpush2.msra.mxu0 0.0
    %4400 = vmatprep.subr.mxu0 0.0
    %4401 = vmatpush2.msra.mxu0 0.0
    %4402 = vmatprep.subr.mxu0 0.0
    %4403 = vmatpush2.msra.mxu0 0.0
    %4404 = vmatprep.subr.mxu0 0.0
    %4405 = vmatpush2.msra.mxu0 0.0
    %4406 = vmatprep.subr.mxu0 0.0
    %4407 = vmatpush2.msra.mxu0 0.0
    %4408 = vmatprep.mubr.f32.mxu0 0.0
    %4409 = vmatmul.mubr.f32.gmra.mxu0 %v4343
    %v4410 = vpop.f32.mrf.mxu0
    %v4411 = vadd.f32 %v145, %v4410
    %v4412 = vpop.f32.mrf.mxu0
    %4413 = vdwg.mxu0
    %v4414 = vmax.f32 %v4411, 0.0
    %4415 = vmatprep.subr.mxu0 0.0
    %4416 = vmatpush1.msra.mxu0 %v337
    %4417 = vmatprep.subr.mxu0 0.0
    %4418 = vmatpush1.msra.mxu0 %v336
    %4419 = vmatprep.subr.mxu0 0.0
    %4420 = vmatpush1.msra.mxu0 %v335
    %4421 = vmatprep.subr.mxu0 0.0
    %4422 = vmatpush1.msra.mxu0 %v334
    %4423 = vmatprep.subr.mxu0 0.0
    %4424 = vmatpush1.msra.mxu0 %v333
    %4425 = vmatprep.subr.mxu0 0.0
    %4426 = vmatpush1.msra.mxu0 %v332
    %4427 = vmatprep.subr.mxu0 0.0
    %4428 = vmatpush1.msra.mxu0 %v331
    %4429 = vmatprep.subr.mxu0 0.0
    %4430 = vmatpush1.msra.mxu0 %v330
    %4431 = vmatprep.subr.mxu0 0.0
    %4432 = vmatpush1.msra.mxu0 %v329
    %4433 = vmatprep.subr.mxu0 0.0
    %4434 = vmatpush1.msra.mxu0 %v328
    %4435 = vmatprep.subr.mxu0 0.0
    %4436 = vmatpush1.msra.mxu0 %v327
    %4437 = vmatprep.subr.mxu0 0.0
    %4438 = vmatpush1.msra.mxu0 %v326
    %4439 = vmatprep.subr.mxu0 0.0
    %4440 = vmatpush1.msra.mxu0 %v325
    %4441 = vmatprep.subr.mxu0 0.0
    %4442 = vmatpush1.msra.mxu0 %v324
    %4443 = vmatprep.subr.mxu0 0.0
    %4444 = vmatpush1.msra.mxu0 %v323
    %4445 = vmatprep.subr.mxu0 0.0
    %4446 = vmatpush1.msra.mxu0 %v322
    %4447 = vmatprep.subr.mxu0 0.0
    %4448 = vmatpush2.msra.mxu0 0.0
    %4449 = vmatprep.subr.mxu0 0.0
    %4450 = vmatpush2.msra.mxu0 0.0
    %4451 = vmatprep.subr.mxu0 0.0
    %4452 = vmatpush2.msra.mxu0 0.0
    %4453 = vmatprep.subr.mxu0 0.0
    %4454 = vmatpush2.msra.mxu0 0.0
    %4455 = vmatprep.subr.mxu0 0.0
    %4456 = vmatpush2.msra.mxu0 0.0
    %4457 = vmatprep.subr.mxu0 0.0
    %4458 = vmatpush2.msra.mxu0 0.0
    %4459 = vmatprep.subr.mxu0 0.0
    %4460 = vmatpush2.msra.mxu0 0.0
    %4461 = vmatprep.subr.mxu0 0.0
    %4462 = vmatpush2.msra.mxu0 0.0
    %4463 = vmatprep.subr.mxu0 0.0
    %4464 = vmatpush2.msra.mxu0 0.0
    %4465 = vmatprep.subr.mxu0 0.0
    %4466 = vmatpush2.msra.mxu0 0.0
    %4467 = vmatprep.subr.mxu0 0.0
    %4468 = vmatpush2.msra.mxu0 0.0
    %4469 = vmatprep.subr.mxu0 0.0
    %4470 = vmatpush2.msra.mxu0 0.0
    %4471 = vmatprep.subr.mxu0 0.0
    %4472 = vmatpush2.msra.mxu0 0.0
    %4473 = vmatprep.subr.mxu0 0.0
    %4474 = vmatpush2.msra.mxu0 0.0
    %4475 = vmatprep.subr.mxu0 0.0
    %4476 = vmatpush2.msra.mxu0 0.0
    %4477 = vmatprep.subr.mxu0 0.0
    %4478 = vmatpush2.msra.mxu0 0.0
    %4479 = vmatprep.mubr.f32.mxu0 0.0
    %4480 = vmatmul.mubr.f32.gmra.mxu0 %v4414
    %v4481 = vpop.f32.mrf.mxu0
    %v4482 = vadd.f32 %v152, %v4481
    %v4483 = vpop.f32.mrf.mxu0
    %4484 = vdwg.mxu0
    %v4485 = vmul.f32 %v4414, 0.08138021
    %v4486 = vadd.f32 %v4335, %v4485
    %v4487 = vmul.f32 %v4037, 0.36907482
    %v4488 = vadd.f32 %v3896, %v4487
    %v4489 = vmul.f32 %v4184, -1.4494742
    %v4490 = vadd.f32 %v4488, %v4489
    %v4491 = vmul.f32 %v4331, 1.2278616
    %v4492 = vadd.f32 %v4490, %v4491
    %v4493 = vmul.f32 %v4482, -0.036351167
    %v4494 = vadd.f32 %v4492, %v4493
    %v4495 = vadd.f32 %v4494, %v137
    %v4496 = vmax.f32 %v4495, 0.0
    %4497 = vmatprep.subr.mxu0 0.0
    %4498 = vmatpush1.msra.mxu0 %v250
    %4499 = vmatprep.subr.mxu0 0.0
    %4500 = vmatpush1.msra.mxu0 %v249
    %4501 = vmatprep.subr.mxu0 0.0
    %4502 = vmatpush1.msra.mxu0 %v248
    %4503 = vmatprep.subr.mxu0 0.0
    %4504 = vmatpush1.msra.mxu0 %v247
    %4505 = vmatprep.subr.mxu0 0.0
    %4506 = vmatpush1.msra.mxu0 %v246
    %4507 = vmatprep.subr.mxu0 0.0
    %4508 = vmatpush1.msra.mxu0 %v245
    %4509 = vmatprep.subr.mxu0 0.0
    %4510 = vmatpush1.msra.mxu0 %v244
    %4511 = vmatprep.subr.mxu0 0.0
    %4512 = vmatpush1.msra.mxu0 %v243
    %4513 = vmatprep.subr.mxu0 0.0
    %4514 = vmatpush1.msra.mxu0 %v242
    %4515 = vmatprep.subr.mxu0 0.0
    %4516 = vmatpush1.msra.mxu0 %v241
    %4517 = vmatprep.subr.mxu0 0.0
    %4518 = vmatpush1.msra.mxu0 %v240
    %4519 = vmatprep.subr.mxu0 0.0
    %4520 = vmatpush1.msra.mxu0 %v239
    %4521 = vmatprep.subr.mxu0 0.0
    %4522 = vmatpush1.msra.mxu0 %v238
    %4523 = vmatprep.subr.mxu0 0.0
    %4524 = vmatpush1.msra.mxu0 %v237
    %4525 = vmatprep.subr.mxu0 0.0
    %4526 = vmatpush1.msra.mxu0 %v236
    %4527 = vmatprep.subr.mxu0 0.0
    %4528 = vmatpush1.msra.mxu0 %v235
    %4529 = vmatprep.subr.mxu0 0.0
    %4530 = vmatpush2.msra.mxu0 0.0
    %4531 = vmatprep.subr.mxu0 0.0
    %4532 = vmatpush2.msra.mxu0 0.0
    %4533 = vmatprep.subr.mxu0 0.0
    %4534 = vmatpush2.msra.mxu0 0.0
    %4535 = vmatprep.subr.mxu0 0.0
    %4536 = vmatpush2.msra.mxu0 0.0
    %4537 = vmatprep.subr.mxu0 0.0
    %4538 = vmatpush2.msra.mxu0 0.0
    %4539 = vmatprep.subr.mxu0 0.0
    %4540 = vmatpush2.msra.mxu0 0.0
    %4541 = vmatprep.subr.mxu0 0.0
    %4542 = vmatpush2.msra.mxu0 0.0
    %4543 = vmatprep.subr.mxu0 0.0
    %4544 = vmatpush2.msra.mxu0 0.0
    %4545 = vmatprep.subr.mxu0 0.0
    %4546 = vmatpush2.msra.mxu0 0.0
    %4547 = vmatprep.subr.mxu0 0.0
    %4548 = vmatpush2.msra.mxu0 0.0
    %4549 = vmatprep.subr.mxu0 0.0
    %4550 = vmatpush2.msra.mxu0 0.0
    %4551 = vmatprep.subr.mxu0 0.0
    %4552 = vmatpush2.msra.mxu0 0.0
    %4553 = vmatprep.subr.mxu0 0.0
    %4554 = vmatpush2.msra.mxu0 0.0
    %4555 = vmatprep.subr.mxu0 0.0
    %4556 = vmatpush2.msra.mxu0 0.0
    %4557 = vmatprep.subr.mxu0 0.0
    %4558 = vmatpush2.msra.mxu0 0.0
    %4559 = vmatprep.subr.mxu0 0.0
    %4560 = vmatpush2.msra.mxu0 0.0
    %4561 = vmatprep.mubr.f32.mxu0 0.0
    %4562 = vmatmul.mubr.f32.gmra.mxu0 %v4496
    %v4563 = vpop.f32.mrf.mxu0
    %v4564 = vadd.f32 %v145, %v4563
    %v4565 = vpop.f32.mrf.mxu0
    %4566 = vdwg.mxu0
    %v4567 = vmax.f32 %v4564, 0.0
    %4568 = vmatprep.subr.mxu0 0.0
    %4569 = vmatpush1.msra.mxu0 %v337
    %4570 = vmatprep.subr.mxu0 0.0
    %4571 = vmatpush1.msra.mxu0 %v336
    %4572 = vmatprep.subr.mxu0 0.0
    %4573 = vmatpush1.msra.mxu0 %v335
    %4574 = vmatprep.subr.mxu0 0.0
    %4575 = vmatpush1.msra.mxu0 %v334
    %4576 = vmatprep.subr.mxu0 0.0
    %4577 = vmatpush1.msra.mxu0 %v333
    %4578 = vmatprep.subr.mxu0 0.0
    %4579 = vmatpush1.msra.mxu0 %v332
    %4580 = vmatprep.subr.mxu0 0.0
    %4581 = vmatpush1.msra.mxu0 %v331
    %4582 = vmatprep.subr.mxu0 0.0
    %4583 = vmatpush1.msra.mxu0 %v330
    %4584 = vmatprep.subr.mxu0 0.0
    %4585 = vmatpush1.msra.mxu0 %v329
    %4586 = vmatprep.subr.mxu0 0.0
    %4587 = vmatpush1.msra.mxu0 %v328
    %4588 = vmatprep.subr.mxu0 0.0
    %4589 = vmatpush1.msra.mxu0 %v327
    %4590 = vmatprep.subr.mxu0 0.0
    %4591 = vmatpush1.msra.mxu0 %v326
    %4592 = vmatprep.subr.mxu0 0.0
    %4593 = vmatpush1.msra.mxu0 %v325
    %4594 = vmatprep.subr.mxu0 0.0
    %4595 = vmatpush1.msra.mxu0 %v324
    %4596 = vmatprep.subr.mxu0 0.0
    %4597 = vmatpush1.msra.mxu0 %v323
    %4598 = vmatprep.subr.mxu0 0.0
    %4599 = vmatpush1.msra.mxu0 %v322
    %4600 = vmatprep.subr.mxu0 0.0
    %4601 = vmatpush2.msra.mxu0 0.0
    %4602 = vmatprep.subr.mxu0 0.0
    %4603 = vmatpush2.msra.mxu0 0.0
    %4604 = vmatprep.subr.mxu0 0.0
    %4605 = vmatpush2.msra.mxu0 0.0
    %4606 = vmatprep.subr.mxu0 0.0
    %4607 = vmatpush2.msra.mxu0 0.0
    %4608 = vmatprep.subr.mxu0 0.0
    %4609 = vmatpush2.msra.mxu0 0.0
    %4610 = vmatprep.subr.mxu0 0.0
    %4611 = vmatpush2.msra.mxu0 0.0
    %4612 = vmatprep.subr.mxu0 0.0
    %4613 = vmatpush2.msra.mxu0 0.0
    %4614 = vmatprep.subr.mxu0 0.0
    %4615 = vmatpush2.msra.mxu0 0.0
    %4616 = vmatprep.subr.mxu0 0.0
    %4617 = vmatpush2.msra.mxu0 0.0
    %4618 = vmatprep.subr.mxu0 0.0
    %4619 = vmatpush2.msra.mxu0 0.0
    %4620 = vmatprep.subr.mxu0 0.0
    %4621 = vmatpush2.msra.mxu0 0.0
    %4622 = vmatprep.subr.mxu0 0.0
    %4623 = vmatpush2.msra.mxu0 0.0
    %4624 = vmatprep.subr.mxu0 0.0
    %4625 = vmatpush2.msra.mxu0 0.0
    %4626 = vmatprep.subr.mxu0 0.0
    %4627 = vmatpush2.msra.mxu0 0.0
    %4628 = vmatprep.subr.mxu0 0.0
    %4629 = vmatpush2.msra.mxu0 0.0
    %4630 = vmatprep.subr.mxu0 0.0
    %4631 = vmatpush2.msra.mxu0 0.0
    %4632 = vmatprep.mubr.f32.mxu0 0.0
    %4633 = vmatmul.mubr.f32.gmra.mxu0 %v4567
    %v4634 = vpop.f32.mrf.mxu0
    %v4635 = vadd.f32 %v152, %v4634
    %v4636 = vpop.f32.mrf.mxu0
    %4637 = vdwg.mxu0
    %v4638 = vmul.f32 %v4567, -0.040297024
    %v4639 = vadd.f32 %v4486, %v4638
    %v4640 = vmul.f32 %v4037, 0.35578442
    %v4641 = vadd.f32 %v3896, %v4640
    %v4642 = vmul.f32 %v4184, -1.344697
    %v4643 = vadd.f32 %v4641, %v4642
    %v4644 = vmul.f32 %v4331, 1.1133028
    %v4645 = vadd.f32 %v4643, %v4644
    %v4646 = vmul.f32 %v4482, 0.034801137
    %v4647 = vadd.f32 %v4645, %v4646
    %v4648 = vmul.f32 %v4635, -0.034191415
    %v4649 = vadd.f32 %v4647, %v4648
    %v4650 = vadd.f32 %v4649, %v137
    %v4651 = vmax.f32 %v4650, 0.0
    %4652 = vmatprep.subr.mxu0 0.0
    %4653 = vmatpush1.msra.mxu0 %v250
    %4654 = vmatprep.subr.mxu0 0.0
    %4655 = vmatpush1.msra.mxu0 %v249
    %4656 = vmatprep.subr.mxu0 0.0
    %4657 = vmatpush1.msra.mxu0 %v248
    %4658 = vmatprep.subr.mxu0 0.0
    %4659 = vmatpush1.msra.mxu0 %v247
    %4660 = vmatprep.subr.mxu0 0.0
    %4661 = vmatpush1.msra.mxu0 %v246
    %4662 = vmatprep.subr.mxu0 0.0
    %4663 = vmatpush1.msra.mxu0 %v245
    %4664 = vmatprep.subr.mxu0 0.0
    %4665 = vmatpush1.msra.mxu0 %v244
    %4666 = vmatprep.subr.mxu0 0.0
    %4667 = vmatpush1.msra.mxu0 %v243
    %4668 = vmatprep.subr.mxu0 0.0
    %4669 = vmatpush1.msra.mxu0 %v242
    %4670 = vmatprep.subr.mxu0 0.0
    %4671 = vmatpush1.msra.mxu0 %v241
    %4672 = vmatprep.subr.mxu0 0.0
    %4673 = vmatpush1.msra.mxu0 %v240
    %4674 = vmatprep.subr.mxu0 0.0
    %4675 = vmatpush1.msra.mxu0 %v239
    %4676 = vmatprep.subr.mxu0 0.0
    %4677 = vmatpush1.msra.mxu0 %v238
    %4678 = vmatprep.subr.mxu0 0.0
    %4679 = vmatpush1.msra.mxu0 %v237
    %4680 = vmatprep.subr.mxu0 0.0
    %4681 = vmatpush1.msra.mxu0 %v236
    %4682 = vmatprep.subr.mxu0 0.0
    %4683 = vmatpush1.msra.mxu0 %v235
    %4684 = vmatprep.subr.mxu0 0.0
    %4685 = vmatpush2.msra.mxu0 0.0
    %4686 = vmatprep.subr.mxu0 0.0
    %4687 = vmatpush2.msra.mxu0 0.0
    %4688 = vmatprep.subr.mxu0 0.0
    %4689 = vmatpush2.msra.mxu0 0.0
    %4690 = vmatprep.subr.mxu0 0.0
    %4691 = vmatpush2.msra.mxu0 0.0
    %4692 = vmatprep.subr.mxu0 0.0
    %4693 = vmatpush2.msra.mxu0 0.0
    %4694 = vmatprep.subr.mxu0 0.0
    %4695 = vmatpush2.msra.mxu0 0.0
    %4696 = vmatprep.subr.mxu0 0.0
    %4697 = vmatpush2.msra.mxu0 0.0
    %4698 = vmatprep.subr.mxu0 0.0
    %4699 = vmatpush2.msra.mxu0 0.0
    %4700 = vmatprep.subr.mxu0 0.0
    %4701 = vmatpush2.msra.mxu0 0.0
    %4702 = vmatprep.subr.mxu0 0.0
    %4703 = vmatpush2.msra.mxu0 0.0
    %4704 = vmatprep.subr.mxu0 0.0
    %4705 = vmatpush2.msra.mxu0 0.0
    %4706 = vmatprep.subr.mxu0 0.0
    %4707 = vmatpush2.msra.mxu0 0.0
    %4708 = vmatprep.subr.mxu0 0.0
    %4709 = vmatpush2.msra.mxu0 0.0
    %4710 = vmatprep.subr.mxu0 0.0
    %4711 = vmatpush2.msra.mxu0 0.0
    %4712 = vmatprep.subr.mxu0 0.0
    %4713 = vmatpush2.msra.mxu0 0.0
    %4714 = vmatprep.subr.mxu0 0.0
    %4715 = vmatpush2.msra.mxu0 0.0
    %4716 = vmatprep.mubr.f32.mxu0 0.0
    %4717 = vmatmul.mubr.f32.gmra.mxu0 %v4651
    %v4718 = vpop.f32.mrf.mxu0
    %v4719 = vadd.f32 %v145, %v4718
    %v4720 = vpop.f32.mrf.mxu0
    %4721 = vdwg.mxu0
    %v4722 = vmax.f32 %v4719, 0.0
    %4723 = vmatprep.subr.mxu0 0.0
    %4724 = vmatpush1.msra.mxu0 %v337
    %4725 = vmatprep.subr.mxu0 0.0
    %4726 = vmatpush1.msra.mxu0 %v336
    %4727 = vmatprep.subr.mxu0 0.0
    %4728 = vmatpush1.msra.mxu0 %v335
    %4729 = vmatprep.subr.mxu0 0.0
    %4730 = vmatpush1.msra.mxu0 %v334
    %4731 = vmatprep.subr.mxu0 0.0
    %4732 = vmatpush1.msra.mxu0 %v333
    %4733 = vmatprep.subr.mxu0 0.0
    %4734 = vmatpush1.msra.mxu0 %v332
    %4735 = vmatprep.subr.mxu0 0.0
    %4736 = vmatpush1.msra.mxu0 %v331
    %4737 = vmatprep.subr.mxu0 0.0
    %4738 = vmatpush1.msra.mxu0 %v330
    %4739 = vmatprep.subr.mxu0 0.0
    %4740 = vmatpush1.msra.mxu0 %v329
    %4741 = vmatprep.subr.mxu0 0.0
    %4742 = vmatpush1.msra.mxu0 %v328
    %4743 = vmatprep.subr.mxu0 0.0
    %4744 = vmatpush1.msra.mxu0 %v327
    %4745 = vmatprep.subr.mxu0 0.0
    %4746 = vmatpush1.msra.mxu0 %v326
    %4747 = vmatprep.subr.mxu0 0.0
    %4748 = vmatpush1.msra.mxu0 %v325
    %4749 = vmatprep.subr.mxu0 0.0
    %4750 = vmatpush1.msra.mxu0 %v324
    %4751 = vmatprep.subr.mxu0 0.0
    %4752 = vmatpush1.msra.mxu0 %v323
    %4753 = vmatprep.subr.mxu0 0.0
    %4754 = vmatpush1.msra.mxu0 %v322
    %4755 = vmatprep.subr.mxu0 0.0
    %4756 = vmatpush2.msra.mxu0 0.0
    %4757 = vmatprep.subr.mxu0 0.0
    %4758 = vmatpush2.msra.mxu0 0.0
    %4759 = vmatprep.subr.mxu0 0.0
    %4760 = vmatpush2.msra.mxu0 0.0
    %4761 = vmatprep.subr.mxu0 0.0
    %4762 = vmatpush2.msra.mxu0 0.0
    %4763 = vmatprep.subr.mxu0 0.0
    %4764 = vmatpush2.msra.mxu0 0.0
    %4765 = vmatprep.subr.mxu0 0.0
    %4766 = vmatpush2.msra.mxu0 0.0
    %4767 = vmatprep.subr.mxu0 0.0
    %4768 = vmatpush2.msra.mxu0 0.0
    %4769 = vmatprep.subr.mxu0 0.0
    %4770 = vmatpush2.msra.mxu0 0.0
    %4771 = vmatprep.subr.mxu0 0.0
    %4772 = vmatpush2.msra.mxu0 0.0
    %4773 = vmatprep.subr.mxu0 0.0
    %4774 = vmatpush2.msra.mxu0 0.0
    %4775 = vmatprep.subr.mxu0 0.0
    %4776 = vmatpush2.msra.mxu0 0.0
    %4777 = vmatprep.subr.mxu0 0.0
    %4778 = vmatpush2.msra.mxu0 0.0
    %4779 = vmatprep.subr.mxu0 0.0
    %4780 = vmatpush2.msra.mxu0 0.0
    %4781 = vmatprep.subr.mxu0 0.0
    %4782 = vmatpush2.msra.mxu0 0.0
    %4783 = vmatprep.subr.mxu0 0.0
    %4784 = vmatpush2.msra.mxu0 0.0
    %4785 = vmatprep.subr.mxu0 0.0
    %4786 = vmatpush2.msra.mxu0 0.0
    %4787 = vmatprep.mubr.f32.mxu0 0.0
    %4788 = vmatmul.mubr.f32.gmra.mxu0 %v4722
    %v4789 = vpop.f32.mrf.mxu0
    %v4790 = vadd.f32 %v152, %v4789
    %v4791 = vpop.f32.mrf.mxu0
    %4792 = vdwg.mxu0
    %v4793 = vmul.f32 %v4722, 0.016369049
    %v4794 = vadd.f32 %v4639, %v4793
    %v4795 = vmul.f32 %v4037, 0.0113932295
    %v4796 = vadd.f32 %v3896, %v4795
    %v4797 = vmul.f32 %v4331, 0.056154538
    %v4798 = vadd.f32 %v4796, %v4797
    %v4799 = vmul.f32 %v4482, 0.08138021
    %v4800 = vadd.f32 %v4798, %v4799
    %v4801 = vmul.f32 %v4635, -0.040297024
    %v4802 = vadd.f32 %v4800, %v4801
    %v4803 = vmul.f32 %v4790, 0.016369049
    %v4804 = vadd.f32 %v4802, %v4803
    %v4805 = vadd.f32 %v4804, %v137
    %v4806 = vmax.f32 %v4805, 0.0
    %4807 = vmatprep.subr.mxu0 0.0
    %4808 = vmatpush1.msra.mxu0 %v250
    %4809 = vmatprep.subr.mxu0 0.0
    %4810 = vmatpush1.msra.mxu0 %v249
    %4811 = vmatprep.subr.mxu0 0.0
    %4812 = vmatpush1.msra.mxu0 %v248
    %4813 = vmatprep.subr.mxu0 0.0
    %4814 = vmatpush1.msra.mxu0 %v247
    %4815 = vmatprep.subr.mxu0 0.0
    %4816 = vmatpush1.msra.mxu0 %v246
    %4817 = vmatprep.subr.mxu0 0.0
    %4818 = vmatpush1.msra.mxu0 %v245
    %4819 = vmatprep.subr.mxu0 0.0
    %4820 = vmatpush1.msra.mxu0 %v244
    %4821 = vmatprep.subr.mxu0 0.0
    %4822 = vmatpush1.msra.mxu0 %v243
    %4823 = vmatprep.subr.mxu0 0.0
    %4824 = vmatpush1.msra.mxu0 %v242
    %4825 = vmatprep.subr.mxu0 0.0
    %4826 = vmatpush1.msra.mxu0 %v241
    %4827 = vmatprep.subr.mxu0 0.0
    %4828 = vmatpush1.msra.mxu0 %v240
    %4829 = vmatprep.subr.mxu0 0.0
    %4830 = vmatpush1.msra.mxu0 %v239
    %4831 = vmatprep.subr.mxu0 0.0
    %4832 = vmatpush1.msra.mxu0 %v238
    %4833 = vmatprep.subr.mxu0 0.0
    %4834 = vmatpush1.msra.mxu0 %v237
    %4835 = vmatprep.subr.mxu0 0.0
    %4836 = vmatpush1.msra.mxu0 %v236
    %4837 = vmatprep.subr.mxu0 0.0
    %4838 = vmatpush1.msra.mxu0 %v235
    %4839 = vmatprep.subr.mxu0 0.0
    %4840 = vmatpush2.msra.mxu0 0.0
    %4841 = vmatprep.subr.mxu0 0.0
    %4842 = vmatpush2.msra.mxu0 0.0
    %4843 = vmatprep.subr.mxu0 0.0
    %4844 = vmatpush2.msra.mxu0 0.0
    %4845 = vmatprep.subr.mxu0 0.0
    %4846 = vmatpush2.msra.mxu0 0.0
    %4847 = vmatprep.subr.mxu0 0.0
    %4848 = vmatpush2.msra.mxu0 0.0
    %4849 = vmatprep.subr.mxu0 0.0
    %4850 = vmatpush2.msra.mxu0 0.0
    %4851 = vmatprep.subr.mxu0 0.0
    %4852 = vmatpush2.msra.mxu0 0.0
    %4853 = vmatprep.subr.mxu0 0.0
    %4854 = vmatpush2.msra.mxu0 0.0
    %4855 = vmatprep.subr.mxu0 0.0
    %4856 = vmatpush2.msra.mxu0 0.0
    %4857 = vmatprep.subr.mxu0 0.0
    %4858 = vmatpush2.msra.mxu0 0.0
    %4859 = vmatprep.subr.mxu0 0.0
    %4860 = vmatpush2.msra.mxu0 0.0
    %4861 = vmatprep.subr.mxu0 0.0
    %4862 = vmatpush2.msra.mxu0 0.0
    %4863 = vmatprep.subr.mxu0 0.0
    %4864 = vmatpush2.msra.mxu0 0.0
    %4865 = vmatprep.subr.mxu0 0.0
    %4866 = vmatpush2.msra.mxu0 0.0
    %4867 = vmatprep.subr.mxu0 0.0
    %4868 = vmatpush2.msra.mxu0 0.0
    %4869 = vmatprep.subr.mxu0 0.0
    %4870 = vmatpush2.msra.mxu0 0.0
    %4871 = vmatprep.mubr.f32.mxu0 0.0
    %4872 = vmatmul.mubr.f32.gmra.mxu0 %v4806
    %v4873 = vpop.f32.mrf.mxu0
    %v4874 = vadd.f32 %v145, %v4873
    %v4875 = vpop.f32.mrf.mxu0
    %4876 = vdwg.mxu0
    %v4877 = vmax.f32 %v4874, 0.0
    %4878 = vmatprep.subr.mxu0 0.0
    %4879 = vmatpush1.msra.mxu0 %v337
    %4880 = vmatprep.subr.mxu0 0.0
    %4881 = vmatpush1.msra.mxu0 %v336
    %4882 = vmatprep.subr.mxu0 0.0
    %4883 = vmatpush1.msra.mxu0 %v335
    %4884 = vmatprep.subr.mxu0 0.0
    %4885 = vmatpush1.msra.mxu0 %v334
    %4886 = vmatprep.subr.mxu0 0.0
    %4887 = vmatpush1.msra.mxu0 %v333
    %4888 = vmatprep.subr.mxu0 0.0
    %4889 = vmatpush1.msra.mxu0 %v332
    %4890 = vmatprep.subr.mxu0 0.0
    %4891 = vmatpush1.msra.mxu0 %v331
    %4892 = vmatprep.subr.mxu0 0.0
    %4893 = vmatpush1.msra.mxu0 %v330
    %4894 = vmatprep.subr.mxu0 0.0
    %4895 = vmatpush1.msra.mxu0 %v329
    %4896 = vmatprep.subr.mxu0 0.0
    %4897 = vmatpush1.msra.mxu0 %v328
    %4898 = vmatprep.subr.mxu0 0.0
    %4899 = vmatpush1.msra.mxu0 %v327
    %4900 = vmatprep.subr.mxu0 0.0
    %4901 = vmatpush1.msra.mxu0 %v326
    %4902 = vmatprep.subr.mxu0 0.0
    %4903 = vmatpush1.msra.mxu0 %v325
    %4904 = vmatprep.subr.mxu0 0.0
    %4905 = vmatpush1.msra.mxu0 %v324
    %4906 = vmatprep.subr.mxu0 0.0
    %4907 = vmatpush1.msra.mxu0 %v323
    %4908 = vmatprep.subr.mxu0 0.0
    %4909 = vmatpush1.msra.mxu0 %v322
    %4910 = vmatprep.subr.mxu0 0.0
    %4911 = vmatpush2.msra.mxu0 0.0
    %4912 = vmatprep.subr.mxu0 0.0
    %4913 = vmatpush2.msra.mxu0 0.0
    %4914 = vmatprep.subr.mxu0 0.0
    %4915 = vmatpush2.msra.mxu0 0.0
    %4916 = vmatprep.subr.mxu0 0.0
    %4917 = vmatpush2.msra.mxu0 0.0
    %4918 = vmatprep.subr.mxu0 0.0
    %4919 = vmatpush2.msra.mxu0 0.0
    %4920 = vmatprep.subr.mxu0 0.0
    %4921 = vmatpush2.msra.mxu0 0.0
    %4922 = vmatprep.subr.mxu0 0.0
    %4923 = vmatpush2.msra.mxu0 0.0
    %4924 = vmatprep.subr.mxu0 0.0
    %4925 = vmatpush2.msra.mxu0 0.0
    %4926 = vmatprep.subr.mxu0 0.0
    %4927 = vmatpush2.msra.mxu0 0.0
    %4928 = vmatprep.subr.mxu0 0.0
    %4929 = vmatpush2.msra.mxu0 0.0
    %4930 = vmatprep.subr.mxu0 0.0
    %4931 = vmatpush2.msra.mxu0 0.0
    %4932 = vmatprep.subr.mxu0 0.0
    %4933 = vmatpush2.msra.mxu0 0.0
    %4934 = vmatprep.subr.mxu0 0.0
    %4935 = vmatpush2.msra.mxu0 0.0
    %4936 = vmatprep.subr.mxu0 0.0
    %4937 = vmatpush2.msra.mxu0 0.0
    %4938 = vmatprep.subr.mxu0 0.0
    %4939 = vmatpush2.msra.mxu0 0.0
    %4940 = vmatprep.subr.mxu0 0.0
    %4941 = vmatpush2.msra.mxu0 0.0
    %4942 = vmatprep.mubr.f32.mxu0 0.0
    %4943 = vmatmul.mubr.f32.gmra.mxu0 %v4877
    %v4944 = vpop.f32.mrf.mxu0
    %v4945 = vadd.f32 %v152, %v4944
    %v4946 = vpop.f32.mrf.mxu0
    %4947 = vdwg.mxu0
    %v4948 = vmul.f32 %v4877, 0.0113932295
    %v4949 = vadd.f32 %v4794, %v4948
    %v4950 = vmul.f32 %v4945, 0.025
    %v4951 = vadd.f32 %v4804, %v4950
    %v4952 = vadd.f32 %v4951, %v137
    %v4953 = vmax.f32 %v4952, 0.0
    %4954 = vmatprep.subr.mxu0 0.0
    %4955 = vmatpush1.msra.mxu0 %v250
    %4956 = vmatprep.subr.mxu0 0.0
    %4957 = vmatpush1.msra.mxu0 %v249
    %4958 = vmatprep.subr.mxu0 0.0
    %4959 = vmatpush1.msra.mxu0 %v248
    %4960 = vmatprep.subr.mxu0 0.0
    %4961 = vmatpush1.msra.mxu0 %v247
    %4962 = vmatprep.subr.mxu0 0.0
    %4963 = vmatpush1.msra.mxu0 %v246
    %4964 = vmatprep.subr.mxu0 0.0
    %4965 = vmatpush1.msra.mxu0 %v245
    %4966 = vmatprep.subr.mxu0 0.0
    %4967 = vmatpush1.msra.mxu0 %v244
    %4968 = vmatprep.subr.mxu0 0.0
    %4969 = vmatpush1.msra.mxu0 %v243
    %4970 = vmatprep.subr.mxu0 0.0
    %4971 = vmatpush1.msra.mxu0 %v242
    %4972 = vmatprep.subr.mxu0 0.0
    %4973 = vmatpush1.msra.mxu0 %v241
    %4974 = vmatprep.subr.mxu0 0.0
    %4975 = vmatpush1.msra.mxu0 %v240
    %4976 = vmatprep.subr.mxu0 0.0
    %4977 = vmatpush1.msra.mxu0 %v239
    %4978 = vmatprep.subr.mxu0 0.0
    %4979 = vmatpush1.msra.mxu0 %v238
    %4980 = vmatprep.subr.mxu0 0.0
    %4981 = vmatpush1.msra.mxu0 %v237
    %4982 = vmatprep.subr.mxu0 0.0
    %4983 = vmatpush1.msra.mxu0 %v236
    %4984 = vmatprep.subr.mxu0 0.0
    %4985 = vmatpush1.msra.mxu0 %v235
    %4986 = vmatprep.subr.mxu0 0.0
    %4987 = vmatpush2.msra.mxu0 0.0
    %4988 = vmatprep.subr.mxu0 0.0
    %4989 = vmatpush2.msra.mxu0 0.0
    %4990 = vmatprep.subr.mxu0 0.0
    %4991 = vmatpush2.msra.mxu0 0.0
    %4992 = vmatprep.subr.mxu0 0.0
    %4993 = vmatpush2.msra.mxu0 0.0
    %4994 = vmatprep.subr.mxu0 0.0
    %4995 = vmatpush2.msra.mxu0 0.0
    %4996 = vmatprep.subr.mxu0 0.0
    %4997 = vmatpush2.msra.mxu0 0.0
    %4998 = vmatprep.subr.mxu0 0.0
    %4999 = vmatpush2.msra.mxu0 0.0
    %5000 = vmatprep.subr.mxu0 0.0
    %5001 = vmatpush2.msra.mxu0 0.0
    %5002 = vmatprep.subr.mxu0 0.0
    %5003 = vmatpush2.msra.mxu0 0.0
    %5004 = vmatprep.subr.mxu0 0.0
    %5005 = vmatpush2.msra.mxu0 0.0
    %5006 = vmatprep.subr.mxu0 0.0
    %5007 = vmatpush2.msra.mxu0 0.0
    %5008 = vmatprep.subr.mxu0 0.0
    %5009 = vmatpush2.msra.mxu0 0.0
    %5010 = vmatprep.subr.mxu0 0.0
    %5011 = vmatpush2.msra.mxu0 0.0
    %5012 = vmatprep.subr.mxu0 0.0
    %5013 = vmatpush2.msra.mxu0 0.0
    %5014 = vmatprep.subr.mxu0 0.0
    %5015 = vmatpush2.msra.mxu0 0.0
    %5016 = vmatprep.subr.mxu0 0.0
    %5017 = vmatpush2.msra.mxu0 0.0
    %5018 = vmatprep.mubr.f32.mxu0 0.0
    %5019 = vmatmul.mubr.f32.gmra.mxu0 %v4953
    %v5020 = vpop.f32.mrf.mxu0
    %v5021 = vadd.f32 %v145, %v5020
    %v5022 = vpop.f32.mrf.mxu0
    %5023 = vdwg.mxu0
    %v5024 = vmax.f32 %v5021, 0.0
    %5025 = vmatprep.subr.mxu0 0.0
    %5026 = vmatpush1.msra.mxu0 %v337
    %5027 = vmatprep.subr.mxu0 0.0
    %5028 = vmatpush1.msra.mxu0 %v336
    %5029 = vmatprep.subr.mxu0 0.0
    %5030 = vmatpush1.msra.mxu0 %v335
    %5031 = vmatprep.subr.mxu0 0.0
    %5032 = vmatpush1.msra.mxu0 %v334
    %5033 = vmatprep.subr.mxu0 0.0
    %5034 = vmatpush1.msra.mxu0 %v333
    %5035 = vmatprep.subr.mxu0 0.0
    %5036 = vmatpush1.msra.mxu0 %v332
    %5037 = vmatprep.subr.mxu0 0.0
    %5038 = vmatpush1.msra.mxu0 %v331
    %5039 = vmatprep.subr.mxu0 0.0
    %5040 = vmatpush1.msra.mxu0 %v330
    %5041 = vmatprep.subr.mxu0 0.0
    %5042 = vmatpush1.msra.mxu0 %v329
    %5043 = vmatprep.subr.mxu0 0.0
    %5044 = vmatpush1.msra.mxu0 %v328
    %5045 = vmatprep.subr.mxu0 0.0
    %5046 = vmatpush1.msra.mxu0 %v327
    %5047 = vmatprep.subr.mxu0 0.0
    %5048 = vmatpush1.msra.mxu0 %v326
    %5049 = vmatprep.subr.mxu0 0.0
    %5050 = vmatpush1.msra.mxu0 %v325
    %5051 = vmatprep.subr.mxu0 0.0
    %5052 = vmatpush1.msra.mxu0 %v324
    %5053 = vmatprep.subr.mxu0 0.0
    %5054 = vmatpush1.msra.mxu0 %v323
    %5055 = vmatprep.subr.mxu0 0.0
    %5056 = vmatpush1.msra.mxu0 %v322
    %5057 = vmatprep.subr.mxu0 0.0
    %5058 = vmatpush2.msra.mxu0 0.0
    %5059 = vmatprep.subr.mxu0 0.0
    %5060 = vmatpush2.msra.mxu0 0.0
    %5061 = vmatprep.subr.mxu0 0.0
    %5062 = vmatpush2.msra.mxu0 0.0
    %5063 = vmatprep.subr.mxu0 0.0
    %5064 = vmatpush2.msra.mxu0 0.0
    %5065 = vmatprep.subr.mxu0 0.0
    %5066 = vmatpush2.msra.mxu0 0.0
    %5067 = vmatprep.subr.mxu0 0.0
    %5068 = vmatpush2.msra.mxu0 0.0
    %5069 = vmatprep.subr.mxu0 0.0
    %5070 = vmatpush2.msra.mxu0 0.0
    %5071 = vmatprep.subr.mxu0 0.0
    %5072 = vmatpush2.msra.mxu0 0.0
    %5073 = vmatprep.subr.mxu0 0.0
    %5074 = vmatpush2.msra.mxu0 0.0
    %5075 = vmatprep.subr.mxu0 0.0
    %5076 = vmatpush2.msra.mxu0 0.0
    %5077 = vmatprep.subr.mxu0 0.0
    %5078 = vmatpush2.msra.mxu0 0.0
    %5079 = vmatprep.subr.mxu0 0.0
    %5080 = vmatpush2.msra.mxu0 0.0
    %5081 = vmatprep.subr.mxu0 0.0
    %5082 = vmatpush2.msra.mxu0 0.0
    %5083 = vmatprep.subr.mxu0 0.0
    %5084 = vmatpush2.msra.mxu0 0.0
    %5085 = vmatprep.subr.mxu0 0.0
    %5086 = vmatpush2.msra.mxu0 0.0
    %5087 = vmatprep.subr.mxu0 0.0
    %5088 = vmatpush2.msra.mxu0 0.0
    %5089 = vmatprep.mubr.f32.mxu0 0.0
    %5090 = vmatmul.mubr.f32.gmra.mxu0 %v5024
    %v5091 = vpop.f32.mrf.mxu0
    %v5092 = vadd.f32 %v152, %v5091
    %v5093 = vpop.f32.mrf.mxu0
    %5094 = vdwg.mxu0
    %v5095 = vmul.f32 %v4945, 0.009375
    %v5096 = vadd.f32 %v4804, %v5095
    %v5097 = vmul.f32 %v5092, 0.028125
    %v5098 = vadd.f32 %v5096, %v5097
    %v5099 = vadd.f32 %v5098, %v137
    %v5100 = vmax.f32 %v5099, 0.0
    %5101 = vmatprep.subr.mxu0 0.0
    %5102 = vmatpush1.msra.mxu0 %v250
    %5103 = vmatprep.subr.mxu0 0.0
    %5104 = vmatpush1.msra.mxu0 %v249
    %5105 = vmatprep.subr.mxu0 0.0
    %5106 = vmatpush1.msra.mxu0 %v248
    %5107 = vmatprep.subr.mxu0 0.0
    %5108 = vmatpush1.msra.mxu0 %v247
    %5109 = vmatprep.subr.mxu0 0.0
    %5110 = vmatpush1.msra.mxu0 %v246
    %5111 = vmatprep.subr.mxu0 0.0
    %5112 = vmatpush1.msra.mxu0 %v245
    %5113 = vmatprep.subr.mxu0 0.0
    %5114 = vmatpush1.msra.mxu0 %v244
    %5115 = vmatprep.subr.mxu0 0.0
    %5116 = vmatpush1.msra.mxu0 %v243
    %5117 = vmatprep.subr.mxu0 0.0
    %5118 = vmatpush1.msra.mxu0 %v242
    %5119 = vmatprep.subr.mxu0 0.0
    %5120 = vmatpush1.msra.mxu0 %v241
    %5121 = vmatprep.subr.mxu0 0.0
    %5122 = vmatpush1.msra.mxu0 %v240
    %5123 = vmatprep.subr.mxu0 0.0
    %5124 = vmatpush1.msra.mxu0 %v239
    %5125 = vmatprep.subr.mxu0 0.0
    %5126 = vmatpush1.msra.mxu0 %v238
    %5127 = vmatprep.subr.mxu0 0.0
    %5128 = vmatpush1.msra.mxu0 %v237
    %5129 = vmatprep.subr.mxu0 0.0
    %5130 = vmatpush1.msra.mxu0 %v236
    %5131 = vmatprep.subr.mxu0 0.0
    %5132 = vmatpush1.msra.mxu0 %v235
    %5133 = vmatprep.subr.mxu0 0.0
    %5134 = vmatpush2.msra.mxu0 0.0
    %5135 = vmatprep.subr.mxu0 0.0
    %5136 = vmatpush2.msra.mxu0 0.0
    %5137 = vmatprep.subr.mxu0 0.0
    %5138 = vmatpush2.msra.mxu0 0.0
    %5139 = vmatprep.subr.mxu0 0.0
    %5140 = vmatpush2.msra.mxu0 0.0
    %5141 = vmatprep.subr.mxu0 0.0
    %5142 = vmatpush2.msra.mxu0 0.0
    %5143 = vmatprep.subr.mxu0 0.0
    %5144 = vmatpush2.msra.mxu0 0.0
    %5145 = vmatprep.subr.mxu0 0.0
    %5146 = vmatpush2.msra.mxu0 0.0
    %5147 = vmatprep.subr.mxu0 0.0
    %5148 = vmatpush2.msra.mxu0 0.0
    %5149 = vmatprep.subr.mxu0 0.0
    %5150 = vmatpush2.msra.mxu0 0.0
    %5151 = vmatprep.subr.mxu0 0.0
    %5152 = vmatpush2.msra.mxu0 0.0
    %5153 = vmatprep.subr.mxu0 0.0
    %5154 = vmatpush2.msra.mxu0 0.0
    %5155 = vmatprep.subr.mxu0 0.0
    %5156 = vmatpush2.msra.mxu0 0.0
    %5157 = vmatprep.subr.mxu0 0.0
    %5158 = vmatpush2.msra.mxu0 0.0
    %5159 = vmatprep.subr.mxu0 0.0
    %5160 = vmatpush2.msra.mxu0 0.0
    %5161 = vmatprep.subr.mxu0 0.0
    %5162 = vmatpush2.msra.mxu0 0.0
    %5163 = vmatprep.subr.mxu0 0.0
    %5164 = vmatpush2.msra.mxu0 0.0
    %5165 = vmatprep.mubr.f32.mxu0 0.0
    %5166 = vmatmul.mubr.f32.gmra.mxu0 %v5100
    %v5167 = vpop.f32.mrf.mxu0
    %v5168 = vadd.f32 %v145, %v5167
    %v5169 = vpop.f32.mrf.mxu0
    %5170 = vdwg.mxu0
    %v5171 = vmax.f32 %v5168, 0.0
    %5172 = vmatprep.subr.mxu0 0.0
    %5173 = vmatpush1.msra.mxu0 %v337
    %5174 = vmatprep.subr.mxu0 0.0
    %5175 = vmatpush1.msra.mxu0 %v336
    %5176 = vmatprep.subr.mxu0 0.0
    %5177 = vmatpush1.msra.mxu0 %v335
    %5178 = vmatprep.subr.mxu0 0.0
    %5179 = vmatpush1.msra.mxu0 %v334
    %5180 = vmatprep.subr.mxu0 0.0
    %5181 = vmatpush1.msra.mxu0 %v333
    %5182 = vmatprep.subr.mxu0 0.0
    %5183 = vmatpush1.msra.mxu0 %v332
    %5184 = vmatprep.subr.mxu0 0.0
    %5185 = vmatpush1.msra.mxu0 %v331
    %5186 = vmatprep.subr.mxu0 0.0
    %5187 = vmatpush1.msra.mxu0 %v330
    %5188 = vmatprep.subr.mxu0 0.0
    %5189 = vmatpush1.msra.mxu0 %v329
    %5190 = vmatprep.subr.mxu0 0.0
    %5191 = vmatpush1.msra.mxu0 %v328
    %5192 = vmatprep.subr.mxu0 0.0
    %5193 = vmatpush1.msra.mxu0 %v327
    %5194 = vmatprep.subr.mxu0 0.0
    %5195 = vmatpush1.msra.mxu0 %v326
    %5196 = vmatprep.subr.mxu0 0.0
    %5197 = vmatpush1.msra.mxu0 %v325
    %5198 = vmatprep.subr.mxu0 0.0
    %5199 = vmatpush1.msra.mxu0 %v324
    %5200 = vmatprep.subr.mxu0 0.0
    %5201 = vmatpush1.msra.mxu0 %v323
    %5202 = vmatprep.subr.mxu0 0.0
    %5203 = vmatpush1.msra.mxu0 %v322
    %5204 = vmatprep.subr.mxu0 0.0
    %5205 = vmatpush2.msra.mxu0 0.0
    %5206 = vmatprep.subr.mxu0 0.0
    %5207 = vmatpush2.msra.mxu0 0.0
    %5208 = vmatprep.subr.mxu0 0.0
    %5209 = vmatpush2.msra.mxu0 0.0
    %5210 = vmatprep.subr.mxu0 0.0
    %5211 = vmatpush2.msra.mxu0 0.0
    %5212 = vmatprep.subr.mxu0 0.0
    %5213 = vmatpush2.msra.mxu0 0.0
    %5214 = vmatprep.subr.mxu0 0.0
    %5215 = vmatpush2.msra.mxu0 0.0
    %5216 = vmatprep.subr.mxu0 0.0
    %5217 = vmatpush2.msra.mxu0 0.0
    %5218 = vmatprep.subr.mxu0 0.0
    %5219 = vmatpush2.msra.mxu0 0.0
    %5220 = vmatprep.subr.mxu0 0.0
    %5221 = vmatpush2.msra.mxu0 0.0
    %5222 = vmatprep.subr.mxu0 0.0
    %5223 = vmatpush2.msra.mxu0 0.0
    %5224 = vmatprep.subr.mxu0 0.0
    %5225 = vmatpush2.msra.mxu0 0.0
    %5226 = vmatprep.subr.mxu0 0.0
    %5227 = vmatpush2.msra.mxu0 0.0
    %5228 = vmatprep.subr.mxu0 0.0
    %5229 = vmatpush2.msra.mxu0 0.0
    %5230 = vmatprep.subr.mxu0 0.0
    %5231 = vmatpush2.msra.mxu0 0.0
    %5232 = vmatprep.subr.mxu0 0.0
    %5233 = vmatpush2.msra.mxu0 0.0
    %5234 = vmatprep.subr.mxu0 0.0
    %5235 = vmatpush2.msra.mxu0 0.0
    %5236 = vmatprep.mubr.f32.mxu0 0.0
    %5237 = vmatmul.mubr.f32.gmra.mxu0 %v5171
    %v5238 = vpop.f32.mrf.mxu0
    %v5239 = vadd.f32 %v152, %v5238
    %v5240 = vpop.f32.mrf.mxu0
    %5241 = vdwg.mxu0
    %v5242 = vmul.f32 %v5171, 0.056154538
    %v5243 = vadd.f32 %v4949, %v5242
    %v5244 = vmul.f32 %v4945, 0.12222222
    %v5245 = vadd.f32 %v4804, %v5244
    %v5246 = vmul.f32 %v5092, -0.46666667
    %v5247 = vadd.f32 %v5245, %v5246
    %v5248 = vmul.f32 %v5239, 0.44444445
    %v5249 = vadd.f32 %v5247, %v5248
    %v5250 = vadd.f32 %v5249, %v137
    %v5251 = vmax.f32 %v5250, 0.0
    %5252 = vmatprep.subr.mxu0 0.0
    %5253 = vmatpush1.msra.mxu0 %v250
    %5254 = vmatprep.subr.mxu0 0.0
    %5255 = vmatpush1.msra.mxu0 %v249
    %5256 = vmatprep.subr.mxu0 0.0
    %5257 = vmatpush1.msra.mxu0 %v248
    %5258 = vmatprep.subr.mxu0 0.0
    %5259 = vmatpush1.msra.mxu0 %v247
    %5260 = vmatprep.subr.mxu0 0.0
    %5261 = vmatpush1.msra.mxu0 %v246
    %5262 = vmatprep.subr.mxu0 0.0
    %5263 = vmatpush1.msra.mxu0 %v245
    %5264 = vmatprep.subr.mxu0 0.0
    %5265 = vmatpush1.msra.mxu0 %v244
    %5266 = vmatprep.subr.mxu0 0.0
    %5267 = vmatpush1.msra.mxu0 %v243
    %5268 = vmatprep.subr.mxu0 0.0
    %5269 = vmatpush1.msra.mxu0 %v242
    %5270 = vmatprep.subr.mxu0 0.0
    %5271 = vmatpush1.msra.mxu0 %v241
    %5272 = vmatprep.subr.mxu0 0.0
    %5273 = vmatpush1.msra.mxu0 %v240
    %5274 = vmatprep.subr.mxu0 0.0
    %5275 = vmatpush1.msra.mxu0 %v239
    %5276 = vmatprep.subr.mxu0 0.0
    %5277 = vmatpush1.msra.mxu0 %v238
    %5278 = vmatprep.subr.mxu0 0.0
    %5279 = vmatpush1.msra.mxu0 %v237
    %5280 = vmatprep.subr.mxu0 0.0
    %5281 = vmatpush1.msra.mxu0 %v236
    %5282 = vmatprep.subr.mxu0 0.0
    %5283 = vmatpush1.msra.mxu0 %v235
    %5284 = vmatprep.subr.mxu0 0.0
    %5285 = vmatpush2.msra.mxu0 0.0
    %5286 = vmatprep.subr.mxu0 0.0
    %5287 = vmatpush2.msra.mxu0 0.0
    %5288 = vmatprep.subr.mxu0 0.0
    %5289 = vmatpush2.msra.mxu0 0.0
    %5290 = vmatprep.subr.mxu0 0.0
    %5291 = vmatpush2.msra.mxu0 0.0
    %5292 = vmatprep.subr.mxu0 0.0
    %5293 = vmatpush2.msra.mxu0 0.0
    %5294 = vmatprep.subr.mxu0 0.0
    %5295 = vmatpush2.msra.mxu0 0.0
    %5296 = vmatprep.subr.mxu0 0.0
    %5297 = vmatpush2.msra.mxu0 0.0
    %5298 = vmatprep.subr.mxu0 0.0
    %5299 = vmatpush2.msra.mxu0 0.0
    %5300 = vmatprep.subr.mxu0 0.0
    %5301 = vmatpush2.msra.mxu0 0.0
    %5302 = vmatprep.subr.mxu0 0.0
    %5303 = vmatpush2.msra.mxu0 0.0
    %5304 = vmatprep.subr.mxu0 0.0
    %5305 = vmatpush2.msra.mxu0 0.0
    %5306 = vmatprep.subr.mxu0 0.0
    %5307 = vmatpush2.msra.mxu0 0.0
    %5308 = vmatprep.subr.mxu0 0.0
    %5309 = vmatpush2.msra.mxu0 0.0
    %5310 = vmatprep.subr.mxu0 0.0
    %5311 = vmatpush2.msra.mxu0 0.0
    %5312 = vmatprep.subr.mxu0 0.0
    %5313 = vmatpush2.msra.mxu0 0.0
    %5314 = vmatprep.subr.mxu0 0.0
    %5315 = vmatpush2.msra.mxu0 0.0
    %5316 = vmatprep.mubr.f32.mxu0 0.0
    %5317 = vmatmul.mubr.f32.gmra.mxu0 %v5251
    %v5318 = vpop.f32.mrf.mxu0
    %v5319 = vadd.f32 %v145, %v5318
    %v5320 = vpop.f32.mrf.mxu0
    %5321 = vdwg.mxu0
    %v5322 = vmax.f32 %v5319, 0.0
    %5323 = vmatprep.subr.mxu0 0.0
    %5324 = vmatpush1.msra.mxu0 %v337
    %5325 = vmatprep.subr.mxu0 0.0
    %5326 = vmatpush1.msra.mxu0 %v336
    %5327 = vmatprep.subr.mxu0 0.0
    %5328 = vmatpush1.msra.mxu0 %v335
    %5329 = vmatprep.subr.mxu0 0.0
    %5330 = vmatpush1.msra.mxu0 %v334
    %5331 = vmatprep.subr.mxu0 0.0
    %5332 = vmatpush1.msra.mxu0 %v333
    %5333 = vmatprep.subr.mxu0 0.0
    %5334 = vmatpush1.msra.mxu0 %v332
    %5335 = vmatprep.subr.mxu0 0.0
    %5336 = vmatpush1.msra.mxu0 %v331
    %5337 = vmatprep.subr.mxu0 0.0
    %5338 = vmatpush1.msra.mxu0 %v330
    %5339 = vmatprep.subr.mxu0 0.0
    %5340 = vmatpush1.msra.mxu0 %v329
    %5341 = vmatprep.subr.mxu0 0.0
    %5342 = vmatpush1.msra.mxu0 %v328
    %5343 = vmatprep.subr.mxu0 0.0
    %5344 = vmatpush1.msra.mxu0 %v327
    %5345 = vmatprep.subr.mxu0 0.0
    %5346 = vmatpush1.msra.mxu0 %v326
    %5347 = vmatprep.subr.mxu0 0.0
    %5348 = vmatpush1.msra.mxu0 %v325
    %5349 = vmatprep.subr.mxu0 0.0
    %5350 = vmatpush1.msra.mxu0 %v324
    %5351 = vmatprep.subr.mxu0 0.0
    %5352 = vmatpush1.msra.mxu0 %v323
    %5353 = vmatprep.subr.mxu0 0.0
    %5354 = vmatpush1.msra.mxu0 %v322
    %5355 = vmatprep.subr.mxu0 0.0
    %5356 = vmatpush2.msra.mxu0 0.0
    %5357 = vmatprep.subr.mxu0 0.0
    %5358 = vmatpush2.msra.mxu0 0.0
    %5359 = vmatprep.subr.mxu0 0.0
    %5360 = vmatpush2.msra.mxu0 0.0
    %5361 = vmatprep.subr.mxu0 0.0
    %5362 = vmatpush2.msra.mxu0 0.0
    %5363 = vmatprep.subr.mxu0 0.0
    %5364 = vmatpush2.msra.mxu0 0.0
    %5365 = vmatprep.subr.mxu0 0.0
    %5366 = vmatpush2.msra.mxu0 0.0
    %5367 = vmatprep.subr.mxu0 0.0
    %5368 = vmatpush2.msra.mxu0 0.0
    %5369 = vmatprep.subr.mxu0 0.0
    %5370 = vmatpush2.msra.mxu0 0.0
    %5371 = vmatprep.subr.mxu0 0.0
    %5372 = vmatpush2.msra.mxu0 0.0
    %5373 = vmatprep.subr.mxu0 0.0
    %5374 = vmatpush2.msra.mxu0 0.0
    %5375 = vmatprep.subr.mxu0 0.0
    %5376 = vmatpush2.msra.mxu0 0.0
    %5377 = vmatprep.subr.mxu0 0.0
    %5378 = vmatpush2.msra.mxu0 0.0
    %5379 = vmatprep.subr.mxu0 0.0
    %5380 = vmatpush2.msra.mxu0 0.0
    %5381 = vmatprep.subr.mxu0 0.0
    %5382 = vmatpush2.msra.mxu0 0.0
    %5383 = vmatprep.subr.mxu0 0.0
    %5384 = vmatpush2.msra.mxu0 0.0
    %5385 = vmatprep.subr.mxu0 0.0
    %5386 = vmatpush2.msra.mxu0 0.0
    %5387 = vmatprep.mubr.f32.mxu0 0.0
    %5388 = vmatmul.mubr.f32.gmra.mxu0 %v5322
    %v5389 = vpop.f32.mrf.mxu0
    %v5390 = vadd.f32 %v152, %v5389
    %v5391 = vpop.f32.mrf.mxu0
    %5392 = vdwg.mxu0
    %v5393 = vmul.f32 %v5322, 0.08138021
    %v5394 = vadd.f32 %v5243, %v5393
    %v5395 = vmul.f32 %v4945, 0.36907482
    %v5396 = vadd.f32 %v4804, %v5395
    %v5397 = vmul.f32 %v5092, -1.4494742
    %v5398 = vadd.f32 %v5396, %v5397
    %v5399 = vmul.f32 %v5239, 1.2278616
    %v5400 = vadd.f32 %v5398, %v5399
    %v5401 = vmul.f32 %v5390, -0.036351167
    %v5402 = vadd.f32 %v5400, %v5401
    %v5403 = vadd.f32 %v5402, %v137
    %v5404 = vmax.f32 %v5403, 0.0
    %5405 = vmatprep.subr.mxu0 0.0
    %5406 = vmatpush1.msra.mxu0 %v250
    %5407 = vmatprep.subr.mxu0 0.0
    %5408 = vmatpush1.msra.mxu0 %v249
    %5409 = vmatprep.subr.mxu0 0.0
    %5410 = vmatpush1.msra.mxu0 %v248
    %5411 = vmatprep.subr.mxu0 0.0
    %5412 = vmatpush1.msra.mxu0 %v247
    %5413 = vmatprep.subr.mxu0 0.0
    %5414 = vmatpush1.msra.mxu0 %v246
    %5415 = vmatprep.subr.mxu0 0.0
    %5416 = vmatpush1.msra.mxu0 %v245
    %5417 = vmatprep.subr.mxu0 0.0
    %5418 = vmatpush1.msra.mxu0 %v244
    %5419 = vmatprep.subr.mxu0 0.0
    %5420 = vmatpush1.msra.mxu0 %v243
    %5421 = vmatprep.subr.mxu0 0.0
    %5422 = vmatpush1.msra.mxu0 %v242
    %5423 = vmatprep.subr.mxu0 0.0
    %5424 = vmatpush1.msra.mxu0 %v241
    %5425 = vmatprep.subr.mxu0 0.0
    %5426 = vmatpush1.msra.mxu0 %v240
    %5427 = vmatprep.subr.mxu0 0.0
    %5428 = vmatpush1.msra.mxu0 %v239
    %5429 = vmatprep.subr.mxu0 0.0
    %5430 = vmatpush1.msra.mxu0 %v238
    %5431 = vmatprep.subr.mxu0 0.0
    %5432 = vmatpush1.msra.mxu0 %v237
    %5433 = vmatprep.subr.mxu0 0.0
    %5434 = vmatpush1.msra.mxu0 %v236
    %5435 = vmatprep.subr.mxu0 0.0
    %5436 = vmatpush1.msra.mxu0 %v235
    %5437 = vmatprep.subr.mxu0 0.0
    %5438 = vmatpush2.msra.mxu0 0.0
    %5439 = vmatprep.subr.mxu0 0.0
    %5440 = vmatpush2.msra.mxu0 0.0
    %5441 = vmatprep.subr.mxu0 0.0
    %5442 = vmatpush2.msra.mxu0 0.0
    %5443 = vmatprep.subr.mxu0 0.0
    %5444 = vmatpush2.msra.mxu0 0.0
    %5445 = vmatprep.subr.mxu0 0.0
    %5446 = vmatpush2.msra.mxu0 0.0
    %5447 = vmatprep.subr.mxu0 0.0
    %5448 = vmatpush2.msra.mxu0 0.0
    %5449 = vmatprep.subr.mxu0 0.0
    %5450 = vmatpush2.msra.mxu0 0.0
    %5451 = vmatprep.subr.mxu0 0.0
    %5452 = vmatpush2.msra.mxu0 0.0
    %5453 = vmatprep.subr.mxu0 0.0
    %5454 = vmatpush2.msra.mxu0 0.0
    %5455 = vmatprep.subr.mxu0 0.0
    %5456 = vmatpush2.msra.mxu0 0.0
    %5457 = vmatprep.subr.mxu0 0.0
    %5458 = vmatpush2.msra.mxu0 0.0
    %5459 = vmatprep.subr.mxu0 0.0
    %5460 = vmatpush2.msra.mxu0 0.0
    %5461 = vmatprep.subr.mxu0 0.0
    %5462 = vmatpush2.msra.mxu0 0.0
    %5463 = vmatprep.subr.mxu0 0.0
    %5464 = vmatpush2.msra.mxu0 0.0
    %5465 = vmatprep.subr.mxu0 0.0
    %5466 = vmatpush2.msra.mxu0 0.0
    %5467 = vmatprep.subr.mxu0 0.0
    %5468 = vmatpush2.msra.mxu0 0.0
    %5469 = vmatprep.mubr.f32.mxu0 0.0
    %5470 = vmatmul.mubr.f32.gmra.mxu0 %v5404
    %v5471 = vpop.f32.mrf.mxu0
    %v5472 = vadd.f32 %v145, %v5471
    %v5473 = vpop.f32.mrf.mxu0
    %5474 = vdwg.mxu0
    %v5475 = vmax.f32 %v5472, 0.0
    %5476 = vmatprep.subr.mxu0 0.0
    %5477 = vmatpush1.msra.mxu0 %v337
    %5478 = vmatprep.subr.mxu0 0.0
    %5479 = vmatpush1.msra.mxu0 %v336
    %5480 = vmatprep.subr.mxu0 0.0
    %5481 = vmatpush1.msra.mxu0 %v335
    %5482 = vmatprep.subr.mxu0 0.0
    %5483 = vmatpush1.msra.mxu0 %v334
    %5484 = vmatprep.subr.mxu0 0.0
    %5485 = vmatpush1.msra.mxu0 %v333
    %5486 = vmatprep.subr.mxu0 0.0
    %5487 = vmatpush1.msra.mxu0 %v332
    %5488 = vmatprep.subr.mxu0 0.0
    %5489 = vmatpush1.msra.mxu0 %v331
    %5490 = vmatprep.subr.mxu0 0.0
    %5491 = vmatpush1.msra.mxu0 %v330
    %5492 = vmatprep.subr.mxu0 0.0
    %5493 = vmatpush1.msra.mxu0 %v329
    %5494 = vmatprep.subr.mxu0 0.0
    %5495 = vmatpush1.msra.mxu0 %v328
    %5496 = vmatprep.subr.mxu0 0.0
    %5497 = vmatpush1.msra.mxu0 %v327
    %5498 = vmatprep.subr.mxu0 0.0
    %5499 = vmatpush1.msra.mxu0 %v326
    %5500 = vmatprep.subr.mxu0 0.0
    %5501 = vmatpush1.msra.mxu0 %v325
    %5502 = vmatprep.subr.mxu0 0.0
    %5503 = vmatpush1.msra.mxu0 %v324
    %5504 = vmatprep.subr.mxu0 0.0
    %5505 = vmatpush1.msra.mxu0 %v323
    %5506 = vmatprep.subr.mxu0 0.0
    %5507 = vmatpush1.msra.mxu0 %v322
    %5508 = vmatprep.subr.mxu0 0.0
    %5509 = vmatpush2.msra.mxu0 0.0
    %5510 = vmatprep.subr.mxu0 0.0
    %5511 = vmatpush2.msra.mxu0 0.0
    %5512 = vmatprep.subr.mxu0 0.0
    %5513 = vmatpush2.msra.mxu0 0.0
    %5514 = vmatprep.subr.mxu0 0.0
    %5515 = vmatpush2.msra.mxu0 0.0
    %5516 = vmatprep.subr.mxu0 0.0
    %5517 = vmatpush2.msra.mxu0 0.0
    %5518 = vmatprep.subr.mxu0 0.0
    %5519 = vmatpush2.msra.mxu0 0.0
    %5520 = vmatprep.subr.mxu0 0.0
    %5521 = vmatpush2.msra.mxu0 0.0
    %5522 = vmatprep.subr.mxu0 0.0
    %5523 = vmatpush2.msra.mxu0 0.0
    %5524 = vmatprep.subr.mxu0 0.0
    %5525 = vmatpush2.msra.mxu0 0.0
    %5526 = vmatprep.subr.mxu0 0.0
    %5527 = vmatpush2.msra.mxu0 0.0
    %5528 = vmatprep.subr.mxu0 0.0
    %5529 = vmatpush2.msra.mxu0 0.0
    %5530 = vmatprep.subr.mxu0 0.0
    %5531 = vmatpush2.msra.mxu0 0.0
    %5532 = vmatprep.subr.mxu0 0.0
    %5533 = vmatpush2.msra.mxu0 0.0
    %5534 = vmatprep.subr.mxu0 0.0
    %5535 = vmatpush2.msra.mxu0 0.0
    %5536 = vmatprep.subr.mxu0 0.0
    %5537 = vmatpush2.msra.mxu0 0.0
    %5538 = vmatprep.subr.mxu0 0.0
    %5539 = vmatpush2.msra.mxu0 0.0
    %5540 = vmatprep.mubr.f32.mxu0 0.0
    %5541 = vmatmul.mubr.f32.gmra.mxu0 %v5475
    %v5542 = vpop.f32.mrf.mxu0
    %v5543 = vadd.f32 %v152, %v5542
    %v5544 = vpop.f32.mrf.mxu0
    %5545 = vdwg.mxu0
    %v5546 = vmul.f32 %v5475, -0.040297024
    %v5547 = vadd.f32 %v5394, %v5546
    %v5548 = vmul.f32 %v4945, 0.35578442
    %v5549 = vadd.f32 %v4804, %v5548
    %v5550 = vmul.f32 %v5092, -1.344697
    %v5551 = vadd.f32 %v5549, %v5550
    %v5552 = vmul.f32 %v5239, 1.1133028
    %v5553 = vadd.f32 %v5551, %v5552
    %v5554 = vmul.f32 %v5390, 0.034801137
    %v5555 = vadd.f32 %v5553, %v5554
    %v5556 = vmul.f32 %v5543, -0.034191415
    %v5557 = vadd.f32 %v5555, %v5556
    %v5558 = vadd.f32 %v5557, %v137
    %v5559 = vmax.f32 %v5558, 0.0
    %5560 = vmatprep.subr.mxu0 0.0
    %5561 = vmatpush1.msra.mxu0 %v250
    %5562 = vmatprep.subr.mxu0 0.0
    %5563 = vmatpush1.msra.mxu0 %v249
    %5564 = vmatprep.subr.mxu0 0.0
    %5565 = vmatpush1.msra.mxu0 %v248
    %5566 = vmatprep.subr.mxu0 0.0
    %5567 = vmatpush1.msra.mxu0 %v247
    %5568 = vmatprep.subr.mxu0 0.0
    %5569 = vmatpush1.msra.mxu0 %v246
    %5570 = vmatprep.subr.mxu0 0.0
    %5571 = vmatpush1.msra.mxu0 %v245
    %5572 = vmatprep.subr.mxu0 0.0
    %5573 = vmatpush1.msra.mxu0 %v244
    %5574 = vmatprep.subr.mxu0 0.0
    %5575 = vmatpush1.msra.mxu0 %v243
    %5576 = vmatprep.subr.mxu0 0.0
    %5577 = vmatpush1.msra.mxu0 %v242
    %5578 = vmatprep.subr.mxu0 0.0
    %5579 = vmatpush1.msra.mxu0 %v241
    %5580 = vmatprep.subr.mxu0 0.0
    %5581 = vmatpush1.msra.mxu0 %v240
    %5582 = vmatprep.subr.mxu0 0.0
    %5583 = vmatpush1.msra.mxu0 %v239
    %5584 = vmatprep.subr.mxu0 0.0
    %5585 = vmatpush1.msra.mxu0 %v238
    %5586 = vmatprep.subr.mxu0 0.0
    %5587 = vmatpush1.msra.mxu0 %v237
    %5588 = vmatprep.subr.mxu0 0.0
    %5589 = vmatpush1.msra.mxu0 %v236
    %5590 = vmatprep.subr.mxu0 0.0
    %5591 = vmatpush1.msra.mxu0 %v235
    %5592 = vmatprep.subr.mxu0 0.0
    %5593 = vmatpush2.msra.mxu0 0.0
    %5594 = vmatprep.subr.mxu0 0.0
    %5595 = vmatpush2.msra.mxu0 0.0
    %5596 = vmatprep.subr.mxu0 0.0
    %5597 = vmatpush2.msra.mxu0 0.0
    %5598 = vmatprep.subr.mxu0 0.0
    %5599 = vmatpush2.msra.mxu0 0.0
    %5600 = vmatprep.subr.mxu0 0.0
    %5601 = vmatpush2.msra.mxu0 0.0
    %5602 = vmatprep.subr.mxu0 0.0
    %5603 = vmatpush2.msra.mxu0 0.0
    %5604 = vmatprep.subr.mxu0 0.0
    %5605 = vmatpush2.msra.mxu0 0.0
    %5606 = vmatprep.subr.mxu0 0.0
    %5607 = vmatpush2.msra.mxu0 0.0
    %5608 = vmatprep.subr.mxu0 0.0
    %5609 = vmatpush2.msra.mxu0 0.0
    %5610 = vmatprep.subr.mxu0 0.0
    %5611 = vmatpush2.msra.mxu0 0.0
    %5612 = vmatprep.subr.mxu0 0.0
    %5613 = vmatpush2.msra.mxu0 0.0
    %5614 = vmatprep.subr.mxu0 0.0
    %5615 = vmatpush2.msra.mxu0 0.0
    %5616 = vmatprep.subr.mxu0 0.0
    %5617 = vmatpush2.msra.mxu0 0.0
    %5618 = vmatprep.subr.mxu0 0.0
    %5619 = vmatpush2.msra.mxu0 0.0
    %5620 = vmatprep.subr.mxu0 0.0
    %5621 = vmatpush2.msra.mxu0 0.0
    %5622 = vmatprep.subr.mxu0 0.0
    %5623 = vmatpush2.msra.mxu0 0.0
    %5624 = vmatprep.mubr.f32.mxu0 0.0
    %5625 = vmatmul.mubr.f32.gmra.mxu0 %v5559
    %v5626 = vpop.f32.mrf.mxu0
    %v5627 = vadd.f32 %v145, %v5626
    %v5628 = vpop.f32.mrf.mxu0
    %5629 = vdwg.mxu0
    %v5630 = vmax.f32 %v5627, 0.0
    %5631 = vmatprep.subr.mxu0 0.0
    %5632 = vmatpush1.msra.mxu0 %v337
    %5633 = vmatprep.subr.mxu0 0.0
    %5634 = vmatpush1.msra.mxu0 %v336
    %5635 = vmatprep.subr.mxu0 0.0
    %5636 = vmatpush1.msra.mxu0 %v335
    %5637 = vmatprep.subr.mxu0 0.0
    %5638 = vmatpush1.msra.mxu0 %v334
    %5639 = vmatprep.subr.mxu0 0.0
    %5640 = vmatpush1.msra.mxu0 %v333
    %5641 = vmatprep.subr.mxu0 0.0
    %5642 = vmatpush1.msra.mxu0 %v332
    %5643 = vmatprep.subr.mxu0 0.0
    %5644 = vmatpush1.msra.mxu0 %v331
    %5645 = vmatprep.subr.mxu0 0.0
    %5646 = vmatpush1.msra.mxu0 %v330
    %5647 = vmatprep.subr.mxu0 0.0
    %5648 = vmatpush1.msra.mxu0 %v329
    %5649 = vmatprep.subr.mxu0 0.0
    %5650 = vmatpush1.msra.mxu0 %v328
    %5651 = vmatprep.subr.mxu0 0.0
    %5652 = vmatpush1.msra.mxu0 %v327
    %5653 = vmatprep.subr.mxu0 0.0
    %5654 = vmatpush1.msra.mxu0 %v326
    %5655 = vmatprep.subr.mxu0 0.0
    %5656 = vmatpush1.msra.mxu0 %v325
    %5657 = vmatprep.subr.mxu0 0.0
    %5658 = vmatpush1.msra.mxu0 %v324
    %5659 = vmatprep.subr.mxu0 0.0
    %5660 = vmatpush1.msra.mxu0 %v323
    %5661 = vmatprep.subr.mxu0 0.0
    %5662 = vmatpush1.msra.mxu0 %v322
    %5663 = vmatprep.subr.mxu0 0.0
    %5664 = vmatpush2.msra.mxu0 0.0
    %5665 = vmatprep.subr.mxu0 0.0
    %5666 = vmatpush2.msra.mxu0 0.0
    %5667 = vmatprep.subr.mxu0 0.0
    %5668 = vmatpush2.msra.mxu0 0.0
    %5669 = vmatprep.subr.mxu0 0.0
    %5670 = vmatpush2.msra.mxu0 0.0
    %5671 = vmatprep.subr.mxu0 0.0
    %5672 = vmatpush2.msra.mxu0 0.0
    %5673 = vmatprep.subr.mxu0 0.0
    %5674 = vmatpush2.msra.mxu0 0.0
    %5675 = vmatprep.subr.mxu0 0.0
    %5676 = vmatpush2.msra.mxu0 0.0
    %5677 = vmatprep.subr.mxu0 0.0
    %5678 = vmatpush2.msra.mxu0 0.0
    %5679 = vmatprep.subr.mxu0 0.0
    %5680 = vmatpush2.msra.mxu0 0.0
    %5681 = vmatprep.subr.mxu0 0.0
    %5682 = vmatpush2.msra.mxu0 0.0
    %5683 = vmatprep.subr.mxu0 0.0
    %5684 = vmatpush2.msra.mxu0 0.0
    %5685 = vmatprep.subr.mxu0 0.0
    %5686 = vmatpush2.msra.mxu0 0.0
    %5687 = vmatprep.subr.mxu0 0.0
    %5688 = vmatpush2.msra.mxu0 0.0
    %5689 = vmatprep.subr.mxu0 0.0
    %5690 = vmatpush2.msra.mxu0 0.0
    %5691 = vmatprep.subr.mxu0 0.0
    %5692 = vmatpush2.msra.mxu0 0.0
    %5693 = vmatprep.subr.mxu0 0.0
    %5694 = vmatpush2.msra.mxu0 0.0
    %5695 = vmatprep.mubr.f32.mxu0 0.0
    %5696 = vmatmul.mubr.f32.gmra.mxu0 %v5630
    %v5697 = vpop.f32.mrf.mxu0
    %v5698 = vadd.f32 %v152, %v5697
    %v5699 = vpop.f32.mrf.mxu0
    %5700 = vdwg.mxu0
    %v5701 = vmul.f32 %v5630, 0.016369049
    %v5702 = vadd.f32 %v5547, %v5701
    %v5703 = vmul.f32 %v4945, 0.0113932295
    %v5704 = vadd.f32 %v4804, %v5703
    %v5705 = vmul.f32 %v5239, 0.056154538
    %v5706 = vadd.f32 %v5704, %v5705
    %v5707 = vmul.f32 %v5390, 0.08138021
    %v5708 = vadd.f32 %v5706, %v5707
    %v5709 = vmul.f32 %v5543, -0.040297024
    %v5710 = vadd.f32 %v5708, %v5709
    %v5711 = vmul.f32 %v5698, 0.016369049
    %v5712 = vadd.f32 %v5710, %v5711
    %v5713 = vadd.f32 %v5712, %v137
    %v5714 = vmax.f32 %v5713, 0.0
    %5715 = vmatprep.subr.mxu0 0.0
    %5716 = vmatpush1.msra.mxu0 %v250
    %5717 = vmatprep.subr.mxu0 0.0
    %5718 = vmatpush1.msra.mxu0 %v249
    %5719 = vmatprep.subr.mxu0 0.0
    %5720 = vmatpush1.msra.mxu0 %v248
    %5721 = vmatprep.subr.mxu0 0.0
    %5722 = vmatpush1.msra.mxu0 %v247
    %5723 = vmatprep.subr.mxu0 0.0
    %5724 = vmatpush1.msra.mxu0 %v246
    %5725 = vmatprep.subr.mxu0 0.0
    %5726 = vmatpush1.msra.mxu0 %v245
    %5727 = vmatprep.subr.mxu0 0.0
    %5728 = vmatpush1.msra.mxu0 %v244
    %5729 = vmatprep.subr.mxu0 0.0
    %5730 = vmatpush1.msra.mxu0 %v243
    %5731 = vmatprep.subr.mxu0 0.0
    %5732 = vmatpush1.msra.mxu0 %v242
    %5733 = vmatprep.subr.mxu0 0.0
    %5734 = vmatpush1.msra.mxu0 %v241
    %5735 = vmatprep.subr.mxu0 0.0
    %5736 = vmatpush1.msra.mxu0 %v240
    %5737 = vmatprep.subr.mxu0 0.0
    %5738 = vmatpush1.msra.mxu0 %v239
    %5739 = vmatprep.subr.mxu0 0.0
    %5740 = vmatpush1.msra.mxu0 %v238
    %5741 = vmatprep.subr.mxu0 0.0
    %5742 = vmatpush1.msra.mxu0 %v237
    %5743 = vmatprep.subr.mxu0 0.0
    %5744 = vmatpush1.msra.mxu0 %v236
    %5745 = vmatprep.subr.mxu0 0.0
    %5746 = vmatpush1.msra.mxu0 %v235
    %5747 = vmatprep.subr.mxu0 0.0
    %5748 = vmatpush2.msra.mxu0 0.0
    %5749 = vmatprep.subr.mxu0 0.0
    %5750 = vmatpush2.msra.mxu0 0.0
    %5751 = vmatprep.subr.mxu0 0.0
    %5752 = vmatpush2.msra.mxu0 0.0
    %5753 = vmatprep.subr.mxu0 0.0
    %5754 = vmatpush2.msra.mxu0 0.0
    %5755 = vmatprep.subr.mxu0 0.0
    %5756 = vmatpush2.msra.mxu0 0.0
    %5757 = vmatprep.subr.mxu0 0.0
    %5758 = vmatpush2.msra.mxu0 0.0
    %5759 = vmatprep.subr.mxu0 0.0
    %5760 = vmatpush2.msra.mxu0 0.0
    %5761 = vmatprep.subr.mxu0 0.0
    %5762 = vmatpush2.msra.mxu0 0.0
    %5763 = vmatprep.subr.mxu0 0.0
    %5764 = vmatpush2.msra.mxu0 0.0
    %5765 = vmatprep.subr.mxu0 0.0
    %5766 = vmatpush2.msra.mxu0 0.0
    %5767 = vmatprep.subr.mxu0 0.0
    %5768 = vmatpush2.msra.mxu0 0.0
    %5769 = vmatprep.subr.mxu0 0.0
    %5770 = vmatpush2.msra.mxu0 0.0
    %5771 = vmatprep.subr.mxu0 0.0
    %5772 = vmatpush2.msra.mxu0 0.0
    %5773 = vmatprep.subr.mxu0 0.0
    %5774 = vmatpush2.msra.mxu0 0.0
    %5775 = vmatprep.subr.mxu0 0.0
    %5776 = vmatpush2.msra.mxu0 0.0
    %5777 = vmatprep.subr.mxu0 0.0
    %5778 = vmatpush2.msra.mxu0 0.0
    %5779 = vmatprep.mubr.f32.mxu0 0.0
    %5780 = vmatmul.mubr.f32.gmra.mxu0 %v5714
    %v5781 = vpop.f32.mrf.mxu0
    %v5782 = vadd.f32 %v145, %v5781
    %v5783 = vpop.f32.mrf.mxu0
    %5784 = vdwg.mxu0
    %v5785 = vmax.f32 %v5782, 0.0
    %5786 = vmatprep.subr.mxu0 0.0
    %5787 = vmatpush1.msra.mxu0 %v337
    %5788 = vmatprep.subr.mxu0 0.0
    %5789 = vmatpush1.msra.mxu0 %v336
    %5790 = vmatprep.subr.mxu0 0.0
    %5791 = vmatpush1.msra.mxu0 %v335
    %5792 = vmatprep.subr.mxu0 0.0
    %5793 = vmatpush1.msra.mxu0 %v334
    %5794 = vmatprep.subr.mxu0 0.0
    %5795 = vmatpush1.msra.mxu0 %v333
    %5796 = vmatprep.subr.mxu0 0.0
    %5797 = vmatpush1.msra.mxu0 %v332
    %5798 = vmatprep.subr.mxu0 0.0
    %5799 = vmatpush1.msra.mxu0 %v331
    %5800 = vmatprep.subr.mxu0 0.0
    %5801 = vmatpush1.msra.mxu0 %v330
    %5802 = vmatprep.subr.mxu0 0.0
    %5803 = vmatpush1.msra.mxu0 %v329
    %5804 = vmatprep.subr.mxu0 0.0
    %5805 = vmatpush1.msra.mxu0 %v328
    %5806 = vmatprep.subr.mxu0 0.0
    %5807 = vmatpush1.msra.mxu0 %v327
    %5808 = vmatprep.subr.mxu0 0.0
    %5809 = vmatpush1.msra.mxu0 %v326
    %5810 = vmatprep.subr.mxu0 0.0
    %5811 = vmatpush1.msra.mxu0 %v325
    %5812 = vmatprep.subr.mxu0 0.0
    %5813 = vmatpush1.msra.mxu0 %v324
    %5814 = vmatprep.subr.mxu0 0.0
    %5815 = vmatpush1.msra.mxu0 %v323
    %5816 = vmatprep.subr.mxu0 0.0
    %5817 = vmatpush1.msra.mxu0 %v322
    %5818 = vmatprep.subr.mxu0 0.0
    %5819 = vmatpush2.msra.mxu0 0.0
    %5820 = vmatprep.subr.mxu0 0.0
    %5821 = vmatpush2.msra.mxu0 0.0
    %5822 = vmatprep.subr.mxu0 0.0
    %5823 = vmatpush2.msra.mxu0 0.0
    %5824 = vmatprep.subr.mxu0 0.0
    %5825 = vmatpush2.msra.mxu0 0.0
    %5826 = vmatprep.subr.mxu0 0.0
    %5827 = vmatpush2.msra.mxu0 0.0
    %5828 = vmatprep.subr.mxu0 0.0
    %5829 = vmatpush2.msra.mxu0 0.0
    %5830 = vmatprep.subr.mxu0 0.0
    %5831 = vmatpush2.msra.mxu0 0.0
    %5832 = vmatprep.subr.mxu0 0.0
    %5833 = vmatpush2.msra.mxu0 0.0
    %5834 = vmatprep.subr.mxu0 0.0
    %5835 = vmatpush2.msra.mxu0 0.0
    %5836 = vmatprep.subr.mxu0 0.0
    %5837 = vmatpush2.msra.mxu0 0.0
    %5838 = vmatprep.subr.mxu0 0.0
    %5839 = vmatpush2.msra.mxu0 0.0
    %5840 = vmatprep.subr.mxu0 0.0
    %5841 = vmatpush2.msra.mxu0 0.0
    %5842 = vmatprep.subr.mxu0 0.0
    %5843 = vmatpush2.msra.mxu0 0.0
    %5844 = vmatprep.subr.mxu0 0.0
    %5845 = vmatpush2.msra.mxu0 0.0
    %5846 = vmatprep.subr.mxu0 0.0
    %5847 = vmatpush2.msra.mxu0 0.0
    %5848 = vmatprep.subr.mxu0 0.0
    %5849 = vmatpush2.msra.mxu0 0.0
    %5850 = vmatprep.mubr.f32.mxu0 0.0
    %5851 = vmatmul.mubr.f32.gmra.mxu0 %v5785
    %v5852 = vpop.f32.mrf.mxu0
    %v5853 = vadd.f32 %v152, %v5852
    %v5854 = vpop.f32.mrf.mxu0
    %5855 = vdwg.mxu0
    %v5856 = vmul.f32 %v5785, 0.0113932295
    %v5857 = vadd.f32 %v5702, %v5856
    %v5858 = vmul.f32 %v5853, 0.025
    %v5859 = vadd.f32 %v5712, %v5858
    %v5860 = vadd.f32 %v5859, %v137
    %v5861 = vmax.f32 %v5860, 0.0
    %5862 = vmatprep.subr.mxu0 0.0
    %5863 = vmatpush1.msra.mxu0 %v250
    %5864 = vmatprep.subr.mxu0 0.0
    %5865 = vmatpush1.msra.mxu0 %v249
    %5866 = vmatprep.subr.mxu0 0.0
    %5867 = vmatpush1.msra.mxu0 %v248
    %5868 = vmatprep.subr.mxu0 0.0
    %5869 = vmatpush1.msra.mxu0 %v247
    %5870 = vmatprep.subr.mxu0 0.0
    %5871 = vmatpush1.msra.mxu0 %v246
    %5872 = vmatprep.subr.mxu0 0.0
    %5873 = vmatpush1.msra.mxu0 %v245
    %5874 = vmatprep.subr.mxu0 0.0
    %5875 = vmatpush1.msra.mxu0 %v244
    %5876 = vmatprep.subr.mxu0 0.0
    %5877 = vmatpush1.msra.mxu0 %v243
    %5878 = vmatprep.subr.mxu0 0.0
    %5879 = vmatpush1.msra.mxu0 %v242
    %5880 = vmatprep.subr.mxu0 0.0
    %5881 = vmatpush1.msra.mxu0 %v241
    %5882 = vmatprep.subr.mxu0 0.0
    %5883 = vmatpush1.msra.mxu0 %v240
    %5884 = vmatprep.subr.mxu0 0.0
    %5885 = vmatpush1.msra.mxu0 %v239
    %5886 = vmatprep.subr.mxu0 0.0
    %5887 = vmatpush1.msra.mxu0 %v238
    %5888 = vmatprep.subr.mxu0 0.0
    %5889 = vmatpush1.msra.mxu0 %v237
    %5890 = vmatprep.subr.mxu0 0.0
    %5891 = vmatpush1.msra.mxu0 %v236
    %5892 = vmatprep.subr.mxu0 0.0
    %5893 = vmatpush1.msra.mxu0 %v235
    %5894 = vmatprep.subr.mxu0 0.0
    %5895 = vmatpush2.msra.mxu0 0.0
    %5896 = vmatprep.subr.mxu0 0.0
    %5897 = vmatpush2.msra.mxu0 0.0
    %5898 = vmatprep.subr.mxu0 0.0
    %5899 = vmatpush2.msra.mxu0 0.0
    %5900 = vmatprep.subr.mxu0 0.0
    %5901 = vmatpush2.msra.mxu0 0.0
    %5902 = vmatprep.subr.mxu0 0.0
    %5903 = vmatpush2.msra.mxu0 0.0
    %5904 = vmatprep.subr.mxu0 0.0
    %5905 = vmatpush2.msra.mxu0 0.0
    %5906 = vmatprep.subr.mxu0 0.0
    %5907 = vmatpush2.msra.mxu0 0.0
    %5908 = vmatprep.subr.mxu0 0.0
    %5909 = vmatpush2.msra.mxu0 0.0
    %5910 = vmatprep.subr.mxu0 0.0
    %5911 = vmatpush2.msra.mxu0 0.0
    %5912 = vmatprep.subr.mxu0 0.0
    %5913 = vmatpush2.msra.mxu0 0.0
    %5914 = vmatprep.subr.mxu0 0.0
    %5915 = vmatpush2.msra.mxu0 0.0
    %5916 = vmatprep.subr.mxu0 0.0
    %5917 = vmatpush2.msra.mxu0 0.0
    %5918 = vmatprep.subr.mxu0 0.0
    %5919 = vmatpush2.msra.mxu0 0.0
    %5920 = vmatprep.subr.mxu0 0.0
    %5921 = vmatpush2.msra.mxu0 0.0
    %5922 = vmatprep.subr.mxu0 0.0
    %5923 = vmatpush2.msra.mxu0 0.0
    %5924 = vmatprep.subr.mxu0 0.0
    %5925 = vmatpush2.msra.mxu0 0.0
    %5926 = vmatprep.mubr.f32.mxu0 0.0
    %5927 = vmatmul.mubr.f32.gmra.mxu0 %v5861
    %v5928 = vpop.f32.mrf.mxu0
    %v5929 = vadd.f32 %v145, %v5928
    %v5930 = vpop.f32.mrf.mxu0
    %5931 = vdwg.mxu0
    %v5932 = vmax.f32 %v5929, 0.0
    %5933 = vmatprep.subr.mxu0 0.0
    %5934 = vmatpush1.msra.mxu0 %v337
    %5935 = vmatprep.subr.mxu0 0.0
    %5936 = vmatpush1.msra.mxu0 %v336
    %5937 = vmatprep.subr.mxu0 0.0
    %5938 = vmatpush1.msra.mxu0 %v335
    %5939 = vmatprep.subr.mxu0 0.0
    %5940 = vmatpush1.msra.mxu0 %v334
    %5941 = vmatprep.subr.mxu0 0.0
    %5942 = vmatpush1.msra.mxu0 %v333
    %5943 = vmatprep.subr.mxu0 0.0
    %5944 = vmatpush1.msra.mxu0 %v332
    %5945 = vmatprep.subr.mxu0 0.0
    %5946 = vmatpush1.msra.mxu0 %v331
    %5947 = vmatprep.subr.mxu0 0.0
    %5948 = vmatpush1.msra.mxu0 %v330
    %5949 = vmatprep.subr.mxu0 0.0
    %5950 = vmatpush1.msra.mxu0 %v329
    %5951 = vmatprep.subr.mxu0 0.0
    %5952 = vmatpush1.msra.mxu0 %v328
    %5953 = vmatprep.subr.mxu0 0.0
    %5954 = vmatpush1.msra.mxu0 %v327
    %5955 = vmatprep.subr.mxu0 0.0
    %5956 = vmatpush1.msra.mxu0 %v326
    %5957 = vmatprep.subr.mxu0 0.0
    %5958 = vmatpush1.msra.mxu0 %v325
    %5959 = vmatprep.subr.mxu0 0.0
    %5960 = vmatpush1.msra.mxu0 %v324
    %5961 = vmatprep.subr.mxu0 0.0
    %5962 = vmatpush1.msra.mxu0 %v323
    %5963 = vmatprep.subr.mxu0 0.0
    %5964 = vmatpush1.msra.mxu0 %v322
    %5965 = vmatprep.subr.mxu0 0.0
    %5966 = vmatpush2.msra.mxu0 0.0
    %5967 = vmatprep.subr.mxu0 0.0
    %5968 = vmatpush2.msra.mxu0 0.0
    %5969 = vmatprep.subr.mxu0 0.0
    %5970 = vmatpush2.msra.mxu0 0.0
    %5971 = vmatprep.subr.mxu0 0.0
    %5972 = vmatpush2.msra.mxu0 0.0
    %5973 = vmatprep.subr.mxu0 0.0
    %5974 = vmatpush2.msra.mxu0 0.0
    %5975 = vmatprep.subr.mxu0 0.0
    %5976 = vmatpush2.msra.mxu0 0.0
    %5977 = vmatprep.subr.mxu0 0.0
    %5978 = vmatpush2.msra.mxu0 0.0
    %5979 = vmatprep.subr.mxu0 0.0
    %5980 = vmatpush2.msra.mxu0 0.0
    %5981 = vmatprep.subr.mxu0 0.0
    %5982 = vmatpush2.msra.mxu0 0.0
    %5983 = vmatprep.subr.mxu0 0.0
    %5984 = vmatpush2.msra.mxu0 0.0
    %5985 = vmatprep.subr.mxu0 0.0
    %5986 = vmatpush2.msra.mxu0 0.0
    %5987 = vmatprep.subr.mxu0 0.0
    %5988 = vmatpush2.msra.mxu0 0.0
    %5989 = vmatprep.subr.mxu0 0.0
    %5990 = vmatpush2.msra.mxu0 0.0
    %5991 = vmatprep.subr.mxu0 0.0
    %5992 = vmatpush2.msra.mxu0 0.0
    %5993 = vmatprep.subr.mxu0 0.0
    %5994 = vmatpush2.msra.mxu0 0.0
    %5995 = vmatprep.subr.mxu0 0.0
    %5996 = vmatpush2.msra.mxu0 0.0
    %5997 = vmatprep.mubr.f32.mxu0 0.0
    %5998 = vmatmul.mubr.f32.gmra.mxu0 %v5932
    %v5999 = vpop.f32.mrf.mxu0
    %v6000 = vadd.f32 %v152, %v5999
    %v6001 = vpop.f32.mrf.mxu0
    %6002 = vdwg.mxu0
    %v6003 = vmul.f32 %v5853, 0.009375
    %v6004 = vadd.f32 %v5712, %v6003
    %v6005 = vmul.f32 %v6000, 0.028125
    %v6006 = vadd.f32 %v6004, %v6005
    %v6007 = vadd.f32 %v6006, %v137
    %v6008 = vmax.f32 %v6007, 0.0
    %6009 = vmatprep.subr.mxu0 0.0
    %6010 = vmatpush1.msra.mxu0 %v250
    %6011 = vmatprep.subr.mxu0 0.0
    %6012 = vmatpush1.msra.mxu0 %v249
    %6013 = vmatprep.subr.mxu0 0.0
    %6014 = vmatpush1.msra.mxu0 %v248
    %6015 = vmatprep.subr.mxu0 0.0
    %6016 = vmatpush1.msra.mxu0 %v247
    %6017 = vmatprep.subr.mxu0 0.0
    %6018 = vmatpush1.msra.mxu0 %v246
    %6019 = vmatprep.subr.mxu0 0.0
    %6020 = vmatpush1.msra.mxu0 %v245
    %6021 = vmatprep.subr.mxu0 0.0
    %6022 = vmatpush1.msra.mxu0 %v244
    %6023 = vmatprep.subr.mxu0 0.0
    %6024 = vmatpush1.msra.mxu0 %v243
    %6025 = vmatprep.subr.mxu0 0.0
    %6026 = vmatpush1.msra.mxu0 %v242
    %6027 = vmatprep.subr.mxu0 0.0
    %6028 = vmatpush1.msra.mxu0 %v241
    %6029 = vmatprep.subr.mxu0 0.0
    %6030 = vmatpush1.msra.mxu0 %v240
    %6031 = vmatprep.subr.mxu0 0.0
    %6032 = vmatpush1.msra.mxu0 %v239
    %6033 = vmatprep.subr.mxu0 0.0
    %6034 = vmatpush1.msra.mxu0 %v238
    %6035 = vmatprep.subr.mxu0 0.0
    %6036 = vmatpush1.msra.mxu0 %v237
    %6037 = vmatprep.subr.mxu0 0.0
    %6038 = vmatpush1.msra.mxu0 %v236
    %6039 = vmatprep.subr.mxu0 0.0
    %6040 = vmatpush1.msra.mxu0 %v235
    %6041 = vmatprep.subr.mxu0 0.0
    %6042 = vmatpush2.msra.mxu0 0.0
    %6043 = vmatprep.subr.mxu0 0.0
    %6044 = vmatpush2.msra.mxu0 0.0
    %6045 = vmatprep.subr.mxu0 0.0
    %6046 = vmatpush2.msra.mxu0 0.0
    %6047 = vmatprep.subr.mxu0 0.0
    %6048 = vmatpush2.msra.mxu0 0.0
    %6049 = vmatprep.subr.mxu0 0.0
    %6050 = vmatpush2.msra.mxu0 0.0
    %6051 = vmatprep.subr.mxu0 0.0
    %6052 = vmatpush2.msra.mxu0 0.0
    %6053 = vmatprep.subr.mxu0 0.0
    %6054 = vmatpush2.msra.mxu0 0.0
    %6055 = vmatprep.subr.mxu0 0.0
    %6056 = vmatpush2.msra.mxu0 0.0
    %6057 = vmatprep.subr.mxu0 0.0
    %6058 = vmatpush2.msra.mxu0 0.0
    %6059 = vmatprep.subr.mxu0 0.0
    %6060 = vmatpush2.msra.mxu0 0.0
    %6061 = vmatprep.subr.mxu0 0.0
    %6062 = vmatpush2.msra.mxu0 0.0
    %6063 = vmatprep.subr.mxu0 0.0
    %6064 = vmatpush2.msra.mxu0 0.0
    %6065 = vmatprep.subr.mxu0 0.0
    %6066 = vmatpush2.msra.mxu0 0.0
    %6067 = vmatprep.subr.mxu0 0.0
    %6068 = vmatpush2.msra.mxu0 0.0
    %6069 = vmatprep.subr.mxu0 0.0
    %6070 = vmatpush2.msra.mxu0 0.0
    %6071 = vmatprep.subr.mxu0 0.0
    %6072 = vmatpush2.msra.mxu0 0.0
    %6073 = vmatprep.mubr.f32.mxu0 0.0
    %6074 = vmatmul.mubr.f32.gmra.mxu0 %v6008
    %v6075 = vpop.f32.mrf.mxu0
    %v6076 = vadd.f32 %v145, %v6075
    %v6077 = vpop.f32.mrf.mxu0
    %6078 = vdwg.mxu0
    %v6079 = vmax.f32 %v6076, 0.0
    %6080 = vmatprep.subr.mxu0 0.0
    %6081 = vmatpush1.msra.mxu0 %v337
    %6082 = vmatprep.subr.mxu0 0.0
    %6083 = vmatpush1.msra.mxu0 %v336
    %6084 = vmatprep.subr.mxu0 0.0
    %6085 = vmatpush1.msra.mxu0 %v335
    %6086 = vmatprep.subr.mxu0 0.0
    %6087 = vmatpush1.msra.mxu0 %v334
    %6088 = vmatprep.subr.mxu0 0.0
    %6089 = vmatpush1.msra.mxu0 %v333
    %6090 = vmatprep.subr.mxu0 0.0
    %6091 = vmatpush1.msra.mxu0 %v332
    %6092 = vmatprep.subr.mxu0 0.0
    %6093 = vmatpush1.msra.mxu0 %v331
    %6094 = vmatprep.subr.mxu0 0.0
    %6095 = vmatpush1.msra.mxu0 %v330
    %6096 = vmatprep.subr.mxu0 0.0
    %6097 = vmatpush1.msra.mxu0 %v329
    %6098 = vmatprep.subr.mxu0 0.0
    %6099 = vmatpush1.msra.mxu0 %v328
    %6100 = vmatprep.subr.mxu0 0.0
    %6101 = vmatpush1.msra.mxu0 %v327
    %6102 = vmatprep.subr.mxu0 0.0
    %6103 = vmatpush1.msra.mxu0 %v326
    %6104 = vmatprep.subr.mxu0 0.0
    %6105 = vmatpush1.msra.mxu0 %v325
    %6106 = vmatprep.subr.mxu0 0.0
    %6107 = vmatpush1.msra.mxu0 %v324
    %6108 = vmatprep.subr.mxu0 0.0
    %6109 = vmatpush1.msra.mxu0 %v323
    %6110 = vmatprep.subr.mxu0 0.0
    %6111 = vmatpush1.msra.mxu0 %v322
    %6112 = vmatprep.subr.mxu0 0.0
    %6113 = vmatpush2.msra.mxu0 0.0
    %6114 = vmatprep.subr.mxu0 0.0
    %6115 = vmatpush2.msra.mxu0 0.0
    %6116 = vmatprep.subr.mxu0 0.0
    %6117 = vmatpush2.msra.mxu0 0.0
    %6118 = vmatprep.subr.mxu0 0.0
    %6119 = vmatpush2.msra.mxu0 0.0
    %6120 = vmatprep.subr.mxu0 0.0
    %6121 = vmatpush2.msra.mxu0 0.0
    %6122 = vmatprep.subr.mxu0 0.0
    %6123 = vmatpush2.msra.mxu0 0.0
    %6124 = vmatprep.subr.mxu0 0.0
    %6125 = vmatpush2.msra.mxu0 0.0
    %6126 = vmatprep.subr.mxu0 0.0
    %6127 = vmatpush2.msra.mxu0 0.0
    %6128 = vmatprep.subr.mxu0 0.0
    %6129 = vmatpush2.msra.mxu0 0.0
    %6130 = vmatprep.subr.mxu0 0.0
    %6131 = vmatpush2.msra.mxu0 0.0
    %6132 = vmatprep.subr.mxu0 0.0
    %6133 = vmatpush2.msra.mxu0 0.0
    %6134 = vmatprep.subr.mxu0 0.0
    %6135 = vmatpush2.msra.mxu0 0.0
    %6136 = vmatprep.subr.mxu0 0.0
    %6137 = vmatpush2.msra.mxu0 0.0
    %6138 = vmatprep.subr.mxu0 0.0
    %6139 = vmatpush2.msra.mxu0 0.0
    %6140 = vmatprep.subr.mxu0 0.0
    %6141 = vmatpush2.msra.mxu0 0.0
    %6142 = vmatprep.subr.mxu0 0.0
    %6143 = vmatpush2.msra.mxu0 0.0
    %6144 = vmatprep.mubr.f32.mxu0 0.0
    %6145 = vmatmul.mubr.f32.gmra.mxu0 %v6079
    %v6146 = vpop.f32.mrf.mxu0
    %v6147 = vadd.f32 %v152, %v6146
    %v6148 = vpop.f32.mrf.mxu0
    %6149 = vdwg.mxu0
    %v6150 = vmul.f32 %v6079, 0.056154538
    %v6151 = vadd.f32 %v5857, %v6150
    %v6152 = vmul.f32 %v5853, 0.12222222
    %v6153 = vadd.f32 %v5712, %v6152
    %v6154 = vmul.f32 %v6000, -0.46666667
    %v6155 = vadd.f32 %v6153, %v6154
    %v6156 = vmul.f32 %v6147, 0.44444445
    %v6157 = vadd.f32 %v6155, %v6156
    %v6158 = vadd.f32 %v6157, %v137
    %v6159 = vmax.f32 %v6158, 0.0
    %6160 = vmatprep.subr.mxu0 0.0
    %6161 = vmatpush1.msra.mxu0 %v250
    %6162 = vmatprep.subr.mxu0 0.0
    %6163 = vmatpush1.msra.mxu0 %v249
    %6164 = vmatprep.subr.mxu0 0.0
    %6165 = vmatpush1.msra.mxu0 %v248
    %6166 = vmatprep.subr.mxu0 0.0
    %6167 = vmatpush1.msra.mxu0 %v247
    %6168 = vmatprep.subr.mxu0 0.0
    %6169 = vmatpush1.msra.mxu0 %v246
    %6170 = vmatprep.subr.mxu0 0.0
    %6171 = vmatpush1.msra.mxu0 %v245
    %6172 = vmatprep.subr.mxu0 0.0
    %6173 = vmatpush1.msra.mxu0 %v244
    %6174 = vmatprep.subr.mxu0 0.0
    %6175 = vmatpush1.msra.mxu0 %v243
    %6176 = vmatprep.subr.mxu0 0.0
    %6177 = vmatpush1.msra.mxu0 %v242
    %6178 = vmatprep.subr.mxu0 0.0
    %6179 = vmatpush1.msra.mxu0 %v241
    %6180 = vmatprep.subr.mxu0 0.0
    %6181 = vmatpush1.msra.mxu0 %v240
    %6182 = vmatprep.subr.mxu0 0.0
    %6183 = vmatpush1.msra.mxu0 %v239
    %6184 = vmatprep.subr.mxu0 0.0
    %6185 = vmatpush1.msra.mxu0 %v238
    %6186 = vmatprep.subr.mxu0 0.0
    %6187 = vmatpush1.msra.mxu0 %v237
    %6188 = vmatprep.subr.mxu0 0.0
    %6189 = vmatpush1.msra.mxu0 %v236
    %6190 = vmatprep.subr.mxu0 0.0
    %6191 = vmatpush1.msra.mxu0 %v235
    %6192 = vmatprep.subr.mxu0 0.0
    %6193 = vmatpush2.msra.mxu0 0.0
    %6194 = vmatprep.subr.mxu0 0.0
    %6195 = vmatpush2.msra.mxu0 0.0
    %6196 = vmatprep.subr.mxu0 0.0
    %6197 = vmatpush2.msra.mxu0 0.0
    %6198 = vmatprep.subr.mxu0 0.0
    %6199 = vmatpush2.msra.mxu0 0.0
    %6200 = vmatprep.subr.mxu0 0.0
    %6201 = vmatpush2.msra.mxu0 0.0
    %6202 = vmatprep.subr.mxu0 0.0
    %6203 = vmatpush2.msra.mxu0 0.0
    %6204 = vmatprep.subr.mxu0 0.0
    %6205 = vmatpush2.msra.mxu0 0.0
    %6206 = vmatprep.subr.mxu0 0.0
    %6207 = vmatpush2.msra.mxu0 0.0
    %6208 = vmatprep.subr.mxu0 0.0
    %6209 = vmatpush2.msra.mxu0 0.0
    %6210 = vmatprep.subr.mxu0 0.0
    %6211 = vmatpush2.msra.mxu0 0.0
    %6212 = vmatprep.subr.mxu0 0.0
    %6213 = vmatpush2.msra.mxu0 0.0
    %6214 = vmatprep.subr.mxu0 0.0
    %6215 = vmatpush2.msra.mxu0 0.0
    %6216 = vmatprep.subr.mxu0 0.0
    %6217 = vmatpush2.msra.mxu0 0.0
    %6218 = vmatprep.subr.mxu0 0.0
    %6219 = vmatpush2.msra.mxu0 0.0
    %6220 = vmatprep.subr.mxu0 0.0
    %6221 = vmatpush2.msra.mxu0 0.0
    %6222 = vmatprep.subr.mxu0 0.0
    %6223 = vmatpush2.msra.mxu0 0.0
    %6224 = vmatprep.mubr.f32.mxu0 0.0
    %6225 = vmatmul.mubr.f32.gmra.mxu0 %v6159
    %v6226 = vpop.f32.mrf.mxu0
    %v6227 = vadd.f32 %v145, %v6226
    %v6228 = vpop.f32.mrf.mxu0
    %6229 = vdwg.mxu0
    %v6230 = vmax.f32 %v6227, 0.0
    %6231 = vmatprep.subr.mxu0 0.0
    %6232 = vmatpush1.msra.mxu0 %v337
    %6233 = vmatprep.subr.mxu0 0.0
    %6234 = vmatpush1.msra.mxu0 %v336
    %6235 = vmatprep.subr.mxu0 0.0
    %6236 = vmatpush1.msra.mxu0 %v335
    %6237 = vmatprep.subr.mxu0 0.0
    %6238 = vmatpush1.msra.mxu0 %v334
    %6239 = vmatprep.subr.mxu0 0.0
    %6240 = vmatpush1.msra.mxu0 %v333
    %6241 = vmatprep.subr.mxu0 0.0
    %6242 = vmatpush1.msra.mxu0 %v332
    %6243 = vmatprep.subr.mxu0 0.0
    %6244 = vmatpush1.msra.mxu0 %v331
    %6245 = vmatprep.subr.mxu0 0.0
    %6246 = vmatpush1.msra.mxu0 %v330
    %6247 = vmatprep.subr.mxu0 0.0
    %6248 = vmatpush1.msra.mxu0 %v329
    %6249 = vmatprep.subr.mxu0 0.0
    %6250 = vmatpush1.msra.mxu0 %v328
    %6251 = vmatprep.subr.mxu0 0.0
    %6252 = vmatpush1.msra.mxu0 %v327
    %6253 = vmatprep.subr.mxu0 0.0
    %6254 = vmatpush1.msra.mxu0 %v326
    %6255 = vmatprep.subr.mxu0 0.0
    %6256 = vmatpush1.msra.mxu0 %v325
    %6257 = vmatprep.subr.mxu0 0.0
    %6258 = vmatpush1.msra.mxu0 %v324
    %6259 = vmatprep.subr.mxu0 0.0
    %6260 = vmatpush1.msra.mxu0 %v323
    %6261 = vmatprep.subr.mxu0 0.0
    %6262 = vmatpush1.msra.mxu0 %v322
    %6263 = vmatprep.subr.mxu0 0.0
    %6264 = vmatpush2.msra.mxu0 0.0
    %6265 = vmatprep.subr.mxu0 0.0
    %6266 = vmatpush2.msra.mxu0 0.0
    %6267 = vmatprep.subr.mxu0 0.0
    %6268 = vmatpush2.msra.mxu0 0.0
    %6269 = vmatprep.subr.mxu0 0.0
    %6270 = vmatpush2.msra.mxu0 0.0
    %6271 = vmatprep.subr.mxu0 0.0
    %6272 = vmatpush2.msra.mxu0 0.0
    %6273 = vmatprep.subr.mxu0 0.0
    %6274 = vmatpush2.msra.mxu0 0.0
    %6275 = vmatprep.subr.mxu0 0.0
    %6276 = vmatpush2.msra.mxu0 0.0
    %6277 = vmatprep.subr.mxu0 0.0
    %6278 = vmatpush2.msra.mxu0 0.0
    %6279 = vmatprep.subr.mxu0 0.0
    %6280 = vmatpush2.msra.mxu0 0.0
    %6281 = vmatprep.subr.mxu0 0.0
    %6282 = vmatpush2.msra.mxu0 0.0
    %6283 = vmatprep.subr.mxu0 0.0
    %6284 = vmatpush2.msra.mxu0 0.0
    %6285 = vmatprep.subr.mxu0 0.0
    %6286 = vmatpush2.msra.mxu0 0.0
    %6287 = vmatprep.subr.mxu0 0.0
    %6288 = vmatpush2.msra.mxu0 0.0
    %6289 = vmatprep.subr.mxu0 0.0
    %6290 = vmatpush2.msra.mxu0 0.0
    %6291 = vmatprep.subr.mxu0 0.0
    %6292 = vmatpush2.msra.mxu0 0.0
    %6293 = vmatprep.subr.mxu0 0.0
    %6294 = vmatpush2.msra.mxu0 0.0
    %6295 = vmatprep.mubr.f32.mxu0 0.0
    %6296 = vmatmul.mubr.f32.gmra.mxu0 %v6230
    %v6297 = vpop.f32.mrf.mxu0
    %v6298 = vadd.f32 %v152, %v6297
    %v6299 = vpop.f32.mrf.mxu0
    %6300 = vdwg.mxu0
    %v6301 = vmul.f32 %v6230, 0.08138021
    %v6302 = vadd.f32 %v6151, %v6301
    %v6303 = vmul.f32 %v5853, 0.36907482
    %v6304 = vadd.f32 %v5712, %v6303
    %v6305 = vmul.f32 %v6000, -1.4494742
    %v6306 = vadd.f32 %v6304, %v6305
    %v6307 = vmul.f32 %v6147, 1.2278616
    %v6308 = vadd.f32 %v6306, %v6307
    %v6309 = vmul.f32 %v6298, -0.036351167
    %v6310 = vadd.f32 %v6308, %v6309
    %v6311 = vadd.f32 %v6310, %v137
    %v6312 = vmax.f32 %v6311, 0.0
    %6313 = vmatprep.subr.mxu0 0.0
    %6314 = vmatpush1.msra.mxu0 %v250
    %6315 = vmatprep.subr.mxu0 0.0
    %6316 = vmatpush1.msra.mxu0 %v249
    %6317 = vmatprep.subr.mxu0 0.0
    %6318 = vmatpush1.msra.mxu0 %v248
    %6319 = vmatprep.subr.mxu0 0.0
    %6320 = vmatpush1.msra.mxu0 %v247
    %6321 = vmatprep.subr.mxu0 0.0
    %6322 = vmatpush1.msra.mxu0 %v246
    %6323 = vmatprep.subr.mxu0 0.0
    %6324 = vmatpush1.msra.mxu0 %v245
    %6325 = vmatprep.subr.mxu0 0.0
    %6326 = vmatpush1.msra.mxu0 %v244
    %6327 = vmatprep.subr.mxu0 0.0
    %6328 = vmatpush1.msra.mxu0 %v243
    %6329 = vmatprep.subr.mxu0 0.0
    %6330 = vmatpush1.msra.mxu0 %v242
    %6331 = vmatprep.subr.mxu0 0.0
    %6332 = vmatpush1.msra.mxu0 %v241
    %6333 = vmatprep.subr.mxu0 0.0
    %6334 = vmatpush1.msra.mxu0 %v240
    %6335 = vmatprep.subr.mxu0 0.0
    %6336 = vmatpush1.msra.mxu0 %v239
    %6337 = vmatprep.subr.mxu0 0.0
    %6338 = vmatpush1.msra.mxu0 %v238
    %6339 = vmatprep.subr.mxu0 0.0
    %6340 = vmatpush1.msra.mxu0 %v237
    %6341 = vmatprep.subr.mxu0 0.0
    %6342 = vmatpush1.msra.mxu0 %v236
    %6343 = vmatprep.subr.mxu0 0.0
    %6344 = vmatpush1.msra.mxu0 %v235
    %6345 = vmatprep.subr.mxu0 0.0
    %6346 = vmatpush2.msra.mxu0 0.0
    %6347 = vmatprep.subr.mxu0 0.0
    %6348 = vmatpush2.msra.mxu0 0.0
    %6349 = vmatprep.subr.mxu0 0.0
    %6350 = vmatpush2.msra.mxu0 0.0
    %6351 = vmatprep.subr.mxu0 0.0
    %6352 = vmatpush2.msra.mxu0 0.0
    %6353 = vmatprep.subr.mxu0 0.0
    %6354 = vmatpush2.msra.mxu0 0.0
    %6355 = vmatprep.subr.mxu0 0.0
    %6356 = vmatpush2.msra.mxu0 0.0
    %6357 = vmatprep.subr.mxu0 0.0
    %6358 = vmatpush2.msra.mxu0 0.0
    %6359 = vmatprep.subr.mxu0 0.0
    %6360 = vmatpush2.msra.mxu0 0.0
    %6361 = vmatprep.subr.mxu0 0.0
    %6362 = vmatpush2.msra.mxu0 0.0
    %6363 = vmatprep.subr.mxu0 0.0
    %6364 = vmatpush2.msra.mxu0 0.0
    %6365 = vmatprep.subr.mxu0 0.0
    %6366 = vmatpush2.msra.mxu0 0.0
    %6367 = vmatprep.subr.mxu0 0.0
    %6368 = vmatpush2.msra.mxu0 0.0
    %6369 = vmatprep.subr.mxu0 0.0
    %6370 = vmatpush2.msra.mxu0 0.0
    %6371 = vmatprep.subr.mxu0 0.0
    %6372 = vmatpush2.msra.mxu0 0.0
    %6373 = vmatprep.subr.mxu0 0.0
    %6374 = vmatpush2.msra.mxu0 0.0
    %6375 = vmatprep.subr.mxu0 0.0
    %6376 = vmatpush2.msra.mxu0 0.0
    %6377 = vmatprep.mubr.f32.mxu0 0.0
    %6378 = vmatmul.mubr.f32.gmra.mxu0 %v6312
    %v6379 = vpop.f32.mrf.mxu0
    %v6380 = vadd.f32 %v145, %v6379
    %v6381 = vpop.f32.mrf.mxu0
    %6382 = vdwg.mxu0
    %v6383 = vmax.f32 %v6380, 0.0
    %6384 = vmatprep.subr.mxu0 0.0
    %6385 = vmatpush1.msra.mxu0 %v337
    %6386 = vmatprep.subr.mxu0 0.0
    %6387 = vmatpush1.msra.mxu0 %v336
    %6388 = vmatprep.subr.mxu0 0.0
    %6389 = vmatpush1.msra.mxu0 %v335
    %6390 = vmatprep.subr.mxu0 0.0
    %6391 = vmatpush1.msra.mxu0 %v334
    %6392 = vmatprep.subr.mxu0 0.0
    %6393 = vmatpush1.msra.mxu0 %v333
    %6394 = vmatprep.subr.mxu0 0.0
    %6395 = vmatpush1.msra.mxu0 %v332
    %6396 = vmatprep.subr.mxu0 0.0
    %6397 = vmatpush1.msra.mxu0 %v331
    %6398 = vmatprep.subr.mxu0 0.0
    %6399 = vmatpush1.msra.mxu0 %v330
    %6400 = vmatprep.subr.mxu0 0.0
    %6401 = vmatpush1.msra.mxu0 %v329
    %6402 = vmatprep.subr.mxu0 0.0
    %6403 = vmatpush1.msra.mxu0 %v328
    %6404 = vmatprep.subr.mxu0 0.0
    %6405 = vmatpush1.msra.mxu0 %v327
    %6406 = vmatprep.subr.mxu0 0.0
    %6407 = vmatpush1.msra.mxu0 %v326
    %6408 = vmatprep.subr.mxu0 0.0
    %6409 = vmatpush1.msra.mxu0 %v325
    %6410 = vmatprep.subr.mxu0 0.0
    %6411 = vmatpush1.msra.mxu0 %v324
    %6412 = vmatprep.subr.mxu0 0.0
    %6413 = vmatpush1.msra.mxu0 %v323
    %6414 = vmatprep.subr.mxu0 0.0
    %6415 = vmatpush1.msra.mxu0 %v322
    %6416 = vmatprep.subr.mxu0 0.0
    %6417 = vmatpush2.msra.mxu0 0.0
    %6418 = vmatprep.subr.mxu0 0.0
    %6419 = vmatpush2.msra.mxu0 0.0
    %6420 = vmatprep.subr.mxu0 0.0
    %6421 = vmatpush2.msra.mxu0 0.0
    %6422 = vmatprep.subr.mxu0 0.0
    %6423 = vmatpush2.msra.mxu0 0.0
    %6424 = vmatprep.subr.mxu0 0.0
    %6425 = vmatpush2.msra.mxu0 0.0
    %6426 = vmatprep.subr.mxu0 0.0
    %6427 = vmatpush2.msra.mxu0 0.0
    %6428 = vmatprep.subr.mxu0 0.0
    %6429 = vmatpush2.msra.mxu0 0.0
    %6430 = vmatprep.subr.mxu0 0.0
    %6431 = vmatpush2.msra.mxu0 0.0
    %6432 = vmatprep.subr.mxu0 0.0
    %6433 = vmatpush2.msra.mxu0 0.0
    %6434 = vmatprep.subr.mxu0 0.0
    %6435 = vmatpush2.msra.mxu0 0.0
    %6436 = vmatprep.subr.mxu0 0.0
    %6437 = vmatpush2.msra.mxu0 0.0
    %6438 = vmatprep.subr.mxu0 0.0
    %6439 = vmatpush2.msra.mxu0 0.0
    %6440 = vmatprep.subr.mxu0 0.0
    %6441 = vmatpush2.msra.mxu0 0.0
    %6442 = vmatprep.subr.mxu0 0.0
    %6443 = vmatpush2.msra.mxu0 0.0
    %6444 = vmatprep.subr.mxu0 0.0
    %6445 = vmatpush2.msra.mxu0 0.0
    %6446 = vmatprep.subr.mxu0 0.0
    %6447 = vmatpush2.msra.mxu0 0.0
    %6448 = vmatprep.mubr.f32.mxu0 0.0
    %6449 = vmatmul.mubr.f32.gmra.mxu0 %v6383
    %v6450 = vpop.f32.mrf.mxu0
    %v6451 = vadd.f32 %v152, %v6450
    %v6452 = vpop.f32.mrf.mxu0
    %6453 = vdwg.mxu0
    %v6454 = vmul.f32 %v6383, -0.040297024
    %v6455 = vadd.f32 %v6302, %v6454
    %v6456 = vmul.f32 %v5853, 0.35578442
    %v6457 = vadd.f32 %v5712, %v6456
    %v6458 = vmul.f32 %v6000, -1.344697
    %v6459 = vadd.f32 %v6457, %v6458
    %v6460 = vmul.f32 %v6147, 1.1133028
    %v6461 = vadd.f32 %v6459, %v6460
    %v6462 = vmul.f32 %v6298, 0.034801137
    %v6463 = vadd.f32 %v6461, %v6462
    %v6464 = vmul.f32 %v6451, -0.034191415
    %v6465 = vadd.f32 %v6463, %v6464
    %v6466 = vadd.f32 %v6465, %v137
    %v6467 = vmax.f32 %v6466, 0.0
    %6468 = vmatprep.subr.mxu0 0.0
    %6469 = vmatpush1.msra.mxu0 %v250
    %6470 = vmatprep.subr.mxu0 0.0
    %6471 = vmatpush1.msra.mxu0 %v249
    %6472 = vmatprep.subr.mxu0 0.0
    %6473 = vmatpush1.msra.mxu0 %v248
    %6474 = vmatprep.subr.mxu0 0.0
    %6475 = vmatpush1.msra.mxu0 %v247
    %6476 = vmatprep.subr.mxu0 0.0
    %6477 = vmatpush1.msra.mxu0 %v246
    %6478 = vmatprep.subr.mxu0 0.0
    %6479 = vmatpush1.msra.mxu0 %v245
    %6480 = vmatprep.subr.mxu0 0.0
    %6481 = vmatpush1.msra.mxu0 %v244
    %6482 = vmatprep.subr.mxu0 0.0
    %6483 = vmatpush1.msra.mxu0 %v243
    %6484 = vmatprep.subr.mxu0 0.0
    %6485 = vmatpush1.msra.mxu0 %v242
    %6486 = vmatprep.subr.mxu0 0.0
    %6487 = vmatpush1.msra.mxu0 %v241
    %6488 = vmatprep.subr.mxu0 0.0
    %6489 = vmatpush1.msra.mxu0 %v240
    %6490 = vmatprep.subr.mxu0 0.0
    %6491 = vmatpush1.msra.mxu0 %v239
    %6492 = vmatprep.subr.mxu0 0.0
    %6493 = vmatpush1.msra.mxu0 %v238
    %6494 = vmatprep.subr.mxu0 0.0
    %6495 = vmatpush1.msra.mxu0 %v237
    %6496 = vmatprep.subr.mxu0 0.0
    %6497 = vmatpush1.msra.mxu0 %v236
    %6498 = vmatprep.subr.mxu0 0.0
    %6499 = vmatpush1.msra.mxu0 %v235
    %6500 = vmatprep.subr.mxu0 0.0
    %6501 = vmatpush2.msra.mxu0 0.0
    %6502 = vmatprep.subr.mxu0 0.0
    %6503 = vmatpush2.msra.mxu0 0.0
    %6504 = vmatprep.subr.mxu0 0.0
    %6505 = vmatpush2.msra.mxu0 0.0
    %6506 = vmatprep.subr.mxu0 0.0
    %6507 = vmatpush2.msra.mxu0 0.0
    %6508 = vmatprep.subr.mxu0 0.0
    %6509 = vmatpush2.msra.mxu0 0.0
    %6510 = vmatprep.subr.mxu0 0.0
    %6511 = vmatpush2.msra.mxu0 0.0
    %6512 = vmatprep.subr.mxu0 0.0
    %6513 = vmatpush2.msra.mxu0 0.0
    %6514 = vmatprep.subr.mxu0 0.0
    %6515 = vmatpush2.msra.mxu0 0.0
    %6516 = vmatprep.subr.mxu0 0.0
    %6517 = vmatpush2.msra.mxu0 0.0
    %6518 = vmatprep.subr.mxu0 0.0
    %6519 = vmatpush2.msra.mxu0 0.0
    %6520 = vmatprep.subr.mxu0 0.0
    %6521 = vmatpush2.msra.mxu0 0.0
    %6522 = vmatprep.subr.mxu0 0.0
    %6523 = vmatpush2.msra.mxu0 0.0
    %6524 = vmatprep.subr.mxu0 0.0
    %6525 = vmatpush2.msra.mxu0 0.0
    %6526 = vmatprep.subr.mxu0 0.0
    %6527 = vmatpush2.msra.mxu0 0.0
    %6528 = vmatprep.subr.mxu0 0.0
    %6529 = vmatpush2.msra.mxu0 0.0
    %6530 = vmatprep.subr.mxu0 0.0
    %6531 = vmatpush2.msra.mxu0 0.0
    %6532 = vmatprep.mubr.f32.mxu0 0.0
    %6533 = vmatmul.mubr.f32.gmra.mxu0 %v6467
    %v6534 = vpop.f32.mrf.mxu0
    %v6535 = vadd.f32 %v145, %v6534
    %v6536 = vpop.f32.mrf.mxu0
    %6537 = vdwg.mxu0
    %v6538 = vmax.f32 %v6535, 0.0
    %6539 = vmatprep.subr.mxu0 0.0
    %6540 = vmatpush1.msra.mxu0 %v337
    %6541 = vmatprep.subr.mxu0 0.0
    %6542 = vmatpush1.msra.mxu0 %v336
    %6543 = vmatprep.subr.mxu0 0.0
    %6544 = vmatpush1.msra.mxu0 %v335
    %6545 = vmatprep.subr.mxu0 0.0
    %6546 = vmatpush1.msra.mxu0 %v334
    %6547 = vmatprep.subr.mxu0 0.0
    %6548 = vmatpush1.msra.mxu0 %v333
    %6549 = vmatprep.subr.mxu0 0.0
    %6550 = vmatpush1.msra.mxu0 %v332
    %6551 = vmatprep.subr.mxu0 0.0
    %6552 = vmatpush1.msra.mxu0 %v331
    %6553 = vmatprep.subr.mxu0 0.0
    %6554 = vmatpush1.msra.mxu0 %v330
    %6555 = vmatprep.subr.mxu0 0.0
    %6556 = vmatpush1.msra.mxu0 %v329
    %6557 = vmatprep.subr.mxu0 0.0
    %6558 = vmatpush1.msra.mxu0 %v328
    %6559 = vmatprep.subr.mxu0 0.0
    %6560 = vmatpush1.msra.mxu0 %v327
    %6561 = vmatprep.subr.mxu0 0.0
    %6562 = vmatpush1.msra.mxu0 %v326
    %6563 = vmatprep.subr.mxu0 0.0
    %6564 = vmatpush1.msra.mxu0 %v325
    %6565 = vmatprep.subr.mxu0 0.0
    %6566 = vmatpush1.msra.mxu0 %v324
    %6567 = vmatprep.subr.mxu0 0.0
    %6568 = vmatpush1.msra.mxu0 %v323
    %6569 = vmatprep.subr.mxu0 0.0
    %6570 = vmatpush1.msra.mxu0 %v322
    %6571 = vmatprep.subr.mxu0 0.0
    %6572 = vmatpush2.msra.mxu0 0.0
    %6573 = vmatprep.subr.mxu0 0.0
    %6574 = vmatpush2.msra.mxu0 0.0
    %6575 = vmatprep.subr.mxu0 0.0
    %6576 = vmatpush2.msra.mxu0 0.0
    %6577 = vmatprep.subr.mxu0 0.0
    %6578 = vmatpush2.msra.mxu0 0.0
    %6579 = vmatprep.subr.mxu0 0.0
    %6580 = vmatpush2.msra.mxu0 0.0
    %6581 = vmatprep.subr.mxu0 0.0
    %6582 = vmatpush2.msra.mxu0 0.0
    %6583 = vmatprep.subr.mxu0 0.0
    %6584 = vmatpush2.msra.mxu0 0.0
    %6585 = vmatprep.subr.mxu0 0.0
    %6586 = vmatpush2.msra.mxu0 0.0
    %6587 = vmatprep.subr.mxu0 0.0
    %6588 = vmatpush2.msra.mxu0 0.0
    %6589 = vmatprep.subr.mxu0 0.0
    %6590 = vmatpush2.msra.mxu0 0.0
    %6591 = vmatprep.subr.mxu0 0.0
    %6592 = vmatpush2.msra.mxu0 0.0
    %6593 = vmatprep.subr.mxu0 0.0
    %6594 = vmatpush2.msra.mxu0 0.0
    %6595 = vmatprep.subr.mxu0 0.0
    %6596 = vmatpush2.msra.mxu0 0.0
    %6597 = vmatprep.subr.mxu0 0.0
    %6598 = vmatpush2.msra.mxu0 0.0
    %6599 = vmatprep.subr.mxu0 0.0
    %6600 = vmatpush2.msra.mxu0 0.0
    %6601 = vmatprep.subr.mxu0 0.0
    %6602 = vmatpush2.msra.mxu0 0.0
    %6603 = vmatprep.mubr.f32.mxu0 0.0
    %6604 = vmatmul.mubr.f32.gmra.mxu0 %v6538
    %v6605 = vpop.f32.mrf.mxu0
    %v6606 = vadd.f32 %v152, %v6605
    %v6607 = vpop.f32.mrf.mxu0
    %6608 = vdwg.mxu0
    %v6609 = vmul.f32 %v6538, 0.016369049
    %v6610 = vadd.f32 %v6455, %v6609
    %v6611 = vmul.f32 %v5853, 0.0113932295
    %v6612 = vadd.f32 %v5712, %v6611
    %v6613 = vmul.f32 %v6147, 0.056154538
    %v6614 = vadd.f32 %v6612, %v6613
    %v6615 = vmul.f32 %v6298, 0.08138021
    %v6616 = vadd.f32 %v6614, %v6615
    %v6617 = vmul.f32 %v6451, -0.040297024
    %v6618 = vadd.f32 %v6616, %v6617
    %v6619 = vmul.f32 %v6606, 0.016369049
    %v6620 = vadd.f32 %v6618, %v6619
    %v6621 = vadd.f32 %v6620, %v137
    %v6622 = vmax.f32 %v6621, 0.0
    %6623 = vmatprep.subr.mxu0 0.0
    %6624 = vmatpush1.msra.mxu0 %v250
    %6625 = vmatprep.subr.mxu0 0.0
    %6626 = vmatpush1.msra.mxu0 %v249
    %6627 = vmatprep.subr.mxu0 0.0
    %6628 = vmatpush1.msra.mxu0 %v248
    %6629 = vmatprep.subr.mxu0 0.0
    %6630 = vmatpush1.msra.mxu0 %v247
    %6631 = vmatprep.subr.mxu0 0.0
    %6632 = vmatpush1.msra.mxu0 %v246
    %6633 = vmatprep.subr.mxu0 0.0
    %6634 = vmatpush1.msra.mxu0 %v245
    %6635 = vmatprep.subr.mxu0 0.0
    %6636 = vmatpush1.msra.mxu0 %v244
    %6637 = vmatprep.subr.mxu0 0.0
    %6638 = vmatpush1.msra.mxu0 %v243
    %6639 = vmatprep.subr.mxu0 0.0
    %6640 = vmatpush1.msra.mxu0 %v242
    %6641 = vmatprep.subr.mxu0 0.0
    %6642 = vmatpush1.msra.mxu0 %v241
    %6643 = vmatprep.subr.mxu0 0.0
    %6644 = vmatpush1.msra.mxu0 %v240
    %6645 = vmatprep.subr.mxu0 0.0
    %6646 = vmatpush1.msra.mxu0 %v239
    %6647 = vmatprep.subr.mxu0 0.0
    %6648 = vmatpush1.msra.mxu0 %v238
    %6649 = vmatprep.subr.mxu0 0.0
    %6650 = vmatpush1.msra.mxu0 %v237
    %6651 = vmatprep.subr.mxu0 0.0
    %6652 = vmatpush1.msra.mxu0 %v236
    %6653 = vmatprep.subr.mxu0 0.0
    %6654 = vmatpush1.msra.mxu0 %v235
    %6655 = vmatprep.subr.mxu0 0.0
    %6656 = vmatpush2.msra.mxu0 0.0
    %6657 = vmatprep.subr.mxu0 0.0
    %6658 = vmatpush2.msra.mxu0 0.0
    %6659 = vmatprep.subr.mxu0 0.0
    %6660 = vmatpush2.msra.mxu0 0.0
    %6661 = vmatprep.subr.mxu0 0.0
    %6662 = vmatpush2.msra.mxu0 0.0
    %6663 = vmatprep.subr.mxu0 0.0
    %6664 = vmatpush2.msra.mxu0 0.0
    %6665 = vmatprep.subr.mxu0 0.0
    %6666 = vmatpush2.msra.mxu0 0.0
    %6667 = vmatprep.subr.mxu0 0.0
    %6668 = vmatpush2.msra.mxu0 0.0
    %6669 = vmatprep.subr.mxu0 0.0
    %6670 = vmatpush2.msra.mxu0 0.0
    %6671 = vmatprep.subr.mxu0 0.0
    %6672 = vmatpush2.msra.mxu0 0.0
    %6673 = vmatprep.subr.mxu0 0.0
    %6674 = vmatpush2.msra.mxu0 0.0
    %6675 = vmatprep.subr.mxu0 0.0
    %6676 = vmatpush2.msra.mxu0 0.0
    %6677 = vmatprep.subr.mxu0 0.0
    %6678 = vmatpush2.msra.mxu0 0.0
    %6679 = vmatprep.subr.mxu0 0.0
    %6680 = vmatpush2.msra.mxu0 0.0
    %6681 = vmatprep.subr.mxu0 0.0
    %6682 = vmatpush2.msra.mxu0 0.0
    %6683 = vmatprep.subr.mxu0 0.0
    %6684 = vmatpush2.msra.mxu0 0.0
    %6685 = vmatprep.subr.mxu0 0.0
    %6686 = vmatpush2.msra.mxu0 0.0
    %6687 = vmatprep.mubr.f32.mxu0 0.0
    %6688 = vmatmul.mubr.f32.gmra.mxu0 %v6622
    %v6689 = vpop.f32.mrf.mxu0
    %v6690 = vadd.f32 %v145, %v6689
    %v6691 = vpop.f32.mrf.mxu0
    %6692 = vdwg.mxu0
    %v6693 = vmax.f32 %v6690, 0.0
    %6694 = vmatprep.subr.mxu0 0.0
    %6695 = vmatpush1.msra.mxu0 %v337
    %6696 = vmatprep.subr.mxu0 0.0
    %6697 = vmatpush1.msra.mxu0 %v336
    %6698 = vmatprep.subr.mxu0 0.0
    %6699 = vmatpush1.msra.mxu0 %v335
    %6700 = vmatprep.subr.mxu0 0.0
    %6701 = vmatpush1.msra.mxu0 %v334
    %6702 = vmatprep.subr.mxu0 0.0
    %6703 = vmatpush1.msra.mxu0 %v333
    %6704 = vmatprep.subr.mxu0 0.0
    %6705 = vmatpush1.msra.mxu0 %v332
    %6706 = vmatprep.subr.mxu0 0.0
    %6707 = vmatpush1.msra.mxu0 %v331
    %6708 = vmatprep.subr.mxu0 0.0
    %6709 = vmatpush1.msra.mxu0 %v330
    %6710 = vmatprep.subr.mxu0 0.0
    %6711 = vmatpush1.msra.mxu0 %v329
    %6712 = vmatprep.subr.mxu0 0.0
    %6713 = vmatpush1.msra.mxu0 %v328
    %6714 = vmatprep.subr.mxu0 0.0
    %6715 = vmatpush1.msra.mxu0 %v327
    %6716 = vmatprep.subr.mxu0 0.0
    %6717 = vmatpush1.msra.mxu0 %v326
    %6718 = vmatprep.subr.mxu0 0.0
    %6719 = vmatpush1.msra.mxu0 %v325
    %6720 = vmatprep.subr.mxu0 0.0
    %6721 = vmatpush1.msra.mxu0 %v324
    %6722 = vmatprep.subr.mxu0 0.0
    %6723 = vmatpush1.msra.mxu0 %v323
    %6724 = vmatprep.subr.mxu0 0.0
    %6725 = vmatpush1.msra.mxu0 %v322
    %6726 = vmatprep.subr.mxu0 0.0
    %6727 = vmatpush2.msra.mxu0 0.0
    %6728 = vmatprep.subr.mxu0 0.0
    %6729 = vmatpush2.msra.mxu0 0.0
    %6730 = vmatprep.subr.mxu0 0.0
    %6731 = vmatpush2.msra.mxu0 0.0
    %6732 = vmatprep.subr.mxu0 0.0
    %6733 = vmatpush2.msra.mxu0 0.0
    %6734 = vmatprep.subr.mxu0 0.0
    %6735 = vmatpush2.msra.mxu0 0.0
    %6736 = vmatprep.subr.mxu0 0.0
    %6737 = vmatpush2.msra.mxu0 0.0
    %6738 = vmatprep.subr.mxu0 0.0
    %6739 = vmatpush2.msra.mxu0 0.0
    %6740 = vmatprep.subr.mxu0 0.0
    %6741 = vmatpush2.msra.mxu0 0.0
    %6742 = vmatprep.subr.mxu0 0.0
    %6743 = vmatpush2.msra.mxu0 0.0
    %6744 = vmatprep.subr.mxu0 0.0
    %6745 = vmatpush2.msra.mxu0 0.0
    %6746 = vmatprep.subr.mxu0 0.0
    %6747 = vmatpush2.msra.mxu0 0.0
    %6748 = vmatprep.subr.mxu0 0.0
    %6749 = vmatpush2.msra.mxu0 0.0
    %6750 = vmatprep.subr.mxu0 0.0
    %6751 = vmatpush2.msra.mxu0 0.0
    %6752 = vmatprep.subr.mxu0 0.0
    %6753 = vmatpush2.msra.mxu0 0.0
    %6754 = vmatprep.subr.mxu0 0.0
    %6755 = vmatpush2.msra.mxu0 0.0
    %6756 = vmatprep.subr.mxu0 0.0
    %6757 = vmatpush2.msra.mxu0 0.0
    %6758 = vmatprep.mubr.f32.mxu0 0.0
    %6759 = vmatmul.mubr.f32.gmra.mxu0 %v6693
    %v6760 = vpop.f32.mrf.mxu0
    %v6761 = vadd.f32 %v152, %v6760
    %v6762 = vpop.f32.mrf.mxu0
    %6763 = vdwg.mxu0
    %v6764 = vmul.f32 %v6693, 0.0113932295
    %v6765 = vadd.f32 %v6610, %v6764
    %v6766 = vmul.f32 %v6761, 0.025
    %v6767 = vadd.f32 %v6620, %v6766
    %v6768 = vadd.f32 %v6767, %v137
    %v6769 = vmax.f32 %v6768, 0.0
    %6770 = vmatprep.subr.mxu0 0.0
    %6771 = vmatpush1.msra.mxu0 %v250
    %6772 = vmatprep.subr.mxu0 0.0
    %6773 = vmatpush1.msra.mxu0 %v249
    %6774 = vmatprep.subr.mxu0 0.0
    %6775 = vmatpush1.msra.mxu0 %v248
    %6776 = vmatprep.subr.mxu0 0.0
    %6777 = vmatpush1.msra.mxu0 %v247
    %6778 = vmatprep.subr.mxu0 0.0
    %6779 = vmatpush1.msra.mxu0 %v246
    %6780 = vmatprep.subr.mxu0 0.0
    %6781 = vmatpush1.msra.mxu0 %v245
    %6782 = vmatprep.subr.mxu0 0.0
    %6783 = vmatpush1.msra.mxu0 %v244
    %6784 = vmatprep.subr.mxu0 0.0
    %6785 = vmatpush1.msra.mxu0 %v243
    %6786 = vmatprep.subr.mxu0 0.0
    %6787 = vmatpush1.msra.mxu0 %v242
    %6788 = vmatprep.subr.mxu0 0.0
    %6789 = vmatpush1.msra.mxu0 %v241
    %6790 = vmatprep.subr.mxu0 0.0
    %6791 = vmatpush1.msra.mxu0 %v240
    %6792 = vmatprep.subr.mxu0 0.0
    %6793 = vmatpush1.msra.mxu0 %v239
    %6794 = vmatprep.subr.mxu0 0.0
    %6795 = vmatpush1.msra.mxu0 %v238
    %6796 = vmatprep.subr.mxu0 0.0
    %6797 = vmatpush1.msra.mxu0 %v237
    %6798 = vmatprep.subr.mxu0 0.0
    %6799 = vmatpush1.msra.mxu0 %v236
    %6800 = vmatprep.subr.mxu0 0.0
    %6801 = vmatpush1.msra.mxu0 %v235
    %6802 = vmatprep.subr.mxu0 0.0
    %6803 = vmatpush2.msra.mxu0 0.0
    %6804 = vmatprep.subr.mxu0 0.0
    %6805 = vmatpush2.msra.mxu0 0.0
    %6806 = vmatprep.subr.mxu0 0.0
    %6807 = vmatpush2.msra.mxu0 0.0
    %6808 = vmatprep.subr.mxu0 0.0
    %6809 = vmatpush2.msra.mxu0 0.0
    %6810 = vmatprep.subr.mxu0 0.0
    %6811 = vmatpush2.msra.mxu0 0.0
    %6812 = vmatprep.subr.mxu0 0.0
    %6813 = vmatpush2.msra.mxu0 0.0
    %6814 = vmatprep.subr.mxu0 0.0
    %6815 = vmatpush2.msra.mxu0 0.0
    %6816 = vmatprep.subr.mxu0 0.0
    %6817 = vmatpush2.msra.mxu0 0.0
    %6818 = vmatprep.subr.mxu0 0.0
    %6819 = vmatpush2.msra.mxu0 0.0
    %6820 = vmatprep.subr.mxu0 0.0
    %6821 = vmatpush2.msra.mxu0 0.0
    %6822 = vmatprep.subr.mxu0 0.0
    %6823 = vmatpush2.msra.mxu0 0.0
    %6824 = vmatprep.subr.mxu0 0.0
    %6825 = vmatpush2.msra.mxu0 0.0
    %6826 = vmatprep.subr.mxu0 0.0
    %6827 = vmatpush2.msra.mxu0 0.0
    %6828 = vmatprep.subr.mxu0 0.0
    %6829 = vmatpush2.msra.mxu0 0.0
    %6830 = vmatprep.subr.mxu0 0.0
    %6831 = vmatpush2.msra.mxu0 0.0
    %6832 = vmatprep.subr.mxu0 0.0
    %6833 = vmatpush2.msra.mxu0 0.0
    %6834 = vmatprep.mubr.f32.mxu0 0.0
    %6835 = vmatmul.mubr.f32.gmra.mxu0 %v6769
    %v6836 = vpop.f32.mrf.mxu0
    %v6837 = vadd.f32 %v145, %v6836
    %v6838 = vpop.f32.mrf.mxu0
    %6839 = vdwg.mxu0
    %v6840 = vmax.f32 %v6837, 0.0
    %6841 = vmatprep.subr.mxu0 0.0
    %6842 = vmatpush1.msra.mxu0 %v337
    %6843 = vmatprep.subr.mxu0 0.0
    %6844 = vmatpush1.msra.mxu0 %v336
    %6845 = vmatprep.subr.mxu0 0.0
    %6846 = vmatpush1.msra.mxu0 %v335
    %6847 = vmatprep.subr.mxu0 0.0
    %6848 = vmatpush1.msra.mxu0 %v334
    %6849 = vmatprep.subr.mxu0 0.0
    %6850 = vmatpush1.msra.mxu0 %v333
    %6851 = vmatprep.subr.mxu0 0.0
    %6852 = vmatpush1.msra.mxu0 %v332
    %6853 = vmatprep.subr.mxu0 0.0
    %6854 = vmatpush1.msra.mxu0 %v331
    %6855 = vmatprep.subr.mxu0 0.0
    %6856 = vmatpush1.msra.mxu0 %v330
    %6857 = vmatprep.subr.mxu0 0.0
    %6858 = vmatpush1.msra.mxu0 %v329
    %6859 = vmatprep.subr.mxu0 0.0
    %6860 = vmatpush1.msra.mxu0 %v328
    %6861 = vmatprep.subr.mxu0 0.0
    %6862 = vmatpush1.msra.mxu0 %v327
    %6863 = vmatprep.subr.mxu0 0.0
    %6864 = vmatpush1.msra.mxu0 %v326
    %6865 = vmatprep.subr.mxu0 0.0
    %6866 = vmatpush1.msra.mxu0 %v325
    %6867 = vmatprep.subr.mxu0 0.0
    %6868 = vmatpush1.msra.mxu0 %v324
    %6869 = vmatprep.subr.mxu0 0.0
    %6870 = vmatpush1.msra.mxu0 %v323
    %6871 = vmatprep.subr.mxu0 0.0
    %6872 = vmatpush1.msra.mxu0 %v322
    %6873 = vmatprep.subr.mxu0 0.0
    %6874 = vmatpush2.msra.mxu0 0.0
    %6875 = vmatprep.subr.mxu0 0.0
    %6876 = vmatpush2.msra.mxu0 0.0
    %6877 = vmatprep.subr.mxu0 0.0
    %6878 = vmatpush2.msra.mxu0 0.0
    %6879 = vmatprep.subr.mxu0 0.0
    %6880 = vmatpush2.msra.mxu0 0.0
    %6881 = vmatprep.subr.mxu0 0.0
    %6882 = vmatpush2.msra.mxu0 0.0
    %6883 = vmatprep.subr.mxu0 0.0
    %6884 = vmatpush2.msra.mxu0 0.0
    %6885 = vmatprep.subr.mxu0 0.0
    %6886 = vmatpush2.msra.mxu0 0.0
    %6887 = vmatprep.subr.mxu0 0.0
    %6888 = vmatpush2.msra.mxu0 0.0
    %6889 = vmatprep.subr.mxu0 0.0
    %6890 = vmatpush2.msra.mxu0 0.0
    %6891 = vmatprep.subr.mxu0 0.0
    %6892 = vmatpush2.msra.mxu0 0.0
    %6893 = vmatprep.subr.mxu0 0.0
    %6894 = vmatpush2.msra.mxu0 0.0
    %6895 = vmatprep.subr.mxu0 0.0
    %6896 = vmatpush2.msra.mxu0 0.0
    %6897 = vmatprep.subr.mxu0 0.0
    %6898 = vmatpush2.msra.mxu0 0.0
    %6899 = vmatprep.subr.mxu0 0.0
    %6900 = vmatpush2.msra.mxu0 0.0
    %6901 = vmatprep.subr.mxu0 0.0
    %6902 = vmatpush2.msra.mxu0 0.0
    %6903 = vmatprep.subr.mxu0 0.0
    %6904 = vmatpush2.msra.mxu0 0.0
    %6905 = vmatprep.mubr.f32.mxu0 0.0
    %6906 = vmatmul.mubr.f32.gmra.mxu0 %v6840
    %v6907 = vpop.f32.mrf.mxu0
    %v6908 = vadd.f32 %v152, %v6907
    %v6909 = vpop.f32.mrf.mxu0
    %6910 = vdwg.mxu0
    %v6911 = vmul.f32 %v6761, 0.009375
    %v6912 = vadd.f32 %v6620, %v6911
    %v6913 = vmul.f32 %v6908, 0.028125
    %v6914 = vadd.f32 %v6912, %v6913
    %v6915 = vadd.f32 %v6914, %v137
    %v6916 = vmax.f32 %v6915, 0.0
    %6917 = vmatprep.subr.mxu0 0.0
    %6918 = vmatpush1.msra.mxu0 %v250
    %6919 = vmatprep.subr.mxu0 0.0
    %6920 = vmatpush1.msra.mxu0 %v249
    %6921 = vmatprep.subr.mxu0 0.0
    %6922 = vmatpush1.msra.mxu0 %v248
    %6923 = vmatprep.subr.mxu0 0.0
    %6924 = vmatpush1.msra.mxu0 %v247
    %6925 = vmatprep.subr.mxu0 0.0
    %6926 = vmatpush1.msra.mxu0 %v246
    %6927 = vmatprep.subr.mxu0 0.0
    %6928 = vmatpush1.msra.mxu0 %v245
    %6929 = vmatprep.subr.mxu0 0.0
    %6930 = vmatpush1.msra.mxu0 %v244
    %6931 = vmatprep.subr.mxu0 0.0
    %6932 = vmatpush1.msra.mxu0 %v243
    %6933 = vmatprep.subr.mxu0 0.0
    %6934 = vmatpush1.msra.mxu0 %v242
    %6935 = vmatprep.subr.mxu0 0.0
    %6936 = vmatpush1.msra.mxu0 %v241
    %6937 = vmatprep.subr.mxu0 0.0
    %6938 = vmatpush1.msra.mxu0 %v240
    %6939 = vmatprep.subr.mxu0 0.0
    %6940 = vmatpush1.msra.mxu0 %v239
    %6941 = vmatprep.subr.mxu0 0.0
    %6942 = vmatpush1.msra.mxu0 %v238
    %6943 = vmatprep.subr.mxu0 0.0
    %6944 = vmatpush1.msra.mxu0 %v237
    %6945 = vmatprep.subr.mxu0 0.0
    %6946 = vmatpush1.msra.mxu0 %v236
    %6947 = vmatprep.subr.mxu0 0.0
    %6948 = vmatpush1.msra.mxu0 %v235
    %6949 = vmatprep.subr.mxu0 0.0
    %6950 = vmatpush2.msra.mxu0 0.0
    %6951 = vmatprep.subr.mxu0 0.0
    %6952 = vmatpush2.msra.mxu0 0.0
    %6953 = vmatprep.subr.mxu0 0.0
    %6954 = vmatpush2.msra.mxu0 0.0
    %6955 = vmatprep.subr.mxu0 0.0
    %6956 = vmatpush2.msra.mxu0 0.0
    %6957 = vmatprep.subr.mxu0 0.0
    %6958 = vmatpush2.msra.mxu0 0.0
    %6959 = vmatprep.subr.mxu0 0.0
    %6960 = vmatpush2.msra.mxu0 0.0
    %6961 = vmatprep.subr.mxu0 0.0
    %6962 = vmatpush2.msra.mxu0 0.0
    %6963 = vmatprep.subr.mxu0 0.0
    %6964 = vmatpush2.msra.mxu0 0.0
    %6965 = vmatprep.subr.mxu0 0.0
    %6966 = vmatpush2.msra.mxu0 0.0
    %6967 = vmatprep.subr.mxu0 0.0
    %6968 = vmatpush2.msra.mxu0 0.0
    %6969 = vmatprep.subr.mxu0 0.0
    %6970 = vmatpush2.msra.mxu0 0.0
    %6971 = vmatprep.subr.mxu0 0.0
    %6972 = vmatpush2.msra.mxu0 0.0
    %6973 = vmatprep.subr.mxu0 0.0
    %6974 = vmatpush2.msra.mxu0 0.0
    %6975 = vmatprep.subr.mxu0 0.0
    %6976 = vmatpush2.msra.mxu0 0.0
    %6977 = vmatprep.subr.mxu0 0.0
    %6978 = vmatpush2.msra.mxu0 0.0
    %6979 = vmatprep.subr.mxu0 0.0
    %6980 = vmatpush2.msra.mxu0 0.0
    %6981 = vmatprep.mubr.f32.mxu0 0.0
    %6982 = vmatmul.mubr.f32.gmra.mxu0 %v6916
    %v6983 = vpop.f32.mrf.mxu0
    %v6984 = vadd.f32 %v145, %v6983
    %v6985 = vpop.f32.mrf.mxu0
    %6986 = vdwg.mxu0
    %v6987 = vmax.f32 %v6984, 0.0
    %6988 = vmatprep.subr.mxu0 0.0
    %6989 = vmatpush1.msra.mxu0 %v337
    %6990 = vmatprep.subr.mxu0 0.0
    %6991 = vmatpush1.msra.mxu0 %v336
    %6992 = vmatprep.subr.mxu0 0.0
    %6993 = vmatpush1.msra.mxu0 %v335
    %6994 = vmatprep.subr.mxu0 0.0
    %6995 = vmatpush1.msra.mxu0 %v334
    %6996 = vmatprep.subr.mxu0 0.0
    %6997 = vmatpush1.msra.mxu0 %v333
    %6998 = vmatprep.subr.mxu0 0.0
    %6999 = vmatpush1.msra.mxu0 %v332
    %7000 = vmatprep.subr.mxu0 0.0
    %7001 = vmatpush1.msra.mxu0 %v331
    %7002 = vmatprep.subr.mxu0 0.0
    %7003 = vmatpush1.msra.mxu0 %v330
    %7004 = vmatprep.subr.mxu0 0.0
    %7005 = vmatpush1.msra.mxu0 %v329
    %7006 = vmatprep.subr.mxu0 0.0
    %7007 = vmatpush1.msra.mxu0 %v328
    %7008 = vmatprep.subr.mxu0 0.0
    %7009 = vmatpush1.msra.mxu0 %v327
    %7010 = vmatprep.subr.mxu0 0.0
    %7011 = vmatpush1.msra.mxu0 %v326
    %7012 = vmatprep.subr.mxu0 0.0
    %7013 = vmatpush1.msra.mxu0 %v325
    %7014 = vmatprep.subr.mxu0 0.0
    %7015 = vmatpush1.msra.mxu0 %v324
    %7016 = vmatprep.subr.mxu0 0.0
    %7017 = vmatpush1.msra.mxu0 %v323
    %7018 = vmatprep.subr.mxu0 0.0
    %7019 = vmatpush1.msra.mxu0 %v322
    %7020 = vmatprep.subr.mxu0 0.0
    %7021 = vmatpush2.msra.mxu0 0.0
    %7022 = vmatprep.subr.mxu0 0.0
    %7023 = vmatpush2.msra.mxu0 0.0
    %7024 = vmatprep.subr.mxu0 0.0
    %7025 = vmatpush2.msra.mxu0 0.0
    %7026 = vmatprep.subr.mxu0 0.0
    %7027 = vmatpush2.msra.mxu0 0.0
    %7028 = vmatprep.subr.mxu0 0.0
    %7029 = vmatpush2.msra.mxu0 0.0
    %7030 = vmatprep.subr.mxu0 0.0
    %7031 = vmatpush2.msra.mxu0 0.0
    %7032 = vmatprep.subr.mxu0 0.0
    %7033 = vmatpush2.msra.mxu0 0.0
    %7034 = vmatprep.subr.mxu0 0.0
    %7035 = vmatpush2.msra.mxu0 0.0
    %7036 = vmatprep.subr.mxu0 0.0
    %7037 = vmatpush2.msra.mxu0 0.0
    %7038 = vmatprep.subr.mxu0 0.0
    %7039 = vmatpush2.msra.mxu0 0.0
    %7040 = vmatprep.subr.mxu0 0.0
    %7041 = vmatpush2.msra.mxu0 0.0
    %7042 = vmatprep.subr.mxu0 0.0
    %7043 = vmatpush2.msra.mxu0 0.0
    %7044 = vmatprep.subr.mxu0 0.0
    %7045 = vmatpush2.msra.mxu0 0.0
    %7046 = vmatprep.subr.mxu0 0.0
    %7047 = vmatpush2.msra.mxu0 0.0
    %7048 = vmatprep.subr.mxu0 0.0
    %7049 = vmatpush2.msra.mxu0 0.0
    %7050 = vmatprep.subr.mxu0 0.0
    %7051 = vmatpush2.msra.mxu0 0.0
    %7052 = vmatprep.mubr.f32.mxu0 0.0
    %7053 = vmatmul.mubr.f32.gmra.mxu0 %v6987
    %v7054 = vpop.f32.mrf.mxu0
    %v7055 = vadd.f32 %v152, %v7054
    %v7056 = vpop.f32.mrf.mxu0
    %7057 = vdwg.mxu0
    %v7058 = vmul.f32 %v6987, 0.056154538
    %v7059 = vadd.f32 %v6765, %v7058
    %v7060 = vmul.f32 %v6761, 0.12222222
    %v7061 = vadd.f32 %v6620, %v7060
    %v7062 = vmul.f32 %v6908, -0.46666667
    %v7063 = vadd.f32 %v7061, %v7062
    %v7064 = vmul.f32 %v7055, 0.44444445
    %v7065 = vadd.f32 %v7063, %v7064
    %v7066 = vadd.f32 %v7065, %v137
    %v7067 = vmax.f32 %v7066, 0.0
    %7068 = vmatprep.subr.mxu0 0.0
    %7069 = vmatpush1.msra.mxu0 %v250
    %7070 = vmatprep.subr.mxu0 0.0
    %7071 = vmatpush1.msra.mxu0 %v249
    %7072 = vmatprep.subr.mxu0 0.0
    %7073 = vmatpush1.msra.mxu0 %v248
    %7074 = vmatprep.subr.mxu0 0.0
    %7075 = vmatpush1.msra.mxu0 %v247
    %7076 = vmatprep.subr.mxu0 0.0
    %7077 = vmatpush1.msra.mxu0 %v246
    %7078 = vmatprep.subr.mxu0 0.0
    %7079 = vmatpush1.msra.mxu0 %v245
    %7080 = vmatprep.subr.mxu0 0.0
    %7081 = vmatpush1.msra.mxu0 %v244
    %7082 = vmatprep.subr.mxu0 0.0
    %7083 = vmatpush1.msra.mxu0 %v243
    %7084 = vmatprep.subr.mxu0 0.0
    %7085 = vmatpush1.msra.mxu0 %v242
    %7086 = vmatprep.subr.mxu0 0.0
    %7087 = vmatpush1.msra.mxu0 %v241
    %7088 = vmatprep.subr.mxu0 0.0
    %7089 = vmatpush1.msra.mxu0 %v240
    %7090 = vmatprep.subr.mxu0 0.0
    %7091 = vmatpush1.msra.mxu0 %v239
    %7092 = vmatprep.subr.mxu0 0.0
    %7093 = vmatpush1.msra.mxu0 %v238
    %7094 = vmatprep.subr.mxu0 0.0
    %7095 = vmatpush1.msra.mxu0 %v237
    %7096 = vmatprep.subr.mxu0 0.0
    %7097 = vmatpush1.msra.mxu0 %v236
    %7098 = vmatprep.subr.mxu0 0.0
    %7099 = vmatpush1.msra.mxu0 %v235
    %7100 = vmatprep.subr.mxu0 0.0
    %7101 = vmatpush2.msra.mxu0 0.0
    %7102 = vmatprep.subr.mxu0 0.0
    %7103 = vmatpush2.msra.mxu0 0.0
    %7104 = vmatprep.subr.mxu0 0.0
    %7105 = vmatpush2.msra.mxu0 0.0
    %7106 = vmatprep.subr.mxu0 0.0
    %7107 = vmatpush2.msra.mxu0 0.0
    %7108 = vmatprep.subr.mxu0 0.0
    %7109 = vmatpush2.msra.mxu0 0.0
    %7110 = vmatprep.subr.mxu0 0.0
    %7111 = vmatpush2.msra.mxu0 0.0
    %7112 = vmatprep.subr.mxu0 0.0
    %7113 = vmatpush2.msra.mxu0 0.0
    %7114 = vmatprep.subr.mxu0 0.0
    %7115 = vmatpush2.msra.mxu0 0.0
    %7116 = vmatprep.subr.mxu0 0.0
    %7117 = vmatpush2.msra.mxu0 0.0
    %7118 = vmatprep.subr.mxu0 0.0
    %7119 = vmatpush2.msra.mxu0 0.0
    %7120 = vmatprep.subr.mxu0 0.0
    %7121 = vmatpush2.msra.mxu0 0.0
    %7122 = vmatprep.subr.mxu0 0.0
    %7123 = vmatpush2.msra.mxu0 0.0
    %7124 = vmatprep.subr.mxu0 0.0
    %7125 = vmatpush2.msra.mxu0 0.0
    %7126 = vmatprep.subr.mxu0 0.0
    %7127 = vmatpush2.msra.mxu0 0.0
    %7128 = vmatprep.subr.mxu0 0.0
    %7129 = vmatpush2.msra.mxu0 0.0
    %7130 = vmatprep.subr.mxu0 0.0
    %7131 = vmatpush2.msra.mxu0 0.0
    %7132 = vmatprep.mubr.f32.mxu0 0.0
    %7133 = vmatmul.mubr.f32.gmra.mxu0 %v7067
    %v7134 = vpop.f32.mrf.mxu0
    %v7135 = vadd.f32 %v145, %v7134
    %v7136 = vpop.f32.mrf.mxu0
    %7137 = vdwg.mxu0
    %v7138 = vmax.f32 %v7135, 0.0
    %7139 = vmatprep.subr.mxu0 0.0
    %7140 = vmatpush1.msra.mxu0 %v337
    %7141 = vmatprep.subr.mxu0 0.0
    %7142 = vmatpush1.msra.mxu0 %v336
    %7143 = vmatprep.subr.mxu0 0.0
    %7144 = vmatpush1.msra.mxu0 %v335
    %7145 = vmatprep.subr.mxu0 0.0
    %7146 = vmatpush1.msra.mxu0 %v334
    %7147 = vmatprep.subr.mxu0 0.0
    %7148 = vmatpush1.msra.mxu0 %v333
    %7149 = vmatprep.subr.mxu0 0.0
    %7150 = vmatpush1.msra.mxu0 %v332
    %7151 = vmatprep.subr.mxu0 0.0
    %7152 = vmatpush1.msra.mxu0 %v331
    %7153 = vmatprep.subr.mxu0 0.0
    %7154 = vmatpush1.msra.mxu0 %v330
    %7155 = vmatprep.subr.mxu0 0.0
    %7156 = vmatpush1.msra.mxu0 %v329
    %7157 = vmatprep.subr.mxu0 0.0
    %7158 = vmatpush1.msra.mxu0 %v328
    %7159 = vmatprep.subr.mxu0 0.0
    %7160 = vmatpush1.msra.mxu0 %v327
    %7161 = vmatprep.subr.mxu0 0.0
    %7162 = vmatpush1.msra.mxu0 %v326
    %7163 = vmatprep.subr.mxu0 0.0
    %7164 = vmatpush1.msra.mxu0 %v325
    %7165 = vmatprep.subr.mxu0 0.0
    %7166 = vmatpush1.msra.mxu0 %v324
    %7167 = vmatprep.subr.mxu0 0.0
    %7168 = vmatpush1.msra.mxu0 %v323
    %7169 = vmatprep.subr.mxu0 0.0
    %7170 = vmatpush1.msra.mxu0 %v322
    %7171 = vmatprep.subr.mxu0 0.0
    %7172 = vmatpush2.msra.mxu0 0.0
    %7173 = vmatprep.subr.mxu0 0.0
    %7174 = vmatpush2.msra.mxu0 0.0
    %7175 = vmatprep.subr.mxu0 0.0
    %7176 = vmatpush2.msra.mxu0 0.0
    %7177 = vmatprep.subr.mxu0 0.0
    %7178 = vmatpush2.msra.mxu0 0.0
    %7179 = vmatprep.subr.mxu0 0.0
    %7180 = vmatpush2.msra.mxu0 0.0
    %7181 = vmatprep.subr.mxu0 0.0
    %7182 = vmatpush2.msra.mxu0 0.0
    %7183 = vmatprep.subr.mxu0 0.0
    %7184 = vmatpush2.msra.mxu0 0.0
    %7185 = vmatprep.subr.mxu0 0.0
    %7186 = vmatpush2.msra.mxu0 0.0
    %7187 = vmatprep.subr.mxu0 0.0
    %7188 = vmatpush2.msra.mxu0 0.0
    %7189 = vmatprep.subr.mxu0 0.0
    %7190 = vmatpush2.msra.mxu0 0.0
    %7191 = vmatprep.subr.mxu0 0.0
    %7192 = vmatpush2.msra.mxu0 0.0
    %7193 = vmatprep.subr.mxu0 0.0
    %7194 = vmatpush2.msra.mxu0 0.0
    %7195 = vmatprep.subr.mxu0 0.0
    %7196 = vmatpush2.msra.mxu0 0.0
    %7197 = vmatprep.subr.mxu0 0.0
    %7198 = vmatpush2.msra.mxu0 0.0
    %7199 = vmatprep.subr.mxu0 0.0
    %7200 = vmatpush2.msra.mxu0 0.0
    %7201 = vmatprep.subr.mxu0 0.0
    %7202 = vmatpush2.msra.mxu0 0.0
    %7203 = vmatprep.mubr.f32.mxu0 0.0
    %7204 = vmatmul.mubr.f32.gmra.mxu0 %v7138
    %v7205 = vpop.f32.mrf.mxu0
    %v7206 = vadd.f32 %v152, %v7205
    %v7207 = vpop.f32.mrf.mxu0
    %7208 = vdwg.mxu0
    %v7209 = vmul.f32 %v7138, 0.08138021
    %v7210 = vadd.f32 %v7059, %v7209
    %v7211 = vmul.f32 %v6761, 0.36907482
    %v7212 = vadd.f32 %v6620, %v7211
    %v7213 = vmul.f32 %v6908, -1.4494742
    %v7214 = vadd.f32 %v7212, %v7213
    %v7215 = vmul.f32 %v7055, 1.2278616
    %v7216 = vadd.f32 %v7214, %v7215
    %v7217 = vmul.f32 %v7206, -0.036351167
    %v7218 = vadd.f32 %v7216, %v7217
    %v7219 = vadd.f32 %v7218, %v137
    %v7220 = vmax.f32 %v7219, 0.0
    %7221 = vmatprep.subr.mxu0 0.0
    %7222 = vmatpush1.msra.mxu0 %v250
    %7223 = vmatprep.subr.mxu0 0.0
    %7224 = vmatpush1.msra.mxu0 %v249
    %7225 = vmatprep.subr.mxu0 0.0
    %7226 = vmatpush1.msra.mxu0 %v248
    %7227 = vmatprep.subr.mxu0 0.0
    %7228 = vmatpush1.msra.mxu0 %v247
    %7229 = vmatprep.subr.mxu0 0.0
    %7230 = vmatpush1.msra.mxu0 %v246
    %7231 = vmatprep.subr.mxu0 0.0
    %7232 = vmatpush1.msra.mxu0 %v245
    %7233 = vmatprep.subr.mxu0 0.0
    %7234 = vmatpush1.msra.mxu0 %v244
    %7235 = vmatprep.subr.mxu0 0.0
    %7236 = vmatpush1.msra.mxu0 %v243
    %7237 = vmatprep.subr.mxu0 0.0
    %7238 = vmatpush1.msra.mxu0 %v242
    %7239 = vmatprep.subr.mxu0 0.0
    %7240 = vmatpush1.msra.mxu0 %v241
    %7241 = vmatprep.subr.mxu0 0.0
    %7242 = vmatpush1.msra.mxu0 %v240
    %7243 = vmatprep.subr.mxu0 0.0
    %7244 = vmatpush1.msra.mxu0 %v239
    %7245 = vmatprep.subr.mxu0 0.0
    %7246 = vmatpush1.msra.mxu0 %v238
    %7247 = vmatprep.subr.mxu0 0.0
    %7248 = vmatpush1.msra.mxu0 %v237
    %7249 = vmatprep.subr.mxu0 0.0
    %7250 = vmatpush1.msra.mxu0 %v236
    %7251 = vmatprep.subr.mxu0 0.0
    %7252 = vmatpush1.msra.mxu0 %v235
    %7253 = vmatprep.subr.mxu0 0.0
    %7254 = vmatpush2.msra.mxu0 0.0
    %7255 = vmatprep.subr.mxu0 0.0
    %7256 = vmatpush2.msra.mxu0 0.0
    %7257 = vmatprep.subr.mxu0 0.0
    %7258 = vmatpush2.msra.mxu0 0.0
    %7259 = vmatprep.subr.mxu0 0.0
    %7260 = vmatpush2.msra.mxu0 0.0
    %7261 = vmatprep.subr.mxu0 0.0
    %7262 = vmatpush2.msra.mxu0 0.0
    %7263 = vmatprep.subr.mxu0 0.0
    %7264 = vmatpush2.msra.mxu0 0.0
    %7265 = vmatprep.subr.mxu0 0.0
    %7266 = vmatpush2.msra.mxu0 0.0
    %7267 = vmatprep.subr.mxu0 0.0
    %7268 = vmatpush2.msra.mxu0 0.0
    %7269 = vmatprep.subr.mxu0 0.0
    %7270 = vmatpush2.msra.mxu0 0.0
    %7271 = vmatprep.subr.mxu0 0.0
    %7272 = vmatpush2.msra.mxu0 0.0
    %7273 = vmatprep.subr.mxu0 0.0
    %7274 = vmatpush2.msra.mxu0 0.0
    %7275 = vmatprep.subr.mxu0 0.0
    %7276 = vmatpush2.msra.mxu0 0.0
    %7277 = vmatprep.subr.mxu0 0.0
    %7278 = vmatpush2.msra.mxu0 0.0
    %7279 = vmatprep.subr.mxu0 0.0
    %7280 = vmatpush2.msra.mxu0 0.0
    %7281 = vmatprep.subr.mxu0 0.0
    %7282 = vmatpush2.msra.mxu0 0.0
    %7283 = vmatprep.subr.mxu0 0.0
    %7284 = vmatpush2.msra.mxu0 0.0
    %7285 = vmatprep.mubr.f32.mxu0 0.0
    %7286 = vmatmul.mubr.f32.gmra.mxu0 %v7220
    %v7287 = vpop.f32.mrf.mxu0
    %v7288 = vadd.f32 %v145, %v7287
    %v7289 = vpop.f32.mrf.mxu0
    %7290 = vdwg.mxu0
    %v7291 = vmax.f32 %v7288, 0.0
    %7292 = vmatprep.subr.mxu0 0.0
    %7293 = vmatpush1.msra.mxu0 %v337
    %7294 = vmatprep.subr.mxu0 0.0
    %7295 = vmatpush1.msra.mxu0 %v336
    %7296 = vmatprep.subr.mxu0 0.0
    %7297 = vmatpush1.msra.mxu0 %v335
    %7298 = vmatprep.subr.mxu0 0.0
    %7299 = vmatpush1.msra.mxu0 %v334
    %7300 = vmatprep.subr.mxu0 0.0
    %7301 = vmatpush1.msra.mxu0 %v333
    %7302 = vmatprep.subr.mxu0 0.0
    %7303 = vmatpush1.msra.mxu0 %v332
    %7304 = vmatprep.subr.mxu0 0.0
    %7305 = vmatpush1.msra.mxu0 %v331
    %7306 = vmatprep.subr.mxu0 0.0
    %7307 = vmatpush1.msra.mxu0 %v330
    %7308 = vmatprep.subr.mxu0 0.0
    %7309 = vmatpush1.msra.mxu0 %v329
    %7310 = vmatprep.subr.mxu0 0.0
    %7311 = vmatpush1.msra.mxu0 %v328
    %7312 = vmatprep.subr.mxu0 0.0
    %7313 = vmatpush1.msra.mxu0 %v327
    %7314 = vmatprep.subr.mxu0 0.0
    %7315 = vmatpush1.msra.mxu0 %v326
    %7316 = vmatprep.subr.mxu0 0.0
    %7317 = vmatpush1.msra.mxu0 %v325
    %7318 = vmatprep.subr.mxu0 0.0
    %7319 = vmatpush1.msra.mxu0 %v324
    %7320 = vmatprep.subr.mxu0 0.0
    %7321 = vmatpush1.msra.mxu0 %v323
    %7322 = vmatprep.subr.mxu0 0.0
    %7323 = vmatpush1.msra.mxu0 %v322
    %7324 = vmatprep.subr.mxu0 0.0
    %7325 = vmatpush2.msra.mxu0 0.0
    %7326 = vmatprep.subr.mxu0 0.0
    %7327 = vmatpush2.msra.mxu0 0.0
    %7328 = vmatprep.subr.mxu0 0.0
    %7329 = vmatpush2.msra.mxu0 0.0
    %7330 = vmatprep.subr.mxu0 0.0
    %7331 = vmatpush2.msra.mxu0 0.0
    %7332 = vmatprep.subr.mxu0 0.0
    %7333 = vmatpush2.msra.mxu0 0.0
    %7334 = vmatprep.subr.mxu0 0.0
    %7335 = vmatpush2.msra.mxu0 0.0
    %7336 = vmatprep.subr.mxu0 0.0
    %7337 = vmatpush2.msra.mxu0 0.0
    %7338 = vmatprep.subr.mxu0 0.0
    %7339 = vmatpush2.msra.mxu0 0.0
    %7340 = vmatprep.subr.mxu0 0.0
    %7341 = vmatpush2.msra.mxu0 0.0
    %7342 = vmatprep.subr.mxu0 0.0
    %7343 = vmatpush2.msra.mxu0 0.0
    %7344 = vmatprep.subr.mxu0 0.0
    %7345 = vmatpush2.msra.mxu0 0.0
    %7346 = vmatprep.subr.mxu0 0.0
    %7347 = vmatpush2.msra.mxu0 0.0
    %7348 = vmatprep.subr.mxu0 0.0
    %7349 = vmatpush2.msra.mxu0 0.0
    %7350 = vmatprep.subr.mxu0 0.0
    %7351 = vmatpush2.msra.mxu0 0.0
    %7352 = vmatprep.subr.mxu0 0.0
    %7353 = vmatpush2.msra.mxu0 0.0
    %7354 = vmatprep.subr.mxu0 0.0
    %7355 = vmatpush2.msra.mxu0 0.0
    %7356 = vmatprep.mubr.f32.mxu0 0.0
    %7357 = vmatmul.mubr.f32.gmra.mxu0 %v7291
    %v7358 = vpop.f32.mrf.mxu0
    %v7359 = vadd.f32 %v152, %v7358
    %v7360 = vpop.f32.mrf.mxu0
    %7361 = vdwg.mxu0
    %v7362 = vmul.f32 %v7291, -0.040297024
    %v7363 = vadd.f32 %v7210, %v7362
    %v7364 = vmul.f32 %v6761, 0.35578442
    %v7365 = vadd.f32 %v6620, %v7364
    %v7366 = vmul.f32 %v6908, -1.344697
    %v7367 = vadd.f32 %v7365, %v7366
    %v7368 = vmul.f32 %v7055, 1.1133028
    %v7369 = vadd.f32 %v7367, %v7368
    %v7370 = vmul.f32 %v7206, 0.034801137
    %v7371 = vadd.f32 %v7369, %v7370
    %v7372 = vmul.f32 %v7359, -0.034191415
    %v7373 = vadd.f32 %v7371, %v7372
    %v7374 = vadd.f32 %v7373, %v137
    %v7375 = vmax.f32 %v7374, 0.0
    %7376 = vmatprep.subr.mxu0 0.0
    %7377 = vmatpush1.msra.mxu0 %v250
    %7378 = vmatprep.subr.mxu0 0.0
    %7379 = vmatpush1.msra.mxu0 %v249
    %7380 = vmatprep.subr.mxu0 0.0
    %7381 = vmatpush1.msra.mxu0 %v248
    %7382 = vmatprep.subr.mxu0 0.0
    %7383 = vmatpush1.msra.mxu0 %v247
    %7384 = vmatprep.subr.mxu0 0.0
    %7385 = vmatpush1.msra.mxu0 %v246
    %7386 = vmatprep.subr.mxu0 0.0
    %7387 = vmatpush1.msra.mxu0 %v245
    %7388 = vmatprep.subr.mxu0 0.0
    %7389 = vmatpush1.msra.mxu0 %v244
    %7390 = vmatprep.subr.mxu0 0.0
    %7391 = vmatpush1.msra.mxu0 %v243
    %7392 = vmatprep.subr.mxu0 0.0
    %7393 = vmatpush1.msra.mxu0 %v242
    %7394 = vmatprep.subr.mxu0 0.0
    %7395 = vmatpush1.msra.mxu0 %v241
    %7396 = vmatprep.subr.mxu0 0.0
    %7397 = vmatpush1.msra.mxu0 %v240
    %7398 = vmatprep.subr.mxu0 0.0
    %7399 = vmatpush1.msra.mxu0 %v239
    %7400 = vmatprep.subr.mxu0 0.0
    %7401 = vmatpush1.msra.mxu0 %v238
    %7402 = vmatprep.subr.mxu0 0.0
    %7403 = vmatpush1.msra.mxu0 %v237
    %7404 = vmatprep.subr.mxu0 0.0
    %7405 = vmatpush1.msra.mxu0 %v236
    %7406 = vmatprep.subr.mxu0 0.0
    %7407 = vmatpush1.msra.mxu0 %v235
    %7408 = vmatprep.subr.mxu0 0.0
    %7409 = vmatpush2.msra.mxu0 0.0
    %7410 = vmatprep.subr.mxu0 0.0
    %7411 = vmatpush2.msra.mxu0 0.0
    %7412 = vmatprep.subr.mxu0 0.0
    %7413 = vmatpush2.msra.mxu0 0.0
    %7414 = vmatprep.subr.mxu0 0.0
    %7415 = vmatpush2.msra.mxu0 0.0
    %7416 = vmatprep.subr.mxu0 0.0
    %7417 = vmatpush2.msra.mxu0 0.0
    %7418 = vmatprep.subr.mxu0 0.0
    %7419 = vmatpush2.msra.mxu0 0.0
    %7420 = vmatprep.subr.mxu0 0.0
    %7421 = vmatpush2.msra.mxu0 0.0
    %7422 = vmatprep.subr.mxu0 0.0
    %7423 = vmatpush2.msra.mxu0 0.0
    %7424 = vmatprep.subr.mxu0 0.0
    %7425 = vmatpush2.msra.mxu0 0.0
    %7426 = vmatprep.subr.mxu0 0.0
    %7427 = vmatpush2.msra.mxu0 0.0
    %7428 = vmatprep.subr.mxu0 0.0
    %7429 = vmatpush2.msra.mxu0 0.0
    %7430 = vmatprep.subr.mxu0 0.0
    %7431 = vmatpush2.msra.mxu0 0.0
    %7432 = vmatprep.subr.mxu0 0.0
    %7433 = vmatpush2.msra.mxu0 0.0
    %7434 = vmatprep.subr.mxu0 0.0
    %7435 = vmatpush2.msra.mxu0 0.0
    %7436 = vmatprep.subr.mxu0 0.0
    %7437 = vmatpush2.msra.mxu0 0.0
    %7438 = vmatprep.subr.mxu0 0.0
    %7439 = vmatpush2.msra.mxu0 0.0
    %7440 = vmatprep.mubr.f32.mxu0 0.0
    %7441 = vmatmul.mubr.f32.gmra.mxu0 %v7375
    %v7442 = vpop.f32.mrf.mxu0
    %v7443 = vadd.f32 %v145, %v7442
    %v7444 = vpop.f32.mrf.mxu0
    %7445 = vdwg.mxu0
    %v7446 = vmax.f32 %v7443, 0.0
    %v7447 = vmul.f32 %v7446, 0.016369049
    %v7448 = vadd.f32 %v7363, %v7447
    %v7449 = vld [vmem:[%s9] sm:$0xff]
    %v7450 = vld [vmem:[%s9 + $0x8] sm:$0xff]
    %v7451 = vld [vmem:[%s9 + $0x10] sm:$0xff]
    %v7452 = vld [vmem:[%s9 + $0x18] sm:$0xff]
    %v7453 = vld [vmem:[%s9 + $0x20] sm:$0xff]
    %v7454 = vld [vmem:[%s9 + $0x28] sm:$0xff]
    %v7455 = vld [vmem:[%s9 + $0x30] sm:$0xff]
    %v7456 = vld [vmem:[%s9 + $0x38] sm:$0xff]
    %v7457 = vld [vmem:[%s9 + $0x40] sm:$0xff]
    %v7458 = vld [vmem:[%s9 + $0x48] sm:$0xff]
    %v7459 = vld [vmem:[%s9 + $0x50] sm:$0xff]
    %v7460 = vld [vmem:[%s9 + $0x58] sm:$0xff]
    %v7461 = vld [vmem:[%s9 + $0x60] sm:$0xff]
    %v7462 = vld [vmem:[%s9 + $0x68] sm:$0xff]
    %v7463 = vld [vmem:[%s9 + $0x70] sm:$0xff]
    %v7464 = vld [vmem:[%s9 + $0x78] sm:$0xff]
    %7465 = vmatprep.subr.mxu0 0.0
    %7466 = vmatpush1.msra.mxu0 %v7464
    %7467 = vmatprep.subr.mxu0 0.0
    %7468 = vmatpush1.msra.mxu0 %v7463
    %7469 = vmatprep.subr.mxu0 0.0
    %7470 = vmatpush1.msra.mxu0 %v7462
    %7471 = vmatprep.subr.mxu0 0.0
    %7472 = vmatpush1.msra.mxu0 %v7461
    %7473 = vmatprep.subr.mxu0 0.0
    %7474 = vmatpush1.msra.mxu0 %v7460
    %7475 = vmatprep.subr.mxu0 0.0
    %7476 = vmatpush1.msra.mxu0 %v7459
    %7477 = vmatprep.subr.mxu0 0.0
    %7478 = vmatpush1.msra.mxu0 %v7458
    %7479 = vmatprep.subr.mxu0 0.0
    %7480 = vmatpush1.msra.mxu0 %v7457
    %7481 = vmatprep.subr.mxu0 0.0
    %7482 = vmatpush1.msra.mxu0 %v7456
    %7483 = vmatprep.subr.mxu0 0.0
    %7484 = vmatpush1.msra.mxu0 %v7455
    %7485 = vmatprep.subr.mxu0 0.0
    %7486 = vmatpush1.msra.mxu0 %v7454
    %7487 = vmatprep.subr.mxu0 0.0
    %7488 = vmatpush1.msra.mxu0 %v7453
    %7489 = vmatprep.subr.mxu0 0.0
    %7490 = vmatpush1.msra.mxu0 %v7452
    %7491 = vmatprep.subr.mxu0 0.0
    %7492 = vmatpush1.msra.mxu0 %v7451
    %7493 = vmatprep.subr.mxu0 0.0
    %7494 = vmatpush1.msra.mxu0 %v7450
    %7495 = vmatprep.subr.mxu0 0.0
    %7496 = vmatpush1.msra.mxu0 %v7449
    %7497 = vmatprep.subr.mxu0 0.0
    %7498 = vmatpush2.msra.mxu0 0.0
    %7499 = vmatprep.subr.mxu0 0.0
    %7500 = vmatpush2.msra.mxu0 0.0
    %7501 = vmatprep.subr.mxu0 0.0
    %7502 = vmatpush2.msra.mxu0 0.0
    %7503 = vmatprep.subr.mxu0 0.0
    %7504 = vmatpush2.msra.mxu0 0.0
    %7505 = vmatprep.subr.mxu0 0.0
    %7506 = vmatpush2.msra.mxu0 0.0
    %7507 = vmatprep.subr.mxu0 0.0
    %7508 = vmatpush2.msra.mxu0 0.0
    %7509 = vmatprep.subr.mxu0 0.0
    %7510 = vmatpush2.msra.mxu0 0.0
    %7511 = vmatprep.subr.mxu0 0.0
    %7512 = vmatpush2.msra.mxu0 0.0
    %7513 = vmatprep.subr.mxu0 0.0
    %7514 = vmatpush2.msra.mxu0 0.0
    %7515 = vmatprep.subr.mxu0 0.0
    %7516 = vmatpush2.msra.mxu0 0.0
    %7517 = vmatprep.subr.mxu0 0.0
    %7518 = vmatpush2.msra.mxu0 0.0
    %7519 = vmatprep.subr.mxu0 0.0
    %7520 = vmatpush2.msra.mxu0 0.0
    %7521 = vmatprep.subr.mxu0 0.0
    %7522 = vmatpush2.msra.mxu0 0.0
    %7523 = vmatprep.subr.mxu0 0.0
    %7524 = vmatpush2.msra.mxu0 0.0
    %7525 = vmatprep.subr.mxu0 0.0
    %7526 = vmatpush2.msra.mxu0 0.0
    %7527 = vmatprep.subr.mxu0 0.0
    %7528 = vmatpush2.msra.mxu0 0.0
    %7529 = vmatprep.mubr.f32.mxu0 0.0
    %7530 = vmatmul.mubr.f32.gmra.mxu0 %v7448
    %v7531 = vpop.f32.mrf.mxu0
    %v7532 = vadd.f32 0.0, %v7531
    %v7533 = vpop.f32.mrf.mxu0
    %7534 = vdwg.mxu0
    %v7535 = vadd.f32 %v52, %v7532
    %v7536 = vld [vmem:[%s10] sm:$0x1]
    %v7538 = vlaneseq
    %v7539 = vshrl.u32 %v7538, 7
    %v7540 = vsub.s32 0, %v7539
    %v7541 = vrot.slane %v7536, %v7540
    %v7543 = vadd.f32 %v7535, %v7541
    %7544 = vst.msk [vmem:[%s11] sm:$0xff] %vm155, %v7543
    // Predicated region
    $region50: #{tpu_custom_call.1} parent=1 // pred_check
      _
    $region51: #{tpu_custom_call.1} parent=1 // pred_check_branch
      %7546 = sbr.rel (0) target = $region53
    $region52: #{tpu_custom_call.1} parent=1 // pred_region
      _
    $region53: #{tpu_custom_call.1} parent=1 // pred_fallthru
      _
    // Predicated region
    $region54: #{tpu_custom_call.1} parent=1 // pred_check
      _
    $region55: #{tpu_custom_call.1} parent=1 // pred_check_branch
      %7548 = sbr.rel (0) target = $region57
    $region56: #{tpu_custom_call.1} parent=1 // pred_region
      _
    $region57: #{tpu_custom_call.1} parent=1 // pred_fallthru
      _
    %7549 = vsyncpa [#allocation3], 1

</llo_original>
